<compile_context>
chip_gen: v5e
topology: v5e:2x2
jax: 0.10.0
libtpu: 0.0.40
codegen_flags: <defaults>
</compile_context>

<pallas_src>
import functools

import jax
import jax.numpy as jnp
from jax import lax
from jax.experimental import pallas as pl
from jax.experimental.pallas import tpu as pltpu


# ---------------------------------------------------------------------------
# Kernels
# ---------------------------------------------------------------------------
def _basic_block_kernel_stride1(x_ref, mask_ref, w1_ref, s1_ref, b1_ref,
                                w2_ref, s2_ref, b2_ref, o_ref,
                                hbuf_ref, res_ref, *, H, W):
    """Fused basic block, identity shortcut (both 3x3 convs stride 1)."""
    Wp, Hp = W + 2, H + 2
    M = Hp * Wp                  # rows of the flattened (Hp, Wp) padded grid
    halo_x = 2 * Wp              # zero rows above/below the padded grid inside x_ref
    halo_h = Wp + 1              # max |row shift| of any 3x3 tap on the padded grid
    cout = o_ref.shape[-1]

    # conv1: 3x3 stride-1 pad-1 == 9 row-shifted bf16 matmuls, f32 accumulation on the MXU.
    acc = jnp.zeros((M, cout), jnp.float32)
    for dy in range(3):
        for dx in range(3):
            off = (dy - 1) * Wp + (dx - 1)
            acc = acc + jnp.dot(x_ref[pl.ds(halo_x + off, M), :], w1_ref[dy * 3 + dx],
                                preferred_element_type=jnp.float32)
    # folded BN1 + ReLU (f32 epilogue); the mask zeroes the padded-grid border rows so
    # they act as conv2's zero padding.
    h = jnp.maximum(acc * s1_ref[...] + b1_ref[...], 0.0) * mask_ref[...]

    # Stage h into the haloed scratch.  Only the halo rows are zeroed (the interior is
    # fully overwritten every step).  No program_id gating: megacore-safe.
    zeros_halo = jnp.zeros((halo_h, cout), hbuf_ref.dtype)
    hbuf_ref[pl.ds(0, halo_h), :] = zeros_halo
    hbuf_ref[pl.ds(halo_h + M, halo_h), :] = zeros_halo
    hbuf_ref[pl.ds(halo_h, M), :] = h.astype(hbuf_ref.dtype)

    # conv2: 3x3 stride-1 pad-1 + folded BN2.
    acc2 = jnp.zeros((M, cout), jnp.float32)
    for dy in range(3):
        for dx in range(3):
            off = (dy - 1) * Wp + (dx - 1)
            acc2 = acc2 + jnp.dot(hbuf_ref[pl.ds(halo_h + off, M), :], w2_ref[dy * 3 + dx],
                                  preferred_element_type=jnp.float32)
    res_ref[...] = acc2 * s2_ref[...] + b2_ref[...]

    # identity shortcut + final ReLU; write the unpadded (H, W, C) output directly.
    for y in range(H):
        row = (1 + y) * Wp + 1
        ident = x_ref[pl.ds(halo_x + row, W), :].astype(jnp.float32)
        o_ref[y] = jnp.maximum(ident + res_ref[pl.ds(row, W), :], 0.0).astype(o_ref.dtype)


def _basic_block_kernel_down(x_ref, w1_ref, s1_ref, b1_ref, w2_ref, s2_ref, b2_ref,
                             wd_ref, sd_ref, bd_ref, o_ref,
                             hfull_ref, idfull_ref, hbuf_ref, res_ref, *, H, W):
    """Fused basic block with downscale (conv1 stride 2, 1x1 stride-2 projection)."""
    Wp, Hp = W + 2, H + 2
    M = Hp * Wp
    H2 = (H - 1) // 2 + 1
    W2 = (W - 1) // 2 + 1
    H2p, W2p = H2 + 2, W2 + 2
    M2 = H2p * W2p
    halo_x = 2 * Wp
    halo_h = W2p + 1
    cout = o_ref.shape[-1]

    # conv1 computed as stride-1 over the full padded grid (same 9 shifted bf16 matmuls as
    # the stride-1 kernel); the stride-2 decimation happens below when staging into hbuf.
    # The decimation only reads interior grid positions, so no border mask is needed here.
    acc = jnp.zeros((M, cout), jnp.float32)
    for dy in range(3):
        for dx in range(3):
            off = (dy - 1) * Wp + (dx - 1)
            acc = acc + jnp.dot(x_ref[pl.ds(halo_x + off, M), :], w1_ref[dy * 3 + dx],
                                preferred_element_type=jnp.float32)
    hfull_ref[...] = jnp.maximum(acc * s1_ref[...] + b1_ref[...], 0.0)

    # 1x1 projection shortcut (+ folded BN) over the same grid; decimated at output time.
    idf = jnp.dot(x_ref[pl.ds(halo_x, M), :], wd_ref[...],
                  preferred_element_type=jnp.float32)
    idfull_ref[...] = idf * sd_ref[...] + bd_ref[...]

    # Stage the stride-2-decimated conv1 output into the haloed conv2 scratch.  The whole
    # (small) buffer is zeroed: its padding ring between interior segments is never written.
    hbuf_ref[...] = jnp.zeros_like(hbuf_ref)
    for i in range(H2):
        src = (2 * i + 1) * Wp + 1
        dst = halo_h + (1 + i) * W2p + 1
        hbuf_ref[pl.ds(dst, W2), :] = \
            hfull_ref[pl.ds(src, W2, stride=2), :].astype(hbuf_ref.dtype)

    # conv2: 3x3 stride-1 pad-1 on the downscaled grid + folded BN2.
    acc2 = jnp.zeros((M2, cout), jnp.float32)
    for dy in range(3):
        for dx in range(3):
            off = (dy - 1) * W2p + (dx - 1)
            acc2 = acc2 + jnp.dot(hbuf_ref[pl.ds(halo_h + off, M2), :], w2_ref[dy * 3 + dx],
                                  preferred_element_type=jnp.float32)
    res_ref[...] = acc2 * s2_ref[...] + b2_ref[...]

    # decimated projection shortcut + residual + ReLU; write unpadded (H2, W2, C) output.
    for i in range(H2):
        src = (2 * i + 1) * Wp + 1
        ident = idfull_ref[pl.ds(src, W2, stride=2), :]
        r = res_ref[pl.ds((1 + i) * W2p + 1, W2), :]
        o_ref[i] = jnp.maximum(ident + r, 0.0).astype(o_ref.dtype)


# ---------------------------------------------------------------------------
# Wrapper helpers
# ---------------------------------------------------------------------------
def _fold_bn(gamma, beta, mean, var, eps=1e-5):
    scale = gamma / jnp.sqrt(var + eps)
    bias = beta - mean * scale
    return (scale.reshape(1, -1).astype(jnp.float32),
            bias.reshape(1, -1).astype(jnp.float32))


def _taps(w_oihw):
    """(Cout, Cin, 3, 3) torch-layout conv weight -> (9, Cin, Cout) bf16 tap-major."""
    cout, cin = w_oihw.shape[0], w_oihw.shape[1]
    return jnp.transpose(w_oihw, (2, 3, 1, 0)).reshape(9, cin, cout).astype(jnp.bfloat16)


def _interior_mask(hp, wp):
    m = jnp.zeros((hp, wp), jnp.float32)
    m = m.at[1:hp - 1, 1:wp - 1].set(1.0)
    return m.reshape(hp * wp, 1)


def _pad_flatten(x_nhwc):
    """Single pad providing both the conv zero ring and the shifted-slice halo.

    Pads H by (3,3) and W by (1,1); flattening the (H+6, W+2) grid puts the (Hp, Wp)
    padded conv grid at flat offset 2*Wp with >= Wp+1 zero halo rows on each side.
    """
    xp = jnp.pad(x_nhwc.astype(jnp.bfloat16), ((0, 0), (3, 3), (1, 1), (0, 0)))
    b, ht, wt, c = xp.shape
    return xp.reshape(b, ht * wt, c)


def basic_block_apply(x_nhwc, params, *, downscale=False):
    """NHWC forward pass of _BasicBlock (keep NHWC end-to-end when chaining blocks)."""
    B, H, W, Cin = x_nhwc.shape
    Cout = params["conv1_w"].shape[0]
    Wp, Hp = W + 2, H + 2
    M = Hp * Wp

    w1t = _taps(params["conv1_w"])
    s1, b1 = _fold_bn(*params["bn1"])
    w2t = _taps(params["conv2_w"])
    s2, b2 = _fold_bn(*params["bn2"])

    x2d = _pad_flatten(x_nhwc)                       # (B, (H+6)*Wp, Cin) bf16
    npad = x2d.shape[1]

    # NOTE: with grid=(B,) and tiny B, v7x megacore gets ~1 step per TensorCore so the
    # activation DMA is not hidden; for production batch sizes give each core >=2-3 steps.
    cparams = pltpu.CompilerParams(
        dimension_semantics=("parallel",),
        vmem_limit_bytes=32 * 1024 * 1024)

    if not downscale:
        assert Cin == Cout, "identity shortcut requires in_channels == out_channels"
        mask = _interior_mask(Hp, Wp)
        halo_h = Wp + 1

        flops = B * 9 * 2 * M * (Cin * Cout + Cout * Cout)
        bytes_accessed = (x2d.size * 2 + (w1t.size + w2t.size) * 2 + mask.size * 4
                          + B * H * W * Cout * 4)

        return pl.pallas_call(
            functools.partial(_basic_block_kernel_stride1, H=H, W=W),
            out_shape=jax.ShapeDtypeStruct((B, H, W, Cout), jnp.float32),
            grid=(B,),
            in_specs=[
                pl.BlockSpec((None, npad, Cin), lambda b: (b, 0, 0)),
                pl.BlockSpec((M, 1), lambda b: (0, 0)),
                pl.BlockSpec((9, Cin, Cout), lambda b: (0, 0, 0)),
                pl.BlockSpec((1, Cout), lambda b: (0, 0)),
                pl.BlockSpec((1, Cout), lambda b: (0, 0)),
                pl.BlockSpec((9, Cout, Cout), lambda b: (0, 0, 0)),
                pl.BlockSpec((1, Cout), lambda b: (0, 0)),
                pl.BlockSpec((1, Cout), lambda b: (0, 0)),
            ],
            out_specs=pl.BlockSpec((None, H, W, Cout), lambda b: (b, 0, 0, 0)),
            scratch_shapes=[
                pltpu.VMEM((M + 2 * halo_h, Cout), jnp.bfloat16),   # hbuf (conv2 input)
                pltpu.VMEM((M, Cout), jnp.float32),                 # res (conv2 + BN2)
            ],
            compiler_params=cparams,
            cost_estimate=pl.CostEstimate(flops=flops, transcendentals=0,
                                          bytes_accessed=bytes_accessed),
        )(x2d, mask, w1t, s1, b1, w2t, s2, b2)

    # -------- downscale branch --------
    wdm = jnp.transpose(params["convd_w"][:, :, 0, 0]).astype(jnp.bfloat16)   # (Cin, Cout)
    sd, bd = _fold_bn(*params["bnd"])
    H2 = (H - 1) // 2 + 1
    W2 = (W - 1) // 2 + 1
    H2p, W2p = H2 + 2, W2 + 2
    M2 = H2p * W2p
    halo_h = W2p + 1

    flops = B * (9 * 2 * M * Cin * Cout + 9 * 2 * M2 * Cout * Cout + 2 * M * Cin * Cout)
    bytes_accessed = (x2d.size * 2 + (w1t.size + w2t.size + wdm.size) * 2
                      + B * H2 * W2 * Cout * 4)

    return pl.pallas_call(
        functools.partial(_basic_block_kernel_down, H=H, W=W),
        out_shape=jax.ShapeDtypeStruct((B, H2, W2, Cout), jnp.float32),
        grid=(B,),
        in_specs=[
            pl.BlockSpec((None, npad, Cin), lambda b: (b, 0, 0)),
            pl.BlockSpec((9, Cin, Cout), lambda b: (0, 0, 0)),
            pl.BlockSpec((1, Cout), lambda b: (0, 0)),
            pl.BlockSpec((1, Cout), lambda b: (0, 0)),
            pl.BlockSpec((9, Cout, Cout), lambda b: (0, 0, 0)),
            pl.BlockSpec((1, Cout), lambda b: (0, 0)),
            pl.BlockSpec((1, Cout), lambda b: (0, 0)),
            pl.BlockSpec((Cin, Cout), lambda b: (0, 0)),
            pl.BlockSpec((1, Cout), lambda b: (0, 0)),
            pl.BlockSpec((1, Cout), lambda b: (0, 0)),
        ],
        out_specs=pl.BlockSpec((None, H2, W2, Cout), lambda b: (b, 0, 0, 0)),
        scratch_shapes=[
            pltpu.VMEM((M, Cout), jnp.float32),                    # hfull (conv1, full grid)
            pltpu.VMEM((M, Cout), jnp.float32),                    # idfull (1x1 shortcut)
            pltpu.VMEM((M2 + 2 * halo_h, Cout), jnp.bfloat16),     # hbuf (conv2 input)
            pltpu.VMEM((M2, Cout), jnp.float32),                   # res (conv2 + BN2)
        ],
        compiler_params=cparams,
        cost_estimate=pl.CostEstimate(flops=flops, transcendentals=0,
                                      bytes_accessed=bytes_accessed),
    )(x2d, w1t, s1, b1, w2t, s2, b2, wdm, sd, bd)


def basic_block_forward(x_nchw, params, *, downscale=False):
    """NCHW-in / NCHW-out wrapper matching the PyTorch module interface.

    The NCHW<->NHWC transposes live only at this boundary; chained blocks should call
    basic_block_apply directly and stay NHWC end-to-end.
    """
    x = jnp.transpose(x_nchw, (0, 2, 3, 1))
    out = basic_block_apply(x, params, downscale=downscale)
    return jnp.transpose(out, (0, 3, 1, 2))


# ---------------------------------------------------------------------------
# Parameter init (mirrors nn.Conv2d kaiming-uniform bound; BN stats randomized so the
# fold is actually exercised) and a pure-JAX f32 reference for checking.
# ---------------------------------------------------------------------------
def init_basic_block_params(key, in_channels, out_channels, downscale):
    ks = jax.random.split(key, 6)

    def conv_w(k, cout, cin, ksz):
        fan_in = cin * ksz * ksz
        bound = 1.0 / jnp.sqrt(fan_in)
        return jax.random.uniform(k, (cout, cin, ksz, ksz),
                                  minval=-bound, maxval=bound, dtype=jnp.float32)

    def bn(k, c):
        k1, k2, k3, k4 = jax.random.split(k, 4)
        gamma = jax.random.uniform(k1, (c,), minval=0.5, maxval=1.5, dtype=jnp.float32)
        beta = 0.1 * jax.random.normal(k2, (c,), dtype=jnp.float32)
        mean = 0.1 * jax.random.normal(k3, (c,), dtype=jnp.float32)
        var = jax.random.uniform(k4, (c,), minval=0.5, maxval=1.5, dtype=jnp.float32)
        return (gamma, beta, mean, var)

    params = {
        "conv1_w": conv_w(ks[0], out_channels, in_channels, 3),
        "bn1": bn(ks[1], out_channels),
        "conv2_w": conv_w(ks[2], out_channels, out_channels, 3),
        "bn2": bn(ks[3], out_channels),
    }
    if downscale:
        params["convd_w"] = conv_w(ks[4], out_channels, in_channels, 1)
        params["bnd"] = bn(ks[5], out_channels)
    return params


def _ref_conv_bn(x_nhwc, w_oihw, bn, stride, pad):
    gamma, beta, mean, var = bn
    scale = gamma / jnp.sqrt(var + 1e-5)
    bias = beta - mean * scale
    y = lax.conv_general_dilated(
        x_nhwc, jnp.transpose(w_oihw, (2, 3, 1, 0)),
        window_strides=(stride, stride), padding=((pad, pad), (pad, pad)),
        dimension_numbers=("NHWC", "HWIO", "NHWC"))
    return y * scale.reshape(1, 1, 1, -1) + bias.reshape(1, 1, 1, -1)


def basic_block_reference(x_nchw, params, *, downscale=False):
    x = jnp.transpose(x_nchw, (0, 2, 3, 1))
    stride = 2 if downscale else 1
    ident = _ref_conv_bn(x, params["convd_w"], params["bnd"], 2, 0) if downscale else x
    r = jnp.maximum(_ref_conv_bn(x, params["conv1_w"], params["bn1"], stride, 1), 0.0)
    r = _ref_conv_bn(r, params["conv2_w"], params["bn2"], 1, 1)
    out = jnp.maximum(ident + r, 0.0)
    return jnp.transpose(out, (0, 3, 1, 2))


def _check(y, r, name):
    # bf16 matmul inputs with f32 accumulation -> loosened tolerance vs the f32 reference.
    err = float(jnp.max(jnp.abs(y - r)))
    assert jnp.allclose(y, r, atol=8e-2, rtol=5e-2), (name, err)


if __name__ == "__main__":
    key = jax.random.PRNGKey(0)
    kx1, kp1, kx2, kp2 = jax.random.split(key, 4)

    # Case 1: no downscale (identity shortcut), in_channels == out_channels.
    B, C, H, W = 2, 8, 16, 16
    x1 = jax.random.normal(kx1, (B, C, H, W), dtype=jnp.float32)
    p1 = init_basic_block_params(kp1, C, C, downscale=False)
    y1 = jax.block_until_ready(basic_block_forward(x1, p1, downscale=False))
    r1 = basic_block_reference(x1, p1, downscale=False)
    assert y1.shape == (B, C, H, W)
    _check(y1, r1, "stride1")

    # Case 2: downscale (stride-2 conv1 + 1x1 stride-2 projection shortcut).
    Cin, Cout = 4, 8
    x2 = jax.random.normal(kx2, (B, Cin, H, W), dtype=jnp.float32)
    p2 = init_basic_block_params(kp2, Cin, Cout, downscale=True)
    y2 = jax.block_until_ready(basic_block_forward(x2, p2, downscale=True))
    r2 = basic_block_reference(x2, p2, downscale=True)
    assert y2.shape == (B, Cout, H // 2, W // 2)
    _check(y2, r2, "downscale")

    print("KERNEL_OK")
</pallas_src>

<mosaic_0001>
module attributes {stable_mosaic.version = 11 : i64} {
  func.func @_basic_block_kernel_stride1(%arg0: i32, %arg1: memref<1x396x8xbf16, #tpu.memory_space<vmem>>, %arg2: memref<324x1xf32, #tpu.memory_space<vmem>>, %arg3: memref<9x8x8xbf16, #tpu.memory_space<vmem>>, %arg4: memref<1x8xf32, #tpu.memory_space<vmem>>, %arg5: memref<1x8xf32, #tpu.memory_space<vmem>>, %arg6: memref<9x8x8xbf16, #tpu.memory_space<vmem>>, %arg7: memref<1x8xf32, #tpu.memory_space<vmem>>, %arg8: memref<1x8xf32, #tpu.memory_space<vmem>>, %arg9: memref<1x16x16x8xf32, #tpu.memory_space<vmem>>, %arg10: memref<362x8xbf16, #tpu.memory_space<vmem>>, %arg11: memref<324x8xf32, #tpu.memory_space<vmem>>) attributes {dimension_semantics = [#tpu.dimension_semantics<parallel>], iteration_bounds = array<i64: 2>, scalar_prefetch = 0 : i64, scratch_operands = 2 : i64, tpu.core_type = #tpu.core_type<tc>, window_params = [{transform_indices = @transform_0, window_bounds = array<i64: 1, 396, 8>}, {pipeline_mode = #tpu.pipeline_mode<synchronous>, transform_indices = @transform_1, window_bounds = array<i64: 324, 1>}, {pipeline_mode = #tpu.pipeline_mode<synchronous>, transform_indices = @transform_2, window_bounds = array<i64: 9, 8, 8>}, {pipeline_mode = #tpu.pipeline_mode<synchronous>, transform_indices = @transform_3, window_bounds = array<i64: 1, 8>}, {pipeline_mode = #tpu.pipeline_mode<synchronous>, transform_indices = @transform_4, window_bounds = array<i64: 1, 8>}, {pipeline_mode = #tpu.pipeline_mode<synchronous>, transform_indices = @transform_5, window_bounds = array<i64: 9, 8, 8>}, {pipeline_mode = #tpu.pipeline_mode<synchronous>, transform_indices = @transform_6, window_bounds = array<i64: 1, 8>}, {pipeline_mode = #tpu.pipeline_mode<synchronous>, transform_indices = @transform_7, window_bounds = array<i64: 1, 8>}, {transform_indices = @transform_8, window_bounds = array<i64: 1, 16, 16, 8>}]} {
    %cst = arith.constant 0.000000e+00 : f32
    %0 = vector.broadcast %cst : f32 to vector<324x8xf32>
    %c0 = arith.constant 0 : index
    %c17 = arith.constant 17 : index
    %c0_0 = arith.constant 0 : index
    %1 = vector.load %arg1[%c0, %c17, %c0_0] : memref<1x396x8xbf16, #tpu.memory_space<vmem>>, vector<1x324x8xbf16>
    %2 = vector.shape_cast %1 : vector<1x324x8xbf16> to vector<324x8xbf16>
    %c0_1 = arith.constant 0 : index
    %c0_2 = arith.constant 0 : index
    %c0_3 = arith.constant 0 : index
    %3 = vector.load %arg3[%c0_1, %c0_2, %c0_3] : memref<9x8x8xbf16, #tpu.memory_space<vmem>>, vector<1x8x8xbf16>
    %4 = vector.shape_cast %3 : vector<1x8x8xbf16> to vector<8x8xbf16>
    %cst_4 = arith.constant dense<0.000000e+00> : vector<324x8xf32>
    %5 = tpu.matmul %2, %4, %cst_4 {dimension_numbers = #tpu.dot_dimension_numbers<[1], [0], [0], [1], [0, 0, 1, 1], [], []>} : vector<324x8xbf16>, vector<8x8xbf16>, vector<324x8xf32> -> vector<324x8xf32>
    %6 = arith.addf %0, %5 : vector<324x8xf32>
    %c0_5 = arith.constant 0 : index
    %c18 = arith.constant 18 : index
    %c0_6 = arith.constant 0 : index
    %7 = vector.load %arg1[%c0_5, %c18, %c0_6] : memref<1x396x8xbf16, #tpu.memory_space<vmem>>, vector<1x324x8xbf16>
    %8 = vector.shape_cast %7 : vector<1x324x8xbf16> to vector<324x8xbf16>
    %c1 = arith.constant 1 : index
    %c0_7 = arith.constant 0 : index
    %c0_8 = arith.constant 0 : index
    %9 = vector.load %arg3[%c1, %c0_7, %c0_8] : memref<9x8x8xbf16, #tpu.memory_space<vmem>>, vector<1x8x8xbf16>
    %10 = vector.shape_cast %9 : vector<1x8x8xbf16> to vector<8x8xbf16>
    %cst_9 = arith.constant dense<0.000000e+00> : vector<324x8xf32>
    %11 = tpu.matmul %8, %10, %cst_9 {dimension_numbers = #tpu.dot_dimension_numbers<[1], [0], [0], [1], [0, 0, 1, 1], [], []>} : vector<324x8xbf16>, vector<8x8xbf16>, vector<324x8xf32> -> vector<324x8xf32>
    %12 = arith.addf %6, %11 : vector<324x8xf32>
    %c0_10 = arith.constant 0 : index
    %c19 = arith.constant 19 : index
    %c0_11 = arith.constant 0 : index
    %13 = vector.load %arg1[%c0_10, %c19, %c0_11] : memref<1x396x8xbf16, #tpu.memory_space<vmem>>, vector<1x324x8xbf16>
    %14 = vector.shape_cast %13 : vector<1x324x8xbf16> to vector<324x8xbf16>
    %c2 = arith.constant 2 : index
    %c0_12 = arith.constant 0 : index
    %c0_13 = arith.constant 0 : index
    %15 = vector.load %arg3[%c2, %c0_12, %c0_13] : memref<9x8x8xbf16, #tpu.memory_space<vmem>>, vector<1x8x8xbf16>
    %16 = vector.shape_cast %15 : vector<1x8x8xbf16> to vector<8x8xbf16>
    %cst_14 = arith.constant dense<0.000000e+00> : vector<324x8xf32>
    %17 = tpu.matmul %14, %16, %cst_14 {dimension_numbers = #tpu.dot_dimension_numbers<[1], [0], [0], [1], [0, 0, 1, 1], [], []>} : vector<324x8xbf16>, vector<8x8xbf16>, vector<324x8xf32> -> vector<324x8xf32>
    %18 = arith.addf %12, %17 : vector<324x8xf32>
    %c0_15 = arith.constant 0 : index
    %c35 = arith.constant 35 : index
    %c0_16 = arith.constant 0 : index
    %19 = vector.load %arg1[%c0_15, %c35, %c0_16] : memref<1x396x8xbf16, #tpu.memory_space<vmem>>, vector<1x324x8xbf16>
    %20 = vector.shape_cast %19 : vector<1x324x8xbf16> to vector<324x8xbf16>
    %c3 = arith.constant 3 : index
    %c0_17 = arith.constant 0 : index
    %c0_18 = arith.constant 0 : index
    %21 = vector.load %arg3[%c3, %c0_17, %c0_18] : memref<9x8x8xbf16, #tpu.memory_space<vmem>>, vector<1x8x8xbf16>
    %22 = vector.shape_cast %21 : vector<1x8x8xbf16> to vector<8x8xbf16>
    %cst_19 = arith.constant dense<0.000000e+00> : vector<324x8xf32>
    %23 = tpu.matmul %20, %22, %cst_19 {dimension_numbers = #tpu.dot_dimension_numbers<[1], [0], [0], [1], [0, 0, 1, 1], [], []>} : vector<324x8xbf16>, vector<8x8xbf16>, vector<324x8xf32> -> vector<324x8xf32>
    %24 = arith.addf %18, %23 : vector<324x8xf32>
    %c0_20 = arith.constant 0 : index
    %c36 = arith.constant 36 : index
    %c0_21 = arith.constant 0 : index
    %25 = vector.load %arg1[%c0_20, %c36, %c0_21] : memref<1x396x8xbf16, #tpu.memory_space<vmem>>, vector<1x324x8xbf16>
    %26 = vector.shape_cast %25 : vector<1x324x8xbf16> to vector<324x8xbf16>
    %c4 = arith.constant 4 : index
    %c0_22 = arith.constant 0 : index
    %c0_23 = arith.constant 0 : index
    %27 = vector.load %arg3[%c4, %c0_22, %c0_23] : memref<9x8x8xbf16, #tpu.memory_space<vmem>>, vector<1x8x8xbf16>
    %28 = vector.shape_cast %27 : vector<1x8x8xbf16> to vector<8x8xbf16>
    %cst_24 = arith.constant dense<0.000000e+00> : vector<324x8xf32>
    %29 = tpu.matmul %26, %28, %cst_24 {dimension_numbers = #tpu.dot_dimension_numbers<[1], [0], [0], [1], [0, 0, 1, 1], [], []>} : vector<324x8xbf16>, vector<8x8xbf16>, vector<324x8xf32> -> vector<324x8xf32>
    %30 = arith.addf %24, %29 : vector<324x8xf32>
    %c0_25 = arith.constant 0 : index
    %c37 = arith.constant 37 : index
    %c0_26 = arith.constant 0 : index
    %31 = vector.load %arg1[%c0_25, %c37, %c0_26] : memref<1x396x8xbf16, #tpu.memory_space<vmem>>, vector<1x324x8xbf16>
    %32 = vector.shape_cast %31 : vector<1x324x8xbf16> to vector<324x8xbf16>
    %c5 = arith.constant 5 : index
    %c0_27 = arith.constant 0 : index
    %c0_28 = arith.constant 0 : index
    %33 = vector.load %arg3[%c5, %c0_27, %c0_28] : memref<9x8x8xbf16, #tpu.memory_space<vmem>>, vector<1x8x8xbf16>
    %34 = vector.shape_cast %33 : vector<1x8x8xbf16> to vector<8x8xbf16>
    %cst_29 = arith.constant dense<0.000000e+00> : vector<324x8xf32>
    %35 = tpu.matmul %32, %34, %cst_29 {dimension_numbers = #tpu.dot_dimension_numbers<[1], [0], [0], [1], [0, 0, 1, 1], [], []>} : vector<324x8xbf16>, vector<8x8xbf16>, vector<324x8xf32> -> vector<324x8xf32>
    %36 = arith.addf %30, %35 : vector<324x8xf32>
    %c0_30 = arith.constant 0 : index
    %c53 = arith.constant 53 : index
    %c0_31 = arith.constant 0 : index
    %37 = vector.load %arg1[%c0_30, %c53, %c0_31] : memref<1x396x8xbf16, #tpu.memory_space<vmem>>, vector<1x324x8xbf16>
    %38 = vector.shape_cast %37 : vector<1x324x8xbf16> to vector<324x8xbf16>
    %c6 = arith.constant 6 : index
    %c0_32 = arith.constant 0 : index
    %c0_33 = arith.constant 0 : index
    %39 = vector.load %arg3[%c6, %c0_32, %c0_33] : memref<9x8x8xbf16, #tpu.memory_space<vmem>>, vector<1x8x8xbf16>
    %40 = vector.shape_cast %39 : vector<1x8x8xbf16> to vector<8x8xbf16>
    %cst_34 = arith.constant dense<0.000000e+00> : vector<324x8xf32>
    %41 = tpu.matmul %38, %40, %cst_34 {dimension_numbers = #tpu.dot_dimension_numbers<[1], [0], [0], [1], [0, 0, 1, 1], [], []>} : vector<324x8xbf16>, vector<8x8xbf16>, vector<324x8xf32> -> vector<324x8xf32>
    %42 = arith.addf %36, %41 : vector<324x8xf32>
    %c0_35 = arith.constant 0 : index
    %c54 = arith.constant 54 : index
    %c0_36 = arith.constant 0 : index
    %43 = vector.load %arg1[%c0_35, %c54, %c0_36] : memref<1x396x8xbf16, #tpu.memory_space<vmem>>, vector<1x324x8xbf16>
    %44 = vector.shape_cast %43 : vector<1x324x8xbf16> to vector<324x8xbf16>
    %c7 = arith.constant 7 : index
    %c0_37 = arith.constant 0 : index
    %c0_38 = arith.constant 0 : index
    %45 = vector.load %arg3[%c7, %c0_37, %c0_38] : memref<9x8x8xbf16, #tpu.memory_space<vmem>>, vector<1x8x8xbf16>
    %46 = vector.shape_cast %45 : vector<1x8x8xbf16> to vector<8x8xbf16>
    %cst_39 = arith.constant dense<0.000000e+00> : vector<324x8xf32>
    %47 = tpu.matmul %44, %46, %cst_39 {dimension_numbers = #tpu.dot_dimension_numbers<[1], [0], [0], [1], [0, 0, 1, 1], [], []>} : vector<324x8xbf16>, vector<8x8xbf16>, vector<324x8xf32> -> vector<324x8xf32>
    %48 = arith.addf %42, %47 : vector<324x8xf32>
    %c0_40 = arith.constant 0 : index
    %c55 = arith.constant 55 : index
    %c0_41 = arith.constant 0 : index
    %49 = vector.load %arg1[%c0_40, %c55, %c0_41] : memref<1x396x8xbf16, #tpu.memory_space<vmem>>, vector<1x324x8xbf16>
    %50 = vector.shape_cast %49 : vector<1x324x8xbf16> to vector<324x8xbf16>
    %c8 = arith.constant 8 : index
    %c0_42 = arith.constant 0 : index
    %c0_43 = arith.constant 0 : index
    %51 = vector.load %arg3[%c8, %c0_42, %c0_43] : memref<9x8x8xbf16, #tpu.memory_space<vmem>>, vector<1x8x8xbf16>
    %52 = vector.shape_cast %51 : vector<1x8x8xbf16> to vector<8x8xbf16>
    %cst_44 = arith.constant dense<0.000000e+00> : vector<324x8xf32>
    %53 = tpu.matmul %50, %52, %cst_44 {dimension_numbers = #tpu.dot_dimension_numbers<[1], [0], [0], [1], [0, 0, 1, 1], [], []>} : vector<324x8xbf16>, vector<8x8xbf16>, vector<324x8xf32> -> vector<324x8xf32>
    %54 = arith.addf %48, %53 : vector<324x8xf32>
    %c0_45 = arith.constant 0 : index
    %c0_46 = arith.constant 0 : index
    %55 = vector.load %arg4[%c0_45, %c0_46] : memref<1x8xf32, #tpu.memory_space<vmem>>, vector<1x8xf32>
    %56 = vector.broadcast %55 : vector<1x8xf32> to vector<324x8xf32>
    %57 = arith.mulf %54, %56 : vector<324x8xf32>
    %c0_47 = arith.constant 0 : index
    %c0_48 = arith.constant 0 : index
    %58 = vector.load %arg5[%c0_47, %c0_48] : memref<1x8xf32, #tpu.memory_space<vmem>>, vector<1x8xf32>
    %59 = vector.broadcast %58 : vector<1x8xf32> to vector<324x8xf32>
    %60 = arith.addf %57, %59 : vector<324x8xf32>
    %cst_49 = arith.constant 0.000000e+00 : f32
    %61 = vector.broadcast %cst_49 : f32 to vector<324x8xf32>
    %62 = arith.maximumf %60, %61 : vector<324x8xf32>
    %c0_50 = arith.constant 0 : index
    %c0_51 = arith.constant 0 : index
    %63 = vector.load %arg2[%c0_50, %c0_51] : memref<324x1xf32, #tpu.memory_space<vmem>>, vector<324x1xf32>
    %64 = vector.broadcast %63 : vector<324x1xf32> to vector<324x8xf32>
    %65 = arith.mulf %62, %64 : vector<324x8xf32>
    %cst_52 = arith.constant 0.000000e+00 : bf16
    %66 = vector.broadcast %cst_52 : bf16 to vector<19x8xbf16>
    %c0_53 = arith.constant 0 : index
    %c0_54 = arith.constant 0 : index
    %67 = vector.load %arg10[%c0_53, %c0_54] : memref<362x8xbf16, #tpu.memory_space<vmem>>, vector<19x8xbf16>
    tpu.vector_store %arg10[%c0_53, %c0_54], %66 {strides = array<i32>} : memref<362x8xbf16, #tpu.memory_space<vmem>>, vector<19x8xbf16>,
    %c343 = arith.constant 343 : index
    %c0_55 = arith.constant 0 : index
    %68 = vector.load %arg10[%c343, %c0_55] : memref<362x8xbf16, #tpu.memory_space<vmem>>, vector<19x8xbf16>
    tpu.vector_store %arg10[%c343, %c0_55], %66 {strides = array<i32>} : memref<362x8xbf16, #tpu.memory_space<vmem>>, vector<19x8xbf16>,
    %69 = arith.truncf %65 : vector<324x8xf32> to vector<324x8xbf16>
    %c19_56 = arith.constant 19 : index
    %c0_57 = arith.constant 0 : index
    %70 = vector.load %arg10[%c19_56, %c0_57] : memref<362x8xbf16, #tpu.memory_space<vmem>>, vector<324x8xbf16>
    tpu.vector_store %arg10[%c19_56, %c0_57], %69 {strides = array<i32>} : memref<362x8xbf16, #tpu.memory_space<vmem>>, vector<324x8xbf16>,
    %cst_58 = arith.constant 0.000000e+00 : f32
    %71 = vector.broadcast %cst_58 : f32 to vector<324x8xf32>
    %c0_59 = arith.constant 0 : index
    %c0_60 = arith.constant 0 : index
    %72 = vector.load %arg10[%c0_59, %c0_60] : memref<362x8xbf16, #tpu.memory_space<vmem>>, vector<324x8xbf16>
    %c0_61 = arith.constant 0 : index
    %c0_62 = arith.constant 0 : index
    %c0_63 = arith.constant 0 : index
    %73 = vector.load %arg6[%c0_61, %c0_62, %c0_63] : memref<9x8x8xbf16, #tpu.memory_space<vmem>>, vector<1x8x8xbf16>
    %74 = vector.shape_cast %73 : vector<1x8x8xbf16> to vector<8x8xbf16>
    %cst_64 = arith.constant dense<0.000000e+00> : vector<324x8xf32>
    %75 = tpu.matmul %72, %74, %cst_64 {dimension_numbers = #tpu.dot_dimension_numbers<[1], [0], [0], [1], [0, 0, 1, 1], [], []>} : vector<324x8xbf16>, vector<8x8xbf16>, vector<324x8xf32> -> vector<324x8xf32>
    %76 = arith.addf %71, %75 : vector<324x8xf32>
    %c1_65 = arith.constant 1 : index
    %c0_66 = arith.constant 0 : index
    %77 = vector.load %arg10[%c1_65, %c0_66] : memref<362x8xbf16, #tpu.memory_space<vmem>>, vector<324x8xbf16>
    %c1_67 = arith.constant 1 : index
    %c0_68 = arith.constant 0 : index
    %c0_69 = arith.constant 0 : index
    %78 = vector.load %arg6[%c1_67, %c0_68, %c0_69] : memref<9x8x8xbf16, #tpu.memory_space<vmem>>, vector<1x8x8xbf16>
    %79 = vector.shape_cast %78 : vector<1x8x8xbf16> to vector<8x8xbf16>
    %cst_70 = arith.constant dense<0.000000e+00> : vector<324x8xf32>
    %80 = tpu.matmul %77, %79, %cst_70 {dimension_numbers = #tpu.dot_dimension_numbers<[1], [0], [0], [1], [0, 0, 1, 1], [], []>} : vector<324x8xbf16>, vector<8x8xbf16>, vector<324x8xf32> -> vector<324x8xf32>
    %81 = arith.addf %76, %80 : vector<324x8xf32>
    %c2_71 = arith.constant 2 : index
    %c0_72 = arith.constant 0 : index
    %82 = vector.load %arg10[%c2_71, %c0_72] : memref<362x8xbf16, #tpu.memory_space<vmem>>, vector<324x8xbf16>
    %c2_73 = arith.constant 2 : index
    %c0_74 = arith.constant 0 : index
    %c0_75 = arith.constant 0 : index
    %83 = vector.load %arg6[%c2_73, %c0_74, %c0_75] : memref<9x8x8xbf16, #tpu.memory_space<vmem>>, vector<1x8x8xbf16>
    %84 = vector.shape_cast %83 : vector<1x8x8xbf16> to vector<8x8xbf16>
    %cst_76 = arith.constant dense<0.000000e+00> : vector<324x8xf32>
    %85 = tpu.matmul %82, %84, %cst_76 {dimension_numbers = #tpu.dot_dimension_numbers<[1], [0], [0], [1], [0, 0, 1, 1], [], []>} : vector<324x8xbf16>, vector<8x8xbf16>, vector<324x8xf32> -> vector<324x8xf32>
    %86 = arith.addf %81, %85 : vector<324x8xf32>
    %c18_77 = arith.constant 18 : index
    %c0_78 = arith.constant 0 : index
    %87 = vector.load %arg10[%c18_77, %c0_78] : memref<362x8xbf16, #tpu.memory_space<vmem>>, vector<324x8xbf16>
    %c3_79 = arith.constant 3 : index
    %c0_80 = arith.constant 0 : index
    %c0_81 = arith.constant 0 : index
    %88 = vector.load %arg6[%c3_79, %c0_80, %c0_81] : memref<9x8x8xbf16, #tpu.memory_space<vmem>>, vector<1x8x8xbf16>
    %89 = vector.shape_cast %88 : vector<1x8x8xbf16> to vector<8x8xbf16>
    %cst_82 = arith.constant dense<0.000000e+00> : vector<324x8xf32>
    %90 = tpu.matmul %87, %89, %cst_82 {dimension_numbers = #tpu.dot_dimension_numbers<[1], [0], [0], [1], [0, 0, 1, 1], [], []>} : vector<324x8xbf16>, vector<8x8xbf16>, vector<324x8xf32> -> vector<324x8xf32>
    %91 = arith.addf %86, %90 : vector<324x8xf32>
    %c19_83 = arith.constant 19 : index
    %c0_84 = arith.constant 0 : index
    %92 = vector.load %arg10[%c19_83, %c0_84] : memref<362x8xbf16, #tpu.memory_space<vmem>>, vector<324x8xbf16>
    %c4_85 = arith.constant 4 : index
    %c0_86 = arith.constant 0 : index
    %c0_87 = arith.constant 0 : index
    %93 = vector.load %arg6[%c4_85, %c0_86, %c0_87] : memref<9x8x8xbf16, #tpu.memory_space<vmem>>, vector<1x8x8xbf16>
    %94 = vector.shape_cast %93 : vector<1x8x8xbf16> to vector<8x8xbf16>
    %cst_88 = arith.constant dense<0.000000e+00> : vector<324x8xf32>
    %95 = tpu.matmul %92, %94, %cst_88 {dimension_numbers = #tpu.dot_dimension_numbers<[1], [0], [0], [1], [0, 0, 1, 1], [], []>} : vector<324x8xbf16>, vector<8x8xbf16>, vector<324x8xf32> -> vector<324x8xf32>
    %96 = arith.addf %91, %95 : vector<324x8xf32>
    %c20 = arith.constant 20 : index
    %c0_89 = arith.constant 0 : index
    %97 = vector.load %arg10[%c20, %c0_89] : memref<362x8xbf16, #tpu.memory_space<vmem>>, vector<324x8xbf16>
    %c5_90 = arith.constant 5 : index
    %c0_91 = arith.constant 0 : index
    %c0_92 = arith.constant 0 : index
    %98 = vector.load %arg6[%c5_90, %c0_91, %c0_92] : memref<9x8x8xbf16, #tpu.memory_space<vmem>>, vector<1x8x8xbf16>
    %99 = vector.shape_cast %98 : vector<1x8x8xbf16> to vector<8x8xbf16>
    %cst_93 = arith.constant dense<0.000000e+00> : vector<324x8xf32>
    %100 = tpu.matmul %97, %99, %cst_93 {dimension_numbers = #tpu.dot_dimension_numbers<[1], [0], [0], [1], [0, 0, 1, 1], [], []>} : vector<324x8xbf16>, vector<8x8xbf16>, vector<324x8xf32> -> vector<324x8xf32>
    %101 = arith.addf %96, %100 : vector<324x8xf32>
    %c36_94 = arith.constant 36 : index
    %c0_95 = arith.constant 0 : index
    %102 = vector.load %arg10[%c36_94, %c0_95] : memref<362x8xbf16, #tpu.memory_space<vmem>>, vector<324x8xbf16>
    %c6_96 = arith.constant 6 : index
    %c0_97 = arith.constant 0 : index
    %c0_98 = arith.constant 0 : index
    %103 = vector.load %arg6[%c6_96, %c0_97, %c0_98] : memref<9x8x8xbf16, #tpu.memory_space<vmem>>, vector<1x8x8xbf16>
    %104 = vector.shape_cast %103 : vector<1x8x8xbf16> to vector<8x8xbf16>
    %cst_99 = arith.constant dense<0.000000e+00> : vector<324x8xf32>
    %105 = tpu.matmul %102, %104, %cst_99 {dimension_numbers = #tpu.dot_dimension_numbers<[1], [0], [0], [1], [0, 0, 1, 1], [], []>} : vector<324x8xbf16>, vector<8x8xbf16>, vector<324x8xf32> -> vector<324x8xf32>
    %106 = arith.addf %101, %105 : vector<324x8xf32>
    %c37_100 = arith.constant 37 : index
    %c0_101 = arith.constant 0 : index
    %107 = vector.load %arg10[%c37_100, %c0_101] : memref<362x8xbf16, #tpu.memory_space<vmem>>, vector<324x8xbf16>
    %c7_102 = arith.constant 7 : index
    %c0_103 = arith.constant 0 : index
    %c0_104 = arith.constant 0 : index
    %108 = vector.load %arg6[%c7_102, %c0_103, %c0_104] : memref<9x8x8xbf16, #tpu.memory_space<vmem>>, vector<1x8x8xbf16>
    %109 = vector.shape_cast %108 : vector<1x8x8xbf16> to vector<8x8xbf16>
    %cst_105 = arith.constant dense<0.000000e+00> : vector<324x8xf32>
    %110 = tpu.matmul %107, %109, %cst_105 {dimension_numbers = #tpu.dot_dimension_numbers<[1], [0], [0], [1], [0, 0, 1, 1], [], []>} : vector<324x8xbf16>, vector<8x8xbf16>, vector<324x8xf32> -> vector<324x8xf32>
    %111 = arith.addf %106, %110 : vector<324x8xf32>
    %c38 = arith.constant 38 : index
    %c0_106 = arith.constant 0 : index
    %112 = vector.load %arg10[%c38, %c0_106] : memref<362x8xbf16, #tpu.memory_space<vmem>>, vector<324x8xbf16>
    %c8_107 = arith.constant 8 : index
    %c0_108 = arith.constant 0 : index
    %c0_109 = arith.constant 0 : index
    %113 = vector.load %arg6[%c8_107, %c0_108, %c0_109] : memref<9x8x8xbf16, #tpu.memory_space<vmem>>, vector<1x8x8xbf16>
    %114 = vector.shape_cast %113 : vector<1x8x8xbf16> to vector<8x8xbf16>
    %cst_110 = arith.constant dense<0.000000e+00> : vector<324x8xf32>
    %115 = tpu.matmul %112, %114, %cst_110 {dimension_numbers = #tpu.dot_dimension_numbers<[1], [0], [0], [1], [0, 0, 1, 1], [], []>} : vector<324x8xbf16>, vector<8x8xbf16>, vector<324x8xf32> -> vector<324x8xf32>
    %116 = arith.addf %111, %115 : vector<324x8xf32>
    %c0_111 = arith.constant 0 : index
    %c0_112 = arith.constant 0 : index
    %117 = vector.load %arg7[%c0_111, %c0_112] : memref<1x8xf32, #tpu.memory_space<vmem>>, vector<1x8xf32>
    %118 = vector.broadcast %117 : vector<1x8xf32> to vector<324x8xf32>
    %119 = arith.mulf %116, %118 : vector<324x8xf32>
    %c0_113 = arith.constant 0 : index
    %c0_114 = arith.constant 0 : index
    %120 = vector.load %arg8[%c0_113, %c0_114] : memref<1x8xf32, #tpu.memory_space<vmem>>, vector<1x8xf32>
    %121 = vector.broadcast %120 : vector<1x8xf32> to vector<324x8xf32>
    %122 = arith.addf %119, %121 : vector<324x8xf32>
    %c0_115 = arith.constant 0 : index
    %c0_116 = arith.constant 0 : index
    %123 = vector.load %arg11[%c0_115, %c0_116] : memref<324x8xf32, #tpu.memory_space<vmem>>, vector<324x8xf32>
    tpu.vector_store %arg11[%c0_115, %c0_116], %122 {strides = array<i32>} : memref<324x8xf32, #tpu.memory_space<vmem>>, vector<324x8xf32>,
    %c0_117 = arith.constant 0 : index
    %c55_118 = arith.constant 55 : index
    %c0_119 = arith.constant 0 : index
    %124 = vector.load %arg1[%c0_117, %c55_118, %c0_119] : memref<1x396x8xbf16, #tpu.memory_space<vmem>>, vector<1x16x8xbf16>
    %125 = vector.shape_cast %124 : vector<1x16x8xbf16> to vector<16x8xbf16>
    %126 = arith.extf %125 : vector<16x8xbf16> to vector<16x8xf32>
    %c19_120 = arith.constant 19 : index
    %c0_121 = arith.constant 0 : index
    %127 = vector.load %arg11[%c19_120, %c0_121] : memref<324x8xf32, #tpu.memory_space<vmem>>, vector<16x8xf32>
    %128 = arith.addf %126, %127 : vector<16x8xf32>
    %cst_122 = arith.constant 0.000000e+00 : f32
    %129 = vector.broadcast %cst_122 : f32 to vector<16x8xf32>
    %130 = arith.maximumf %128, %129 : vector<16x8xf32>
    %c0_123 = arith.constant 0 : index
    %c0_124 = arith.constant 0 : index
    %c0_125 = arith.constant 0 : index
    %c0_126 = arith.constant 0 : index
    %131 = vector.load %arg9[%c0_123, %c0_124, %c0_125, %c0_126] : memref<1x16x16x8xf32, #tpu.memory_space<vmem>>, vector<1x1x16x8xf32>
    %132 = vector.shape_cast %131 : vector<1x1x16x8xf32> to vector<16x8xf32>
    %133 = vector.shape_cast %130 : vector<16x8xf32> to vector<1x1x16x8xf32>
    tpu.vector_store %arg9[%c0_123, %c0_124, %c0_125, %c0_126], %133 {strides = array<i32>} : memref<1x16x16x8xf32, #tpu.memory_space<vmem>>, vector<1x1x16x8xf32>,
    %c0_127 = arith.constant 0 : index
    %c73 = arith.constant 73 : index
    %c0_128 = arith.constant 0 : index
    %134 = vector.load %arg1[%c0_127, %c73, %c0_128] : memref<1x396x8xbf16, #tpu.memory_space<vmem>>, vector<1x16x8xbf16>
    %135 = vector.shape_cast %134 : vector<1x16x8xbf16> to vector<16x8xbf16>
    %136 = arith.extf %135 : vector<16x8xbf16> to vector<16x8xf32>
    %c37_129 = arith.constant 37 : index
    %c0_130 = arith.constant 0 : index
    %137 = vector.load %arg11[%c37_129, %c0_130] : memref<324x8xf32, #tpu.memory_space<vmem>>, vector<16x8xf32>
    %138 = arith.addf %136, %137 : vector<16x8xf32>
    %cst_131 = arith.constant 0.000000e+00 : f32
    %139 = vector.broadcast %cst_131 : f32 to vector<16x8xf32>
    %140 = arith.maximumf %138, %139 : vector<16x8xf32>
    %c0_132 = arith.constant 0 : index
    %c1_133 = arith.constant 1 : index
    %c0_134 = arith.constant 0 : index
    %c0_135 = arith.constant 0 : index
    %141 = vector.load %arg9[%c0_132, %c1_133, %c0_134, %c0_135] : memref<1x16x16x8xf32, #tpu.memory_space<vmem>>, vector<1x1x16x8xf32>
    %142 = vector.shape_cast %141 : vector<1x1x16x8xf32> to vector<16x8xf32>
    %143 = vector.shape_cast %140 : vector<16x8xf32> to vector<1x1x16x8xf32>
    tpu.vector_store %arg9[%c0_132, %c1_133, %c0_134, %c0_135], %143 {strides = array<i32>} : memref<1x16x16x8xf32, #tpu.memory_space<vmem>>, vector<1x1x16x8xf32>,
    %c0_136 = arith.constant 0 : index
    %c91 = arith.constant 91 : index
    %c0_137 = arith.constant 0 : index
    %144 = vector.load %arg1[%c0_136, %c91, %c0_137] : memref<1x396x8xbf16, #tpu.memory_space<vmem>>, vector<1x16x8xbf16>
    %145 = vector.shape_cast %144 : vector<1x16x8xbf16> to vector<16x8xbf16>
    %146 = arith.extf %145 : vector<16x8xbf16> to vector<16x8xf32>
    %c55_138 = arith.constant 55 : index
    %c0_139 = arith.constant 0 : index
    %147 = vector.load %arg11[%c55_138, %c0_139] : memref<324x8xf32, #tpu.memory_space<vmem>>, vector<16x8xf32>
    %148 = arith.addf %146, %147 : vector<16x8xf32>
    %cst_140 = arith.constant 0.000000e+00 : f32
    %149 = vector.broadcast %cst_140 : f32 to vector<16x8xf32>
    %150 = arith.maximumf %148, %149 : vector<16x8xf32>
    %c0_141 = arith.constant 0 : index
    %c2_142 = arith.constant 2 : index
    %c0_143 = arith.constant 0 : index
    %c0_144 = arith.constant 0 : index
    %151 = vector.load %arg9[%c0_141, %c2_142, %c0_143, %c0_144] : memref<1x16x16x8xf32, #tpu.memory_space<vmem>>, vector<1x1x16x8xf32>
    %152 = vector.shape_cast %151 : vector<1x1x16x8xf32> to vector<16x8xf32>
    %153 = vector.shape_cast %150 : vector<16x8xf32> to vector<1x1x16x8xf32>
    tpu.vector_store %arg9[%c0_141, %c2_142, %c0_143, %c0_144], %153 {strides = array<i32>} : memref<1x16x16x8xf32, #tpu.memory_space<vmem>>, vector<1x1x16x8xf32>,
    %c0_145 = arith.constant 0 : index
    %c109 = arith.constant 109 : index
    %c0_146 = arith.constant 0 : index
    %154 = vector.load %arg1[%c0_145, %c109, %c0_146] : memref<1x396x8xbf16, #tpu.memory_space<vmem>>, vector<1x16x8xbf16>
    %155 = vector.shape_cast %154 : vector<1x16x8xbf16> to vector<16x8xbf16>
    %156 = arith.extf %155 : vector<16x8xbf16> to vector<16x8xf32>
    %c73_147 = arith.constant 73 : index
    %c0_148 = arith.constant 0 : index
    %157 = vector.load %arg11[%c73_147, %c0_148] : memref<324x8xf32, #tpu.memory_space<vmem>>, vector<16x8xf32>
    %158 = arith.addf %156, %157 : vector<16x8xf32>
    %cst_149 = arith.constant 0.000000e+00 : f32
    %159 = vector.broadcast %cst_149 : f32 to vector<16x8xf32>
    %160 = arith.maximumf %158, %159 : vector<16x8xf32>
    %c0_150 = arith.constant 0 : index
    %c3_151 = arith.constant 3 : index
    %c0_152 = arith.constant 0 : index
    %c0_153 = arith.constant 0 : index
    %161 = vector.load %arg9[%c0_150, %c3_151, %c0_152, %c0_153] : memref<1x16x16x8xf32, #tpu.memory_space<vmem>>, vector<1x1x16x8xf32>
    %162 = vector.shape_cast %161 : vector<1x1x16x8xf32> to vector<16x8xf32>
    %163 = vector.shape_cast %160 : vector<16x8xf32> to vector<1x1x16x8xf32>
    tpu.vector_store %arg9[%c0_150, %c3_151, %c0_152, %c0_153], %163 {strides = array<i32>} : memref<1x16x16x8xf32, #tpu.memory_space<vmem>>, vector<1x1x16x8xf32>,
    %c0_154 = arith.constant 0 : index
    %c127 = arith.constant 127 : index
    %c0_155 = arith.constant 0 : index
    %164 = vector.load %arg1[%c0_154, %c127, %c0_155] : memref<1x396x8xbf16, #tpu.memory_space<vmem>>, vector<1x16x8xbf16>
    %165 = vector.shape_cast %164 : vector<1x16x8xbf16> to vector<16x8xbf16>
    %166 = arith.extf %165 : vector<16x8xbf16> to vector<16x8xf32>
    %c91_156 = arith.constant 91 : index
    %c0_157 = arith.constant 0 : index
    %167 = vector.load %arg11[%c91_156, %c0_157] : memref<324x8xf32, #tpu.memory_space<vmem>>, vector<16x8xf32>
    %168 = arith.addf %166, %167 : vector<16x8xf32>
    %cst_158 = arith.constant 0.000000e+00 : f32
    %169 = vector.broadcast %cst_158 : f32 to vector<16x8xf32>
    %170 = arith.maximumf %168, %169 : vector<16x8xf32>
    %c0_159 = arith.constant 0 : index
    %c4_160 = arith.constant 4 : index
    %c0_161 = arith.constant 0 : index
    %c0_162 = arith.constant 0 : index
    %171 = vector.load %arg9[%c0_159, %c4_160, %c0_161, %c0_162] : memref<1x16x16x8xf32, #tpu.memory_space<vmem>>, vector<1x1x16x8xf32>
    %172 = vector.shape_cast %171 : vector<1x1x16x8xf32> to vector<16x8xf32>
    %173 = vector.shape_cast %170 : vector<16x8xf32> to vector<1x1x16x8xf32>
    tpu.vector_store %arg9[%c0_159, %c4_160, %c0_161, %c0_162], %173 {strides = array<i32>} : memref<1x16x16x8xf32, #tpu.memory_space<vmem>>, vector<1x1x16x8xf32>,
    %c0_163 = arith.constant 0 : index
    %c145 = arith.constant 145 : index
    %c0_164 = arith.constant 0 : index
    %174 = vector.load %arg1[%c0_163, %c145, %c0_164] : memref<1x396x8xbf16, #tpu.memory_space<vmem>>, vector<1x16x8xbf16>
    %175 = vector.shape_cast %174 : vector<1x16x8xbf16> to vector<16x8xbf16>
    %176 = arith.extf %175 : vector<16x8xbf16> to vector<16x8xf32>
    %c109_165 = arith.constant 109 : index
    %c0_166 = arith.constant 0 : index
    %177 = vector.load %arg11[%c109_165, %c0_166] : memref<324x8xf32, #tpu.memory_space<vmem>>, vector<16x8xf32>
    %178 = arith.addf %176, %177 : vector<16x8xf32>
    %cst_167 = arith.constant 0.000000e+00 : f32
    %179 = vector.broadcast %cst_167 : f32 to vector<16x8xf32>
    %180 = arith.maximumf %178, %179 : vector<16x8xf32>
    %c0_168 = arith.constant 0 : index
    %c5_169 = arith.constant 5 : index
    %c0_170 = arith.constant 0 : index
    %c0_171 = arith.constant 0 : index
    %181 = vector.load %arg9[%c0_168, %c5_169, %c0_170, %c0_171] : memref<1x16x16x8xf32, #tpu.memory_space<vmem>>, vector<1x1x16x8xf32>
    %182 = vector.shape_cast %181 : vector<1x1x16x8xf32> to vector<16x8xf32>
    %183 = vector.shape_cast %180 : vector<16x8xf32> to vector<1x1x16x8xf32>
    tpu.vector_store %arg9[%c0_168, %c5_169, %c0_170, %c0_171], %183 {strides = array<i32>} : memref<1x16x16x8xf32, #tpu.memory_space<vmem>>, vector<1x1x16x8xf32>,
    %c0_172 = arith.constant 0 : index
    %c163 = arith.constant 163 : index
    %c0_173 = arith.constant 0 : index
    %184 = vector.load %arg1[%c0_172, %c163, %c0_173] : memref<1x396x8xbf16, #tpu.memory_space<vmem>>, vector<1x16x8xbf16>
    %185 = vector.shape_cast %184 : vector<1x16x8xbf16> to vector<16x8xbf16>
    %186 = arith.extf %185 : vector<16x8xbf16> to vector<16x8xf32>
    %c127_174 = arith.constant 127 : index
    %c0_175 = arith.constant 0 : index
    %187 = vector.load %arg11[%c127_174, %c0_175] : memref<324x8xf32, #tpu.memory_space<vmem>>, vector<16x8xf32>
    %188 = arith.addf %186, %187 : vector<16x8xf32>
    %cst_176 = arith.constant 0.000000e+00 : f32
    %189 = vector.broadcast %cst_176 : f32 to vector<16x8xf32>
    %190 = arith.maximumf %188, %189 : vector<16x8xf32>
    %c0_177 = arith.constant 0 : index
    %c6_178 = arith.constant 6 : index
    %c0_179 = arith.constant 0 : index
    %c0_180 = arith.constant 0 : index
    %191 = vector.load %arg9[%c0_177, %c6_178, %c0_179, %c0_180] : memref<1x16x16x8xf32, #tpu.memory_space<vmem>>, vector<1x1x16x8xf32>
    %192 = vector.shape_cast %191 : vector<1x1x16x8xf32> to vector<16x8xf32>
    %193 = vector.shape_cast %190 : vector<16x8xf32> to vector<1x1x16x8xf32>
    tpu.vector_store %arg9[%c0_177, %c6_178, %c0_179, %c0_180], %193 {strides = array<i32>} : memref<1x16x16x8xf32, #tpu.memory_space<vmem>>, vector<1x1x16x8xf32>,
    %c0_181 = arith.constant 0 : index
    %c181 = arith.constant 181 : index
    %c0_182 = arith.constant 0 : index
    %194 = vector.load %arg1[%c0_181, %c181, %c0_182] : memref<1x396x8xbf16, #tpu.memory_space<vmem>>, vector<1x16x8xbf16>
    %195 = vector.shape_cast %194 : vector<1x16x8xbf16> to vector<16x8xbf16>
    %196 = arith.extf %195 : vector<16x8xbf16> to vector<16x8xf32>
    %c145_183 = arith.constant 145 : index
    %c0_184 = arith.constant 0 : index
    %197 = vector.load %arg11[%c145_183, %c0_184] : memref<324x8xf32, #tpu.memory_space<vmem>>, vector<16x8xf32>
    %198 = arith.addf %196, %197 : vector<16x8xf32>
    %cst_185 = arith.constant 0.000000e+00 : f32
    %199 = vector.broadcast %cst_185 : f32 to vector<16x8xf32>
    %200 = arith.maximumf %198, %199 : vector<16x8xf32>
    %c0_186 = arith.constant 0 : index
    %c7_187 = arith.constant 7 : index
    %c0_188 = arith.constant 0 : index
    %c0_189 = arith.constant 0 : index
    %201 = vector.load %arg9[%c0_186, %c7_187, %c0_188, %c0_189] : memref<1x16x16x8xf32, #tpu.memory_space<vmem>>, vector<1x1x16x8xf32>
    %202 = vector.shape_cast %201 : vector<1x1x16x8xf32> to vector<16x8xf32>
    %203 = vector.shape_cast %200 : vector<16x8xf32> to vector<1x1x16x8xf32>
    tpu.vector_store %arg9[%c0_186, %c7_187, %c0_188, %c0_189], %203 {strides = array<i32>} : memref<1x16x16x8xf32, #tpu.memory_space<vmem>>, vector<1x1x16x8xf32>,
    %c0_190 = arith.constant 0 : index
    %c199 = arith.constant 199 : index
    %c0_191 = arith.constant 0 : index
    %204 = vector.load %arg1[%c0_190, %c199, %c0_191] : memref<1x396x8xbf16, #tpu.memory_space<vmem>>, vector<1x16x8xbf16>
    %205 = vector.shape_cast %204 : vector<1x16x8xbf16> to vector<16x8xbf16>
    %206 = arith.extf %205 : vector<16x8xbf16> to vector<16x8xf32>
    %c163_192 = arith.constant 163 : index
    %c0_193 = arith.constant 0 : index
    %207 = vector.load %arg11[%c163_192, %c0_193] : memref<324x8xf32, #tpu.memory_space<vmem>>, vector<16x8xf32>
    %208 = arith.addf %206, %207 : vector<16x8xf32>
    %cst_194 = arith.constant 0.000000e+00 : f32
    %209 = vector.broadcast %cst_194 : f32 to vector<16x8xf32>
    %210 = arith.maximumf %208, %209 : vector<16x8xf32>
    %c0_195 = arith.constant 0 : index
    %c8_196 = arith.constant 8 : index
    %c0_197 = arith.constant 0 : index
    %c0_198 = arith.constant 0 : index
    %211 = vector.load %arg9[%c0_195, %c8_196, %c0_197, %c0_198] : memref<1x16x16x8xf32, #tpu.memory_space<vmem>>, vector<1x1x16x8xf32>
    %212 = vector.shape_cast %211 : vector<1x1x16x8xf32> to vector<16x8xf32>
    %213 = vector.shape_cast %210 : vector<16x8xf32> to vector<1x1x16x8xf32>
    tpu.vector_store %arg9[%c0_195, %c8_196, %c0_197, %c0_198], %213 {strides = array<i32>} : memref<1x16x16x8xf32, #tpu.memory_space<vmem>>, vector<1x1x16x8xf32>,
    %c0_199 = arith.constant 0 : index
    %c217 = arith.constant 217 : index
    %c0_200 = arith.constant 0 : index
    %214 = vector.load %arg1[%c0_199, %c217, %c0_200] : memref<1x396x8xbf16, #tpu.memory_space<vmem>>, vector<1x16x8xbf16>
    %215 = vector.shape_cast %214 : vector<1x16x8xbf16> to vector<16x8xbf16>
    %216 = arith.extf %215 : vector<16x8xbf16> to vector<16x8xf32>
    %c181_201 = arith.constant 181 : index
    %c0_202 = arith.constant 0 : index
    %217 = vector.load %arg11[%c181_201, %c0_202] : memref<324x8xf32, #tpu.memory_space<vmem>>, vector<16x8xf32>
    %218 = arith.addf %216, %217 : vector<16x8xf32>
    %cst_203 = arith.constant 0.000000e+00 : f32
    %219 = vector.broadcast %cst_203 : f32 to vector<16x8xf32>
    %220 = arith.maximumf %218, %219 : vector<16x8xf32>
    %c0_204 = arith.constant 0 : index
    %c9 = arith.constant 9 : index
    %c0_205 = arith.constant 0 : index
    %c0_206 = arith.constant 0 : index
    %221 = vector.load %arg9[%c0_204, %c9, %c0_205, %c0_206] : memref<1x16x16x8xf32, #tpu.memory_space<vmem>>, vector<1x1x16x8xf32>
    %222 = vector.shape_cast %221 : vector<1x1x16x8xf32> to vector<16x8xf32>
    %223 = vector.shape_cast %220 : vector<16x8xf32> to vector<1x1x16x8xf32>
    tpu.vector_store %arg9[%c0_204, %c9, %c0_205, %c0_206], %223 {strides = array<i32>} : memref<1x16x16x8xf32, #tpu.memory_space<vmem>>, vector<1x1x16x8xf32>,
    %c0_207 = arith.constant 0 : index
    %c235 = arith.constant 235 : index
    %c0_208 = arith.constant 0 : index
    %224 = vector.load %arg1[%c0_207, %c235, %c0_208] : memref<1x396x8xbf16, #tpu.memory_space<vmem>>, vector<1x16x8xbf16>
    %225 = vector.shape_cast %224 : vector<1x16x8xbf16> to vector<16x8xbf16>
    %226 = arith.extf %225 : vector<16x8xbf16> to vector<16x8xf32>
    %c199_209 = arith.constant 199 : index
    %c0_210 = arith.constant 0 : index
    %227 = vector.load %arg11[%c199_209, %c0_210] : memref<324x8xf32, #tpu.memory_space<vmem>>, vector<16x8xf32>
    %228 = arith.addf %226, %227 : vector<16x8xf32>
    %cst_211 = arith.constant 0.000000e+00 : f32
    %229 = vector.broadcast %cst_211 : f32 to vector<16x8xf32>
    %230 = arith.maximumf %228, %229 : vector<16x8xf32>
    %c0_212 = arith.constant 0 : index
    %c10 = arith.constant 10 : index
    %c0_213 = arith.constant 0 : index
    %c0_214 = arith.constant 0 : index
    %231 = vector.load %arg9[%c0_212, %c10, %c0_213, %c0_214] : memref<1x16x16x8xf32, #tpu.memory_space<vmem>>, vector<1x1x16x8xf32>
    %232 = vector.shape_cast %231 : vector<1x1x16x8xf32> to vector<16x8xf32>
    %233 = vector.shape_cast %230 : vector<16x8xf32> to vector<1x1x16x8xf32>
    tpu.vector_store %arg9[%c0_212, %c10, %c0_213, %c0_214], %233 {strides = array<i32>} : memref<1x16x16x8xf32, #tpu.memory_space<vmem>>, vector<1x1x16x8xf32>,
    %c0_215 = arith.constant 0 : index
    %c253 = arith.constant 253 : index
    %c0_216 = arith.constant 0 : index
    %234 = vector.load %arg1[%c0_215, %c253, %c0_216] : memref<1x396x8xbf16, #tpu.memory_space<vmem>>, vector<1x16x8xbf16>
    %235 = vector.shape_cast %234 : vector<1x16x8xbf16> to vector<16x8xbf16>
    %236 = arith.extf %235 : vector<16x8xbf16> to vector<16x8xf32>
    %c217_217 = arith.constant 217 : index
    %c0_218 = arith.constant 0 : index
    %237 = vector.load %arg11[%c217_217, %c0_218] : memref<324x8xf32, #tpu.memory_space<vmem>>, vector<16x8xf32>
    %238 = arith.addf %236, %237 : vector<16x8xf32>
    %cst_219 = arith.constant 0.000000e+00 : f32
    %239 = vector.broadcast %cst_219 : f32 to vector<16x8xf32>
    %240 = arith.maximumf %238, %239 : vector<16x8xf32>
    %c0_220 = arith.constant 0 : index
    %c11 = arith.constant 11 : index
    %c0_221 = arith.constant 0 : index
    %c0_222 = arith.constant 0 : index
    %241 = vector.load %arg9[%c0_220, %c11, %c0_221, %c0_222] : memref<1x16x16x8xf32, #tpu.memory_space<vmem>>, vector<1x1x16x8xf32>
    %242 = vector.shape_cast %241 : vector<1x1x16x8xf32> to vector<16x8xf32>
    %243 = vector.shape_cast %240 : vector<16x8xf32> to vector<1x1x16x8xf32>
    tpu.vector_store %arg9[%c0_220, %c11, %c0_221, %c0_222], %243 {strides = array<i32>} : memref<1x16x16x8xf32, #tpu.memory_space<vmem>>, vector<1x1x16x8xf32>,
    %c0_223 = arith.constant 0 : index
    %c271 = arith.constant 271 : index
    %c0_224 = arith.constant 0 : index
    %244 = vector.load %arg1[%c0_223, %c271, %c0_224] : memref<1x396x8xbf16, #tpu.memory_space<vmem>>, vector<1x16x8xbf16>
    %245 = vector.shape_cast %244 : vector<1x16x8xbf16> to vector<16x8xbf16>
    %246 = arith.extf %245 : vector<16x8xbf16> to vector<16x8xf32>
    %c235_225 = arith.constant 235 : index
    %c0_226 = arith.constant 0 : index
    %247 = vector.load %arg11[%c235_225, %c0_226] : memref<324x8xf32, #tpu.memory_space<vmem>>, vector<16x8xf32>
    %248 = arith.addf %246, %247 : vector<16x8xf32>
    %cst_227 = arith.constant 0.000000e+00 : f32
    %249 = vector.broadcast %cst_227 : f32 to vector<16x8xf32>
    %250 = arith.maximumf %248, %249 : vector<16x8xf32>
    %c0_228 = arith.constant 0 : index
    %c12 = arith.constant 12 : index
    %c0_229 = arith.constant 0 : index
    %c0_230 = arith.constant 0 : index
    %251 = vector.load %arg9[%c0_228, %c12, %c0_229, %c0_230] : memref<1x16x16x8xf32, #tpu.memory_space<vmem>>, vector<1x1x16x8xf32>
    %252 = vector.shape_cast %251 : vector<1x1x16x8xf32> to vector<16x8xf32>
    %253 = vector.shape_cast %250 : vector<16x8xf32> to vector<1x1x16x8xf32>
    tpu.vector_store %arg9[%c0_228, %c12, %c0_229, %c0_230], %253 {strides = array<i32>} : memref<1x16x16x8xf32, #tpu.memory_space<vmem>>, vector<1x1x16x8xf32>,
    %c0_231 = arith.constant 0 : index
    %c289 = arith.constant 289 : index
    %c0_232 = arith.constant 0 : index
    %254 = vector.load %arg1[%c0_231, %c289, %c0_232] : memref<1x396x8xbf16, #tpu.memory_space<vmem>>, vector<1x16x8xbf16>
    %255 = vector.shape_cast %254 : vector<1x16x8xbf16> to vector<16x8xbf16>
    %256 = arith.extf %255 : vector<16x8xbf16> to vector<16x8xf32>
    %c253_233 = arith.constant 253 : index
    %c0_234 = arith.constant 0 : index
    %257 = vector.load %arg11[%c253_233, %c0_234] : memref<324x8xf32, #tpu.memory_space<vmem>>, vector<16x8xf32>
    %258 = arith.addf %256, %257 : vector<16x8xf32>
    %cst_235 = arith.constant 0.000000e+00 : f32
    %259 = vector.broadcast %cst_235 : f32 to vector<16x8xf32>
    %260 = arith.maximumf %258, %259 : vector<16x8xf32>
    %c0_236 = arith.constant 0 : index
    %c13 = arith.constant 13 : index
    %c0_237 = arith.constant 0 : index
    %c0_238 = arith.constant 0 : index
    %261 = vector.load %arg9[%c0_236, %c13, %c0_237, %c0_238] : memref<1x16x16x8xf32, #tpu.memory_space<vmem>>, vector<1x1x16x8xf32>
    %262 = vector.shape_cast %261 : vector<1x1x16x8xf32> to vector<16x8xf32>
    %263 = vector.shape_cast %260 : vector<16x8xf32> to vector<1x1x16x8xf32>
    tpu.vector_store %arg9[%c0_236, %c13, %c0_237, %c0_238], %263 {strides = array<i32>} : memref<1x16x16x8xf32, #tpu.memory_space<vmem>>, vector<1x1x16x8xf32>,
    %c0_239 = arith.constant 0 : index
    %c307 = arith.constant 307 : index
    %c0_240 = arith.constant 0 : index
    %264 = vector.load %arg1[%c0_239, %c307, %c0_240] : memref<1x396x8xbf16, #tpu.memory_space<vmem>>, vector<1x16x8xbf16>
    %265 = vector.shape_cast %264 : vector<1x16x8xbf16> to vector<16x8xbf16>
    %266 = arith.extf %265 : vector<16x8xbf16> to vector<16x8xf32>
    %c271_241 = arith.constant 271 : index
    %c0_242 = arith.constant 0 : index
    %267 = vector.load %arg11[%c271_241, %c0_242] : memref<324x8xf32, #tpu.memory_space<vmem>>, vector<16x8xf32>
    %268 = arith.addf %266, %267 : vector<16x8xf32>
    %cst_243 = arith.constant 0.000000e+00 : f32
    %269 = vector.broadcast %cst_243 : f32 to vector<16x8xf32>
    %270 = arith.maximumf %268, %269 : vector<16x8xf32>
    %c0_244 = arith.constant 0 : index
    %c14 = arith.constant 14 : index
    %c0_245 = arith.constant 0 : index
    %c0_246 = arith.constant 0 : index
    %271 = vector.load %arg9[%c0_244, %c14, %c0_245, %c0_246] : memref<1x16x16x8xf32, #tpu.memory_space<vmem>>, vector<1x1x16x8xf32>
    %272 = vector.shape_cast %271 : vector<1x1x16x8xf32> to vector<16x8xf32>
    %273 = vector.shape_cast %270 : vector<16x8xf32> to vector<1x1x16x8xf32>
    tpu.vector_store %arg9[%c0_244, %c14, %c0_245, %c0_246], %273 {strides = array<i32>} : memref<1x16x16x8xf32, #tpu.memory_space<vmem>>, vector<1x1x16x8xf32>,
    %c0_247 = arith.constant 0 : index
    %c325 = arith.constant 325 : index
    %c0_248 = arith.constant 0 : index
    %274 = vector.load %arg1[%c0_247, %c325, %c0_248] : memref<1x396x8xbf16, #tpu.memory_space<vmem>>, vector<1x16x8xbf16>
    %275 = vector.shape_cast %274 : vector<1x16x8xbf16> to vector<16x8xbf16>
    %276 = arith.extf %275 : vector<16x8xbf16> to vector<16x8xf32>
    %c289_249 = arith.constant 289 : index
    %c0_250 = arith.constant 0 : index
    %277 = vector.load %arg11[%c289_249, %c0_250] : memref<324x8xf32, #tpu.memory_space<vmem>>, vector<16x8xf32>
    %278 = arith.addf %276, %277 : vector<16x8xf32>
    %cst_251 = arith.constant 0.000000e+00 : f32
    %279 = vector.broadcast %cst_251 : f32 to vector<16x8xf32>
    %280 = arith.maximumf %278, %279 : vector<16x8xf32>
    %c0_252 = arith.constant 0 : index
    %c15 = arith.constant 15 : index
    %c0_253 = arith.constant 0 : index
    %c0_254 = arith.constant 0 : index
    %281 = vector.load %arg9[%c0_252, %c15, %c0_253, %c0_254] : memref<1x16x16x8xf32, #tpu.memory_space<vmem>>, vector<1x1x16x8xf32>
    %282 = vector.shape_cast %281 : vector<1x1x16x8xf32> to vector<16x8xf32>
    %283 = vector.shape_cast %280 : vector<16x8xf32> to vector<1x1x16x8xf32>
    tpu.vector_store %arg9[%c0_252, %c15, %c0_253, %c0_254], %283 {strides = array<i32>} : memref<1x16x16x8xf32, #tpu.memory_space<vmem>>, vector<1x1x16x8xf32>,
    return
  }
  func.func @transform_0(%arg0: i32) -> (i32, i32, i32) {
    %c0_i32 = arith.constant 0 : i32
    %c0_i32_0 = arith.constant 0 : i32
    %c0_i32_1 = arith.constant 0 : i32
    return %arg0, %c0_i32, %c0_i32_0 : i32, i32, i32
  }
  func.func @transform_1(%arg0: i32) -> (i32, i32) {
    %c0_i32 = arith.constant 0 : i32
    %c0_i32_0 = arith.constant 0 : i32
    %c0_i32_1 = arith.constant 0 : i32
    return %c0_i32, %c0_i32_0 : i32, i32
  }
  func.func @transform_2(%arg0: i32) -> (i32, i32, i32) {
    %c0_i32 = arith.constant 0 : i32
    %c0_i32_0 = arith.constant 0 : i32
    %c0_i32_1 = arith.constant 0 : i32
    %c0_i32_2 = arith.constant 0 : i32
    return %c0_i32, %c0_i32_0, %c0_i32_1 : i32, i32, i32
  }
  func.func @transform_3(%arg0: i32) -> (i32, i32) {
    %c0_i32 = arith.constant 0 : i32
    %c0_i32_0 = arith.constant 0 : i32
    %c0_i32_1 = arith.constant 0 : i32
    return %c0_i32, %c0_i32_0 : i32, i32
  }
  func.func @transform_4(%arg0: i32) -> (i32, i32) {
    %c0_i32 = arith.constant 0 : i32
    %c0_i32_0 = arith.constant 0 : i32
    %c0_i32_1 = arith.constant 0 : i32
    return %c0_i32, %c0_i32_0 : i32, i32
  }
  func.func @transform_5(%arg0: i32) -> (i32, i32, i32) {
    %c0_i32 = arith.constant 0 : i32
    %c0_i32_0 = arith.constant 0 : i32
    %c0_i32_1 = arith.constant 0 : i32
    %c0_i32_2 = arith.constant 0 : i32
    return %c0_i32, %c0_i32_0, %c0_i32_1 : i32, i32, i32
  }
  func.func @transform_6(%arg0: i32) -> (i32, i32) {
    %c0_i32 = arith.constant 0 : i32
    %c0_i32_0 = arith.constant 0 : i32
    %c0_i32_1 = arith.constant 0 : i32
    return %c0_i32, %c0_i32_0 : i32, i32
  }
  func.func @transform_7(%arg0: i32) -> (i32, i32) {
    %c0_i32 = arith.constant 0 : i32
    %c0_i32_0 = arith.constant 0 : i32
    %c0_i32_1 = arith.constant 0 : i32
    return %c0_i32, %c0_i32_0 : i32, i32
  }
  func.func @transform_8(%arg0: i32) -> (i32, i32, i32, i32) {
    %c0_i32 = arith.constant 0 : i32
    %c0_i32_0 = arith.constant 0 : i32
    %c0_i32_1 = arith.constant 0 : i32
    %c0_i32_2 = arith.constant 0 : i32
    return %arg0, %c0_i32, %c0_i32_0, %c0_i32_1 : i32, i32, i32, i32
  }
}

</mosaic_0001>

<llo_original>
// kernel: tpu_custom_call.1
$region0: #{tpu_custom_call.1}
  #allocation0 [shape = 'u32[]', space=smem, size = 0x4, offset = 0x4, fixed_abs, tag = 'smem constant byte address 0x4 - core index']
  #allocation1 [shape = 'u32[72,128]{1,0:T(1,128)}', space=vmem, size = 0x9000, scoped, tag = 'internal scratch']
  #allocation2 [shape = 'bf16[362,8]{1,0:T(8,128)(2,1)}', space=vmem, size = 0x17000, scoped, tag = 'scratch operand']
  #allocation3 [shape = 'f32[324,8]{1,0:T(8,128)}', space=vmem, size = 0x29000, scoped, tag = 'scratch operand']
  %s0 = inlined_call_operand.vmem [shape: bf16[2,396,8], index: 0, kind: input, shape index: {}]
  %s1 = inlined_call_operand.vmem [shape: f32[324,1], index: 1, kind: input, shape index: {}]
  %s2 = inlined_call_operand.vmem [shape: bf16[9,8,8], index: 2, kind: input, shape index: {}]
  %s3 = inlined_call_operand.vmem [shape: f32[1,8], index: 3, kind: input, shape index: {}]
  %s4 = inlined_call_operand.vmem [shape: f32[1,8], index: 4, kind: input, shape index: {}]
  %s5 = inlined_call_operand.vmem [shape: bf16[9,8,8], index: 5, kind: input, shape index: {}]
  %s6 = inlined_call_operand.vmem [shape: f32[1,8], index: 6, kind: input, shape index: {}]
  %s7 = inlined_call_operand.vmem [shape: f32[1,8], index: 7, kind: input, shape index: {}]
  %s8 = inlined_call_operand.vmem [shape: f32[2,16,16,8], index: 8, kind: output, shape index: {}]
  %s9 = sld [smem:[#allocation0]]
  $region65: #{tpu_custom_call.1} parent=0
    _
  %s11 = ssub.s32 1, %s9
  %s12 = scalar_select 0, %s11, %s9
  loop: start=0, step=1, limit=4
  $region2: #{tpu_custom_call.1} parent=0 // loop_pre_header
    _
  $region3: #{tpu_custom_call.1} parent=0 // loop_header
    %s14 = sphi 0, %s18
    %p15 = scmp.ge.s32.totalorder %s14, 4
    %s24 = sphi 0, %s26
    %s27 = sphi 0, %s24
    %s28 = sphi 0, %s27
    %s44 = sphi 0, %s28
    %s48 = sphi 0, %s48
    %s50 = sphi 0, %s48
    %s51 = sphi 0, %s50
    %s65 = sphi 0, %s51
    %s69 = sphi 0, %s69
    %s71 = sphi 0, %s69
    %s72 = sphi 0, %s71
    %s86 = sphi 0, %s72
    %s90 = sphi 0, %s90
    %s92 = sphi 0, %s90
    %s93 = sphi 0, %s92
    %s107 = sphi 0, %s93
    %s111 = sphi 0, %s111
    %s113 = sphi 0, %s111
    %s114 = sphi 0, %s113
    %s128 = sphi 0, %s114
    %s132 = sphi 0, %s132
    %s134 = sphi 0, %s132
    %s135 = sphi 0, %s134
    %s149 = sphi 0, %s135
    %s153 = sphi 0, %s153
    %s155 = sphi 0, %s153
    %s156 = sphi 0, %s155
    %s170 = sphi 0, %s156
    %s174 = sphi 0, %s174
    %s176 = sphi 0, %s174
    %s177 = sphi 0, %s176
    %s191 = sphi 0, %s177
    %s197 = sphi 0, %s199
    %s200 = sphi 0, %s197
    %s201 = sphi 0, %s200
    %s217 = sphi 0, %s201
  $region4: #{tpu_custom_call.1} parent=0 // loop_header_branch
    %17 = sbr.rel (%p15) target = $region8
  $region5: #{tpu_custom_call.1} parent=0 // loop_body
    %s19 = ssub.s32 %s14, 1
    %s20 = ssub.s32 %s14, 2
    %s21 = sadd.s32 %s14, 1
    %s22 = ssub.s32 %s14, %s21
    %p23 = scmp.eq.s32.totalorder %s22, 0
    %s25 = sadd.s32 %s24, 1
    %s26 = scalar_select %p23, %s24, %s25
    %p29 = pneg %p23
    %p30 = scmp.eq.s32.totalorder %s14, 1
    %p31 = por %p29, %p30
    %p32 = scmp.ne.s32.totalorder %s24, %s27
    %p33 = scmp.eq.s32.totalorder %s14, 0
    %p34 = por %p32, %p33
    %p35 = scmp.ne.s32.totalorder %s24, %s27
    %p36 = scmp.eq.s32.totalorder %s19, 1
    %p37 = por %p35, %p36
    %p38 = scmp.ne.s32.totalorder %s27, %s28
    %p39 = scmp.eq.s32.totalorder %s19, 0
    %p40 = por %p38, %p39
    %p41 = scmp.ne.s32.totalorder %s27, %s28
    %p42 = scmp.eq.s32.totalorder %s20, 1
    %p43 = por %p41, %p42
    %p45 = scmp.ne.s32.totalorder %s28, %s44
    %p46 = scmp.eq.s32.totalorder %s20, 0
    %p47 = por %p45, %p46
    %s49 = sadd.s32 %s48, 1
    %p52 = scmp.eq.s32.totalorder %s14, 1
    %p53 = scmp.ne.s32.totalorder %s48, %s50
    %p54 = scmp.eq.s32.totalorder %s14, 0
    %p55 = por %p53, %p54
    %p56 = scmp.ne.s32.totalorder %s48, %s50
    %p57 = scmp.eq.s32.totalorder %s19, 1
    %p58 = por %p56, %p57
    %p59 = scmp.ne.s32.totalorder %s50, %s51
    %p60 = scmp.eq.s32.totalorder %s19, 0
    %p61 = por %p59, %p60
    %p62 = scmp.ne.s32.totalorder %s50, %s51
    %p63 = scmp.eq.s32.totalorder %s20, 1
    %p64 = por %p62, %p63
    %p66 = scmp.ne.s32.totalorder %s51, %s65
    %p67 = scmp.eq.s32.totalorder %s20, 0
    %p68 = por %p66, %p67
    %s70 = sadd.s32 %s69, 1
    %p73 = scmp.eq.s32.totalorder %s14, 1
    %p74 = scmp.ne.s32.totalorder %s69, %s71
    %p75 = scmp.eq.s32.totalorder %s14, 0
    %p76 = por %p74, %p75
    %p77 = scmp.ne.s32.totalorder %s69, %s71
    %p78 = scmp.eq.s32.totalorder %s19, 1
    %p79 = por %p77, %p78
    %p80 = scmp.ne.s32.totalorder %s71, %s72
    %p81 = scmp.eq.s32.totalorder %s19, 0
    %p82 = por %p80, %p81
    %p83 = scmp.ne.s32.totalorder %s71, %s72
    %p84 = scmp.eq.s32.totalorder %s20, 1
    %p85 = por %p83, %p84
    %p87 = scmp.ne.s32.totalorder %s72, %s86
    %p88 = scmp.eq.s32.totalorder %s20, 0
    %p89 = por %p87, %p88
    %s91 = sadd.s32 %s90, 1
    %p94 = scmp.eq.s32.totalorder %s14, 1
    %p95 = scmp.ne.s32.totalorder %s90, %s92
    %p96 = scmp.eq.s32.totalorder %s14, 0
    %p97 = por %p95, %p96
    %p98 = scmp.ne.s32.totalorder %s90, %s92
    %p99 = scmp.eq.s32.totalorder %s19, 1
    %p100 = por %p98, %p99
    %p101 = scmp.ne.s32.totalorder %s92, %s93
    %p102 = scmp.eq.s32.totalorder %s19, 0
    %p103 = por %p101, %p102
    %p104 = scmp.ne.s32.totalorder %s92, %s93
    %p105 = scmp.eq.s32.totalorder %s20, 1
    %p106 = por %p104, %p105
    %p108 = scmp.ne.s32.totalorder %s93, %s107
    %p109 = scmp.eq.s32.totalorder %s20, 0
    %p110 = por %p108, %p109
    %s112 = sadd.s32 %s111, 1
    %p115 = scmp.eq.s32.totalorder %s14, 1
    %p116 = scmp.ne.s32.totalorder %s111, %s113
    %p117 = scmp.eq.s32.totalorder %s14, 0
    %p118 = por %p116, %p117
    %p119 = scmp.ne.s32.totalorder %s111, %s113
    %p120 = scmp.eq.s32.totalorder %s19, 1
    %p121 = por %p119, %p120
    %p122 = scmp.ne.s32.totalorder %s113, %s114
    %p123 = scmp.eq.s32.totalorder %s19, 0
    %p124 = por %p122, %p123
    %p125 = scmp.ne.s32.totalorder %s113, %s114
    %p126 = scmp.eq.s32.totalorder %s20, 1
    %p127 = por %p125, %p126
    %p129 = scmp.ne.s32.totalorder %s114, %s128
    %p130 = scmp.eq.s32.totalorder %s20, 0
    %p131 = por %p129, %p130
    %s133 = sadd.s32 %s132, 1
    %p136 = scmp.eq.s32.totalorder %s14, 1
    %p137 = scmp.ne.s32.totalorder %s132, %s134
    %p138 = scmp.eq.s32.totalorder %s14, 0
    %p139 = por %p137, %p138
    %p140 = scmp.ne.s32.totalorder %s132, %s134
    %p141 = scmp.eq.s32.totalorder %s19, 1
    %p142 = por %p140, %p141
    %p143 = scmp.ne.s32.totalorder %s134, %s135
    %p144 = scmp.eq.s32.totalorder %s19, 0
    %p145 = por %p143, %p144
    %p146 = scmp.ne.s32.totalorder %s134, %s135
    %p147 = scmp.eq.s32.totalorder %s20, 1
    %p148 = por %p146, %p147
    %p150 = scmp.ne.s32.totalorder %s135, %s149
    %p151 = scmp.eq.s32.totalorder %s20, 0
    %p152 = por %p150, %p151
    %s154 = sadd.s32 %s153, 1
    %p157 = scmp.eq.s32.totalorder %s14, 1
    %p158 = scmp.ne.s32.totalorder %s153, %s155
    %p159 = scmp.eq.s32.totalorder %s14, 0
    %p160 = por %p158, %p159
    %p161 = scmp.ne.s32.totalorder %s153, %s155
    %p162 = scmp.eq.s32.totalorder %s19, 1
    %p163 = por %p161, %p162
    %p164 = scmp.ne.s32.totalorder %s155, %s156
    %p165 = scmp.eq.s32.totalorder %s19, 0
    %p166 = por %p164, %p165
    %p167 = scmp.ne.s32.totalorder %s155, %s156
    %p168 = scmp.eq.s32.totalorder %s20, 1
    %p169 = por %p167, %p168
    %p171 = scmp.ne.s32.totalorder %s156, %s170
    %p172 = scmp.eq.s32.totalorder %s20, 0
    %p173 = por %p171, %p172
    %s175 = sadd.s32 %s174, 1
    %p178 = scmp.eq.s32.totalorder %s14, 1
    %p179 = scmp.ne.s32.totalorder %s174, %s176
    %p180 = scmp.eq.s32.totalorder %s14, 0
    %p181 = por %p179, %p180
    %p182 = scmp.ne.s32.totalorder %s174, %s176
    %p183 = scmp.eq.s32.totalorder %s19, 1
    %p184 = por %p182, %p183
    %p185 = scmp.ne.s32.totalorder %s176, %s177
    %p186 = scmp.eq.s32.totalorder %s19, 0
    %p187 = por %p185, %p186
    %p188 = scmp.ne.s32.totalorder %s176, %s177
    %p189 = scmp.eq.s32.totalorder %s20, 1
    %p190 = por %p188, %p189
    %p192 = scmp.ne.s32.totalorder %s177, %s191
    %p193 = scmp.eq.s32.totalorder %s20, 0
    %p194 = por %p192, %p193
    %s195 = ssub.s32 %s14, %s21
    %p196 = scmp.eq.s32.totalorder %s195, 0
    %s198 = sadd.s32 %s197, 1
    %s199 = scalar_select %p196, %s197, %s198
    %p202 = pneg %p196
    %p203 = scmp.eq.s32.totalorder %s14, 1
    %p204 = por %p202, %p203
    %p205 = scmp.ne.s32.totalorder %s197, %s200
    %p206 = scmp.eq.s32.totalorder %s14, 0
    %p207 = por %p205, %p206
    %p208 = scmp.ne.s32.totalorder %s197, %s200
    %p209 = scmp.eq.s32.totalorder %s19, 1
    %p210 = por %p208, %p209
    %p211 = scmp.ne.s32.totalorder %s200, %s201
    %p212 = scmp.eq.s32.totalorder %s19, 0
    %p213 = por %p211, %p212
    %p214 = scmp.ne.s32.totalorder %s200, %s201
    %p215 = scmp.eq.s32.totalorder %s20, 1
    %p216 = por %p214, %p215
    %p218 = scmp.ne.s32.totalorder %s201, %s217
    %p219 = scmp.eq.s32.totalorder %s20, 0
    %p220 = por %p218, %p219
    %p221 = scmp.le.s32.totalorder 1, %s14
    %p222 = scmp.lt.s32.totalorder %s14, 3
    %p223 = pnand %p221, %p222
    %p224 = pneg %p223
    // Predicated region
    $region9: #{tpu_custom_call.1} parent=5 // pred_check
      _
    $region10: #{tpu_custom_call.1} parent=5 // pred_check_branch
      %226 = sbr.rel (%p223) target = $region12
    $region11: #{tpu_custom_call.1} parent=5 // pred_region
      %s227 = ssub.s32 %s14, 1
      // Predicated region
      $region13: #{tpu_custom_call.1} parent=11 // pred_check
        %p228 = pneg %p61
      $region14: #{tpu_custom_call.1} parent=11 // pred_check_branch
        %230 = sbr.rel (%p228) target = $region16
      $region15: #{tpu_custom_call.1} parent=11 // pred_region
        _
      $region16: #{tpu_custom_call.1} parent=11 // pred_fallthru
        _
      // Predicated region
      $region17: #{tpu_custom_call.1} parent=11 // pred_check
        %p231 = pneg %p82
      $region18: #{tpu_custom_call.1} parent=11 // pred_check_branch
        %233 = sbr.rel (%p231) target = $region20
      $region19: #{tpu_custom_call.1} parent=11 // pred_region
        _
      $region20: #{tpu_custom_call.1} parent=11 // pred_fallthru
        _
      // Predicated region
      $region21: #{tpu_custom_call.1} parent=11 // pred_check
        %p234 = pneg %p103
      $region22: #{tpu_custom_call.1} parent=11 // pred_check_branch
        %236 = sbr.rel (%p234) target = $region24
      $region23: #{tpu_custom_call.1} parent=11 // pred_region
        _
      $region24: #{tpu_custom_call.1} parent=11 // pred_fallthru
        _
      // Predicated region
      $region25: #{tpu_custom_call.1} parent=11 // pred_check
        %p237 = pneg %p124
      $region26: #{tpu_custom_call.1} parent=11 // pred_check_branch
        %239 = sbr.rel (%p237) target = $region28
      $region27: #{tpu_custom_call.1} parent=11 // pred_region
        _
      $region28: #{tpu_custom_call.1} parent=11 // pred_fallthru
        _
      // Predicated region
      $region29: #{tpu_custom_call.1} parent=11 // pred_check
        %p240 = pneg %p145
      $region30: #{tpu_custom_call.1} parent=11 // pred_check_branch
        %242 = sbr.rel (%p240) target = $region32
      $region31: #{tpu_custom_call.1} parent=11 // pred_region
        _
      $region32: #{tpu_custom_call.1} parent=11 // pred_fallthru
        _
      // Predicated region
      $region33: #{tpu_custom_call.1} parent=11 // pred_check
        %p243 = pneg %p166
      $region34: #{tpu_custom_call.1} parent=11 // pred_check_branch
        %245 = sbr.rel (%p243) target = $region36
      $region35: #{tpu_custom_call.1} parent=11 // pred_region
        _
      $region36: #{tpu_custom_call.1} parent=11 // pred_fallthru
        _
      // Predicated region
      $region37: #{tpu_custom_call.1} parent=11 // pred_check
        %p246 = pneg %p187
      $region38: #{tpu_custom_call.1} parent=11 // pred_check_branch
        %248 = sbr.rel (%p246) target = $region40
      $region39: #{tpu_custom_call.1} parent=11 // pred_region
        _
      $region40: #{tpu_custom_call.1} parent=11 // pred_fallthru
        _
    $region12: #{tpu_custom_call.1} parent=5 // pred_fallthru
      _
    %p249 = scmp.lt.s32.totalorder %s14, 2
    // Predicated region
    $region41: #{tpu_custom_call.1} parent=5 // pred_check
      %p250 = pneg %p249
    $region42: #{tpu_custom_call.1} parent=5 // pred_check_branch
      %252 = sbr.rel (%p250) target = $region44
    $region43: #{tpu_custom_call.1} parent=5 // pred_region
      // Predicated region
      $region45: #{tpu_custom_call.1} parent=43 // pred_check
        %p253 = pneg %p34
      $region46: #{tpu_custom_call.1} parent=43 // pred_check_branch
        %255 = sbr.rel (%p253) target = $region48
      $region47: #{tpu_custom_call.1} parent=43 // pred_region
        %p256 = scmp.lt.s32.totalorder %s14, 1
        %s257 = scalar_select %p256, %s14, 1
        %s258 = smul.addr %s257, 50
        %s259 = smul.addr %s258, 4
        %s260 = scalar_lea.vmem %s0, %s259
      $region48: #{tpu_custom_call.1} parent=43 // pred_fallthru
        _
    $region44: #{tpu_custom_call.1} parent=5 // pred_fallthru
      _
    %p261 = scmp.le.s32.totalorder 1, %s14
    %p262 = scmp.lt.s32.totalorder %s14, 3
    %p263 = pnand %p261, %p262
    %p264 = pneg %p263
    // Predicated region
    $region49: #{tpu_custom_call.1} parent=5 // pred_check
      _
    $region50: #{tpu_custom_call.1} parent=5 // pred_check_branch
      %266 = sbr.rel (%p263) target = $region52
    $region51: #{tpu_custom_call.1} parent=5 // pred_region
      %s267 = ssub.s32 %s14, 1
      %p268 = scmp.lt.s32.totalorder %s19, 1
      %s269 = scalar_select %p268, %s19, 1
      %s270 = smul.addr %s269, 50
      %s271 = smul.addr %s270, 4
      %s272 = scalar_lea.vmem %s0, %s271
      %p273 = pneg %p40
      %p274 = pneg %p37
      %p275 = pneg %p61
      %p276 = pneg %p58
      %p277 = pneg %p82
      %p278 = pneg %p79
      %p279 = pneg %p103
      %p280 = pneg %p100
      %p281 = pneg %p124
      %p282 = pneg %p121
      %p283 = pneg %p145
      %p284 = pneg %p142
      %p285 = pneg %p166
      %p286 = pneg %p163
      %p287 = pneg %p187
      %p288 = pneg %p184
      %p289 = pneg %p213
      %p290 = pneg %p210
      %p291 = scmp.lt.s32.totalorder %s19, 1
      %s292 = scalar_select %p291, %s19, 1
      %s293 = smul.addr %s292, 32
      %s294 = smul.addr %s293, 8
      %s295 = scalar_lea.vmem %s8, %s294
      %p296 = scmp.lt.s32.totalorder %s19, 1
      %s297 = scalar_select %p296, %s19, 1
      %s298 = smul.addr %s297, 50
      %s299 = smul.addr %s298, 4
      %s300 = scalar_lea.vmem %s0, %s299
      %p301 = scmp.lt.s32.totalorder %s19, 1
      %s302 = scalar_select %p301, %s19, 1
      %s303 = smul.addr %s302, 32
      %s304 = smul.addr %s303, 8
      %s305 = scalar_lea.vmem %s8, %s304
      %v307 = vld [vmem:[%s300 + $0x8] sm:$0xf]
      %v308 = vld [vmem:[%s300 + $0xc] sm:$0xf]
      %v309 = vld [vmem:[%s300 + $0x10] sm:$0xf]
      %v310 = vld [vmem:[%s300 + $0x14] sm:$0xf]
      %v311 = vld [vmem:[%s300 + $0x18] sm:$0xf]
      %v312 = vld [vmem:[%s300 + $0x1c] sm:$0xf]
      %v313 = vld [vmem:[%s300 + $0x20] sm:$0xf]
      %v314 = vld [vmem:[%s300 + $0x24] sm:$0xf]
      %v315 = vld [vmem:[%s300 + $0x28] sm:$0xf]
      %v316 = vld [vmem:[%s300 + $0x2c] sm:$0xf]
      %v317 = vld [vmem:[%s300 + $0x30] sm:$0xf]
      %v318 = vld [vmem:[%s300 + $0x34] sm:$0xf]
      %v319 = vld [vmem:[%s300 + $0x38] sm:$0xf]
      %v320 = vld [vmem:[%s300 + $0x3c] sm:$0xf]
      %v321 = vld [vmem:[%s300 + $0x40] sm:$0xf]
      %v322 = vld [vmem:[%s300 + $0x44] sm:$0xf]
      %v323 = vld [vmem:[%s300 + $0x48] sm:$0xf]
      %v324 = vld [vmem:[%s300 + $0x4c] sm:$0xf]
      %v325 = vld [vmem:[%s300 + $0x50] sm:$0xf]
      %v326 = vld [vmem:[%s300 + $0x54] sm:$0xf]
      %v327 = vld [vmem:[%s300 + $0x58] sm:$0xf]
      %v328 = vld [vmem:[%s300 + $0x5c] sm:$0xf]
      %v329 = vld [vmem:[%s300 + $0x60] sm:$0xf]
      %v330 = vld [vmem:[%s300 + $0x64] sm:$0xf]
      %v331 = vld [vmem:[%s300 + $0x68] sm:$0xf]
      %v332 = vld [vmem:[%s300 + $0x6c] sm:$0xf]
      %v333 = vld [vmem:[%s300 + $0x70] sm:$0xf]
      %v334 = vld [vmem:[%s300 + $0x74] sm:$0xf]
      %v335 = vld [vmem:[%s300 + $0x78] sm:$0xf]
      %v336 = vld [vmem:[%s300 + $0x7c] sm:$0xf]
      %v337 = vld [vmem:[%s300 + $0x80] sm:$0xf]
      %v338 = vld [vmem:[%s300 + $0x84] sm:$0xf]
      %v339 = vld [vmem:[%s300 + $0x88] sm:$0xf]
      %v340 = vld [vmem:[%s300 + $0x8c] sm:$0xf]
      %v341 = vld [vmem:[%s300 + $0x90] sm:$0xf]
      %v342 = vld [vmem:[%s300 + $0x94] sm:$0xf]
      %v343 = vld [vmem:[%s300 + $0x98] sm:$0xf]
      %v344 = vld [vmem:[%s300 + $0x9c] sm:$0xf]
      %v345 = vld [vmem:[%s300 + $0xa0] sm:$0xf]
      %v346 = vld [vmem:[%s300 + $0xa4] sm:$0xf]
      %v347 = vld [vmem:[%s300 + $0xa8] sm:$0x7]
      %v348 = vld [vmem:[%s2] sm:$0xf]
      %v349 = vld [vmem:[%s300 + $0x8] sm:$0xe]
      %s350 = scalar_lea.vmem %s2, 4
      %v351 = vld [vmem:[%s350] sm:$0xf]
      %v393 = vunpack.c.l.b16 %v349
      %v394 = vunpack.c.l.b16 %v308
      %v395 = vunpack.c.l.b16 %v309
      %v396 = vunpack.c.l.b16 %v310
      %v397 = vunpack.c.l.b16 %v311
      %v398 = vunpack.c.l.b16 %v312
      %v399 = vunpack.c.l.b16 %v313
      %v400 = vunpack.c.l.b16 %v314
      %v401 = vunpack.c.l.b16 %v315
      %v402 = vunpack.c.l.b16 %v316
      %v403 = vunpack.c.l.b16 %v317
      %v404 = vunpack.c.l.b16 %v318
      %v405 = vunpack.c.l.b16 %v319
      %v406 = vunpack.c.l.b16 %v320
      %v407 = vunpack.c.l.b16 %v321
      %v408 = vunpack.c.l.b16 %v322
      %v409 = vunpack.c.l.b16 %v323
      %v410 = vunpack.c.l.b16 %v324
      %v411 = vunpack.c.l.b16 %v325
      %v412 = vunpack.c.l.b16 %v326
      %v413 = vunpack.c.l.b16 %v327
      %v414 = vunpack.c.l.b16 %v328
      %v415 = vunpack.c.l.b16 %v329
      %v416 = vunpack.c.l.b16 %v330
      %v417 = vunpack.c.l.b16 %v331
      %v418 = vunpack.c.l.b16 %v332
      %v419 = vunpack.c.l.b16 %v333
      %v420 = vunpack.c.l.b16 %v334
      %v421 = vunpack.c.l.b16 %v335
      %v422 = vunpack.c.l.b16 %v336
      %v423 = vunpack.c.l.b16 %v337
      %v424 = vunpack.c.l.b16 %v338
      %v425 = vunpack.c.l.b16 %v339
      %v426 = vunpack.c.l.b16 %v340
      %v427 = vunpack.c.l.b16 %v341
      %v428 = vunpack.c.l.b16 %v342
      %v429 = vunpack.c.l.b16 %v343
      %v430 = vunpack.c.l.b16 %v344
      %v431 = vunpack.c.l.b16 %v345
      %v432 = vunpack.c.l.b16 %v346
      %v433 = vunpack.c.l.b16 %v347
      %v434 = vpack.c.b16 %v394, %v393
      %v435 = vpack.c.b16 %v396, %v395
      %v436 = vpack.c.b16 %v398, %v397
      %v437 = vpack.c.b16 %v400, %v399
      %v438 = vpack.c.b16 %v402, %v401
      %v439 = vpack.c.b16 %v404, %v403
      %v440 = vpack.c.b16 %v406, %v405
      %v441 = vpack.c.b16 %v408, %v407
      %v442 = vpack.c.b16 %v410, %v409
      %v443 = vpack.c.b16 %v412, %v411
      %v444 = vpack.c.b16 %v414, %v413
      %v445 = vpack.c.b16 %v416, %v415
      %v446 = vpack.c.b16 %v418, %v417
      %v447 = vpack.c.b16 %v420, %v419
      %v448 = vpack.c.b16 %v422, %v421
      %v449 = vpack.c.b16 %v424, %v423
      %v450 = vpack.c.b16 %v426, %v425
      %v451 = vpack.c.b16 %v428, %v427
      %v452 = vpack.c.b16 %v430, %v429
      %v453 = vpack.c.b16 %v432, %v431
      %v454 = vpack.c.b16 %v433, %v433
      %vm455 = vcmask 1046528
      %v456 = vrot.slane %v434, 1
      %v457 = vrot.slane %v435, 1
      %v458 = vsel %vm455, %v456, %v457
      %v459 = vrot.slane %v436, 1
      %v460 = vsel %vm455, %v457, %v459
      %v461 = vrot.slane %v437, 1
      %v462 = vsel %vm455, %v459, %v461
      %v463 = vrot.slane %v438, 1
      %v464 = vsel %vm455, %v461, %v463
      %v465 = vrot.slane %v439, 1
      %v466 = vsel %vm455, %v463, %v465
      %v467 = vrot.slane %v440, 1
      %v468 = vsel %vm455, %v465, %v467
      %v469 = vrot.slane %v441, 1
      %v470 = vsel %vm455, %v467, %v469
      %v471 = vrot.slane %v442, 1
      %v472 = vsel %vm455, %v469, %v471
      %v473 = vrot.slane %v443, 1
      %v474 = vsel %vm455, %v471, %v473
      %v475 = vrot.slane %v444, 1
      %v476 = vsel %vm455, %v473, %v475
      %v477 = vrot.slane %v445, 1
      %v478 = vsel %vm455, %v475, %v477
      %v479 = vrot.slane %v446, 1
      %v480 = vsel %vm455, %v477, %v479
      %v481 = vrot.slane %v447, 1
      %v482 = vsel %vm455, %v479, %v481
      %v483 = vrot.slane %v448, 1
      %v484 = vsel %vm455, %v481, %v483
      %v485 = vrot.slane %v449, 1
      %v486 = vsel %vm455, %v483, %v485
      %v487 = vrot.slane %v450, 1
      %v488 = vsel %vm455, %v485, %v487
      %v489 = vrot.slane %v451, 1
      %v490 = vsel %vm455, %v487, %v489
      %v491 = vrot.slane %v452, 1
      %v492 = vsel %vm455, %v489, %v491
      %v493 = vrot.slane %v453, 1
      %v494 = vsel %vm455, %v491, %v493
      %v495 = vrot.slane %v454, 1
      %v496 = vsel %vm455, %v493, %v495
      %vm497 = vcmask 64512
      %v499 = vsel %vm497, %v458, 0
      %v502 = vsel %vm497, %v460, 0
      %v505 = vsel %vm497, %v462, 0
      %v508 = vsel %vm497, %v464, 0
      %v511 = vsel %vm497, %v466, 0
      %v514 = vsel %vm497, %v468, 0
      %v517 = vsel %vm497, %v470, 0
      %v520 = vsel %vm497, %v472, 0
      %v523 = vsel %vm497, %v474, 0
      %v526 = vsel %vm497, %v476, 0
      %v529 = vsel %vm497, %v478, 0
      %v532 = vsel %vm497, %v480, 0
      %v535 = vsel %vm497, %v482, 0
      %v538 = vsel %vm497, %v484, 0
      %v541 = vsel %vm497, %v486, 0
      %v544 = vsel %vm497, %v488, 0
      %v547 = vsel %vm497, %v490, 0
      %v550 = vsel %vm497, %v492, 0
      %v553 = vsel %vm497, %v494, 0
      %v556 = vsel %vm497, %v496, 0
      %v559 = vsel %vm497, %v495, 0
      %vm561 = vcmask 1043456
      %v563 = vsel %vm561, %v351, 0
      %565 = vmatpush.bf16.msra.mxu0 0
      %566 = vmatpush.bf16.msra.mxu0 0
      %567 = vmatpush.bf16.msra.mxu0 0
      %568 = vmatpush.bf16.msra.mxu0 0
      %569 = vmatpush.bf16.msra.mxu0 0
      %570 = vmatpush.bf16.msra.mxu0 0
      %571 = vmatpush.bf16.msra.mxu0 0
      %572 = vmatpush.bf16.msra.mxu0 %v563
      %573 = vmatmul.bf16.gmra.mxu0 %v499
      %v574 = vpop.f32.mrf.mxu0
      %v575 = vadd.f32 0.0, %v574
      %v576 = vpop.f32.mrf.mxu0
      %v577 = vadd.f32 0.0, %v576
      %578 = vmatmul.bf16.gmra.mxu0 %v502
      %v579 = vpop.f32.mrf.mxu0
      %v580 = vadd.f32 0.0, %v579
      %v581 = vpop.f32.mrf.mxu0
      %v582 = vadd.f32 0.0, %v581
      %583 = vmatmul.bf16.gmra.mxu0 %v505
      %v584 = vpop.f32.mrf.mxu0
      %v585 = vadd.f32 0.0, %v584
      %v586 = vpop.f32.mrf.mxu0
      %v587 = vadd.f32 0.0, %v586
      %588 = vmatmul.bf16.gmra.mxu0 %v508
      %v589 = vpop.f32.mrf.mxu0
      %v590 = vadd.f32 0.0, %v589
      %v591 = vpop.f32.mrf.mxu0
      %v592 = vadd.f32 0.0, %v591
      %593 = vmatmul.bf16.gmra.mxu0 %v511
      %v594 = vpop.f32.mrf.mxu0
      %v595 = vadd.f32 0.0, %v594
      %v596 = vpop.f32.mrf.mxu0
      %v597 = vadd.f32 0.0, %v596
      %598 = vmatmul.bf16.gmra.mxu0 %v514
      %v599 = vpop.f32.mrf.mxu0
      %v600 = vadd.f32 0.0, %v599
      %v601 = vpop.f32.mrf.mxu0
      %v602 = vadd.f32 0.0, %v601
      %603 = vmatmul.bf16.gmra.mxu0 %v517
      %v604 = vpop.f32.mrf.mxu0
      %v605 = vadd.f32 0.0, %v604
      %v606 = vpop.f32.mrf.mxu0
      %v607 = vadd.f32 0.0, %v606
      %608 = vmatmul.bf16.gmra.mxu0 %v520
      %v609 = vpop.f32.mrf.mxu0
      %v610 = vadd.f32 0.0, %v609
      %v611 = vpop.f32.mrf.mxu0
      %v612 = vadd.f32 0.0, %v611
      %613 = vmatmul.bf16.gmra.mxu0 %v523
      %v614 = vpop.f32.mrf.mxu0
      %v615 = vadd.f32 0.0, %v614
      %v616 = vpop.f32.mrf.mxu0
      %v617 = vadd.f32 0.0, %v616
      %618 = vmatmul.bf16.gmra.mxu0 %v526
      %v619 = vpop.f32.mrf.mxu0
      %v620 = vadd.f32 0.0, %v619
      %v621 = vpop.f32.mrf.mxu0
      %v622 = vadd.f32 0.0, %v621
      %623 = vmatmul.bf16.gmra.mxu0 %v529
      %v624 = vpop.f32.mrf.mxu0
      %v625 = vadd.f32 0.0, %v624
      %v626 = vpop.f32.mrf.mxu0
      %v627 = vadd.f32 0.0, %v626
      %628 = vmatmul.bf16.gmra.mxu0 %v532
      %v629 = vpop.f32.mrf.mxu0
      %v630 = vadd.f32 0.0, %v629
      %v631 = vpop.f32.mrf.mxu0
      %v632 = vadd.f32 0.0, %v631
      %633 = vmatmul.bf16.gmra.mxu0 %v535
      %v634 = vpop.f32.mrf.mxu0
      %v635 = vadd.f32 0.0, %v634
      %v636 = vpop.f32.mrf.mxu0
      %v637 = vadd.f32 0.0, %v636
      %638 = vmatmul.bf16.gmra.mxu0 %v538
      %v639 = vpop.f32.mrf.mxu0
      %v640 = vadd.f32 0.0, %v639
      %v641 = vpop.f32.mrf.mxu0
      %v642 = vadd.f32 0.0, %v641
      %643 = vmatmul.bf16.gmra.mxu0 %v541
      %v644 = vpop.f32.mrf.mxu0
      %v645 = vadd.f32 0.0, %v644
      %v646 = vpop.f32.mrf.mxu0
      %v647 = vadd.f32 0.0, %v646
      %648 = vmatmul.bf16.gmra.mxu0 %v544
      %v649 = vpop.f32.mrf.mxu0
      %v650 = vadd.f32 0.0, %v649
      %v651 = vpop.f32.mrf.mxu0
      %v652 = vadd.f32 0.0, %v651
      %653 = vmatmul.bf16.gmra.mxu0 %v547
      %v654 = vpop.f32.mrf.mxu0
      %v655 = vadd.f32 0.0, %v654
      %v656 = vpop.f32.mrf.mxu0
      %v657 = vadd.f32 0.0, %v656
      %658 = vmatmul.bf16.gmra.mxu0 %v550
      %v659 = vpop.f32.mrf.mxu0
      %v660 = vadd.f32 0.0, %v659
      %v661 = vpop.f32.mrf.mxu0
      %v662 = vadd.f32 0.0, %v661
      %663 = vmatmul.bf16.gmra.mxu0 %v553
      %v664 = vpop.f32.mrf.mxu0
      %v665 = vadd.f32 0.0, %v664
      %v666 = vpop.f32.mrf.mxu0
      %v667 = vadd.f32 0.0, %v666
      %668 = vmatmul.bf16.gmra.mxu0 %v556
      %v669 = vpop.f32.mrf.mxu0
      %v670 = vadd.f32 0.0, %v669
      %v671 = vpop.f32.mrf.mxu0
      %v672 = vadd.f32 0.0, %v671
      %673 = vmatmul.bf16.gmra.mxu0 %v559
      %v674 = vpop.f32.mrf.mxu0
      %v675 = vadd.f32 0.0, %v674
      %v676 = vpop.f32.mrf.mxu0
      %677 = vdwg.mxu0
      %v679 = vunpack.c.l.b16 %v307
      %v680 = vpack.c.b16 %v394, %v679
      %vm681 = vsmask.f32 7424
      %v683 = vshrl.u32 %v680, 16
      %v685 = vshll.u32 %v680, 16
      %v687 = vrot.slane %v685, 1
      %v688 = vor.u32 %v683, %v687
      %v690 = vshll.u32 %v435, 16
      %v692 = vrot.slane %v690, 1
      %v693 = vsel %vm681, %v688, %v692
      %v694 = vshrl.u32 %v435, 16
      %v696 = vor.u32 %v694, %v692
      %v698 = vshll.u32 %v436, 16
      %v700 = vrot.slane %v698, 1
      %v701 = vsel %vm681, %v696, %v700
      %v702 = vshrl.u32 %v436, 16
      %v704 = vor.u32 %v702, %v700
      %v706 = vshll.u32 %v437, 16
      %v708 = vrot.slane %v706, 1
      %v709 = vsel %vm681, %v704, %v708
      %v710 = vshrl.u32 %v437, 16
      %v712 = vor.u32 %v710, %v708
      %v714 = vshll.u32 %v438, 16
      %v716 = vrot.slane %v714, 1
      %v717 = vsel %vm681, %v712, %v716
      %v718 = vshrl.u32 %v438, 16
      %v720 = vor.u32 %v718, %v716
      %v722 = vshll.u32 %v439, 16
      %v724 = vrot.slane %v722, 1
      %v725 = vsel %vm681, %v720, %v724
      %v726 = vshrl.u32 %v439, 16
      %v728 = vor.u32 %v726, %v724
      %v730 = vshll.u32 %v440, 16
      %v732 = vrot.slane %v730, 1
      %v733 = vsel %vm681, %v728, %v732
      %v734 = vshrl.u32 %v440, 16
      %v736 = vor.u32 %v734, %v732
      %v738 = vshll.u32 %v441, 16
      %v740 = vrot.slane %v738, 1
      %v741 = vsel %vm681, %v736, %v740
      %v742 = vshrl.u32 %v441, 16
      %v744 = vor.u32 %v742, %v740
      %v746 = vshll.u32 %v442, 16
      %v748 = vrot.slane %v746, 1
      %v749 = vsel %vm681, %v744, %v748
      %v750 = vshrl.u32 %v442, 16
      %v752 = vor.u32 %v750, %v748
      %v754 = vshll.u32 %v443, 16
      %v756 = vrot.slane %v754, 1
      %v757 = vsel %vm681, %v752, %v756
      %v758 = vshrl.u32 %v443, 16
      %v760 = vor.u32 %v758, %v756
      %v762 = vshll.u32 %v444, 16
      %v764 = vrot.slane %v762, 1
      %v765 = vsel %vm681, %v760, %v764
      %v766 = vshrl.u32 %v444, 16
      %v768 = vor.u32 %v766, %v764
      %v770 = vshll.u32 %v445, 16
      %v772 = vrot.slane %v770, 1
      %v773 = vsel %vm681, %v768, %v772
      %v774 = vshrl.u32 %v445, 16
      %v776 = vor.u32 %v774, %v772
      %v778 = vshll.u32 %v446, 16
      %v780 = vrot.slane %v778, 1
      %v781 = vsel %vm681, %v776, %v780
      %v782 = vshrl.u32 %v446, 16
      %v784 = vor.u32 %v782, %v780
      %v786 = vshll.u32 %v447, 16
      %v788 = vrot.slane %v786, 1
      %v789 = vsel %vm681, %v784, %v788
      %v790 = vshrl.u32 %v447, 16
      %v792 = vor.u32 %v790, %v788
      %v794 = vshll.u32 %v448, 16
      %v796 = vrot.slane %v794, 1
      %v797 = vsel %vm681, %v792, %v796
      %v798 = vshrl.u32 %v448, 16
      %v800 = vor.u32 %v798, %v796
      %v802 = vshll.u32 %v449, 16
      %v804 = vrot.slane %v802, 1
      %v805 = vsel %vm681, %v800, %v804
      %v806 = vshrl.u32 %v449, 16
      %v808 = vor.u32 %v806, %v804
      %v810 = vshll.u32 %v450, 16
      %v812 = vrot.slane %v810, 1
      %v813 = vsel %vm681, %v808, %v812
      %v814 = vshrl.u32 %v450, 16
      %v816 = vor.u32 %v814, %v812
      %v818 = vshll.u32 %v451, 16
      %v820 = vrot.slane %v818, 1
      %v821 = vsel %vm681, %v816, %v820
      %v822 = vshrl.u32 %v451, 16
      %v824 = vor.u32 %v822, %v820
      %v826 = vshll.u32 %v452, 16
      %v828 = vrot.slane %v826, 1
      %v829 = vsel %vm681, %v824, %v828
      %v830 = vshrl.u32 %v452, 16
      %v832 = vor.u32 %v830, %v828
      %v834 = vshll.u32 %v453, 16
      %v836 = vrot.slane %v834, 1
      %v837 = vsel %vm681, %v832, %v836
      %v838 = vshrl.u32 %v453, 16
      %v840 = vor.u32 %v838, %v836
      %v842 = vshll.u32 %v454, 16
      %v844 = vrot.slane %v842, 1
      %v845 = vsel %vm681, %v840, %v844
      %v846 = vshrl.u32 %v454, 16
      %v848 = vor.u32 %v846, %v844
      %v850 = vsel %vm497, %v693, 0
      %v853 = vsel %vm497, %v701, 0
      %v856 = vsel %vm497, %v709, 0
      %v859 = vsel %vm497, %v717, 0
      %v862 = vsel %vm497, %v725, 0
      %v865 = vsel %vm497, %v733, 0
      %v868 = vsel %vm497, %v741, 0
      %v871 = vsel %vm497, %v749, 0
      %v874 = vsel %vm497, %v757, 0
      %v877 = vsel %vm497, %v765, 0
      %v880 = vsel %vm497, %v773, 0
      %v883 = vsel %vm497, %v781, 0
      %v886 = vsel %vm497, %v789, 0
      %v889 = vsel %vm497, %v797, 0
      %v892 = vsel %vm497, %v805, 0
      %v895 = vsel %vm497, %v813, 0
      %v898 = vsel %vm497, %v821, 0
      %v901 = vsel %vm497, %v829, 0
      %v904 = vsel %vm497, %v837, 0
      %v907 = vsel %vm497, %v845, 0
      %v910 = vsel %vm497, %v848, 0
      %v913 = vsel %vm561, %v348, 0
      %915 = vmatpush.bf16.msra.mxu0 0
      %916 = vmatpush.bf16.msra.mxu0 0
      %917 = vmatpush.bf16.msra.mxu0 0
      %918 = vmatpush.bf16.msra.mxu0 0
      %919 = vmatpush.bf16.msra.mxu0 0
      %920 = vmatpush.bf16.msra.mxu0 0
      %921 = vmatpush.bf16.msra.mxu0 0
      %922 = vmatpush.bf16.msra.mxu0 %v913
      %923 = vmatmul.bf16.gmra.mxu0 %v850
      %v924 = vpop.f32.mrf.mxu0
      %v925 = vadd.f32 %v575, %v924
      %v926 = vpop.f32.mrf.mxu0
      %v927 = vadd.f32 %v577, %v926
      %928 = vmatmul.bf16.gmra.mxu0 %v853
      %v929 = vpop.f32.mrf.mxu0
      %v930 = vadd.f32 %v580, %v929
      %v931 = vpop.f32.mrf.mxu0
      %v932 = vadd.f32 %v582, %v931
      %933 = vmatmul.bf16.gmra.mxu0 %v856
      %v934 = vpop.f32.mrf.mxu0
      %v935 = vadd.f32 %v585, %v934
      %v936 = vpop.f32.mrf.mxu0
      %v937 = vadd.f32 %v587, %v936
      %938 = vmatmul.bf16.gmra.mxu0 %v859
      %v939 = vpop.f32.mrf.mxu0
      %v940 = vadd.f32 %v590, %v939
      %v941 = vpop.f32.mrf.mxu0
      %v942 = vadd.f32 %v592, %v941
      %943 = vmatmul.bf16.gmra.mxu0 %v862
      %v944 = vpop.f32.mrf.mxu0
      %v945 = vadd.f32 %v595, %v944
      %v946 = vpop.f32.mrf.mxu0
      %v947 = vadd.f32 %v597, %v946
      %948 = vmatmul.bf16.gmra.mxu0 %v865
      %v949 = vpop.f32.mrf.mxu0
      %v950 = vadd.f32 %v600, %v949
      %v951 = vpop.f32.mrf.mxu0
      %v952 = vadd.f32 %v602, %v951
      %953 = vmatmul.bf16.gmra.mxu0 %v868
      %v954 = vpop.f32.mrf.mxu0
      %v955 = vadd.f32 %v605, %v954
      %v956 = vpop.f32.mrf.mxu0
      %v957 = vadd.f32 %v607, %v956
      %958 = vmatmul.bf16.gmra.mxu0 %v871
      %v959 = vpop.f32.mrf.mxu0
      %v960 = vadd.f32 %v610, %v959
      %v961 = vpop.f32.mrf.mxu0
      %v962 = vadd.f32 %v612, %v961
      %963 = vmatmul.bf16.gmra.mxu0 %v874
      %v964 = vpop.f32.mrf.mxu0
      %v965 = vadd.f32 %v615, %v964
      %v966 = vpop.f32.mrf.mxu0
      %v967 = vadd.f32 %v617, %v966
      %968 = vmatmul.bf16.gmra.mxu0 %v877
      %v969 = vpop.f32.mrf.mxu0
      %v970 = vadd.f32 %v620, %v969
      %v971 = vpop.f32.mrf.mxu0
      %v972 = vadd.f32 %v622, %v971
      %973 = vmatmul.bf16.gmra.mxu0 %v880
      %v974 = vpop.f32.mrf.mxu0
      %v975 = vadd.f32 %v625, %v974
      %v976 = vpop.f32.mrf.mxu0
      %v977 = vadd.f32 %v627, %v976
      %978 = vmatmul.bf16.gmra.mxu0 %v883
      %v979 = vpop.f32.mrf.mxu0
      %v980 = vadd.f32 %v630, %v979
      %v981 = vpop.f32.mrf.mxu0
      %v982 = vadd.f32 %v632, %v981
      %983 = vmatmul.bf16.gmra.mxu0 %v886
      %v984 = vpop.f32.mrf.mxu0
      %v985 = vadd.f32 %v635, %v984
      %v986 = vpop.f32.mrf.mxu0
      %v987 = vadd.f32 %v637, %v986
      %988 = vmatmul.bf16.gmra.mxu0 %v889
      %v989 = vpop.f32.mrf.mxu0
      %v990 = vadd.f32 %v640, %v989
      %v991 = vpop.f32.mrf.mxu0
      %v992 = vadd.f32 %v642, %v991
      %993 = vmatmul.bf16.gmra.mxu0 %v892
      %v994 = vpop.f32.mrf.mxu0
      %v995 = vadd.f32 %v645, %v994
      %v996 = vpop.f32.mrf.mxu0
      %v997 = vadd.f32 %v647, %v996
      %998 = vmatmul.bf16.gmra.mxu0 %v895
      %v999 = vpop.f32.mrf.mxu0
      %v1000 = vadd.f32 %v650, %v999
      %v1001 = vpop.f32.mrf.mxu0
      %v1002 = vadd.f32 %v652, %v1001
      %1003 = vmatmul.bf16.gmra.mxu0 %v898
      %v1004 = vpop.f32.mrf.mxu0
      %v1005 = vadd.f32 %v655, %v1004
      %v1006 = vpop.f32.mrf.mxu0
      %v1007 = vadd.f32 %v657, %v1006
      %1008 = vmatmul.bf16.gmra.mxu0 %v901
      %v1009 = vpop.f32.mrf.mxu0
      %v1010 = vadd.f32 %v660, %v1009
      %v1011 = vpop.f32.mrf.mxu0
      %v1012 = vadd.f32 %v662, %v1011
      %1013 = vmatmul.bf16.gmra.mxu0 %v904
      %v1014 = vpop.f32.mrf.mxu0
      %v1015 = vadd.f32 %v665, %v1014
      %v1016 = vpop.f32.mrf.mxu0
      %v1017 = vadd.f32 %v667, %v1016
      %1018 = vmatmul.bf16.gmra.mxu0 %v907
      %v1019 = vpop.f32.mrf.mxu0
      %v1020 = vadd.f32 %v670, %v1019
      %v1021 = vpop.f32.mrf.mxu0
      %v1022 = vadd.f32 %v672, %v1021
      %1023 = vmatmul.bf16.gmra.mxu0 %v910
      %v1024 = vpop.f32.mrf.mxu0
      %v1025 = vadd.f32 %v675, %v1024
      %v1026 = vpop.f32.mrf.mxu0
      %1027 = vdwg.mxu0
      %v1028 = vld [vmem:[%s300 + $0xa8] sm:$0xf]
      %s1029 = scalar_lea.vmem %s2, 8
      %v1030 = vld [vmem:[%s1029] sm:$0xf]
      %v1032 = vunpack.c.l.b16 %v1028
      %v1033 = vpack.c.b16 %v1032, %v1032
      %vm1034 = vsmask.f32 6400
      %v1036 = vshrl.u32 %v434, 16
      %v1038 = vrot.slane %v1036, 1
      %v1039 = vshll.u32 %v434, 16
      %v1041 = vrot.slane %v1039, 2
      %v1042 = vor.u32 %v1038, %v1041
      %v1043 = vrot.slane %v694, 1
      %v1044 = vrot.slane %v690, 2
      %v1045 = vor.u32 %v1043, %v1044
      %v1046 = vsel %vm1034, %v1042, %v1045
      %v1047 = vrot.slane %v702, 1
      %v1048 = vrot.slane %v698, 2
      %v1049 = vor.u32 %v1047, %v1048
      %v1050 = vsel %vm1034, %v1045, %v1049
      %v1051 = vrot.slane %v710, 1
      %v1052 = vrot.slane %v706, 2
      %v1053 = vor.u32 %v1051, %v1052
      %v1054 = vsel %vm1034, %v1049, %v1053
      %v1055 = vrot.slane %v718, 1
      %v1056 = vrot.slane %v714, 2
      %v1057 = vor.u32 %v1055, %v1056
      %v1058 = vsel %vm1034, %v1053, %v1057
      %v1059 = vrot.slane %v726, 1
      %v1060 = vrot.slane %v722, 2
      %v1061 = vor.u32 %v1059, %v1060
      %v1062 = vsel %vm1034, %v1057, %v1061
      %v1063 = vrot.slane %v734, 1
      %v1064 = vrot.slane %v730, 2
      %v1065 = vor.u32 %v1063, %v1064
      %v1066 = vsel %vm1034, %v1061, %v1065
      %v1067 = vrot.slane %v742, 1
      %v1068 = vrot.slane %v738, 2
      %v1069 = vor.u32 %v1067, %v1068
      %v1070 = vsel %vm1034, %v1065, %v1069
      %v1071 = vrot.slane %v750, 1
      %v1072 = vrot.slane %v746, 2
      %v1073 = vor.u32 %v1071, %v1072
      %v1074 = vsel %vm1034, %v1069, %v1073
      %v1075 = vrot.slane %v758, 1
      %v1076 = vrot.slane %v754, 2
      %v1077 = vor.u32 %v1075, %v1076
      %v1078 = vsel %vm1034, %v1073, %v1077
      %v1079 = vrot.slane %v766, 1
      %v1080 = vrot.slane %v762, 2
      %v1081 = vor.u32 %v1079, %v1080
      %v1082 = vsel %vm1034, %v1077, %v1081
      %v1083 = vrot.slane %v774, 1
      %v1084 = vrot.slane %v770, 2
      %v1085 = vor.u32 %v1083, %v1084
      %v1086 = vsel %vm1034, %v1081, %v1085
      %v1087 = vrot.slane %v782, 1
      %v1088 = vrot.slane %v778, 2
      %v1089 = vor.u32 %v1087, %v1088
      %v1090 = vsel %vm1034, %v1085, %v1089
      %v1091 = vrot.slane %v790, 1
      %v1092 = vrot.slane %v786, 2
      %v1093 = vor.u32 %v1091, %v1092
      %v1094 = vsel %vm1034, %v1089, %v1093
      %v1095 = vrot.slane %v798, 1
      %v1096 = vrot.slane %v794, 2
      %v1097 = vor.u32 %v1095, %v1096
      %v1098 = vsel %vm1034, %v1093, %v1097
      %v1099 = vrot.slane %v806, 1
      %v1100 = vrot.slane %v802, 2
      %v1101 = vor.u32 %v1099, %v1100
      %v1102 = vsel %vm1034, %v1097, %v1101
      %v1103 = vrot.slane %v814, 1
      %v1104 = vrot.slane %v810, 2
      %v1105 = vor.u32 %v1103, %v1104
      %v1106 = vsel %vm1034, %v1101, %v1105
      %v1107 = vrot.slane %v822, 1
      %v1108 = vrot.slane %v818, 2
      %v1109 = vor.u32 %v1107, %v1108
      %v1110 = vsel %vm1034, %v1105, %v1109
      %v1111 = vrot.slane %v830, 1
      %v1112 = vrot.slane %v826, 2
      %v1113 = vor.u32 %v1111, %v1112
      %v1114 = vsel %vm1034, %v1109, %v1113
      %v1115 = vrot.slane %v838, 1
      %v1116 = vrot.slane %v834, 2
      %v1117 = vor.u32 %v1115, %v1116
      %v1118 = vsel %vm1034, %v1113, %v1117
      %v1120 = vshrl.u32 %v1033, 16
      %v1122 = vrot.slane %v1120, 1
      %v1123 = vshll.u32 %v1033, 16
      %v1125 = vrot.slane %v1123, 2
      %v1126 = vor.u32 %v1122, %v1125
      %v1127 = vsel %vm1034, %v1117, %v1126
      %v1129 = vsel %vm497, %v1046, 0
      %v1132 = vsel %vm497, %v1050, 0
      %v1135 = vsel %vm497, %v1054, 0
      %v1138 = vsel %vm497, %v1058, 0
      %v1141 = vsel %vm497, %v1062, 0
      %v1144 = vsel %vm497, %v1066, 0
      %v1147 = vsel %vm497, %v1070, 0
      %v1150 = vsel %vm497, %v1074, 0
      %v1153 = vsel %vm497, %v1078, 0
      %v1156 = vsel %vm497, %v1082, 0
      %v1159 = vsel %vm497, %v1086, 0
      %v1162 = vsel %vm497, %v1090, 0
      %v1165 = vsel %vm497, %v1094, 0
      %v1168 = vsel %vm497, %v1098, 0
      %v1171 = vsel %vm497, %v1102, 0
      %v1174 = vsel %vm497, %v1106, 0
      %v1177 = vsel %vm497, %v1110, 0
      %v1180 = vsel %vm497, %v1114, 0
      %v1183 = vsel %vm497, %v1118, 0
      %v1186 = vsel %vm497, %v1127, 0
      %v1189 = vsel %vm497, %v1126, 0
      %v1192 = vsel %vm561, %v1030, 0
      %1194 = vmatpush.bf16.msra.mxu0 0
      %1195 = vmatpush.bf16.msra.mxu0 0
      %1196 = vmatpush.bf16.msra.mxu0 0
      %1197 = vmatpush.bf16.msra.mxu0 0
      %1198 = vmatpush.bf16.msra.mxu0 0
      %1199 = vmatpush.bf16.msra.mxu0 0
      %1200 = vmatpush.bf16.msra.mxu0 0
      %1201 = vmatpush.bf16.msra.mxu0 %v1192
      %1202 = vmatmul.bf16.gmra.mxu0 %v1129
      %v1203 = vpop.f32.mrf.mxu0
      %v1204 = vadd.f32 0.0, %v1203
      %v1205 = vpop.f32.mrf.mxu0
      %v1206 = vadd.f32 0.0, %v1205
      %1207 = vmatmul.bf16.gmra.mxu0 %v1132
      %v1208 = vpop.f32.mrf.mxu0
      %v1209 = vadd.f32 0.0, %v1208
      %v1210 = vpop.f32.mrf.mxu0
      %v1211 = vadd.f32 0.0, %v1210
      %1212 = vmatmul.bf16.gmra.mxu0 %v1135
      %v1213 = vpop.f32.mrf.mxu0
      %v1214 = vadd.f32 0.0, %v1213
      %v1215 = vpop.f32.mrf.mxu0
      %v1216 = vadd.f32 0.0, %v1215
      %1217 = vmatmul.bf16.gmra.mxu0 %v1138
      %v1218 = vpop.f32.mrf.mxu0
      %v1219 = vadd.f32 0.0, %v1218
      %v1220 = vpop.f32.mrf.mxu0
      %v1221 = vadd.f32 0.0, %v1220
      %1222 = vmatmul.bf16.gmra.mxu0 %v1141
      %v1223 = vpop.f32.mrf.mxu0
      %v1224 = vadd.f32 0.0, %v1223
      %v1225 = vpop.f32.mrf.mxu0
      %v1226 = vadd.f32 0.0, %v1225
      %1227 = vmatmul.bf16.gmra.mxu0 %v1144
      %v1228 = vpop.f32.mrf.mxu0
      %v1229 = vadd.f32 0.0, %v1228
      %v1230 = vpop.f32.mrf.mxu0
      %v1231 = vadd.f32 0.0, %v1230
      %1232 = vmatmul.bf16.gmra.mxu0 %v1147
      %v1233 = vpop.f32.mrf.mxu0
      %v1234 = vadd.f32 0.0, %v1233
      %v1235 = vpop.f32.mrf.mxu0
      %v1236 = vadd.f32 0.0, %v1235
      %1237 = vmatmul.bf16.gmra.mxu0 %v1150
      %v1238 = vpop.f32.mrf.mxu0
      %v1239 = vadd.f32 0.0, %v1238
      %v1240 = vpop.f32.mrf.mxu0
      %v1241 = vadd.f32 0.0, %v1240
      %1242 = vmatmul.bf16.gmra.mxu0 %v1153
      %v1243 = vpop.f32.mrf.mxu0
      %v1244 = vadd.f32 0.0, %v1243
      %v1245 = vpop.f32.mrf.mxu0
      %v1246 = vadd.f32 0.0, %v1245
      %1247 = vmatmul.bf16.gmra.mxu0 %v1156
      %v1248 = vpop.f32.mrf.mxu0
      %v1249 = vadd.f32 0.0, %v1248
      %v1250 = vpop.f32.mrf.mxu0
      %v1251 = vadd.f32 0.0, %v1250
      %1252 = vmatmul.bf16.gmra.mxu0 %v1159
      %v1253 = vpop.f32.mrf.mxu0
      %v1254 = vadd.f32 0.0, %v1253
      %v1255 = vpop.f32.mrf.mxu0
      %v1256 = vadd.f32 0.0, %v1255
      %1257 = vmatmul.bf16.gmra.mxu0 %v1162
      %v1258 = vpop.f32.mrf.mxu0
      %v1259 = vadd.f32 0.0, %v1258
      %v1260 = vpop.f32.mrf.mxu0
      %v1261 = vadd.f32 0.0, %v1260
      %1262 = vmatmul.bf16.gmra.mxu0 %v1165
      %v1263 = vpop.f32.mrf.mxu0
      %v1264 = vadd.f32 0.0, %v1263
      %v1265 = vpop.f32.mrf.mxu0
      %v1266 = vadd.f32 0.0, %v1265
      %1267 = vmatmul.bf16.gmra.mxu0 %v1168
      %v1268 = vpop.f32.mrf.mxu0
      %v1269 = vadd.f32 0.0, %v1268
      %v1270 = vpop.f32.mrf.mxu0
      %v1271 = vadd.f32 0.0, %v1270
      %1272 = vmatmul.bf16.gmra.mxu0 %v1171
      %v1273 = vpop.f32.mrf.mxu0
      %v1274 = vadd.f32 0.0, %v1273
      %v1275 = vpop.f32.mrf.mxu0
      %v1276 = vadd.f32 0.0, %v1275
      %1277 = vmatmul.bf16.gmra.mxu0 %v1174
      %v1278 = vpop.f32.mrf.mxu0
      %v1279 = vadd.f32 0.0, %v1278
      %v1280 = vpop.f32.mrf.mxu0
      %v1281 = vadd.f32 0.0, %v1280
      %1282 = vmatmul.bf16.gmra.mxu0 %v1177
      %v1283 = vpop.f32.mrf.mxu0
      %v1284 = vadd.f32 0.0, %v1283
      %v1285 = vpop.f32.mrf.mxu0
      %v1286 = vadd.f32 0.0, %v1285
      %1287 = vmatmul.bf16.gmra.mxu0 %v1180
      %v1288 = vpop.f32.mrf.mxu0
      %v1289 = vadd.f32 0.0, %v1288
      %v1290 = vpop.f32.mrf.mxu0
      %v1291 = vadd.f32 0.0, %v1290
      %1292 = vmatmul.bf16.gmra.mxu0 %v1183
      %v1293 = vpop.f32.mrf.mxu0
      %v1294 = vadd.f32 0.0, %v1293
      %v1295 = vpop.f32.mrf.mxu0
      %v1296 = vadd.f32 0.0, %v1295
      %1297 = vmatmul.bf16.gmra.mxu0 %v1186
      %v1298 = vpop.f32.mrf.mxu0
      %v1299 = vadd.f32 0.0, %v1298
      %v1300 = vpop.f32.mrf.mxu0
      %v1301 = vadd.f32 0.0, %v1300
      %1302 = vmatmul.bf16.gmra.mxu0 %v1189
      %v1303 = vpop.f32.mrf.mxu0
      %v1304 = vadd.f32 0.0, %v1303
      %v1305 = vpop.f32.mrf.mxu0
      %1306 = vdwg.mxu0
      %v1307 = vadd.f32 %v925, %v1204
      %v1308 = vadd.f32 %v927, %v1206
      %v1309 = vadd.f32 %v930, %v1209
      %v1310 = vadd.f32 %v932, %v1211
      %v1311 = vadd.f32 %v935, %v1214
      %v1312 = vadd.f32 %v937, %v1216
      %v1313 = vadd.f32 %v940, %v1219
      %v1314 = vadd.f32 %v942, %v1221
      %v1315 = vadd.f32 %v945, %v1224
      %v1316 = vadd.f32 %v947, %v1226
      %v1317 = vadd.f32 %v950, %v1229
      %v1318 = vadd.f32 %v952, %v1231
      %v1319 = vadd.f32 %v955, %v1234
      %v1320 = vadd.f32 %v957, %v1236
      %v1321 = vadd.f32 %v960, %v1239
      %v1322 = vadd.f32 %v962, %v1241
      %v1323 = vadd.f32 %v965, %v1244
      %v1324 = vadd.f32 %v967, %v1246
      %v1325 = vadd.f32 %v970, %v1249
      %v1326 = vadd.f32 %v972, %v1251
      %v1327 = vadd.f32 %v975, %v1254
      %v1328 = vadd.f32 %v977, %v1256
      %v1329 = vadd.f32 %v980, %v1259
      %v1330 = vadd.f32 %v982, %v1261
      %v1331 = vadd.f32 %v985, %v1264
      %v1332 = vadd.f32 %v987, %v1266
      %v1333 = vadd.f32 %v990, %v1269
      %v1334 = vadd.f32 %v992, %v1271
      %v1335 = vadd.f32 %v995, %v1274
      %v1336 = vadd.f32 %v997, %v1276
      %v1337 = vadd.f32 %v1000, %v1279
      %v1338 = vadd.f32 %v1002, %v1281
      %v1339 = vadd.f32 %v1005, %v1284
      %v1340 = vadd.f32 %v1007, %v1286
      %v1341 = vadd.f32 %v1010, %v1289
      %v1342 = vadd.f32 %v1012, %v1291
      %v1343 = vadd.f32 %v1015, %v1294
      %v1344 = vadd.f32 %v1017, %v1296
      %v1345 = vadd.f32 %v1020, %v1299
      %v1346 = vadd.f32 %v1022, %v1301
      %v1347 = vadd.f32 %v1025, %v1304
      %v1348 = vld [vmem:[%s300 + $0x10] sm:$0xe]
      %v1349 = vld [vmem:[%s300 + $0x14] sm:$0xf]
      %v1350 = vld [vmem:[%s300 + $0x18] sm:$0xf]
      %v1351 = vld [vmem:[%s300 + $0x1c] sm:$0xf]
      %v1352 = vld [vmem:[%s300 + $0x20] sm:$0xf]
      %v1353 = vld [vmem:[%s300 + $0x24] sm:$0xf]
      %v1354 = vld [vmem:[%s300 + $0x28] sm:$0xf]
      %v1355 = vld [vmem:[%s300 + $0x2c] sm:$0xf]
      %v1356 = vld [vmem:[%s300 + $0x30] sm:$0xf]
      %v1357 = vld [vmem:[%s300 + $0x34] sm:$0xf]
      %v1358 = vld [vmem:[%s300 + $0x38] sm:$0xf]
      %v1359 = vld [vmem:[%s300 + $0x3c] sm:$0xf]
      %v1360 = vld [vmem:[%s300 + $0x40] sm:$0xf]
      %v1361 = vld [vmem:[%s300 + $0x44] sm:$0xf]
      %v1362 = vld [vmem:[%s300 + $0x48] sm:$0xf]
      %v1363 = vld [vmem:[%s300 + $0x4c] sm:$0xf]
      %v1364 = vld [vmem:[%s300 + $0x50] sm:$0xf]
      %v1365 = vld [vmem:[%s300 + $0x54] sm:$0xf]
      %v1366 = vld [vmem:[%s300 + $0x58] sm:$0xf]
      %v1367 = vld [vmem:[%s300 + $0x5c] sm:$0xf]
      %v1368 = vld [vmem:[%s300 + $0x60] sm:$0xf]
      %v1369 = vld [vmem:[%s300 + $0x64] sm:$0xf]
      %v1370 = vld [vmem:[%s300 + $0x68] sm:$0xf]
      %v1371 = vld [vmem:[%s300 + $0x6c] sm:$0xf]
      %v1372 = vld [vmem:[%s300 + $0x70] sm:$0xf]
      %v1373 = vld [vmem:[%s300 + $0x74] sm:$0xf]
      %v1374 = vld [vmem:[%s300 + $0x78] sm:$0xf]
      %v1375 = vld [vmem:[%s300 + $0x7c] sm:$0xf]
      %v1376 = vld [vmem:[%s300 + $0x80] sm:$0xf]
      %v1377 = vld [vmem:[%s300 + $0x84] sm:$0xf]
      %v1378 = vld [vmem:[%s300 + $0x88] sm:$0xf]
      %v1379 = vld [vmem:[%s300 + $0x8c] sm:$0xf]
      %v1380 = vld [vmem:[%s300 + $0x90] sm:$0xf]
      %v1381 = vld [vmem:[%s300 + $0x94] sm:$0xf]
      %v1382 = vld [vmem:[%s300 + $0x98] sm:$0xf]
      %v1383 = vld [vmem:[%s300 + $0x9c] sm:$0xf]
      %v1384 = vld [vmem:[%s300 + $0xa0] sm:$0xf]
      %v1385 = vld [vmem:[%s300 + $0xa4] sm:$0xf]
      %v1386 = vld [vmem:[%s300 + $0xa8] sm:$0xf]
      %v1387 = vld [vmem:[%s300 + $0xac] sm:$0xf]
      %v1388 = vld [vmem:[%s300 + $0xb0] sm:$0xf]
      %s1389 = scalar_lea.vmem %s2, 12
      %v1390 = vld [vmem:[%s1389] sm:$0xf]
      %v1432 = vunpack.c.l.b16 %v1348
      %v1433 = vunpack.c.l.b16 %v1349
      %v1434 = vunpack.c.l.b16 %v1350
      %v1435 = vunpack.c.l.b16 %v1351
      %v1436 = vunpack.c.l.b16 %v1352
      %v1437 = vunpack.c.l.b16 %v1353
      %v1438 = vunpack.c.l.b16 %v1354
      %v1439 = vunpack.c.l.b16 %v1355
      %v1440 = vunpack.c.l.b16 %v1356
      %v1441 = vunpack.c.l.b16 %v1357
      %v1442 = vunpack.c.l.b16 %v1358
      %v1443 = vunpack.c.l.b16 %v1359
      %v1444 = vunpack.c.l.b16 %v1360
      %v1445 = vunpack.c.l.b16 %v1361
      %v1446 = vunpack.c.l.b16 %v1362
      %v1447 = vunpack.c.l.b16 %v1363
      %v1448 = vunpack.c.l.b16 %v1364
      %v1449 = vunpack.c.l.b16 %v1365
      %v1450 = vunpack.c.l.b16 %v1366
      %v1451 = vunpack.c.l.b16 %v1367
      %v1452 = vunpack.c.l.b16 %v1368
      %v1453 = vunpack.c.l.b16 %v1369
      %v1454 = vunpack.c.l.b16 %v1370
      %v1455 = vunpack.c.l.b16 %v1371
      %v1456 = vunpack.c.l.b16 %v1372
      %v1457 = vunpack.c.l.b16 %v1373
      %v1458 = vunpack.c.l.b16 %v1374
      %v1459 = vunpack.c.l.b16 %v1375
      %v1460 = vunpack.c.l.b16 %v1376
      %v1461 = vunpack.c.l.b16 %v1377
      %v1462 = vunpack.c.l.b16 %v1378
      %v1463 = vunpack.c.l.b16 %v1379
      %v1464 = vunpack.c.l.b16 %v1380
      %v1465 = vunpack.c.l.b16 %v1381
      %v1466 = vunpack.c.l.b16 %v1382
      %v1467 = vunpack.c.l.b16 %v1383
      %v1468 = vunpack.c.l.b16 %v1384
      %v1469 = vunpack.c.l.b16 %v1385
      %v1470 = vunpack.c.l.b16 %v1386
      %v1471 = vunpack.c.l.b16 %v1387
      %v1472 = vunpack.c.l.b16 %v1388
      %v1473 = vpack.c.b16 %v1433, %v1432
      %v1474 = vpack.c.b16 %v1435, %v1434
      %v1475 = vpack.c.b16 %v1437, %v1436
      %v1476 = vpack.c.b16 %v1439, %v1438
      %v1477 = vpack.c.b16 %v1441, %v1440
      %v1478 = vpack.c.b16 %v1443, %v1442
      %v1479 = vpack.c.b16 %v1445, %v1444
      %v1480 = vpack.c.b16 %v1447, %v1446
      %v1481 = vpack.c.b16 %v1449, %v1448
      %v1482 = vpack.c.b16 %v1451, %v1450
      %v1483 = vpack.c.b16 %v1453, %v1452
      %v1484 = vpack.c.b16 %v1455, %v1454
      %v1485 = vpack.c.b16 %v1457, %v1456
      %v1486 = vpack.c.b16 %v1459, %v1458
      %v1487 = vpack.c.b16 %v1461, %v1460
      %v1488 = vpack.c.b16 %v1463, %v1462
      %v1489 = vpack.c.b16 %v1465, %v1464
      %v1490 = vpack.c.b16 %v1467, %v1466
      %v1491 = vpack.c.b16 %v1469, %v1468
      %v1492 = vpack.c.b16 %v1471, %v1470
      %v1493 = vpack.c.b16 %v1472, %v1472
      %v1495 = vshrl.u32 %v1473, 16
      %v1497 = vrot.slane %v1495, 1
      %v1498 = vshll.u32 %v1473, 16
      %v1500 = vrot.slane %v1498, 2
      %v1501 = vor.u32 %v1497, %v1500
      %v1503 = vshrl.u32 %v1474, 16
      %v1505 = vrot.slane %v1503, 1
      %v1506 = vshll.u32 %v1474, 16
      %v1508 = vrot.slane %v1506, 2
      %v1509 = vor.u32 %v1505, %v1508
      %v1510 = vsel %vm1034, %v1501, %v1509
      %v1512 = vshrl.u32 %v1475, 16
      %v1514 = vrot.slane %v1512, 1
      %v1515 = vshll.u32 %v1475, 16
      %v1517 = vrot.slane %v1515, 2
      %v1518 = vor.u32 %v1514, %v1517
      %v1519 = vsel %vm1034, %v1509, %v1518
      %v1521 = vshrl.u32 %v1476, 16
      %v1523 = vrot.slane %v1521, 1
      %v1524 = vshll.u32 %v1476, 16
      %v1526 = vrot.slane %v1524, 2
      %v1527 = vor.u32 %v1523, %v1526
      %v1528 = vsel %vm1034, %v1518, %v1527
      %v1530 = vshrl.u32 %v1477, 16
      %v1532 = vrot.slane %v1530, 1
      %v1533 = vshll.u32 %v1477, 16
      %v1535 = vrot.slane %v1533, 2
      %v1536 = vor.u32 %v1532, %v1535
      %v1537 = vsel %vm1034, %v1527, %v1536
      %v1539 = vshrl.u32 %v1478, 16
      %v1541 = vrot.slane %v1539, 1
      %v1542 = vshll.u32 %v1478, 16
      %v1544 = vrot.slane %v1542, 2
      %v1545 = vor.u32 %v1541, %v1544
      %v1546 = vsel %vm1034, %v1536, %v1545
      %v1548 = vshrl.u32 %v1479, 16
      %v1550 = vrot.slane %v1548, 1
      %v1551 = vshll.u32 %v1479, 16
      %v1553 = vrot.slane %v1551, 2
      %v1554 = vor.u32 %v1550, %v1553
      %v1555 = vsel %vm1034, %v1545, %v1554
      %v1557 = vshrl.u32 %v1480, 16
      %v1559 = vrot.slane %v1557, 1
      %v1560 = vshll.u32 %v1480, 16
      %v1562 = vrot.slane %v1560, 2
      %v1563 = vor.u32 %v1559, %v1562
      %v1564 = vsel %vm1034, %v1554, %v1563
      %v1566 = vshrl.u32 %v1481, 16
      %v1568 = vrot.slane %v1566, 1
      %v1569 = vshll.u32 %v1481, 16
      %v1571 = vrot.slane %v1569, 2
      %v1572 = vor.u32 %v1568, %v1571
      %v1573 = vsel %vm1034, %v1563, %v1572
      %v1575 = vshrl.u32 %v1482, 16
      %v1577 = vrot.slane %v1575, 1
      %v1578 = vshll.u32 %v1482, 16
      %v1580 = vrot.slane %v1578, 2
      %v1581 = vor.u32 %v1577, %v1580
      %v1582 = vsel %vm1034, %v1572, %v1581
      %v1584 = vshrl.u32 %v1483, 16
      %v1586 = vrot.slane %v1584, 1
      %v1587 = vshll.u32 %v1483, 16
      %v1589 = vrot.slane %v1587, 2
      %v1590 = vor.u32 %v1586, %v1589
      %v1591 = vsel %vm1034, %v1581, %v1590
      %v1593 = vshrl.u32 %v1484, 16
      %v1595 = vrot.slane %v1593, 1
      %v1596 = vshll.u32 %v1484, 16
      %v1598 = vrot.slane %v1596, 2
      %v1599 = vor.u32 %v1595, %v1598
      %v1600 = vsel %vm1034, %v1590, %v1599
      %v1602 = vshrl.u32 %v1485, 16
      %v1604 = vrot.slane %v1602, 1
      %v1605 = vshll.u32 %v1485, 16
      %v1607 = vrot.slane %v1605, 2
      %v1608 = vor.u32 %v1604, %v1607
      %v1609 = vsel %vm1034, %v1599, %v1608
      %v1611 = vshrl.u32 %v1486, 16
      %v1613 = vrot.slane %v1611, 1
      %v1614 = vshll.u32 %v1486, 16
      %v1616 = vrot.slane %v1614, 2
      %v1617 = vor.u32 %v1613, %v1616
      %v1618 = vsel %vm1034, %v1608, %v1617
      %v1620 = vshrl.u32 %v1487, 16
      %v1622 = vrot.slane %v1620, 1
      %v1623 = vshll.u32 %v1487, 16
      %v1625 = vrot.slane %v1623, 2
      %v1626 = vor.u32 %v1622, %v1625
      %v1627 = vsel %vm1034, %v1617, %v1626
      %v1629 = vshrl.u32 %v1488, 16
      %v1631 = vrot.slane %v1629, 1
      %v1632 = vshll.u32 %v1488, 16
      %v1634 = vrot.slane %v1632, 2
      %v1635 = vor.u32 %v1631, %v1634
      %v1636 = vsel %vm1034, %v1626, %v1635
      %v1638 = vshrl.u32 %v1489, 16
      %v1640 = vrot.slane %v1638, 1
      %v1641 = vshll.u32 %v1489, 16
      %v1643 = vrot.slane %v1641, 2
      %v1644 = vor.u32 %v1640, %v1643
      %v1645 = vsel %vm1034, %v1635, %v1644
      %v1647 = vshrl.u32 %v1490, 16
      %v1649 = vrot.slane %v1647, 1
      %v1650 = vshll.u32 %v1490, 16
      %v1652 = vrot.slane %v1650, 2
      %v1653 = vor.u32 %v1649, %v1652
      %v1654 = vsel %vm1034, %v1644, %v1653
      %v1656 = vshrl.u32 %v1491, 16
      %v1658 = vrot.slane %v1656, 1
      %v1659 = vshll.u32 %v1491, 16
      %v1661 = vrot.slane %v1659, 2
      %v1662 = vor.u32 %v1658, %v1661
      %v1663 = vsel %vm1034, %v1653, %v1662
      %v1665 = vshrl.u32 %v1492, 16
      %v1667 = vrot.slane %v1665, 1
      %v1668 = vshll.u32 %v1492, 16
      %v1670 = vrot.slane %v1668, 2
      %v1671 = vor.u32 %v1667, %v1670
      %v1672 = vsel %vm1034, %v1662, %v1671
      %v1674 = vshrl.u32 %v1493, 16
      %v1676 = vrot.slane %v1674, 1
      %v1677 = vshll.u32 %v1493, 16
      %v1679 = vrot.slane %v1677, 2
      %v1680 = vor.u32 %v1676, %v1679
      %v1681 = vsel %vm1034, %v1671, %v1680
      %v1683 = vsel %vm497, %v1510, 0
      %v1686 = vsel %vm497, %v1519, 0
      %v1689 = vsel %vm497, %v1528, 0
      %v1692 = vsel %vm497, %v1537, 0
      %v1695 = vsel %vm497, %v1546, 0
      %v1698 = vsel %vm497, %v1555, 0
      %v1701 = vsel %vm497, %v1564, 0
      %v1704 = vsel %vm497, %v1573, 0
      %v1707 = vsel %vm497, %v1582, 0
      %v1710 = vsel %vm497, %v1591, 0
      %v1713 = vsel %vm497, %v1600, 0
      %v1716 = vsel %vm497, %v1609, 0
      %v1719 = vsel %vm497, %v1618, 0
      %v1722 = vsel %vm497, %v1627, 0
      %v1725 = vsel %vm497, %v1636, 0
      %v1728 = vsel %vm497, %v1645, 0
      %v1731 = vsel %vm497, %v1654, 0
      %v1734 = vsel %vm497, %v1663, 0
      %v1737 = vsel %vm497, %v1672, 0
      %v1740 = vsel %vm497, %v1681, 0
      %v1743 = vsel %vm497, %v1680, 0
      %v1746 = vsel %vm561, %v1390, 0
      %1748 = vmatpush.bf16.msra.mxu0 0
      %1749 = vmatpush.bf16.msra.mxu0 0
      %1750 = vmatpush.bf16.msra.mxu0 0
      %1751 = vmatpush.bf16.msra.mxu0 0
      %1752 = vmatpush.bf16.msra.mxu0 0
      %1753 = vmatpush.bf16.msra.mxu0 0
      %1754 = vmatpush.bf16.msra.mxu0 0
      %1755 = vmatpush.bf16.msra.mxu0 %v1746
      %1756 = vmatmul.bf16.gmra.mxu0 %v1683
      %v1757 = vpop.f32.mrf.mxu0
      %v1758 = vadd.f32 0.0, %v1757
      %v1759 = vpop.f32.mrf.mxu0
      %v1760 = vadd.f32 0.0, %v1759
      %1761 = vmatmul.bf16.gmra.mxu0 %v1686
      %v1762 = vpop.f32.mrf.mxu0
      %v1763 = vadd.f32 0.0, %v1762
      %v1764 = vpop.f32.mrf.mxu0
      %v1765 = vadd.f32 0.0, %v1764
      %1766 = vmatmul.bf16.gmra.mxu0 %v1689
      %v1767 = vpop.f32.mrf.mxu0
      %v1768 = vadd.f32 0.0, %v1767
      %v1769 = vpop.f32.mrf.mxu0
      %v1770 = vadd.f32 0.0, %v1769
      %1771 = vmatmul.bf16.gmra.mxu0 %v1692
      %v1772 = vpop.f32.mrf.mxu0
      %v1773 = vadd.f32 0.0, %v1772
      %v1774 = vpop.f32.mrf.mxu0
      %v1775 = vadd.f32 0.0, %v1774
      %1776 = vmatmul.bf16.gmra.mxu0 %v1695
      %v1777 = vpop.f32.mrf.mxu0
      %v1778 = vadd.f32 0.0, %v1777
      %v1779 = vpop.f32.mrf.mxu0
      %v1780 = vadd.f32 0.0, %v1779
      %1781 = vmatmul.bf16.gmra.mxu0 %v1698
      %v1782 = vpop.f32.mrf.mxu0
      %v1783 = vadd.f32 0.0, %v1782
      %v1784 = vpop.f32.mrf.mxu0
      %v1785 = vadd.f32 0.0, %v1784
      %1786 = vmatmul.bf16.gmra.mxu0 %v1701
      %v1787 = vpop.f32.mrf.mxu0
      %v1788 = vadd.f32 0.0, %v1787
      %v1789 = vpop.f32.mrf.mxu0
      %v1790 = vadd.f32 0.0, %v1789
      %1791 = vmatmul.bf16.gmra.mxu0 %v1704
      %v1792 = vpop.f32.mrf.mxu0
      %v1793 = vadd.f32 0.0, %v1792
      %v1794 = vpop.f32.mrf.mxu0
      %v1795 = vadd.f32 0.0, %v1794
      %1796 = vmatmul.bf16.gmra.mxu0 %v1707
      %v1797 = vpop.f32.mrf.mxu0
      %v1798 = vadd.f32 0.0, %v1797
      %v1799 = vpop.f32.mrf.mxu0
      %v1800 = vadd.f32 0.0, %v1799
      %1801 = vmatmul.bf16.gmra.mxu0 %v1710
      %v1802 = vpop.f32.mrf.mxu0
      %v1803 = vadd.f32 0.0, %v1802
      %v1804 = vpop.f32.mrf.mxu0
      %v1805 = vadd.f32 0.0, %v1804
      %1806 = vmatmul.bf16.gmra.mxu0 %v1713
      %v1807 = vpop.f32.mrf.mxu0
      %v1808 = vadd.f32 0.0, %v1807
      %v1809 = vpop.f32.mrf.mxu0
      %v1810 = vadd.f32 0.0, %v1809
      %1811 = vmatmul.bf16.gmra.mxu0 %v1716
      %v1812 = vpop.f32.mrf.mxu0
      %v1813 = vadd.f32 0.0, %v1812
      %v1814 = vpop.f32.mrf.mxu0
      %v1815 = vadd.f32 0.0, %v1814
      %1816 = vmatmul.bf16.gmra.mxu0 %v1719
      %v1817 = vpop.f32.mrf.mxu0
      %v1818 = vadd.f32 0.0, %v1817
      %v1819 = vpop.f32.mrf.mxu0
      %v1820 = vadd.f32 0.0, %v1819
      %1821 = vmatmul.bf16.gmra.mxu0 %v1722
      %v1822 = vpop.f32.mrf.mxu0
      %v1823 = vadd.f32 0.0, %v1822
      %v1824 = vpop.f32.mrf.mxu0
      %v1825 = vadd.f32 0.0, %v1824
      %1826 = vmatmul.bf16.gmra.mxu0 %v1725
      %v1827 = vpop.f32.mrf.mxu0
      %v1828 = vadd.f32 0.0, %v1827
      %v1829 = vpop.f32.mrf.mxu0
      %v1830 = vadd.f32 0.0, %v1829
      %1831 = vmatmul.bf16.gmra.mxu0 %v1728
      %v1832 = vpop.f32.mrf.mxu0
      %v1833 = vadd.f32 0.0, %v1832
      %v1834 = vpop.f32.mrf.mxu0
      %v1835 = vadd.f32 0.0, %v1834
      %1836 = vmatmul.bf16.gmra.mxu0 %v1731
      %v1837 = vpop.f32.mrf.mxu0
      %v1838 = vadd.f32 0.0, %v1837
      %v1839 = vpop.f32.mrf.mxu0
      %v1840 = vadd.f32 0.0, %v1839
      %1841 = vmatmul.bf16.gmra.mxu0 %v1734
      %v1842 = vpop.f32.mrf.mxu0
      %v1843 = vadd.f32 0.0, %v1842
      %v1844 = vpop.f32.mrf.mxu0
      %v1845 = vadd.f32 0.0, %v1844
      %1846 = vmatmul.bf16.gmra.mxu0 %v1737
      %v1847 = vpop.f32.mrf.mxu0
      %v1848 = vadd.f32 0.0, %v1847
      %v1849 = vpop.f32.mrf.mxu0
      %v1850 = vadd.f32 0.0, %v1849
      %1851 = vmatmul.bf16.gmra.mxu0 %v1740
      %v1852 = vpop.f32.mrf.mxu0
      %v1853 = vadd.f32 0.0, %v1852
      %v1854 = vpop.f32.mrf.mxu0
      %v1855 = vadd.f32 0.0, %v1854
      %1856 = vmatmul.bf16.gmra.mxu0 %v1743
      %v1857 = vpop.f32.mrf.mxu0
      %v1858 = vadd.f32 0.0, %v1857
      %v1859 = vpop.f32.mrf.mxu0
      %1860 = vdwg.mxu0
      %v1861 = vadd.f32 %v1307, %v1758
      %v1862 = vadd.f32 %v1308, %v1760
      %v1863 = vadd.f32 %v1309, %v1763
      %v1864 = vadd.f32 %v1310, %v1765
      %v1865 = vadd.f32 %v1311, %v1768
      %v1866 = vadd.f32 %v1312, %v1770
      %v1867 = vadd.f32 %v1313, %v1773
      %v1868 = vadd.f32 %v1314, %v1775
      %v1869 = vadd.f32 %v1315, %v1778
      %v1870 = vadd.f32 %v1316, %v1780
      %v1871 = vadd.f32 %v1317, %v1783
      %v1872 = vadd.f32 %v1318, %v1785
      %v1873 = vadd.f32 %v1319, %v1788
      %v1874 = vadd.f32 %v1320, %v1790
      %v1875 = vadd.f32 %v1321, %v1793
      %v1876 = vadd.f32 %v1322, %v1795
      %v1877 = vadd.f32 %v1323, %v1798
      %v1878 = vadd.f32 %v1324, %v1800
      %v1879 = vadd.f32 %v1325, %v1803
      %v1880 = vadd.f32 %v1326, %v1805
      %v1881 = vadd.f32 %v1327, %v1808
      %v1882 = vadd.f32 %v1328, %v1810
      %v1883 = vadd.f32 %v1329, %v1813
      %v1884 = vadd.f32 %v1330, %v1815
      %v1885 = vadd.f32 %v1331, %v1818
      %v1886 = vadd.f32 %v1332, %v1820
      %v1887 = vadd.f32 %v1333, %v1823
      %v1888 = vadd.f32 %v1334, %v1825
      %v1889 = vadd.f32 %v1335, %v1828
      %v1890 = vadd.f32 %v1336, %v1830
      %v1891 = vadd.f32 %v1337, %v1833
      %v1892 = vadd.f32 %v1338, %v1835
      %v1893 = vadd.f32 %v1339, %v1838
      %v1894 = vadd.f32 %v1340, %v1840
      %v1895 = vadd.f32 %v1341, %v1843
      %v1896 = vadd.f32 %v1342, %v1845
      %v1897 = vadd.f32 %v1343, %v1848
      %v1898 = vadd.f32 %v1344, %v1850
      %v1899 = vadd.f32 %v1345, %v1853
      %v1900 = vadd.f32 %v1346, %v1855
      %v1901 = vadd.f32 %v1347, %v1858
      %v1902 = vld [vmem:[%s300 + $0x10] sm:$0xc]
      %s1903 = scalar_lea.vmem %s2, 16
      %v1904 = vld [vmem:[%s1903] sm:$0xf]
      %v1906 = vunpack.c.l.b16 %v1902
      %v1907 = vpack.c.b16 %v1433, %v1906
      %vm1908 = vcmask 1045504
      %v1909 = vrot.slane %v1907, 2
      %v1910 = vrot.slane %v1474, 2
      %v1911 = vsel %vm1908, %v1909, %v1910
      %v1912 = vrot.slane %v1475, 2
      %v1913 = vsel %vm1908, %v1910, %v1912
      %v1914 = vrot.slane %v1476, 2
      %v1915 = vsel %vm1908, %v1912, %v1914
      %v1916 = vrot.slane %v1477, 2
      %v1917 = vsel %vm1908, %v1914, %v1916
      %v1918 = vrot.slane %v1478, 2
      %v1919 = vsel %vm1908, %v1916, %v1918
      %v1920 = vrot.slane %v1479, 2
      %v1921 = vsel %vm1908, %v1918, %v1920
      %v1922 = vrot.slane %v1480, 2
      %v1923 = vsel %vm1908, %v1920, %v1922
      %v1924 = vrot.slane %v1481, 2
      %v1925 = vsel %vm1908, %v1922, %v1924
      %v1926 = vrot.slane %v1482, 2
      %v1927 = vsel %vm1908, %v1924, %v1926
      %v1928 = vrot.slane %v1483, 2
      %v1929 = vsel %vm1908, %v1926, %v1928
      %v1930 = vrot.slane %v1484, 2
      %v1931 = vsel %vm1908, %v1928, %v1930
      %v1932 = vrot.slane %v1485, 2
      %v1933 = vsel %vm1908, %v1930, %v1932
      %v1934 = vrot.slane %v1486, 2
      %v1935 = vsel %vm1908, %v1932, %v1934
      %v1936 = vrot.slane %v1487, 2
      %v1937 = vsel %vm1908, %v1934, %v1936
      %v1938 = vrot.slane %v1488, 2
      %v1939 = vsel %vm1908, %v1936, %v1938
      %v1940 = vrot.slane %v1489, 2
      %v1941 = vsel %vm1908, %v1938, %v1940
      %v1942 = vrot.slane %v1490, 2
      %v1943 = vsel %vm1908, %v1940, %v1942
      %v1944 = vrot.slane %v1491, 2
      %v1945 = vsel %vm1908, %v1942, %v1944
      %v1946 = vrot.slane %v1492, 2
      %v1947 = vsel %vm1908, %v1944, %v1946
      %v1948 = vrot.slane %v1493, 2
      %v1949 = vsel %vm1908, %v1946, %v1948
      %v1951 = vsel %vm497, %v1911, 0
      %v1954 = vsel %vm497, %v1913, 0
      %v1957 = vsel %vm497, %v1915, 0
      %v1960 = vsel %vm497, %v1917, 0
      %v1963 = vsel %vm497, %v1919, 0
      %v1966 = vsel %vm497, %v1921, 0
      %v1969 = vsel %vm497, %v1923, 0
      %v1972 = vsel %vm497, %v1925, 0
      %v1975 = vsel %vm497, %v1927, 0
      %v1978 = vsel %vm497, %v1929, 0
      %v1981 = vsel %vm497, %v1931, 0
      %v1984 = vsel %vm497, %v1933, 0
      %v1987 = vsel %vm497, %v1935, 0
      %v1990 = vsel %vm497, %v1937, 0
      %v1993 = vsel %vm497, %v1939, 0
      %v1996 = vsel %vm497, %v1941, 0
      %v1999 = vsel %vm497, %v1943, 0
      %v2002 = vsel %vm497, %v1945, 0
      %v2005 = vsel %vm497, %v1947, 0
      %v2008 = vsel %vm497, %v1949, 0
      %v2011 = vsel %vm497, %v1948, 0
      %v2014 = vsel %vm561, %v1904, 0
      %2016 = vmatpush.bf16.msra.mxu0 0
      %2017 = vmatpush.bf16.msra.mxu0 0
      %2018 = vmatpush.bf16.msra.mxu0 0
      %2019 = vmatpush.bf16.msra.mxu0 0
      %2020 = vmatpush.bf16.msra.mxu0 0
      %2021 = vmatpush.bf16.msra.mxu0 0
      %2022 = vmatpush.bf16.msra.mxu0 0
      %2023 = vmatpush.bf16.msra.mxu0 %v2014
      %2024 = vmatmul.bf16.gmra.mxu0 %v1951
      %v2025 = vpop.f32.mrf.mxu0
      %v2026 = vadd.f32 0.0, %v2025
      %v2027 = vpop.f32.mrf.mxu0
      %v2028 = vadd.f32 0.0, %v2027
      %2029 = vmatmul.bf16.gmra.mxu0 %v1954
      %v2030 = vpop.f32.mrf.mxu0
      %v2031 = vadd.f32 0.0, %v2030
      %v2032 = vpop.f32.mrf.mxu0
      %v2033 = vadd.f32 0.0, %v2032
      %2034 = vmatmul.bf16.gmra.mxu0 %v1957
      %v2035 = vpop.f32.mrf.mxu0
      %v2036 = vadd.f32 0.0, %v2035
      %v2037 = vpop.f32.mrf.mxu0
      %v2038 = vadd.f32 0.0, %v2037
      %2039 = vmatmul.bf16.gmra.mxu0 %v1960
      %v2040 = vpop.f32.mrf.mxu0
      %v2041 = vadd.f32 0.0, %v2040
      %v2042 = vpop.f32.mrf.mxu0
      %v2043 = vadd.f32 0.0, %v2042
      %2044 = vmatmul.bf16.gmra.mxu0 %v1963
      %v2045 = vpop.f32.mrf.mxu0
      %v2046 = vadd.f32 0.0, %v2045
      %v2047 = vpop.f32.mrf.mxu0
      %v2048 = vadd.f32 0.0, %v2047
      %2049 = vmatmul.bf16.gmra.mxu0 %v1966
      %v2050 = vpop.f32.mrf.mxu0
      %v2051 = vadd.f32 0.0, %v2050
      %v2052 = vpop.f32.mrf.mxu0
      %v2053 = vadd.f32 0.0, %v2052
      %2054 = vmatmul.bf16.gmra.mxu0 %v1969
      %v2055 = vpop.f32.mrf.mxu0
      %v2056 = vadd.f32 0.0, %v2055
      %v2057 = vpop.f32.mrf.mxu0
      %v2058 = vadd.f32 0.0, %v2057
      %2059 = vmatmul.bf16.gmra.mxu0 %v1972
      %v2060 = vpop.f32.mrf.mxu0
      %v2061 = vadd.f32 0.0, %v2060
      %v2062 = vpop.f32.mrf.mxu0
      %v2063 = vadd.f32 0.0, %v2062
      %2064 = vmatmul.bf16.gmra.mxu0 %v1975
      %v2065 = vpop.f32.mrf.mxu0
      %v2066 = vadd.f32 0.0, %v2065
      %v2067 = vpop.f32.mrf.mxu0
      %v2068 = vadd.f32 0.0, %v2067
      %2069 = vmatmul.bf16.gmra.mxu0 %v1978
      %v2070 = vpop.f32.mrf.mxu0
      %v2071 = vadd.f32 0.0, %v2070
      %v2072 = vpop.f32.mrf.mxu0
      %v2073 = vadd.f32 0.0, %v2072
      %2074 = vmatmul.bf16.gmra.mxu0 %v1981
      %v2075 = vpop.f32.mrf.mxu0
      %v2076 = vadd.f32 0.0, %v2075
      %v2077 = vpop.f32.mrf.mxu0
      %v2078 = vadd.f32 0.0, %v2077
      %2079 = vmatmul.bf16.gmra.mxu0 %v1984
      %v2080 = vpop.f32.mrf.mxu0
      %v2081 = vadd.f32 0.0, %v2080
      %v2082 = vpop.f32.mrf.mxu0
      %v2083 = vadd.f32 0.0, %v2082
      %2084 = vmatmul.bf16.gmra.mxu0 %v1987
      %v2085 = vpop.f32.mrf.mxu0
      %v2086 = vadd.f32 0.0, %v2085
      %v2087 = vpop.f32.mrf.mxu0
      %v2088 = vadd.f32 0.0, %v2087
      %2089 = vmatmul.bf16.gmra.mxu0 %v1990
      %v2090 = vpop.f32.mrf.mxu0
      %v2091 = vadd.f32 0.0, %v2090
      %v2092 = vpop.f32.mrf.mxu0
      %v2093 = vadd.f32 0.0, %v2092
      %2094 = vmatmul.bf16.gmra.mxu0 %v1993
      %v2095 = vpop.f32.mrf.mxu0
      %v2096 = vadd.f32 0.0, %v2095
      %v2097 = vpop.f32.mrf.mxu0
      %v2098 = vadd.f32 0.0, %v2097
      %2099 = vmatmul.bf16.gmra.mxu0 %v1996
      %v2100 = vpop.f32.mrf.mxu0
      %v2101 = vadd.f32 0.0, %v2100
      %v2102 = vpop.f32.mrf.mxu0
      %v2103 = vadd.f32 0.0, %v2102
      %2104 = vmatmul.bf16.gmra.mxu0 %v1999
      %v2105 = vpop.f32.mrf.mxu0
      %v2106 = vadd.f32 0.0, %v2105
      %v2107 = vpop.f32.mrf.mxu0
      %v2108 = vadd.f32 0.0, %v2107
      %2109 = vmatmul.bf16.gmra.mxu0 %v2002
      %v2110 = vpop.f32.mrf.mxu0
      %v2111 = vadd.f32 0.0, %v2110
      %v2112 = vpop.f32.mrf.mxu0
      %v2113 = vadd.f32 0.0, %v2112
      %2114 = vmatmul.bf16.gmra.mxu0 %v2005
      %v2115 = vpop.f32.mrf.mxu0
      %v2116 = vadd.f32 0.0, %v2115
      %v2117 = vpop.f32.mrf.mxu0
      %v2118 = vadd.f32 0.0, %v2117
      %2119 = vmatmul.bf16.gmra.mxu0 %v2008
      %v2120 = vpop.f32.mrf.mxu0
      %v2121 = vadd.f32 0.0, %v2120
      %v2122 = vpop.f32.mrf.mxu0
      %v2123 = vadd.f32 0.0, %v2122
      %2124 = vmatmul.bf16.gmra.mxu0 %v2011
      %v2125 = vpop.f32.mrf.mxu0
      %v2126 = vadd.f32 0.0, %v2125
      %v2127 = vpop.f32.mrf.mxu0
      %2128 = vdwg.mxu0
      %v2129 = vadd.f32 %v1861, %v2026
      %v2130 = vadd.f32 %v1862, %v2028
      %v2131 = vadd.f32 %v1863, %v2031
      %v2132 = vadd.f32 %v1864, %v2033
      %v2133 = vadd.f32 %v1865, %v2036
      %v2134 = vadd.f32 %v1866, %v2038
      %v2135 = vadd.f32 %v1867, %v2041
      %v2136 = vadd.f32 %v1868, %v2043
      %v2137 = vadd.f32 %v1869, %v2046
      %v2138 = vadd.f32 %v1870, %v2048
      %v2139 = vadd.f32 %v1871, %v2051
      %v2140 = vadd.f32 %v1872, %v2053
      %v2141 = vadd.f32 %v1873, %v2056
      %v2142 = vadd.f32 %v1874, %v2058
      %v2143 = vadd.f32 %v1875, %v2061
      %v2144 = vadd.f32 %v1876, %v2063
      %v2145 = vadd.f32 %v1877, %v2066
      %v2146 = vadd.f32 %v1878, %v2068
      %v2147 = vadd.f32 %v1879, %v2071
      %v2148 = vadd.f32 %v1880, %v2073
      %v2149 = vadd.f32 %v1881, %v2076
      %v2150 = vadd.f32 %v1882, %v2078
      %v2151 = vadd.f32 %v1883, %v2081
      %v2152 = vadd.f32 %v1884, %v2083
      %v2153 = vadd.f32 %v1885, %v2086
      %v2154 = vadd.f32 %v1886, %v2088
      %v2155 = vadd.f32 %v1887, %v2091
      %v2156 = vadd.f32 %v1888, %v2093
      %v2157 = vadd.f32 %v1889, %v2096
      %v2158 = vadd.f32 %v1890, %v2098
      %v2159 = vadd.f32 %v1891, %v2101
      %v2160 = vadd.f32 %v1892, %v2103
      %v2161 = vadd.f32 %v1893, %v2106
      %v2162 = vadd.f32 %v1894, %v2108
      %v2163 = vadd.f32 %v1895, %v2111
      %v2164 = vadd.f32 %v1896, %v2113
      %v2165 = vadd.f32 %v1897, %v2116
      %v2166 = vadd.f32 %v1898, %v2118
      %v2167 = vadd.f32 %v1899, %v2121
      %v2168 = vadd.f32 %v1900, %v2123
      %v2169 = vadd.f32 %v1901, %v2126
      %v2170 = vld [vmem:[%s300 + $0x10] sm:$0xc]
      %v2171 = vld [vmem:[%s300 + $0x14] sm:$0xf]
      %v2172 = vld [vmem:[%s300 + $0x18] sm:$0xf]
      %v2173 = vld [vmem:[%s300 + $0x1c] sm:$0xf]
      %v2174 = vld [vmem:[%s300 + $0x20] sm:$0xf]
      %v2175 = vld [vmem:[%s300 + $0x24] sm:$0xf]
      %v2176 = vld [vmem:[%s300 + $0x28] sm:$0xf]
      %v2177 = vld [vmem:[%s300 + $0x2c] sm:$0xf]
      %v2178 = vld [vmem:[%s300 + $0x30] sm:$0xf]
      %v2179 = vld [vmem:[%s300 + $0x34] sm:$0xf]
      %v2180 = vld [vmem:[%s300 + $0x38] sm:$0xf]
      %v2181 = vld [vmem:[%s300 + $0x3c] sm:$0xf]
      %v2182 = vld [vmem:[%s300 + $0x40] sm:$0xf]
      %v2183 = vld [vmem:[%s300 + $0x44] sm:$0xf]
      %v2184 = vld [vmem:[%s300 + $0x48] sm:$0xf]
      %v2185 = vld [vmem:[%s300 + $0x4c] sm:$0xf]
      %v2186 = vld [vmem:[%s300 + $0x50] sm:$0xf]
      %v2187 = vld [vmem:[%s300 + $0x54] sm:$0xf]
      %v2188 = vld [vmem:[%s300 + $0x58] sm:$0xf]
      %v2189 = vld [vmem:[%s300 + $0x5c] sm:$0xf]
      %v2190 = vld [vmem:[%s300 + $0x60] sm:$0xf]
      %v2191 = vld [vmem:[%s300 + $0x64] sm:$0xf]
      %v2192 = vld [vmem:[%s300 + $0x68] sm:$0xf]
      %v2193 = vld [vmem:[%s300 + $0x6c] sm:$0xf]
      %v2194 = vld [vmem:[%s300 + $0x70] sm:$0xf]
      %v2195 = vld [vmem:[%s300 + $0x74] sm:$0xf]
      %v2196 = vld [vmem:[%s300 + $0x78] sm:$0xf]
      %v2197 = vld [vmem:[%s300 + $0x7c] sm:$0xf]
      %v2198 = vld [vmem:[%s300 + $0x80] sm:$0xf]
      %v2199 = vld [vmem:[%s300 + $0x84] sm:$0xf]
      %v2200 = vld [vmem:[%s300 + $0x88] sm:$0xf]
      %v2201 = vld [vmem:[%s300 + $0x8c] sm:$0xf]
      %v2202 = vld [vmem:[%s300 + $0x90] sm:$0xf]
      %v2203 = vld [vmem:[%s300 + $0x94] sm:$0xf]
      %v2204 = vld [vmem:[%s300 + $0x98] sm:$0xf]
      %v2205 = vld [vmem:[%s300 + $0x9c] sm:$0xf]
      %v2206 = vld [vmem:[%s300 + $0xa0] sm:$0xf]
      %v2207 = vld [vmem:[%s300 + $0xa4] sm:$0xf]
      %v2208 = vld [vmem:[%s300 + $0xa8] sm:$0xf]
      %v2209 = vld [vmem:[%s300 + $0xac] sm:$0xf]
      %v2210 = vld [vmem:[%s300 + $0xb0] sm:$0xf]
      %v2211 = vld [vmem:[%s300 + $0xb4] sm:$0x1]
      %s2212 = scalar_lea.vmem %s2, 20
      %v2213 = vld [vmem:[%s2212] sm:$0xf]
      %v2256 = vunpack.c.l.b16 %v2170
      %v2257 = vunpack.c.l.b16 %v2171
      %v2258 = vunpack.c.l.b16 %v2172
      %v2259 = vunpack.c.l.b16 %v2173
      %v2260 = vunpack.c.l.b16 %v2174
      %v2261 = vunpack.c.l.b16 %v2175
      %v2262 = vunpack.c.l.b16 %v2176
      %v2263 = vunpack.c.l.b16 %v2177
      %v2264 = vunpack.c.l.b16 %v2178
      %v2265 = vunpack.c.l.b16 %v2179
      %v2266 = vunpack.c.l.b16 %v2180
      %v2267 = vunpack.c.l.b16 %v2181
      %v2268 = vunpack.c.l.b16 %v2182
      %v2269 = vunpack.c.l.b16 %v2183
      %v2270 = vunpack.c.l.b16 %v2184
      %v2271 = vunpack.c.l.b16 %v2185
      %v2272 = vunpack.c.l.b16 %v2186
      %v2273 = vunpack.c.l.b16 %v2187
      %v2274 = vunpack.c.l.b16 %v2188
      %v2275 = vunpack.c.l.b16 %v2189
      %v2276 = vunpack.c.l.b16 %v2190
      %v2277 = vunpack.c.l.b16 %v2191
      %v2278 = vunpack.c.l.b16 %v2192
      %v2279 = vunpack.c.l.b16 %v2193
      %v2280 = vunpack.c.l.b16 %v2194
      %v2281 = vunpack.c.l.b16 %v2195
      %v2282 = vunpack.c.l.b16 %v2196
      %v2283 = vunpack.c.l.b16 %v2197
      %v2284 = vunpack.c.l.b16 %v2198
      %v2285 = vunpack.c.l.b16 %v2199
      %v2286 = vunpack.c.l.b16 %v2200
      %v2287 = vunpack.c.l.b16 %v2201
      %v2288 = vunpack.c.l.b16 %v2202
      %v2289 = vunpack.c.l.b16 %v2203
      %v2290 = vunpack.c.l.b16 %v2204
      %v2291 = vunpack.c.l.b16 %v2205
      %v2292 = vunpack.c.l.b16 %v2206
      %v2293 = vunpack.c.l.b16 %v2207
      %v2294 = vunpack.c.l.b16 %v2208
      %v2295 = vunpack.c.l.b16 %v2209
      %v2296 = vunpack.c.l.b16 %v2210
      %v2297 = vunpack.c.l.b16 %v2211
      %v2298 = vpack.c.b16 %v2257, %v2256
      %v2299 = vpack.c.b16 %v2259, %v2258
      %v2300 = vpack.c.b16 %v2261, %v2260
      %v2301 = vpack.c.b16 %v2263, %v2262
      %v2302 = vpack.c.b16 %v2265, %v2264
      %v2303 = vpack.c.b16 %v2267, %v2266
      %v2304 = vpack.c.b16 %v2269, %v2268
      %v2305 = vpack.c.b16 %v2271, %v2270
      %v2306 = vpack.c.b16 %v2273, %v2272
      %v2307 = vpack.c.b16 %v2275, %v2274
      %v2308 = vpack.c.b16 %v2277, %v2276
      %v2309 = vpack.c.b16 %v2279, %v2278
      %v2310 = vpack.c.b16 %v2281, %v2280
      %v2311 = vpack.c.b16 %v2283, %v2282
      %v2312 = vpack.c.b16 %v2285, %v2284
      %v2313 = vpack.c.b16 %v2287, %v2286
      %v2314 = vpack.c.b16 %v2289, %v2288
      %v2315 = vpack.c.b16 %v2291, %v2290
      %v2316 = vpack.c.b16 %v2293, %v2292
      %v2317 = vpack.c.b16 %v2295, %v2294
      %v2318 = vpack.c.b16 %v2297, %v2296
      %vm2319 = vsmask.f32 5376
      %v2321 = vshrl.u32 %v2298, 16
      %v2323 = vrot.slane %v2321, 2
      %v2324 = vshll.u32 %v2298, 16
      %v2326 = vrot.slane %v2324, 3
      %v2327 = vor.u32 %v2323, %v2326
      %v2329 = vshrl.u32 %v2299, 16
      %v2331 = vrot.slane %v2329, 2
      %v2332 = vshll.u32 %v2299, 16
      %v2334 = vrot.slane %v2332, 3
      %v2335 = vor.u32 %v2331, %v2334
      %v2336 = vsel %vm2319, %v2327, %v2335
      %v2338 = vshrl.u32 %v2300, 16
      %v2340 = vrot.slane %v2338, 2
      %v2341 = vshll.u32 %v2300, 16
      %v2343 = vrot.slane %v2341, 3
      %v2344 = vor.u32 %v2340, %v2343
      %v2345 = vsel %vm2319, %v2335, %v2344
      %v2347 = vshrl.u32 %v2301, 16
      %v2349 = vrot.slane %v2347, 2
      %v2350 = vshll.u32 %v2301, 16
      %v2352 = vrot.slane %v2350, 3
      %v2353 = vor.u32 %v2349, %v2352
      %v2354 = vsel %vm2319, %v2344, %v2353
      %v2356 = vshrl.u32 %v2302, 16
      %v2358 = vrot.slane %v2356, 2
      %v2359 = vshll.u32 %v2302, 16
      %v2361 = vrot.slane %v2359, 3
      %v2362 = vor.u32 %v2358, %v2361
      %v2363 = vsel %vm2319, %v2353, %v2362
      %v2365 = vshrl.u32 %v2303, 16
      %v2367 = vrot.slane %v2365, 2
      %v2368 = vshll.u32 %v2303, 16
      %v2370 = vrot.slane %v2368, 3
      %v2371 = vor.u32 %v2367, %v2370
      %v2372 = vsel %vm2319, %v2362, %v2371
      %v2374 = vshrl.u32 %v2304, 16
      %v2376 = vrot.slane %v2374, 2
      %v2377 = vshll.u32 %v2304, 16
      %v2379 = vrot.slane %v2377, 3
      %v2380 = vor.u32 %v2376, %v2379
      %v2381 = vsel %vm2319, %v2371, %v2380
      %v2383 = vshrl.u32 %v2305, 16
      %v2385 = vrot.slane %v2383, 2
      %v2386 = vshll.u32 %v2305, 16
      %v2388 = vrot.slane %v2386, 3
      %v2389 = vor.u32 %v2385, %v2388
      %v2390 = vsel %vm2319, %v2380, %v2389
      %v2392 = vshrl.u32 %v2306, 16
      %v2394 = vrot.slane %v2392, 2
      %v2395 = vshll.u32 %v2306, 16
      %v2397 = vrot.slane %v2395, 3
      %v2398 = vor.u32 %v2394, %v2397
      %v2399 = vsel %vm2319, %v2389, %v2398
      %v2401 = vshrl.u32 %v2307, 16
      %v2403 = vrot.slane %v2401, 2
      %v2404 = vshll.u32 %v2307, 16
      %v2406 = vrot.slane %v2404, 3
      %v2407 = vor.u32 %v2403, %v2406
      %v2408 = vsel %vm2319, %v2398, %v2407
      %v2410 = vshrl.u32 %v2308, 16
      %v2412 = vrot.slane %v2410, 2
      %v2413 = vshll.u32 %v2308, 16
      %v2415 = vrot.slane %v2413, 3
      %v2416 = vor.u32 %v2412, %v2415
      %v2417 = vsel %vm2319, %v2407, %v2416
      %v2419 = vshrl.u32 %v2309, 16
      %v2421 = vrot.slane %v2419, 2
      %v2422 = vshll.u32 %v2309, 16
      %v2424 = vrot.slane %v2422, 3
      %v2425 = vor.u32 %v2421, %v2424
      %v2426 = vsel %vm2319, %v2416, %v2425
      %v2428 = vshrl.u32 %v2310, 16
      %v2430 = vrot.slane %v2428, 2
      %v2431 = vshll.u32 %v2310, 16
      %v2433 = vrot.slane %v2431, 3
      %v2434 = vor.u32 %v2430, %v2433
      %v2435 = vsel %vm2319, %v2425, %v2434
      %v2437 = vshrl.u32 %v2311, 16
      %v2439 = vrot.slane %v2437, 2
      %v2440 = vshll.u32 %v2311, 16
      %v2442 = vrot.slane %v2440, 3
      %v2443 = vor.u32 %v2439, %v2442
      %v2444 = vsel %vm2319, %v2434, %v2443
      %v2446 = vshrl.u32 %v2312, 16
      %v2448 = vrot.slane %v2446, 2
      %v2449 = vshll.u32 %v2312, 16
      %v2451 = vrot.slane %v2449, 3
      %v2452 = vor.u32 %v2448, %v2451
      %v2453 = vsel %vm2319, %v2443, %v2452
      %v2455 = vshrl.u32 %v2313, 16
      %v2457 = vrot.slane %v2455, 2
      %v2458 = vshll.u32 %v2313, 16
      %v2460 = vrot.slane %v2458, 3
      %v2461 = vor.u32 %v2457, %v2460
      %v2462 = vsel %vm2319, %v2452, %v2461
      %v2464 = vshrl.u32 %v2314, 16
      %v2466 = vrot.slane %v2464, 2
      %v2467 = vshll.u32 %v2314, 16
      %v2469 = vrot.slane %v2467, 3
      %v2470 = vor.u32 %v2466, %v2469
      %v2471 = vsel %vm2319, %v2461, %v2470
      %v2473 = vshrl.u32 %v2315, 16
      %v2475 = vrot.slane %v2473, 2
      %v2476 = vshll.u32 %v2315, 16
      %v2478 = vrot.slane %v2476, 3
      %v2479 = vor.u32 %v2475, %v2478
      %v2480 = vsel %vm2319, %v2470, %v2479
      %v2482 = vshrl.u32 %v2316, 16
      %v2484 = vrot.slane %v2482, 2
      %v2485 = vshll.u32 %v2316, 16
      %v2487 = vrot.slane %v2485, 3
      %v2488 = vor.u32 %v2484, %v2487
      %v2489 = vsel %vm2319, %v2479, %v2488
      %v2491 = vshrl.u32 %v2317, 16
      %v2493 = vrot.slane %v2491, 2
      %v2494 = vshll.u32 %v2317, 16
      %v2496 = vrot.slane %v2494, 3
      %v2497 = vor.u32 %v2493, %v2496
      %v2498 = vsel %vm2319, %v2488, %v2497
      %v2500 = vshrl.u32 %v2318, 16
      %v2502 = vrot.slane %v2500, 2
      %v2503 = vshll.u32 %v2318, 16
      %v2505 = vrot.slane %v2503, 3
      %v2506 = vor.u32 %v2502, %v2505
      %v2507 = vsel %vm2319, %v2497, %v2506
      %v2509 = vsel %vm497, %v2336, 0
      %v2512 = vsel %vm497, %v2345, 0
      %v2515 = vsel %vm497, %v2354, 0
      %v2518 = vsel %vm497, %v2363, 0
      %v2521 = vsel %vm497, %v2372, 0
      %v2524 = vsel %vm497, %v2381, 0
      %v2527 = vsel %vm497, %v2390, 0
      %v2530 = vsel %vm497, %v2399, 0
      %v2533 = vsel %vm497, %v2408, 0
      %v2536 = vsel %vm497, %v2417, 0
      %v2539 = vsel %vm497, %v2426, 0
      %v2542 = vsel %vm497, %v2435, 0
      %v2545 = vsel %vm497, %v2444, 0
      %v2548 = vsel %vm497, %v2453, 0
      %v2551 = vsel %vm497, %v2462, 0
      %v2554 = vsel %vm497, %v2471, 0
      %v2557 = vsel %vm497, %v2480, 0
      %v2560 = vsel %vm497, %v2489, 0
      %v2563 = vsel %vm497, %v2498, 0
      %v2566 = vsel %vm497, %v2507, 0
      %v2569 = vsel %vm497, %v2506, 0
      %v2572 = vsel %vm561, %v2213, 0
      %2574 = vmatpush.bf16.msra.mxu0 0
      %2575 = vmatpush.bf16.msra.mxu0 0
      %2576 = vmatpush.bf16.msra.mxu0 0
      %2577 = vmatpush.bf16.msra.mxu0 0
      %2578 = vmatpush.bf16.msra.mxu0 0
      %2579 = vmatpush.bf16.msra.mxu0 0
      %2580 = vmatpush.bf16.msra.mxu0 0
      %2581 = vmatpush.bf16.msra.mxu0 %v2572
      %2582 = vmatmul.bf16.gmra.mxu0 %v2509
      %v2583 = vpop.f32.mrf.mxu0
      %v2584 = vadd.f32 0.0, %v2583
      %v2585 = vpop.f32.mrf.mxu0
      %v2586 = vadd.f32 0.0, %v2585
      %2587 = vmatmul.bf16.gmra.mxu0 %v2512
      %v2588 = vpop.f32.mrf.mxu0
      %v2589 = vadd.f32 0.0, %v2588
      %v2590 = vpop.f32.mrf.mxu0
      %v2591 = vadd.f32 0.0, %v2590
      %2592 = vmatmul.bf16.gmra.mxu0 %v2515
      %v2593 = vpop.f32.mrf.mxu0
      %v2594 = vadd.f32 0.0, %v2593
      %v2595 = vpop.f32.mrf.mxu0
      %v2596 = vadd.f32 0.0, %v2595
      %2597 = vmatmul.bf16.gmra.mxu0 %v2518
      %v2598 = vpop.f32.mrf.mxu0
      %v2599 = vadd.f32 0.0, %v2598
      %v2600 = vpop.f32.mrf.mxu0
      %v2601 = vadd.f32 0.0, %v2600
      %2602 = vmatmul.bf16.gmra.mxu0 %v2521
      %v2603 = vpop.f32.mrf.mxu0
      %v2604 = vadd.f32 0.0, %v2603
      %v2605 = vpop.f32.mrf.mxu0
      %v2606 = vadd.f32 0.0, %v2605
      %2607 = vmatmul.bf16.gmra.mxu0 %v2524
      %v2608 = vpop.f32.mrf.mxu0
      %v2609 = vadd.f32 0.0, %v2608
      %v2610 = vpop.f32.mrf.mxu0
      %v2611 = vadd.f32 0.0, %v2610
      %2612 = vmatmul.bf16.gmra.mxu0 %v2527
      %v2613 = vpop.f32.mrf.mxu0
      %v2614 = vadd.f32 0.0, %v2613
      %v2615 = vpop.f32.mrf.mxu0
      %v2616 = vadd.f32 0.0, %v2615
      %2617 = vmatmul.bf16.gmra.mxu0 %v2530
      %v2618 = vpop.f32.mrf.mxu0
      %v2619 = vadd.f32 0.0, %v2618
      %v2620 = vpop.f32.mrf.mxu0
      %v2621 = vadd.f32 0.0, %v2620
      %2622 = vmatmul.bf16.gmra.mxu0 %v2533
      %v2623 = vpop.f32.mrf.mxu0
      %v2624 = vadd.f32 0.0, %v2623
      %v2625 = vpop.f32.mrf.mxu0
      %v2626 = vadd.f32 0.0, %v2625
      %2627 = vmatmul.bf16.gmra.mxu0 %v2536
      %v2628 = vpop.f32.mrf.mxu0
      %v2629 = vadd.f32 0.0, %v2628
      %v2630 = vpop.f32.mrf.mxu0
      %v2631 = vadd.f32 0.0, %v2630
      %2632 = vmatmul.bf16.gmra.mxu0 %v2539
      %v2633 = vpop.f32.mrf.mxu0
      %v2634 = vadd.f32 0.0, %v2633
      %v2635 = vpop.f32.mrf.mxu0
      %v2636 = vadd.f32 0.0, %v2635
      %2637 = vmatmul.bf16.gmra.mxu0 %v2542
      %v2638 = vpop.f32.mrf.mxu0
      %v2639 = vadd.f32 0.0, %v2638
      %v2640 = vpop.f32.mrf.mxu0
      %v2641 = vadd.f32 0.0, %v2640
      %2642 = vmatmul.bf16.gmra.mxu0 %v2545
      %v2643 = vpop.f32.mrf.mxu0
      %v2644 = vadd.f32 0.0, %v2643
      %v2645 = vpop.f32.mrf.mxu0
      %v2646 = vadd.f32 0.0, %v2645
      %2647 = vmatmul.bf16.gmra.mxu0 %v2548
      %v2648 = vpop.f32.mrf.mxu0
      %v2649 = vadd.f32 0.0, %v2648
      %v2650 = vpop.f32.mrf.mxu0
      %v2651 = vadd.f32 0.0, %v2650
      %2652 = vmatmul.bf16.gmra.mxu0 %v2551
      %v2653 = vpop.f32.mrf.mxu0
      %v2654 = vadd.f32 0.0, %v2653
      %v2655 = vpop.f32.mrf.mxu0
      %v2656 = vadd.f32 0.0, %v2655
      %2657 = vmatmul.bf16.gmra.mxu0 %v2554
      %v2658 = vpop.f32.mrf.mxu0
      %v2659 = vadd.f32 0.0, %v2658
      %v2660 = vpop.f32.mrf.mxu0
      %v2661 = vadd.f32 0.0, %v2660
      %2662 = vmatmul.bf16.gmra.mxu0 %v2557
      %v2663 = vpop.f32.mrf.mxu0
      %v2664 = vadd.f32 0.0, %v2663
      %v2665 = vpop.f32.mrf.mxu0
      %v2666 = vadd.f32 0.0, %v2665
      %2667 = vmatmul.bf16.gmra.mxu0 %v2560
      %v2668 = vpop.f32.mrf.mxu0
      %v2669 = vadd.f32 0.0, %v2668
      %v2670 = vpop.f32.mrf.mxu0
      %v2671 = vadd.f32 0.0, %v2670
      %2672 = vmatmul.bf16.gmra.mxu0 %v2563
      %v2673 = vpop.f32.mrf.mxu0
      %v2674 = vadd.f32 0.0, %v2673
      %v2675 = vpop.f32.mrf.mxu0
      %v2676 = vadd.f32 0.0, %v2675
      %2677 = vmatmul.bf16.gmra.mxu0 %v2566
      %v2678 = vpop.f32.mrf.mxu0
      %v2679 = vadd.f32 0.0, %v2678
      %v2680 = vpop.f32.mrf.mxu0
      %v2681 = vadd.f32 0.0, %v2680
      %2682 = vmatmul.bf16.gmra.mxu0 %v2569
      %v2683 = vpop.f32.mrf.mxu0
      %v2684 = vadd.f32 0.0, %v2683
      %v2685 = vpop.f32.mrf.mxu0
      %2686 = vdwg.mxu0
      %v2687 = vadd.f32 %v2129, %v2584
      %v2688 = vadd.f32 %v2130, %v2586
      %v2689 = vadd.f32 %v2131, %v2589
      %v2690 = vadd.f32 %v2132, %v2591
      %v2691 = vadd.f32 %v2133, %v2594
      %v2692 = vadd.f32 %v2134, %v2596
      %v2693 = vadd.f32 %v2135, %v2599
      %v2694 = vadd.f32 %v2136, %v2601
      %v2695 = vadd.f32 %v2137, %v2604
      %v2696 = vadd.f32 %v2138, %v2606
      %v2697 = vadd.f32 %v2139, %v2609
      %v2698 = vadd.f32 %v2140, %v2611
      %v2699 = vadd.f32 %v2141, %v2614
      %v2700 = vadd.f32 %v2142, %v2616
      %v2701 = vadd.f32 %v2143, %v2619
      %v2702 = vadd.f32 %v2144, %v2621
      %v2703 = vadd.f32 %v2145, %v2624
      %v2704 = vadd.f32 %v2146, %v2626
      %v2705 = vadd.f32 %v2147, %v2629
      %v2706 = vadd.f32 %v2148, %v2631
      %v2707 = vadd.f32 %v2149, %v2634
      %v2708 = vadd.f32 %v2150, %v2636
      %v2709 = vadd.f32 %v2151, %v2639
      %v2710 = vadd.f32 %v2152, %v2641
      %v2711 = vadd.f32 %v2153, %v2644
      %v2712 = vadd.f32 %v2154, %v2646
      %v2713 = vadd.f32 %v2155, %v2649
      %v2714 = vadd.f32 %v2156, %v2651
      %v2715 = vadd.f32 %v2157, %v2654
      %v2716 = vadd.f32 %v2158, %v2656
      %v2717 = vadd.f32 %v2159, %v2659
      %v2718 = vadd.f32 %v2160, %v2661
      %v2719 = vadd.f32 %v2161, %v2664
      %v2720 = vadd.f32 %v2162, %v2666
      %v2721 = vadd.f32 %v2163, %v2669
      %v2722 = vadd.f32 %v2164, %v2671
      %v2723 = vadd.f32 %v2165, %v2674
      %v2724 = vadd.f32 %v2166, %v2676
      %v2725 = vadd.f32 %v2167, %v2679
      %v2726 = vadd.f32 %v2168, %v2681
      %v2727 = vadd.f32 %v2169, %v2684
      %v2728 = vld [vmem:[%s300 + $0x18] sm:$0xc]
      %v2729 = vld [vmem:[%s300 + $0x1c] sm:$0xf]
      %v2730 = vld [vmem:[%s300 + $0x20] sm:$0xf]
      %v2731 = vld [vmem:[%s300 + $0x24] sm:$0xf]
      %v2732 = vld [vmem:[%s300 + $0x28] sm:$0xf]
      %v2733 = vld [vmem:[%s300 + $0x2c] sm:$0xf]
      %v2734 = vld [vmem:[%s300 + $0x30] sm:$0xf]
      %v2735 = vld [vmem:[%s300 + $0x34] sm:$0xf]
      %v2736 = vld [vmem:[%s300 + $0x38] sm:$0xf]
      %v2737 = vld [vmem:[%s300 + $0x3c] sm:$0xf]
      %v2738 = vld [vmem:[%s300 + $0x40] sm:$0xf]
      %v2739 = vld [vmem:[%s300 + $0x44] sm:$0xf]
      %v2740 = vld [vmem:[%s300 + $0x48] sm:$0xf]
      %v2741 = vld [vmem:[%s300 + $0x4c] sm:$0xf]
      %v2742 = vld [vmem:[%s300 + $0x50] sm:$0xf]
      %v2743 = vld [vmem:[%s300 + $0x54] sm:$0xf]
      %v2744 = vld [vmem:[%s300 + $0x58] sm:$0xf]
      %v2745 = vld [vmem:[%s300 + $0x5c] sm:$0xf]
      %v2746 = vld [vmem:[%s300 + $0x60] sm:$0xf]
      %v2747 = vld [vmem:[%s300 + $0x64] sm:$0xf]
      %v2748 = vld [vmem:[%s300 + $0x68] sm:$0xf]
      %v2749 = vld [vmem:[%s300 + $0x6c] sm:$0xf]
      %v2750 = vld [vmem:[%s300 + $0x70] sm:$0xf]
      %v2751 = vld [vmem:[%s300 + $0x74] sm:$0xf]
      %v2752 = vld [vmem:[%s300 + $0x78] sm:$0xf]
      %v2753 = vld [vmem:[%s300 + $0x7c] sm:$0xf]
      %v2754 = vld [vmem:[%s300 + $0x80] sm:$0xf]
      %v2755 = vld [vmem:[%s300 + $0x84] sm:$0xf]
      %v2756 = vld [vmem:[%s300 + $0x88] sm:$0xf]
      %v2757 = vld [vmem:[%s300 + $0x8c] sm:$0xf]
      %v2758 = vld [vmem:[%s300 + $0x90] sm:$0xf]
      %v2759 = vld [vmem:[%s300 + $0x94] sm:$0xf]
      %v2760 = vld [vmem:[%s300 + $0x98] sm:$0xf]
      %v2761 = vld [vmem:[%s300 + $0x9c] sm:$0xf]
      %v2762 = vld [vmem:[%s300 + $0xa0] sm:$0xf]
      %v2763 = vld [vmem:[%s300 + $0xa4] sm:$0xf]
      %v2764 = vld [vmem:[%s300 + $0xa8] sm:$0xf]
      %v2765 = vld [vmem:[%s300 + $0xac] sm:$0xf]
      %v2766 = vld [vmem:[%s300 + $0xb0] sm:$0xf]
      %v2767 = vld [vmem:[%s300 + $0xb4] sm:$0xf]
      %v2768 = vld [vmem:[%s300 + $0xb8] sm:$0xf]
      %v2769 = vld [vmem:[%s300 + $0xbc] sm:$0x1]
      %s2770 = scalar_lea.vmem %s2, 24
      %v2771 = vld [vmem:[%s2770] sm:$0xf]
      %v2814 = vunpack.c.l.b16 %v2728
      %v2815 = vunpack.c.l.b16 %v2729
      %v2816 = vunpack.c.l.b16 %v2730
      %v2817 = vunpack.c.l.b16 %v2731
      %v2818 = vunpack.c.l.b16 %v2732
      %v2819 = vunpack.c.l.b16 %v2733
      %v2820 = vunpack.c.l.b16 %v2734
      %v2821 = vunpack.c.l.b16 %v2735
      %v2822 = vunpack.c.l.b16 %v2736
      %v2823 = vunpack.c.l.b16 %v2737
      %v2824 = vunpack.c.l.b16 %v2738
      %v2825 = vunpack.c.l.b16 %v2739
      %v2826 = vunpack.c.l.b16 %v2740
      %v2827 = vunpack.c.l.b16 %v2741
      %v2828 = vunpack.c.l.b16 %v2742
      %v2829 = vunpack.c.l.b16 %v2743
      %v2830 = vunpack.c.l.b16 %v2744
      %v2831 = vunpack.c.l.b16 %v2745
      %v2832 = vunpack.c.l.b16 %v2746
      %v2833 = vunpack.c.l.b16 %v2747
      %v2834 = vunpack.c.l.b16 %v2748
      %v2835 = vunpack.c.l.b16 %v2749
      %v2836 = vunpack.c.l.b16 %v2750
      %v2837 = vunpack.c.l.b16 %v2751
      %v2838 = vunpack.c.l.b16 %v2752
      %v2839 = vunpack.c.l.b16 %v2753
      %v2840 = vunpack.c.l.b16 %v2754
      %v2841 = vunpack.c.l.b16 %v2755
      %v2842 = vunpack.c.l.b16 %v2756
      %v2843 = vunpack.c.l.b16 %v2757
      %v2844 = vunpack.c.l.b16 %v2758
      %v2845 = vunpack.c.l.b16 %v2759
      %v2846 = vunpack.c.l.b16 %v2760
      %v2847 = vunpack.c.l.b16 %v2761
      %v2848 = vunpack.c.l.b16 %v2762
      %v2849 = vunpack.c.l.b16 %v2763
      %v2850 = vunpack.c.l.b16 %v2764
      %v2851 = vunpack.c.l.b16 %v2765
      %v2852 = vunpack.c.l.b16 %v2766
      %v2853 = vunpack.c.l.b16 %v2767
      %v2854 = vunpack.c.l.b16 %v2768
      %v2855 = vunpack.c.l.b16 %v2769
      %v2856 = vpack.c.b16 %v2815, %v2814
      %v2857 = vpack.c.b16 %v2817, %v2816
      %v2858 = vpack.c.b16 %v2819, %v2818
      %v2859 = vpack.c.b16 %v2821, %v2820
      %v2860 = vpack.c.b16 %v2823, %v2822
      %v2861 = vpack.c.b16 %v2825, %v2824
      %v2862 = vpack.c.b16 %v2827, %v2826
      %v2863 = vpack.c.b16 %v2829, %v2828
      %v2864 = vpack.c.b16 %v2831, %v2830
      %v2865 = vpack.c.b16 %v2833, %v2832
      %v2866 = vpack.c.b16 %v2835, %v2834
      %v2867 = vpack.c.b16 %v2837, %v2836
      %v2868 = vpack.c.b16 %v2839, %v2838
      %v2869 = vpack.c.b16 %v2841, %v2840
      %v2870 = vpack.c.b16 %v2843, %v2842
      %v2871 = vpack.c.b16 %v2845, %v2844
      %v2872 = vpack.c.b16 %v2847, %v2846
      %v2873 = vpack.c.b16 %v2849, %v2848
      %v2874 = vpack.c.b16 %v2851, %v2850
      %v2875 = vpack.c.b16 %v2853, %v2852
      %v2876 = vpack.c.b16 %v2855, %v2854
      %v2878 = vshrl.u32 %v2856, 16
      %v2880 = vrot.slane %v2878, 2
      %v2881 = vshll.u32 %v2856, 16
      %v2883 = vrot.slane %v2881, 3
      %v2884 = vor.u32 %v2880, %v2883
      %v2886 = vshrl.u32 %v2857, 16
      %v2888 = vrot.slane %v2886, 2
      %v2889 = vshll.u32 %v2857, 16
      %v2891 = vrot.slane %v2889, 3
      %v2892 = vor.u32 %v2888, %v2891
      %v2893 = vsel %vm2319, %v2884, %v2892
      %v2895 = vshrl.u32 %v2858, 16
      %v2897 = vrot.slane %v2895, 2
      %v2898 = vshll.u32 %v2858, 16
      %v2900 = vrot.slane %v2898, 3
      %v2901 = vor.u32 %v2897, %v2900
      %v2902 = vsel %vm2319, %v2892, %v2901
      %v2904 = vshrl.u32 %v2859, 16
      %v2906 = vrot.slane %v2904, 2
      %v2907 = vshll.u32 %v2859, 16
      %v2909 = vrot.slane %v2907, 3
      %v2910 = vor.u32 %v2906, %v2909
      %v2911 = vsel %vm2319, %v2901, %v2910
      %v2913 = vshrl.u32 %v2860, 16
      %v2915 = vrot.slane %v2913, 2
      %v2916 = vshll.u32 %v2860, 16
      %v2918 = vrot.slane %v2916, 3
      %v2919 = vor.u32 %v2915, %v2918
      %v2920 = vsel %vm2319, %v2910, %v2919
      %v2922 = vshrl.u32 %v2861, 16
      %v2924 = vrot.slane %v2922, 2
      %v2925 = vshll.u32 %v2861, 16
      %v2927 = vrot.slane %v2925, 3
      %v2928 = vor.u32 %v2924, %v2927
      %v2929 = vsel %vm2319, %v2919, %v2928
      %v2931 = vshrl.u32 %v2862, 16
      %v2933 = vrot.slane %v2931, 2
      %v2934 = vshll.u32 %v2862, 16
      %v2936 = vrot.slane %v2934, 3
      %v2937 = vor.u32 %v2933, %v2936
      %v2938 = vsel %vm2319, %v2928, %v2937
      %v2940 = vshrl.u32 %v2863, 16
      %v2942 = vrot.slane %v2940, 2
      %v2943 = vshll.u32 %v2863, 16
      %v2945 = vrot.slane %v2943, 3
      %v2946 = vor.u32 %v2942, %v2945
      %v2947 = vsel %vm2319, %v2937, %v2946
      %v2949 = vshrl.u32 %v2864, 16
      %v2951 = vrot.slane %v2949, 2
      %v2952 = vshll.u32 %v2864, 16
      %v2954 = vrot.slane %v2952, 3
      %v2955 = vor.u32 %v2951, %v2954
      %v2956 = vsel %vm2319, %v2946, %v2955
      %v2958 = vshrl.u32 %v2865, 16
      %v2960 = vrot.slane %v2958, 2
      %v2961 = vshll.u32 %v2865, 16
      %v2963 = vrot.slane %v2961, 3
      %v2964 = vor.u32 %v2960, %v2963
      %v2965 = vsel %vm2319, %v2955, %v2964
      %v2967 = vshrl.u32 %v2866, 16
      %v2969 = vrot.slane %v2967, 2
      %v2970 = vshll.u32 %v2866, 16
      %v2972 = vrot.slane %v2970, 3
      %v2973 = vor.u32 %v2969, %v2972
      %v2974 = vsel %vm2319, %v2964, %v2973
      %v2976 = vshrl.u32 %v2867, 16
      %v2978 = vrot.slane %v2976, 2
      %v2979 = vshll.u32 %v2867, 16
      %v2981 = vrot.slane %v2979, 3
      %v2982 = vor.u32 %v2978, %v2981
      %v2983 = vsel %vm2319, %v2973, %v2982
      %v2985 = vshrl.u32 %v2868, 16
      %v2987 = vrot.slane %v2985, 2
      %v2988 = vshll.u32 %v2868, 16
      %v2990 = vrot.slane %v2988, 3
      %v2991 = vor.u32 %v2987, %v2990
      %v2992 = vsel %vm2319, %v2982, %v2991
      %v2994 = vshrl.u32 %v2869, 16
      %v2996 = vrot.slane %v2994, 2
      %v2997 = vshll.u32 %v2869, 16
      %v2999 = vrot.slane %v2997, 3
      %v3000 = vor.u32 %v2996, %v2999
      %v3001 = vsel %vm2319, %v2991, %v3000
      %v3003 = vshrl.u32 %v2870, 16
      %v3005 = vrot.slane %v3003, 2
      %v3006 = vshll.u32 %v2870, 16
      %v3008 = vrot.slane %v3006, 3
      %v3009 = vor.u32 %v3005, %v3008
      %v3010 = vsel %vm2319, %v3000, %v3009
      %v3012 = vshrl.u32 %v2871, 16
      %v3014 = vrot.slane %v3012, 2
      %v3015 = vshll.u32 %v2871, 16
      %v3017 = vrot.slane %v3015, 3
      %v3018 = vor.u32 %v3014, %v3017
      %v3019 = vsel %vm2319, %v3009, %v3018
      %v3021 = vshrl.u32 %v2872, 16
      %v3023 = vrot.slane %v3021, 2
      %v3024 = vshll.u32 %v2872, 16
      %v3026 = vrot.slane %v3024, 3
      %v3027 = vor.u32 %v3023, %v3026
      %v3028 = vsel %vm2319, %v3018, %v3027
      %v3030 = vshrl.u32 %v2873, 16
      %v3032 = vrot.slane %v3030, 2
      %v3033 = vshll.u32 %v2873, 16
      %v3035 = vrot.slane %v3033, 3
      %v3036 = vor.u32 %v3032, %v3035
      %v3037 = vsel %vm2319, %v3027, %v3036
      %v3039 = vshrl.u32 %v2874, 16
      %v3041 = vrot.slane %v3039, 2
      %v3042 = vshll.u32 %v2874, 16
      %v3044 = vrot.slane %v3042, 3
      %v3045 = vor.u32 %v3041, %v3044
      %v3046 = vsel %vm2319, %v3036, %v3045
      %v3048 = vshrl.u32 %v2875, 16
      %v3050 = vrot.slane %v3048, 2
      %v3051 = vshll.u32 %v2875, 16
      %v3053 = vrot.slane %v3051, 3
      %v3054 = vor.u32 %v3050, %v3053
      %v3055 = vsel %vm2319, %v3045, %v3054
      %v3057 = vshrl.u32 %v2876, 16
      %v3059 = vrot.slane %v3057, 2
      %v3060 = vshll.u32 %v2876, 16
      %v3062 = vrot.slane %v3060, 3
      %v3063 = vor.u32 %v3059, %v3062
      %v3064 = vsel %vm2319, %v3054, %v3063
      %v3066 = vsel %vm497, %v2893, 0
      %v3069 = vsel %vm497, %v2902, 0
      %v3072 = vsel %vm497, %v2911, 0
      %v3075 = vsel %vm497, %v2920, 0
      %v3078 = vsel %vm497, %v2929, 0
      %v3081 = vsel %vm497, %v2938, 0
      %v3084 = vsel %vm497, %v2947, 0
      %v3087 = vsel %vm497, %v2956, 0
      %v3090 = vsel %vm497, %v2965, 0
      %v3093 = vsel %vm497, %v2974, 0
      %v3096 = vsel %vm497, %v2983, 0
      %v3099 = vsel %vm497, %v2992, 0
      %v3102 = vsel %vm497, %v3001, 0
      %v3105 = vsel %vm497, %v3010, 0
      %v3108 = vsel %vm497, %v3019, 0
      %v3111 = vsel %vm497, %v3028, 0
      %v3114 = vsel %vm497, %v3037, 0
      %v3117 = vsel %vm497, %v3046, 0
      %v3120 = vsel %vm497, %v3055, 0
      %v3123 = vsel %vm497, %v3064, 0
      %v3126 = vsel %vm497, %v3063, 0
      %v3129 = vsel %vm561, %v2771, 0
      %3131 = vmatpush.bf16.msra.mxu0 0
      %3132 = vmatpush.bf16.msra.mxu0 0
      %3133 = vmatpush.bf16.msra.mxu0 0
      %3134 = vmatpush.bf16.msra.mxu0 0
      %3135 = vmatpush.bf16.msra.mxu0 0
      %3136 = vmatpush.bf16.msra.mxu0 0
      %3137 = vmatpush.bf16.msra.mxu0 0
      %3138 = vmatpush.bf16.msra.mxu0 %v3129
      %3139 = vmatmul.bf16.gmra.mxu0 %v3066
      %v3140 = vpop.f32.mrf.mxu0
      %v3141 = vadd.f32 0.0, %v3140
      %v3142 = vpop.f32.mrf.mxu0
      %v3143 = vadd.f32 0.0, %v3142
      %3144 = vmatmul.bf16.gmra.mxu0 %v3069
      %v3145 = vpop.f32.mrf.mxu0
      %v3146 = vadd.f32 0.0, %v3145
      %v3147 = vpop.f32.mrf.mxu0
      %v3148 = vadd.f32 0.0, %v3147
      %3149 = vmatmul.bf16.gmra.mxu0 %v3072
      %v3150 = vpop.f32.mrf.mxu0
      %v3151 = vadd.f32 0.0, %v3150
      %v3152 = vpop.f32.mrf.mxu0
      %v3153 = vadd.f32 0.0, %v3152
      %3154 = vmatmul.bf16.gmra.mxu0 %v3075
      %v3155 = vpop.f32.mrf.mxu0
      %v3156 = vadd.f32 0.0, %v3155
      %v3157 = vpop.f32.mrf.mxu0
      %v3158 = vadd.f32 0.0, %v3157
      %3159 = vmatmul.bf16.gmra.mxu0 %v3078
      %v3160 = vpop.f32.mrf.mxu0
      %v3161 = vadd.f32 0.0, %v3160
      %v3162 = vpop.f32.mrf.mxu0
      %v3163 = vadd.f32 0.0, %v3162
      %3164 = vmatmul.bf16.gmra.mxu0 %v3081
      %v3165 = vpop.f32.mrf.mxu0
      %v3166 = vadd.f32 0.0, %v3165
      %v3167 = vpop.f32.mrf.mxu0
      %v3168 = vadd.f32 0.0, %v3167
      %3169 = vmatmul.bf16.gmra.mxu0 %v3084
      %v3170 = vpop.f32.mrf.mxu0
      %v3171 = vadd.f32 0.0, %v3170
      %v3172 = vpop.f32.mrf.mxu0
      %v3173 = vadd.f32 0.0, %v3172
      %3174 = vmatmul.bf16.gmra.mxu0 %v3087
      %v3175 = vpop.f32.mrf.mxu0
      %v3176 = vadd.f32 0.0, %v3175
      %v3177 = vpop.f32.mrf.mxu0
      %v3178 = vadd.f32 0.0, %v3177
      %3179 = vmatmul.bf16.gmra.mxu0 %v3090
      %v3180 = vpop.f32.mrf.mxu0
      %v3181 = vadd.f32 0.0, %v3180
      %v3182 = vpop.f32.mrf.mxu0
      %v3183 = vadd.f32 0.0, %v3182
      %3184 = vmatmul.bf16.gmra.mxu0 %v3093
      %v3185 = vpop.f32.mrf.mxu0
      %v3186 = vadd.f32 0.0, %v3185
      %v3187 = vpop.f32.mrf.mxu0
      %v3188 = vadd.f32 0.0, %v3187
      %3189 = vmatmul.bf16.gmra.mxu0 %v3096
      %v3190 = vpop.f32.mrf.mxu0
      %v3191 = vadd.f32 0.0, %v3190
      %v3192 = vpop.f32.mrf.mxu0
      %v3193 = vadd.f32 0.0, %v3192
      %3194 = vmatmul.bf16.gmra.mxu0 %v3099
      %v3195 = vpop.f32.mrf.mxu0
      %v3196 = vadd.f32 0.0, %v3195
      %v3197 = vpop.f32.mrf.mxu0
      %v3198 = vadd.f32 0.0, %v3197
      %3199 = vmatmul.bf16.gmra.mxu0 %v3102
      %v3200 = vpop.f32.mrf.mxu0
      %v3201 = vadd.f32 0.0, %v3200
      %v3202 = vpop.f32.mrf.mxu0
      %v3203 = vadd.f32 0.0, %v3202
      %3204 = vmatmul.bf16.gmra.mxu0 %v3105
      %v3205 = vpop.f32.mrf.mxu0
      %v3206 = vadd.f32 0.0, %v3205
      %v3207 = vpop.f32.mrf.mxu0
      %v3208 = vadd.f32 0.0, %v3207
      %3209 = vmatmul.bf16.gmra.mxu0 %v3108
      %v3210 = vpop.f32.mrf.mxu0
      %v3211 = vadd.f32 0.0, %v3210
      %v3212 = vpop.f32.mrf.mxu0
      %v3213 = vadd.f32 0.0, %v3212
      %3214 = vmatmul.bf16.gmra.mxu0 %v3111
      %v3215 = vpop.f32.mrf.mxu0
      %v3216 = vadd.f32 0.0, %v3215
      %v3217 = vpop.f32.mrf.mxu0
      %v3218 = vadd.f32 0.0, %v3217
      %3219 = vmatmul.bf16.gmra.mxu0 %v3114
      %v3220 = vpop.f32.mrf.mxu0
      %v3221 = vadd.f32 0.0, %v3220
      %v3222 = vpop.f32.mrf.mxu0
      %v3223 = vadd.f32 0.0, %v3222
      %3224 = vmatmul.bf16.gmra.mxu0 %v3117
      %v3225 = vpop.f32.mrf.mxu0
      %v3226 = vadd.f32 0.0, %v3225
      %v3227 = vpop.f32.mrf.mxu0
      %v3228 = vadd.f32 0.0, %v3227
      %3229 = vmatmul.bf16.gmra.mxu0 %v3120
      %v3230 = vpop.f32.mrf.mxu0
      %v3231 = vadd.f32 0.0, %v3230
      %v3232 = vpop.f32.mrf.mxu0
      %v3233 = vadd.f32 0.0, %v3232
      %3234 = vmatmul.bf16.gmra.mxu0 %v3123
      %v3235 = vpop.f32.mrf.mxu0
      %v3236 = vadd.f32 0.0, %v3235
      %v3237 = vpop.f32.mrf.mxu0
      %v3238 = vadd.f32 0.0, %v3237
      %3239 = vmatmul.bf16.gmra.mxu0 %v3126
      %v3240 = vpop.f32.mrf.mxu0
      %v3241 = vadd.f32 0.0, %v3240
      %v3242 = vpop.f32.mrf.mxu0
      %3243 = vdwg.mxu0
      %v3244 = vadd.f32 %v2687, %v3141
      %v3245 = vadd.f32 %v2688, %v3143
      %v3246 = vadd.f32 %v2689, %v3146
      %v3247 = vadd.f32 %v2690, %v3148
      %v3248 = vadd.f32 %v2691, %v3151
      %v3249 = vadd.f32 %v2692, %v3153
      %v3250 = vadd.f32 %v2693, %v3156
      %v3251 = vadd.f32 %v2694, %v3158
      %v3252 = vadd.f32 %v2695, %v3161
      %v3253 = vadd.f32 %v2696, %v3163
      %v3254 = vadd.f32 %v2697, %v3166
      %v3255 = vadd.f32 %v2698, %v3168
      %v3256 = vadd.f32 %v2699, %v3171
      %v3257 = vadd.f32 %v2700, %v3173
      %v3258 = vadd.f32 %v2701, %v3176
      %v3259 = vadd.f32 %v2702, %v3178
      %v3260 = vadd.f32 %v2703, %v3181
      %v3261 = vadd.f32 %v2704, %v3183
      %v3262 = vadd.f32 %v2705, %v3186
      %v3263 = vadd.f32 %v2706, %v3188
      %v3264 = vadd.f32 %v2707, %v3191
      %v3265 = vadd.f32 %v2708, %v3193
      %v3266 = vadd.f32 %v2709, %v3196
      %v3267 = vadd.f32 %v2710, %v3198
      %v3268 = vadd.f32 %v2711, %v3201
      %v3269 = vadd.f32 %v2712, %v3203
      %v3270 = vadd.f32 %v2713, %v3206
      %v3271 = vadd.f32 %v2714, %v3208
      %v3272 = vadd.f32 %v2715, %v3211
      %v3273 = vadd.f32 %v2716, %v3213
      %v3274 = vadd.f32 %v2717, %v3216
      %v3275 = vadd.f32 %v2718, %v3218
      %v3276 = vadd.f32 %v2719, %v3221
      %v3277 = vadd.f32 %v2720, %v3223
      %v3278 = vadd.f32 %v2721, %v3226
      %v3279 = vadd.f32 %v2722, %v3228
      %v3280 = vadd.f32 %v2723, %v3231
      %v3281 = vadd.f32 %v2724, %v3233
      %v3282 = vadd.f32 %v2725, %v3236
      %v3283 = vadd.f32 %v2726, %v3238
      %v3284 = vadd.f32 %v2727, %v3241
      %v3285 = vld [vmem:[%s300 + $0x18] sm:$0x8]
      %s3286 = scalar_lea.vmem %s2, 28
      %v3287 = vld [vmem:[%s3286] sm:$0xf]
      %v3289 = vunpack.c.l.b16 %v3285
      %v3290 = vpack.c.b16 %v2815, %v3289
      %vm3291 = vcmask 1044480
      %v3292 = vrot.slane %v3290, 3
      %v3293 = vrot.slane %v2857, 3
      %v3294 = vsel %vm3291, %v3292, %v3293
      %v3295 = vrot.slane %v2858, 3
      %v3296 = vsel %vm3291, %v3293, %v3295
      %v3297 = vrot.slane %v2859, 3
      %v3298 = vsel %vm3291, %v3295, %v3297
      %v3299 = vrot.slane %v2860, 3
      %v3300 = vsel %vm3291, %v3297, %v3299
      %v3301 = vrot.slane %v2861, 3
      %v3302 = vsel %vm3291, %v3299, %v3301
      %v3303 = vrot.slane %v2862, 3
      %v3304 = vsel %vm3291, %v3301, %v3303
      %v3305 = vrot.slane %v2863, 3
      %v3306 = vsel %vm3291, %v3303, %v3305
      %v3307 = vrot.slane %v2864, 3
      %v3308 = vsel %vm3291, %v3305, %v3307
      %v3309 = vrot.slane %v2865, 3
      %v3310 = vsel %vm3291, %v3307, %v3309
      %v3311 = vrot.slane %v2866, 3
      %v3312 = vsel %vm3291, %v3309, %v3311
      %v3313 = vrot.slane %v2867, 3
      %v3314 = vsel %vm3291, %v3311, %v3313
      %v3315 = vrot.slane %v2868, 3
      %v3316 = vsel %vm3291, %v3313, %v3315
      %v3317 = vrot.slane %v2869, 3
      %v3318 = vsel %vm3291, %v3315, %v3317
      %v3319 = vrot.slane %v2870, 3
      %v3320 = vsel %vm3291, %v3317, %v3319
      %v3321 = vrot.slane %v2871, 3
      %v3322 = vsel %vm3291, %v3319, %v3321
      %v3323 = vrot.slane %v2872, 3
      %v3324 = vsel %vm3291, %v3321, %v3323
      %v3325 = vrot.slane %v2873, 3
      %v3326 = vsel %vm3291, %v3323, %v3325
      %v3327 = vrot.slane %v2874, 3
      %v3328 = vsel %vm3291, %v3325, %v3327
      %v3329 = vrot.slane %v2875, 3
      %v3330 = vsel %vm3291, %v3327, %v3329
      %v3331 = vrot.slane %v2876, 3
      %v3332 = vsel %vm3291, %v3329, %v3331
      %v3334 = vsel %vm497, %v3294, 0
      %v3337 = vsel %vm497, %v3296, 0
      %v3340 = vsel %vm497, %v3298, 0
      %v3343 = vsel %vm497, %v3300, 0
      %v3346 = vsel %vm497, %v3302, 0
      %v3349 = vsel %vm497, %v3304, 0
      %v3352 = vsel %vm497, %v3306, 0
      %v3355 = vsel %vm497, %v3308, 0
      %v3358 = vsel %vm497, %v3310, 0
      %v3361 = vsel %vm497, %v3312, 0
      %v3364 = vsel %vm497, %v3314, 0
      %v3367 = vsel %vm497, %v3316, 0
      %v3370 = vsel %vm497, %v3318, 0
      %v3373 = vsel %vm497, %v3320, 0
      %v3376 = vsel %vm497, %v3322, 0
      %v3379 = vsel %vm497, %v3324, 0
      %v3382 = vsel %vm497, %v3326, 0
      %v3385 = vsel %vm497, %v3328, 0
      %v3388 = vsel %vm497, %v3330, 0
      %v3391 = vsel %vm497, %v3332, 0
      %v3394 = vsel %vm497, %v3331, 0
      %v3397 = vsel %vm561, %v3287, 0
      %3399 = vmatpush.bf16.msra.mxu0 0
      %3400 = vmatpush.bf16.msra.mxu0 0
      %3401 = vmatpush.bf16.msra.mxu0 0
      %3402 = vmatpush.bf16.msra.mxu0 0
      %3403 = vmatpush.bf16.msra.mxu0 0
      %3404 = vmatpush.bf16.msra.mxu0 0
      %3405 = vmatpush.bf16.msra.mxu0 0
      %3406 = vmatpush.bf16.msra.mxu0 %v3397
      %3407 = vmatmul.bf16.gmra.mxu0 %v3334
      %v3408 = vpop.f32.mrf.mxu0
      %v3409 = vadd.f32 0.0, %v3408
      %v3410 = vpop.f32.mrf.mxu0
      %v3411 = vadd.f32 0.0, %v3410
      %3412 = vmatmul.bf16.gmra.mxu0 %v3337
      %v3413 = vpop.f32.mrf.mxu0
      %v3414 = vadd.f32 0.0, %v3413
      %v3415 = vpop.f32.mrf.mxu0
      %v3416 = vadd.f32 0.0, %v3415
      %3417 = vmatmul.bf16.gmra.mxu0 %v3340
      %v3418 = vpop.f32.mrf.mxu0
      %v3419 = vadd.f32 0.0, %v3418
      %v3420 = vpop.f32.mrf.mxu0
      %v3421 = vadd.f32 0.0, %v3420
      %3422 = vmatmul.bf16.gmra.mxu0 %v3343
      %v3423 = vpop.f32.mrf.mxu0
      %v3424 = vadd.f32 0.0, %v3423
      %v3425 = vpop.f32.mrf.mxu0
      %v3426 = vadd.f32 0.0, %v3425
      %3427 = vmatmul.bf16.gmra.mxu0 %v3346
      %v3428 = vpop.f32.mrf.mxu0
      %v3429 = vadd.f32 0.0, %v3428
      %v3430 = vpop.f32.mrf.mxu0
      %v3431 = vadd.f32 0.0, %v3430
      %3432 = vmatmul.bf16.gmra.mxu0 %v3349
      %v3433 = vpop.f32.mrf.mxu0
      %v3434 = vadd.f32 0.0, %v3433
      %v3435 = vpop.f32.mrf.mxu0
      %v3436 = vadd.f32 0.0, %v3435
      %3437 = vmatmul.bf16.gmra.mxu0 %v3352
      %v3438 = vpop.f32.mrf.mxu0
      %v3439 = vadd.f32 0.0, %v3438
      %v3440 = vpop.f32.mrf.mxu0
      %v3441 = vadd.f32 0.0, %v3440
      %3442 = vmatmul.bf16.gmra.mxu0 %v3355
      %v3443 = vpop.f32.mrf.mxu0
      %v3444 = vadd.f32 0.0, %v3443
      %v3445 = vpop.f32.mrf.mxu0
      %v3446 = vadd.f32 0.0, %v3445
      %3447 = vmatmul.bf16.gmra.mxu0 %v3358
      %v3448 = vpop.f32.mrf.mxu0
      %v3449 = vadd.f32 0.0, %v3448
      %v3450 = vpop.f32.mrf.mxu0
      %v3451 = vadd.f32 0.0, %v3450
      %3452 = vmatmul.bf16.gmra.mxu0 %v3361
      %v3453 = vpop.f32.mrf.mxu0
      %v3454 = vadd.f32 0.0, %v3453
      %v3455 = vpop.f32.mrf.mxu0
      %v3456 = vadd.f32 0.0, %v3455
      %3457 = vmatmul.bf16.gmra.mxu0 %v3364
      %v3458 = vpop.f32.mrf.mxu0
      %v3459 = vadd.f32 0.0, %v3458
      %v3460 = vpop.f32.mrf.mxu0
      %v3461 = vadd.f32 0.0, %v3460
      %3462 = vmatmul.bf16.gmra.mxu0 %v3367
      %v3463 = vpop.f32.mrf.mxu0
      %v3464 = vadd.f32 0.0, %v3463
      %v3465 = vpop.f32.mrf.mxu0
      %v3466 = vadd.f32 0.0, %v3465
      %3467 = vmatmul.bf16.gmra.mxu0 %v3370
      %v3468 = vpop.f32.mrf.mxu0
      %v3469 = vadd.f32 0.0, %v3468
      %v3470 = vpop.f32.mrf.mxu0
      %v3471 = vadd.f32 0.0, %v3470
      %3472 = vmatmul.bf16.gmra.mxu0 %v3373
      %v3473 = vpop.f32.mrf.mxu0
      %v3474 = vadd.f32 0.0, %v3473
      %v3475 = vpop.f32.mrf.mxu0
      %v3476 = vadd.f32 0.0, %v3475
      %3477 = vmatmul.bf16.gmra.mxu0 %v3376
      %v3478 = vpop.f32.mrf.mxu0
      %v3479 = vadd.f32 0.0, %v3478
      %v3480 = vpop.f32.mrf.mxu0
      %v3481 = vadd.f32 0.0, %v3480
      %3482 = vmatmul.bf16.gmra.mxu0 %v3379
      %v3483 = vpop.f32.mrf.mxu0
      %v3484 = vadd.f32 0.0, %v3483
      %v3485 = vpop.f32.mrf.mxu0
      %v3486 = vadd.f32 0.0, %v3485
      %3487 = vmatmul.bf16.gmra.mxu0 %v3382
      %v3488 = vpop.f32.mrf.mxu0
      %v3489 = vadd.f32 0.0, %v3488
      %v3490 = vpop.f32.mrf.mxu0
      %v3491 = vadd.f32 0.0, %v3490
      %3492 = vmatmul.bf16.gmra.mxu0 %v3385
      %v3493 = vpop.f32.mrf.mxu0
      %v3494 = vadd.f32 0.0, %v3493
      %v3495 = vpop.f32.mrf.mxu0
      %v3496 = vadd.f32 0.0, %v3495
      %3497 = vmatmul.bf16.gmra.mxu0 %v3388
      %v3498 = vpop.f32.mrf.mxu0
      %v3499 = vadd.f32 0.0, %v3498
      %v3500 = vpop.f32.mrf.mxu0
      %v3501 = vadd.f32 0.0, %v3500
      %3502 = vmatmul.bf16.gmra.mxu0 %v3391
      %v3503 = vpop.f32.mrf.mxu0
      %v3504 = vadd.f32 0.0, %v3503
      %v3505 = vpop.f32.mrf.mxu0
      %v3506 = vadd.f32 0.0, %v3505
      %3507 = vmatmul.bf16.gmra.mxu0 %v3394
      %v3508 = vpop.f32.mrf.mxu0
      %v3509 = vadd.f32 0.0, %v3508
      %v3510 = vpop.f32.mrf.mxu0
      %3511 = vdwg.mxu0
      %v3512 = vadd.f32 %v3244, %v3409
      %v3513 = vadd.f32 %v3245, %v3411
      %v3514 = vadd.f32 %v3246, %v3414
      %v3515 = vadd.f32 %v3247, %v3416
      %v3516 = vadd.f32 %v3248, %v3419
      %v3517 = vadd.f32 %v3249, %v3421
      %v3518 = vadd.f32 %v3250, %v3424
      %v3519 = vadd.f32 %v3251, %v3426
      %v3520 = vadd.f32 %v3252, %v3429
      %v3521 = vadd.f32 %v3253, %v3431
      %v3522 = vadd.f32 %v3254, %v3434
      %v3523 = vadd.f32 %v3255, %v3436
      %v3524 = vadd.f32 %v3256, %v3439
      %v3525 = vadd.f32 %v3257, %v3441
      %v3526 = vadd.f32 %v3258, %v3444
      %v3527 = vadd.f32 %v3259, %v3446
      %v3528 = vadd.f32 %v3260, %v3449
      %v3529 = vadd.f32 %v3261, %v3451
      %v3530 = vadd.f32 %v3262, %v3454
      %v3531 = vadd.f32 %v3263, %v3456
      %v3532 = vadd.f32 %v3264, %v3459
      %v3533 = vadd.f32 %v3265, %v3461
      %v3534 = vadd.f32 %v3266, %v3464
      %v3535 = vadd.f32 %v3267, %v3466
      %v3536 = vadd.f32 %v3268, %v3469
      %v3537 = vadd.f32 %v3269, %v3471
      %v3538 = vadd.f32 %v3270, %v3474
      %v3539 = vadd.f32 %v3271, %v3476
      %v3540 = vadd.f32 %v3272, %v3479
      %v3541 = vadd.f32 %v3273, %v3481
      %v3542 = vadd.f32 %v3274, %v3484
      %v3543 = vadd.f32 %v3275, %v3486
      %v3544 = vadd.f32 %v3276, %v3489
      %v3545 = vadd.f32 %v3277, %v3491
      %v3546 = vadd.f32 %v3278, %v3494
      %v3547 = vadd.f32 %v3279, %v3496
      %v3548 = vadd.f32 %v3280, %v3499
      %v3549 = vadd.f32 %v3281, %v3501
      %v3550 = vadd.f32 %v3282, %v3504
      %v3551 = vadd.f32 %v3283, %v3506
      %v3552 = vadd.f32 %v3284, %v3509
      %v3553 = vld [vmem:[%s300 + $0xbc] sm:$0x3]
      %s3554 = scalar_lea.vmem %s2, 32
      %v3555 = vld [vmem:[%s3554] sm:$0xf]
      %v3557 = vunpack.c.l.b16 %v3553
      %v3558 = vpack.c.b16 %v3557, %v2854
      %vm3559 = vsmask.f32 4352
      %v3561 = vshrl.u32 %v3290, 16
      %v3563 = vrot.slane %v3561, 3
      %v3564 = vshll.u32 %v3290, 16
      %v3566 = vrot.slane %v3564, 4
      %v3567 = vor.u32 %v3563, %v3566
      %v3568 = vrot.slane %v2886, 3
      %v3569 = vrot.slane %v2889, 4
      %v3570 = vor.u32 %v3568, %v3569
      %v3571 = vsel %vm3559, %v3567, %v3570
      %v3572 = vrot.slane %v2895, 3
      %v3573 = vrot.slane %v2898, 4
      %v3574 = vor.u32 %v3572, %v3573
      %v3575 = vsel %vm3559, %v3570, %v3574
      %v3576 = vrot.slane %v2904, 3
      %v3577 = vrot.slane %v2907, 4
      %v3578 = vor.u32 %v3576, %v3577
      %v3579 = vsel %vm3559, %v3574, %v3578
      %v3580 = vrot.slane %v2913, 3
      %v3581 = vrot.slane %v2916, 4
      %v3582 = vor.u32 %v3580, %v3581
      %v3583 = vsel %vm3559, %v3578, %v3582
      %v3584 = vrot.slane %v2922, 3
      %v3585 = vrot.slane %v2925, 4
      %v3586 = vor.u32 %v3584, %v3585
      %v3587 = vsel %vm3559, %v3582, %v3586
      %v3588 = vrot.slane %v2931, 3
      %v3589 = vrot.slane %v2934, 4
      %v3590 = vor.u32 %v3588, %v3589
      %v3591 = vsel %vm3559, %v3586, %v3590
      %v3592 = vrot.slane %v2940, 3
      %v3593 = vrot.slane %v2943, 4
      %v3594 = vor.u32 %v3592, %v3593
      %v3595 = vsel %vm3559, %v3590, %v3594
      %v3596 = vrot.slane %v2949, 3
      %v3597 = vrot.slane %v2952, 4
      %v3598 = vor.u32 %v3596, %v3597
      %v3599 = vsel %vm3559, %v3594, %v3598
      %v3600 = vrot.slane %v2958, 3
      %v3601 = vrot.slane %v2961, 4
      %v3602 = vor.u32 %v3600, %v3601
      %v3603 = vsel %vm3559, %v3598, %v3602
      %v3604 = vrot.slane %v2967, 3
      %v3605 = vrot.slane %v2970, 4
      %v3606 = vor.u32 %v3604, %v3605
      %v3607 = vsel %vm3559, %v3602, %v3606
      %v3608 = vrot.slane %v2976, 3
      %v3609 = vrot.slane %v2979, 4
      %v3610 = vor.u32 %v3608, %v3609
      %v3611 = vsel %vm3559, %v3606, %v3610
      %v3612 = vrot.slane %v2985, 3
      %v3613 = vrot.slane %v2988, 4
      %v3614 = vor.u32 %v3612, %v3613
      %v3615 = vsel %vm3559, %v3610, %v3614
      %v3616 = vrot.slane %v2994, 3
      %v3617 = vrot.slane %v2997, 4
      %v3618 = vor.u32 %v3616, %v3617
      %v3619 = vsel %vm3559, %v3614, %v3618
      %v3620 = vrot.slane %v3003, 3
      %v3621 = vrot.slane %v3006, 4
      %v3622 = vor.u32 %v3620, %v3621
      %v3623 = vsel %vm3559, %v3618, %v3622
      %v3624 = vrot.slane %v3012, 3
      %v3625 = vrot.slane %v3015, 4
      %v3626 = vor.u32 %v3624, %v3625
      %v3627 = vsel %vm3559, %v3622, %v3626
      %v3628 = vrot.slane %v3021, 3
      %v3629 = vrot.slane %v3024, 4
      %v3630 = vor.u32 %v3628, %v3629
      %v3631 = vsel %vm3559, %v3626, %v3630
      %v3632 = vrot.slane %v3030, 3
      %v3633 = vrot.slane %v3033, 4
      %v3634 = vor.u32 %v3632, %v3633
      %v3635 = vsel %vm3559, %v3630, %v3634
      %v3636 = vrot.slane %v3039, 3
      %v3637 = vrot.slane %v3042, 4
      %v3638 = vor.u32 %v3636, %v3637
      %v3639 = vsel %vm3559, %v3634, %v3638
      %v3640 = vrot.slane %v3048, 3
      %v3641 = vrot.slane %v3051, 4
      %v3642 = vor.u32 %v3640, %v3641
      %v3643 = vsel %vm3559, %v3638, %v3642
      %v3645 = vshrl.u32 %v3558, 16
      %v3647 = vrot.slane %v3645, 3
      %v3648 = vshll.u32 %v3558, 16
      %v3650 = vrot.slane %v3648, 4
      %v3651 = vor.u32 %v3647, %v3650
      %v3652 = vsel %vm3559, %v3642, %v3651
      %v3654 = vsel %vm497, %v3571, 0
      %v3657 = vsel %vm497, %v3575, 0
      %v3660 = vsel %vm497, %v3579, 0
      %v3663 = vsel %vm497, %v3583, 0
      %v3666 = vsel %vm497, %v3587, 0
      %v3669 = vsel %vm497, %v3591, 0
      %v3672 = vsel %vm497, %v3595, 0
      %v3675 = vsel %vm497, %v3599, 0
      %v3678 = vsel %vm497, %v3603, 0
      %v3681 = vsel %vm497, %v3607, 0
      %v3684 = vsel %vm497, %v3611, 0
      %v3687 = vsel %vm497, %v3615, 0
      %v3690 = vsel %vm497, %v3619, 0
      %v3693 = vsel %vm497, %v3623, 0
      %v3696 = vsel %vm497, %v3627, 0
      %v3699 = vsel %vm497, %v3631, 0
      %v3702 = vsel %vm497, %v3635, 0
      %v3705 = vsel %vm497, %v3639, 0
      %v3708 = vsel %vm497, %v3643, 0
      %v3711 = vsel %vm497, %v3652, 0
      %v3714 = vsel %vm497, %v3651, 0
      %v3717 = vsel %vm561, %v3555, 0
      %3719 = vmatpush.bf16.msra.mxu0 0
      %3720 = vmatpush.bf16.msra.mxu0 0
      %3721 = vmatpush.bf16.msra.mxu0 0
      %3722 = vmatpush.bf16.msra.mxu0 0
      %3723 = vmatpush.bf16.msra.mxu0 0
      %3724 = vmatpush.bf16.msra.mxu0 0
      %3725 = vmatpush.bf16.msra.mxu0 0
      %3726 = vmatpush.bf16.msra.mxu0 %v3717
      %3727 = vmatmul.bf16.gmra.mxu0 %v3654
      %v3728 = vpop.f32.mrf.mxu0
      %v3729 = vadd.f32 0.0, %v3728
      %v3730 = vpop.f32.mrf.mxu0
      %v3731 = vadd.f32 0.0, %v3730
      %3732 = vmatmul.bf16.gmra.mxu0 %v3657
      %v3733 = vpop.f32.mrf.mxu0
      %v3734 = vadd.f32 0.0, %v3733
      %v3735 = vpop.f32.mrf.mxu0
      %v3736 = vadd.f32 0.0, %v3735
      %3737 = vmatmul.bf16.gmra.mxu0 %v3660
      %v3738 = vpop.f32.mrf.mxu0
      %v3739 = vadd.f32 0.0, %v3738
      %v3740 = vpop.f32.mrf.mxu0
      %v3741 = vadd.f32 0.0, %v3740
      %3742 = vmatmul.bf16.gmra.mxu0 %v3663
      %v3743 = vpop.f32.mrf.mxu0
      %v3744 = vadd.f32 0.0, %v3743
      %v3745 = vpop.f32.mrf.mxu0
      %v3746 = vadd.f32 0.0, %v3745
      %3747 = vmatmul.bf16.gmra.mxu0 %v3666
      %v3748 = vpop.f32.mrf.mxu0
      %v3749 = vadd.f32 0.0, %v3748
      %v3750 = vpop.f32.mrf.mxu0
      %v3751 = vadd.f32 0.0, %v3750
      %3752 = vmatmul.bf16.gmra.mxu0 %v3669
      %v3753 = vpop.f32.mrf.mxu0
      %v3754 = vadd.f32 0.0, %v3753
      %v3755 = vpop.f32.mrf.mxu0
      %v3756 = vadd.f32 0.0, %v3755
      %3757 = vmatmul.bf16.gmra.mxu0 %v3672
      %v3758 = vpop.f32.mrf.mxu0
      %v3759 = vadd.f32 0.0, %v3758
      %v3760 = vpop.f32.mrf.mxu0
      %v3761 = vadd.f32 0.0, %v3760
      %3762 = vmatmul.bf16.gmra.mxu0 %v3675
      %v3763 = vpop.f32.mrf.mxu0
      %v3764 = vadd.f32 0.0, %v3763
      %v3765 = vpop.f32.mrf.mxu0
      %v3766 = vadd.f32 0.0, %v3765
      %3767 = vmatmul.bf16.gmra.mxu0 %v3678
      %v3768 = vpop.f32.mrf.mxu0
      %v3769 = vadd.f32 0.0, %v3768
      %v3770 = vpop.f32.mrf.mxu0
      %v3771 = vadd.f32 0.0, %v3770
      %3772 = vmatmul.bf16.gmra.mxu0 %v3681
      %v3773 = vpop.f32.mrf.mxu0
      %v3774 = vadd.f32 0.0, %v3773
      %v3775 = vpop.f32.mrf.mxu0
      %v3776 = vadd.f32 0.0, %v3775
      %3777 = vmatmul.bf16.gmra.mxu0 %v3684
      %v3778 = vpop.f32.mrf.mxu0
      %v3779 = vadd.f32 0.0, %v3778
      %v3780 = vpop.f32.mrf.mxu0
      %v3781 = vadd.f32 0.0, %v3780
      %3782 = vmatmul.bf16.gmra.mxu0 %v3687
      %v3783 = vpop.f32.mrf.mxu0
      %v3784 = vadd.f32 0.0, %v3783
      %v3785 = vpop.f32.mrf.mxu0
      %v3786 = vadd.f32 0.0, %v3785
      %3787 = vmatmul.bf16.gmra.mxu0 %v3690
      %v3788 = vpop.f32.mrf.mxu0
      %v3789 = vadd.f32 0.0, %v3788
      %v3790 = vpop.f32.mrf.mxu0
      %v3791 = vadd.f32 0.0, %v3790
      %3792 = vmatmul.bf16.gmra.mxu0 %v3693
      %v3793 = vpop.f32.mrf.mxu0
      %v3794 = vadd.f32 0.0, %v3793
      %v3795 = vpop.f32.mrf.mxu0
      %v3796 = vadd.f32 0.0, %v3795
      %3797 = vmatmul.bf16.gmra.mxu0 %v3696
      %v3798 = vpop.f32.mrf.mxu0
      %v3799 = vadd.f32 0.0, %v3798
      %v3800 = vpop.f32.mrf.mxu0
      %v3801 = vadd.f32 0.0, %v3800
      %3802 = vmatmul.bf16.gmra.mxu0 %v3699
      %v3803 = vpop.f32.mrf.mxu0
      %v3804 = vadd.f32 0.0, %v3803
      %v3805 = vpop.f32.mrf.mxu0
      %v3806 = vadd.f32 0.0, %v3805
      %3807 = vmatmul.bf16.gmra.mxu0 %v3702
      %v3808 = vpop.f32.mrf.mxu0
      %v3809 = vadd.f32 0.0, %v3808
      %v3810 = vpop.f32.mrf.mxu0
      %v3811 = vadd.f32 0.0, %v3810
      %3812 = vmatmul.bf16.gmra.mxu0 %v3705
      %v3813 = vpop.f32.mrf.mxu0
      %v3814 = vadd.f32 0.0, %v3813
      %v3815 = vpop.f32.mrf.mxu0
      %v3816 = vadd.f32 0.0, %v3815
      %3817 = vmatmul.bf16.gmra.mxu0 %v3708
      %v3818 = vpop.f32.mrf.mxu0
      %v3819 = vadd.f32 0.0, %v3818
      %v3820 = vpop.f32.mrf.mxu0
      %v3821 = vadd.f32 0.0, %v3820
      %3822 = vmatmul.bf16.gmra.mxu0 %v3711
      %v3823 = vpop.f32.mrf.mxu0
      %v3824 = vadd.f32 0.0, %v3823
      %v3825 = vpop.f32.mrf.mxu0
      %v3826 = vadd.f32 0.0, %v3825
      %3827 = vmatmul.bf16.gmra.mxu0 %v3714
      %v3828 = vpop.f32.mrf.mxu0
      %v3829 = vadd.f32 0.0, %v3828
      %v3830 = vpop.f32.mrf.mxu0
      %3831 = vdwg.mxu0
      %v3832 = vadd.f32 %v3512, %v3729
      %v3833 = vadd.f32 %v3513, %v3731
      %v3834 = vadd.f32 %v3514, %v3734
      %v3835 = vadd.f32 %v3515, %v3736
      %v3836 = vadd.f32 %v3516, %v3739
      %v3837 = vadd.f32 %v3517, %v3741
      %v3838 = vadd.f32 %v3518, %v3744
      %v3839 = vadd.f32 %v3519, %v3746
      %v3840 = vadd.f32 %v3520, %v3749
      %v3841 = vadd.f32 %v3521, %v3751
      %v3842 = vadd.f32 %v3522, %v3754
      %v3843 = vadd.f32 %v3523, %v3756
      %v3844 = vadd.f32 %v3524, %v3759
      %v3845 = vadd.f32 %v3525, %v3761
      %v3846 = vadd.f32 %v3526, %v3764
      %v3847 = vadd.f32 %v3527, %v3766
      %v3848 = vadd.f32 %v3528, %v3769
      %v3849 = vadd.f32 %v3529, %v3771
      %v3850 = vadd.f32 %v3530, %v3774
      %v3851 = vadd.f32 %v3531, %v3776
      %v3852 = vadd.f32 %v3532, %v3779
      %v3853 = vadd.f32 %v3533, %v3781
      %v3854 = vadd.f32 %v3534, %v3784
      %v3855 = vadd.f32 %v3535, %v3786
      %v3856 = vadd.f32 %v3536, %v3789
      %v3857 = vadd.f32 %v3537, %v3791
      %v3858 = vadd.f32 %v3538, %v3794
      %v3859 = vadd.f32 %v3539, %v3796
      %v3860 = vadd.f32 %v3540, %v3799
      %v3861 = vadd.f32 %v3541, %v3801
      %v3862 = vadd.f32 %v3542, %v3804
      %v3863 = vadd.f32 %v3543, %v3806
      %v3864 = vadd.f32 %v3544, %v3809
      %v3865 = vadd.f32 %v3545, %v3811
      %v3866 = vadd.f32 %v3546, %v3814
      %v3867 = vadd.f32 %v3547, %v3816
      %v3868 = vadd.f32 %v3548, %v3819
      %v3869 = vadd.f32 %v3549, %v3821
      %v3870 = vadd.f32 %v3550, %v3824
      %v3871 = vadd.f32 %v3551, %v3826
      %v3872 = vadd.f32 %v3552, %v3829
      %v3873 = vld [vmem:[%s3] sm:$0x1]
      %v3875 = vperm.slane %v3873, 0
      %v3877 = vmul.f32 %v3832, %v3875
      %v3878 = vmul.f32 %v3833, %v3875
      %v3879 = vmul.f32 %v3834, %v3875
      %v3880 = vmul.f32 %v3835, %v3875
      %v3881 = vmul.f32 %v3836, %v3875
      %v3882 = vmul.f32 %v3837, %v3875
      %v3883 = vmul.f32 %v3838, %v3875
      %v3884 = vmul.f32 %v3839, %v3875
      %v3885 = vmul.f32 %v3840, %v3875
      %v3886 = vmul.f32 %v3841, %v3875
      %v3887 = vmul.f32 %v3842, %v3875
      %v3888 = vmul.f32 %v3843, %v3875
      %v3889 = vmul.f32 %v3844, %v3875
      %v3890 = vmul.f32 %v3845, %v3875
      %v3891 = vmul.f32 %v3846, %v3875
      %v3892 = vmul.f32 %v3847, %v3875
      %v3893 = vmul.f32 %v3848, %v3875
      %v3894 = vmul.f32 %v3849, %v3875
      %v3895 = vmul.f32 %v3850, %v3875
      %v3896 = vmul.f32 %v3851, %v3875
      %v3897 = vmul.f32 %v3852, %v3875
      %v3898 = vmul.f32 %v3853, %v3875
      %v3899 = vmul.f32 %v3854, %v3875
      %v3900 = vmul.f32 %v3855, %v3875
      %v3901 = vmul.f32 %v3856, %v3875
      %v3902 = vmul.f32 %v3857, %v3875
      %v3903 = vmul.f32 %v3858, %v3875
      %v3904 = vmul.f32 %v3859, %v3875
      %v3905 = vmul.f32 %v3860, %v3875
      %v3906 = vmul.f32 %v3861, %v3875
      %v3907 = vmul.f32 %v3862, %v3875
      %v3908 = vmul.f32 %v3863, %v3875
      %v3909 = vmul.f32 %v3864, %v3875
      %v3910 = vmul.f32 %v3865, %v3875
      %v3911 = vmul.f32 %v3866, %v3875
      %v3912 = vmul.f32 %v3867, %v3875
      %v3913 = vmul.f32 %v3868, %v3875
      %v3914 = vmul.f32 %v3869, %v3875
      %v3915 = vmul.f32 %v3870, %v3875
      %v3916 = vmul.f32 %v3871, %v3875
      %v3917 = vmul.f32 %v3872, %v3875
      %v3918 = vld [vmem:[%s4] sm:$0x1]
      %v3920 = vperm.slane %v3918, 0
      %v3922 = vadd.f32 %v3877, %v3920
      %v3923 = vadd.f32 %v3878, %v3920
      %v3924 = vadd.f32 %v3879, %v3920
      %v3925 = vadd.f32 %v3880, %v3920
      %v3926 = vadd.f32 %v3881, %v3920
      %v3927 = vadd.f32 %v3882, %v3920
      %v3928 = vadd.f32 %v3883, %v3920
      %v3929 = vadd.f32 %v3884, %v3920
      %v3930 = vadd.f32 %v3885, %v3920
      %v3931 = vadd.f32 %v3886, %v3920
      %v3932 = vadd.f32 %v3887, %v3920
      %v3933 = vadd.f32 %v3888, %v3920
      %v3934 = vadd.f32 %v3889, %v3920
      %v3935 = vadd.f32 %v3890, %v3920
      %v3936 = vadd.f32 %v3891, %v3920
      %v3937 = vadd.f32 %v3892, %v3920
      %v3938 = vadd.f32 %v3893, %v3920
      %v3939 = vadd.f32 %v3894, %v3920
      %v3940 = vadd.f32 %v3895, %v3920
      %v3941 = vadd.f32 %v3896, %v3920
      %v3942 = vadd.f32 %v3897, %v3920
      %v3943 = vadd.f32 %v3898, %v3920
      %v3944 = vadd.f32 %v3899, %v3920
      %v3945 = vadd.f32 %v3900, %v3920
      %v3946 = vadd.f32 %v3901, %v3920
      %v3947 = vadd.f32 %v3902, %v3920
      %v3948 = vadd.f32 %v3903, %v3920
      %v3949 = vadd.f32 %v3904, %v3920
      %v3950 = vadd.f32 %v3905, %v3920
      %v3951 = vadd.f32 %v3906, %v3920
      %v3952 = vadd.f32 %v3907, %v3920
      %v3953 = vadd.f32 %v3908, %v3920
      %v3954 = vadd.f32 %v3909, %v3920
      %v3955 = vadd.f32 %v3910, %v3920
      %v3956 = vadd.f32 %v3911, %v3920
      %v3957 = vadd.f32 %v3912, %v3920
      %v3958 = vadd.f32 %v3913, %v3920
      %v3959 = vadd.f32 %v3914, %v3920
      %v3960 = vadd.f32 %v3915, %v3920
      %v3961 = vadd.f32 %v3916, %v3920
      %v3962 = vadd.f32 %v3917, %v3920
      %v3963 = vmax.f32 %v3922, 0.0
      %v3964 = vmax.f32 %v3923, 0.0
      %v3965 = vmax.f32 %v3924, 0.0
      %v3966 = vmax.f32 %v3925, 0.0
      %v3967 = vmax.f32 %v3926, 0.0
      %v3968 = vmax.f32 %v3927, 0.0
      %v3969 = vmax.f32 %v3928, 0.0
      %v3970 = vmax.f32 %v3929, 0.0
      %v3971 = vmax.f32 %v3930, 0.0
      %v3972 = vmax.f32 %v3931, 0.0
      %v3973 = vmax.f32 %v3932, 0.0
      %v3974 = vmax.f32 %v3933, 0.0
      %v3975 = vmax.f32 %v3934, 0.0
      %v3976 = vmax.f32 %v3935, 0.0
      %v3977 = vmax.f32 %v3936, 0.0
      %v3978 = vmax.f32 %v3937, 0.0
      %v3979 = vmax.f32 %v3938, 0.0
      %v3980 = vmax.f32 %v3939, 0.0
      %v3981 = vmax.f32 %v3940, 0.0
      %v3982 = vmax.f32 %v3941, 0.0
      %v3983 = vmax.f32 %v3942, 0.0
      %v3984 = vmax.f32 %v3943, 0.0
      %v3985 = vmax.f32 %v3944, 0.0
      %v3986 = vmax.f32 %v3945, 0.0
      %v3987 = vmax.f32 %v3946, 0.0
      %v3988 = vmax.f32 %v3947, 0.0
      %v3989 = vmax.f32 %v3948, 0.0
      %v3990 = vmax.f32 %v3949, 0.0
      %v3991 = vmax.f32 %v3950, 0.0
      %v3992 = vmax.f32 %v3951, 0.0
      %v3993 = vmax.f32 %v3952, 0.0
      %v3994 = vmax.f32 %v3953, 0.0
      %v3995 = vmax.f32 %v3954, 0.0
      %v3996 = vmax.f32 %v3955, 0.0
      %v3997 = vmax.f32 %v3956, 0.0
      %v3998 = vmax.f32 %v3957, 0.0
      %v3999 = vmax.f32 %v3958, 0.0
      %v4000 = vmax.f32 %v3959, 0.0
      %v4001 = vmax.f32 %v3960, 0.0
      %v4002 = vmax.f32 %v3961, 0.0
      %v4003 = vmax.f32 %v3962, 0.0
      %v4004 = vld [vmem:[%s1] sm:$0xff]
      %v4005 = vld [vmem:[%s1 + $0x8] sm:$0xff]
      %v4006 = vld [vmem:[%s1 + $0x10] sm:$0xff]
      %v4007 = vld [vmem:[%s1 + $0x18] sm:$0xff]
      %v4008 = vld [vmem:[%s1 + $0x20] sm:$0xff]
      %v4009 = vld [vmem:[%s1 + $0x28] sm:$0xff]
      %v4010 = vld [vmem:[%s1 + $0x30] sm:$0xff]
      %v4011 = vld [vmem:[%s1 + $0x38] sm:$0xff]
      %v4012 = vld [vmem:[%s1 + $0x40] sm:$0xff]
      %v4013 = vld [vmem:[%s1 + $0x48] sm:$0xff]
      %v4014 = vld [vmem:[%s1 + $0x50] sm:$0xff]
      %v4015 = vld [vmem:[%s1 + $0x58] sm:$0xff]
      %v4016 = vld [vmem:[%s1 + $0x60] sm:$0xff]
      %v4017 = vld [vmem:[%s1 + $0x68] sm:$0xff]
      %v4018 = vld [vmem:[%s1 + $0x70] sm:$0xff]
      %v4019 = vld [vmem:[%s1 + $0x78] sm:$0xff]
      %v4020 = vld [vmem:[%s1 + $0x80] sm:$0xff]
      %v4021 = vld [vmem:[%s1 + $0x88] sm:$0xff]
      %v4022 = vld [vmem:[%s1 + $0x90] sm:$0xff]
      %v4023 = vld [vmem:[%s1 + $0x98] sm:$0xff]
      %v4024 = vld [vmem:[%s1 + $0xa0] sm:$0xff]
      %v4025 = vld [vmem:[%s1 + $0xa8] sm:$0xff]
      %v4026 = vld [vmem:[%s1 + $0xb0] sm:$0xff]
      %v4027 = vld [vmem:[%s1 + $0xb8] sm:$0xff]
      %v4028 = vld [vmem:[%s1 + $0xc0] sm:$0xff]
      %v4029 = vld [vmem:[%s1 + $0xc8] sm:$0xff]
      %v4030 = vld [vmem:[%s1 + $0xd0] sm:$0xff]
      %v4031 = vld [vmem:[%s1 + $0xd8] sm:$0xff]
      %v4032 = vld [vmem:[%s1 + $0xe0] sm:$0xff]
      %v4033 = vld [vmem:[%s1 + $0xe8] sm:$0xff]
      %v4034 = vld [vmem:[%s1 + $0xf0] sm:$0xff]
      %v4035 = vld [vmem:[%s1 + $0xf8] sm:$0xff]
      %v4036 = vld [vmem:[%s1 + $0x100] sm:$0xff]
      %v4037 = vld [vmem:[%s1 + $0x108] sm:$0xff]
      %v4038 = vld [vmem:[%s1 + $0x110] sm:$0xff]
      %v4039 = vld [vmem:[%s1 + $0x118] sm:$0xff]
      %v4040 = vld [vmem:[%s1 + $0x120] sm:$0xff]
      %v4041 = vld [vmem:[%s1 + $0x128] sm:$0xff]
      %v4042 = vld [vmem:[%s1 + $0x130] sm:$0xff]
      %v4043 = vld [vmem:[%s1 + $0x138] sm:$0xff]
      %v4044 = vld [vmem:[%s1 + $0x140] sm:$0xf]
      %4046 = vset.pattern.permute.xlu0 0
      %4047 = vperm.xlu0 %4046, %v4004
      %v4048 = vpop.permute.xlu0 %4047
      %4051 = vset.pattern.permute.xlu0 0
      %4052 = vperm.xlu0 %4051, %v4005
      %v4053 = vpop.permute.xlu0 %4052
      %4056 = vset.pattern.permute.xlu0 0
      %4057 = vperm.xlu0 %4056, %v4006
      %v4058 = vpop.permute.xlu0 %4057
      %4061 = vset.pattern.permute.xlu0 0
      %4062 = vperm.xlu0 %4061, %v4007
      %v4063 = vpop.permute.xlu0 %4062
      %4066 = vset.pattern.permute.xlu0 0
      %4067 = vperm.xlu0 %4066, %v4008
      %v4068 = vpop.permute.xlu0 %4067
      %4071 = vset.pattern.permute.xlu0 0
      %4072 = vperm.xlu0 %4071, %v4009
      %v4073 = vpop.permute.xlu0 %4072
      %4076 = vset.pattern.permute.xlu0 0
      %4077 = vperm.xlu0 %4076, %v4010
      %v4078 = vpop.permute.xlu0 %4077
      %4081 = vset.pattern.permute.xlu0 0
      %4082 = vperm.xlu0 %4081, %v4011
      %v4083 = vpop.permute.xlu0 %4082
      %4086 = vset.pattern.permute.xlu0 0
      %4087 = vperm.xlu0 %4086, %v4012
      %v4088 = vpop.permute.xlu0 %4087
      %4091 = vset.pattern.permute.xlu0 0
      %4092 = vperm.xlu0 %4091, %v4013
      %v4093 = vpop.permute.xlu0 %4092
      %4096 = vset.pattern.permute.xlu0 0
      %4097 = vperm.xlu0 %4096, %v4014
      %v4098 = vpop.permute.xlu0 %4097
      %4101 = vset.pattern.permute.xlu0 0
      %4102 = vperm.xlu0 %4101, %v4015
      %v4103 = vpop.permute.xlu0 %4102
      %4106 = vset.pattern.permute.xlu0 0
      %4107 = vperm.xlu0 %4106, %v4016
      %v4108 = vpop.permute.xlu0 %4107
      %4111 = vset.pattern.permute.xlu0 0
      %4112 = vperm.xlu0 %4111, %v4017
      %v4113 = vpop.permute.xlu0 %4112
      %4116 = vset.pattern.permute.xlu0 0
      %4117 = vperm.xlu0 %4116, %v4018
      %v4118 = vpop.permute.xlu0 %4117
      %4121 = vset.pattern.permute.xlu0 0
      %4122 = vperm.xlu0 %4121, %v4019
      %v4123 = vpop.permute.xlu0 %4122
      %4126 = vset.pattern.permute.xlu0 0
      %4127 = vperm.xlu0 %4126, %v4020
      %v4128 = vpop.permute.xlu0 %4127
      %4131 = vset.pattern.permute.xlu0 0
      %4132 = vperm.xlu0 %4131, %v4021
      %v4133 = vpop.permute.xlu0 %4132
      %4136 = vset.pattern.permute.xlu0 0
      %4137 = vperm.xlu0 %4136, %v4022
      %v4138 = vpop.permute.xlu0 %4137
      %4141 = vset.pattern.permute.xlu0 0
      %4142 = vperm.xlu0 %4141, %v4023
      %v4143 = vpop.permute.xlu0 %4142
      %4146 = vset.pattern.permute.xlu0 0
      %4147 = vperm.xlu0 %4146, %v4024
      %v4148 = vpop.permute.xlu0 %4147
      %4151 = vset.pattern.permute.xlu0 0
      %4152 = vperm.xlu0 %4151, %v4025
      %v4153 = vpop.permute.xlu0 %4152
      %4156 = vset.pattern.permute.xlu0 0
      %4157 = vperm.xlu0 %4156, %v4026
      %v4158 = vpop.permute.xlu0 %4157
      %4161 = vset.pattern.permute.xlu0 0
      %4162 = vperm.xlu0 %4161, %v4027
      %v4163 = vpop.permute.xlu0 %4162
      %4166 = vset.pattern.permute.xlu0 0
      %4167 = vperm.xlu0 %4166, %v4028
      %v4168 = vpop.permute.xlu0 %4167
      %4171 = vset.pattern.permute.xlu0 0
      %4172 = vperm.xlu0 %4171, %v4029
      %v4173 = vpop.permute.xlu0 %4172
      %4176 = vset.pattern.permute.xlu0 0
      %4177 = vperm.xlu0 %4176, %v4030
      %v4178 = vpop.permute.xlu0 %4177
      %4181 = vset.pattern.permute.xlu0 0
      %4182 = vperm.xlu0 %4181, %v4031
      %v4183 = vpop.permute.xlu0 %4182
      %4186 = vset.pattern.permute.xlu0 0
      %4187 = vperm.xlu0 %4186, %v4032
      %v4188 = vpop.permute.xlu0 %4187
      %4191 = vset.pattern.permute.xlu0 0
      %4192 = vperm.xlu0 %4191, %v4033
      %v4193 = vpop.permute.xlu0 %4192
      %4196 = vset.pattern.permute.xlu0 0
      %4197 = vperm.xlu0 %4196, %v4034
      %v4198 = vpop.permute.xlu0 %4197
      %4201 = vset.pattern.permute.xlu0 0
      %4202 = vperm.xlu0 %4201, %v4035
      %v4203 = vpop.permute.xlu0 %4202
      %4206 = vset.pattern.permute.xlu0 0
      %4207 = vperm.xlu0 %4206, %v4036
      %v4208 = vpop.permute.xlu0 %4207
      %4211 = vset.pattern.permute.xlu0 0
      %4212 = vperm.xlu0 %4211, %v4037
      %v4213 = vpop.permute.xlu0 %4212
      %4216 = vset.pattern.permute.xlu0 0
      %4217 = vperm.xlu0 %4216, %v4038
      %v4218 = vpop.permute.xlu0 %4217
      %4221 = vset.pattern.permute.xlu0 0
      %4222 = vperm.xlu0 %4221, %v4039
      %v4223 = vpop.permute.xlu0 %4222
      %4226 = vset.pattern.permute.xlu0 0
      %4227 = vperm.xlu0 %4226, %v4040
      %v4228 = vpop.permute.xlu0 %4227
      %4231 = vset.pattern.permute.xlu0 0
      %4232 = vperm.xlu0 %4231, %v4041
      %v4233 = vpop.permute.xlu0 %4232
      %4236 = vset.pattern.permute.xlu0 0
      %4237 = vperm.xlu0 %4236, %v4042
      %v4238 = vpop.permute.xlu0 %4237
      %4241 = vset.pattern.permute.xlu0 0
      %4242 = vperm.xlu0 %4241, %v4043
      %v4243 = vpop.permute.xlu0 %4242
      %4246 = vset.pattern.permute.xlu0 0
      %4247 = vperm.xlu0 %4246, %v4044
      %v4248 = vpop.permute.xlu0 %4247
      %v4250 = vmul.f32 %v3963, %v4048
      %v4251 = vmul.f32 %v3964, %v4053
      %v4252 = vmul.f32 %v3965, %v4058
      %v4253 = vmul.f32 %v3966, %v4063
      %v4254 = vmul.f32 %v3967, %v4068
      %v4255 = vmul.f32 %v3968, %v4073
      %v4256 = vmul.f32 %v3969, %v4078
      %v4257 = vmul.f32 %v3970, %v4083
      %v4258 = vmul.f32 %v3971, %v4088
      %v4259 = vmul.f32 %v3972, %v4093
      %v4260 = vmul.f32 %v3973, %v4098
      %v4261 = vmul.f32 %v3974, %v4103
      %v4262 = vmul.f32 %v3975, %v4108
      %v4263 = vmul.f32 %v3976, %v4113
      %v4264 = vmul.f32 %v3977, %v4118
      %v4265 = vmul.f32 %v3978, %v4123
      %v4266 = vmul.f32 %v3979, %v4128
      %v4267 = vmul.f32 %v3980, %v4133
      %v4268 = vmul.f32 %v3981, %v4138
      %v4269 = vmul.f32 %v3982, %v4143
      %v4270 = vmul.f32 %v3983, %v4148
      %v4271 = vmul.f32 %v3984, %v4153
      %v4272 = vmul.f32 %v3985, %v4158
      %v4273 = vmul.f32 %v3986, %v4163
      %v4274 = vmul.f32 %v3987, %v4168
      %v4275 = vmul.f32 %v3988, %v4173
      %v4276 = vmul.f32 %v3989, %v4178
      %v4277 = vmul.f32 %v3990, %v4183
      %v4278 = vmul.f32 %v3991, %v4188
      %v4279 = vmul.f32 %v3992, %v4193
      %v4280 = vmul.f32 %v3993, %v4198
      %v4281 = vmul.f32 %v3994, %v4203
      %v4282 = vmul.f32 %v3995, %v4208
      %v4283 = vmul.f32 %v3996, %v4213
      %v4284 = vmul.f32 %v3997, %v4218
      %v4285 = vmul.f32 %v3998, %v4223
      %v4286 = vmul.f32 %v3999, %v4228
      %v4287 = vmul.f32 %v4000, %v4233
      %v4288 = vmul.f32 %v4001, %v4238
      %v4289 = vmul.f32 %v4002, %v4243
      %v4290 = vmul.f32 %v4003, %v4248
      %vm4291 = vcmask 60416
      %4292 = vst.msk [vmem:[#allocation2] sm:$0xf] %vm4291, 0
      %4293 = vst.msk [vmem:[#allocation2 + $0x4] sm:$0xf] %vm4291, 0
      %vm4294 = vcmask 58368
      %vm4295 = vsmask.f32 1280
      %vm4296 = vmand %vm4294, %vm4295
      %v4297 = vld [vmem:[#allocation2 + $0x8] sm:$0x3]
      %v4298 = vsel %vm4296, 0, %v4297
      %4299 = vst [vmem:[#allocation2 + $0x8] sm:$0x3] %v4298
      %vm4300 = vcmask 60419
      %vm4301 = vsmask.f32 7950
      %vm4302 = vmand %vm4300, %vm4301
      %v4303 = vld [vmem:[#allocation2 + $0xa8] sm:$0x8]
      %v4304 = vsel %vm4302, 0, %v4303
      %4305 = vst [vmem:[#allocation2 + $0xa8] sm:$0x8] %v4304
      %4306 = vst.msk [vmem:[#allocation2 + $0xac] sm:$0xf] %vm4291, 0
      %4307 = vst.msk [vmem:[#allocation2 + $0xb0] sm:$0xf] %vm4291, 0
      %vm4308 = vcmask 57344
      %4309 = vst.msk [vmem:[#allocation2 + $0xb4] sm:$0x1] %vm4308, 0
      %v4310 = vpack.c.bf16 %v4250, %v4250
      %v4311 = vpack.c.bf16 %v4251, %v4251
      %v4312 = vpack.c.bf16 %v4252, %v4252
      %v4313 = vpack.c.bf16 %v4253, %v4253
      %v4314 = vpack.c.bf16 %v4254, %v4254
      %v4315 = vpack.c.bf16 %v4255, %v4255
      %v4316 = vpack.c.bf16 %v4256, %v4256
      %v4317 = vpack.c.bf16 %v4257, %v4257
      %v4318 = vpack.c.bf16 %v4258, %v4258
      %v4319 = vpack.c.bf16 %v4259, %v4259
      %v4320 = vpack.c.bf16 %v4260, %v4260
      %v4321 = vpack.c.bf16 %v4261, %v4261
      %v4322 = vpack.c.bf16 %v4262, %v4262
      %v4323 = vpack.c.bf16 %v4263, %v4263
      %v4324 = vpack.c.bf16 %v4264, %v4264
      %v4325 = vpack.c.bf16 %v4265, %v4265
      %v4326 = vpack.c.bf16 %v4266, %v4266
      %v4327 = vpack.c.bf16 %v4267, %v4267
      %v4328 = vpack.c.bf16 %v4268, %v4268
      %v4329 = vpack.c.bf16 %v4269, %v4269
      %v4330 = vpack.c.bf16 %v4270, %v4270
      %v4331 = vpack.c.bf16 %v4271, %v4271
      %v4332 = vpack.c.bf16 %v4272, %v4272
      %v4333 = vpack.c.bf16 %v4273, %v4273
      %v4334 = vpack.c.bf16 %v4274, %v4274
      %v4335 = vpack.c.bf16 %v4275, %v4275
      %v4336 = vpack.c.bf16 %v4276, %v4276
      %v4337 = vpack.c.bf16 %v4277, %v4277
      %v4338 = vpack.c.bf16 %v4278, %v4278
      %v4339 = vpack.c.bf16 %v4279, %v4279
      %v4340 = vpack.c.bf16 %v4280, %v4280
      %v4341 = vpack.c.bf16 %v4281, %v4281
      %v4342 = vpack.c.bf16 %v4282, %v4282
      %v4343 = vpack.c.bf16 %v4283, %v4283
      %v4344 = vpack.c.bf16 %v4284, %v4284
      %v4345 = vpack.c.bf16 %v4285, %v4285
      %v4346 = vpack.c.bf16 %v4286, %v4286
      %v4347 = vpack.c.bf16 %v4287, %v4287
      %v4348 = vpack.c.bf16 %v4288, %v4288
      %v4349 = vpack.c.bf16 %v4289, %v4289
      %v4350 = vpack.c.bf16 %v4290, %v4290
      %vm4351 = vsmask.f32 5392
      %vm4352 = vmor %vm4295, %vm4351
      %v4354 = vshrl.u32 %v4310, 16
      %v4356 = vrot.slane %v4354, 6
      %v4357 = vshll.u32 %v4310, 16
      %v4359 = vrot.slane %v4357, 7
      %v4360 = vor.u32 %v4356, %v4359
      %v4361 = vrot.slane %v4360, 4
      %v4363 = vshrl.u32 %v4311, 16
      %v4365 = vrot.slane %v4363, 6
      %v4366 = vshll.u32 %v4311, 16
      %v4368 = vrot.slane %v4366, 7
      %v4369 = vor.u32 %v4365, %v4368
      %v4370 = vsel %vm4352, %v4361, %v4369
      %v4371 = vrot.slane %v4369, 4
      %v4373 = vshrl.u32 %v4312, 16
      %v4375 = vrot.slane %v4373, 6
      %v4376 = vshll.u32 %v4312, 16
      %v4378 = vrot.slane %v4376, 7
      %v4379 = vor.u32 %v4375, %v4378
      %v4380 = vsel %vm4352, %v4371, %v4379
      %v4381 = vrot.slane %v4379, 4
      %v4383 = vshrl.u32 %v4313, 16
      %v4385 = vrot.slane %v4383, 6
      %v4386 = vshll.u32 %v4313, 16
      %v4388 = vrot.slane %v4386, 7
      %v4389 = vor.u32 %v4385, %v4388
      %v4390 = vsel %vm4352, %v4381, %v4389
      %v4391 = vrot.slane %v4389, 4
      %v4393 = vshrl.u32 %v4314, 16
      %v4395 = vrot.slane %v4393, 6
      %v4396 = vshll.u32 %v4314, 16
      %v4398 = vrot.slane %v4396, 7
      %v4399 = vor.u32 %v4395, %v4398
      %v4400 = vsel %vm4352, %v4391, %v4399
      %v4401 = vrot.slane %v4399, 4
      %v4403 = vshrl.u32 %v4315, 16
      %v4405 = vrot.slane %v4403, 6
      %v4406 = vshll.u32 %v4315, 16
      %v4408 = vrot.slane %v4406, 7
      %v4409 = vor.u32 %v4405, %v4408
      %v4410 = vsel %vm4352, %v4401, %v4409
      %v4411 = vrot.slane %v4409, 4
      %v4413 = vshrl.u32 %v4316, 16
      %v4415 = vrot.slane %v4413, 6
      %v4416 = vshll.u32 %v4316, 16
      %v4418 = vrot.slane %v4416, 7
      %v4419 = vor.u32 %v4415, %v4418
      %v4420 = vsel %vm4352, %v4411, %v4419
      %v4421 = vrot.slane %v4419, 4
      %v4423 = vshrl.u32 %v4317, 16
      %v4425 = vrot.slane %v4423, 6
      %v4426 = vshll.u32 %v4317, 16
      %v4428 = vrot.slane %v4426, 7
      %v4429 = vor.u32 %v4425, %v4428
      %v4430 = vsel %vm4352, %v4421, %v4429
      %v4431 = vrot.slane %v4429, 4
      %v4433 = vshrl.u32 %v4318, 16
      %v4435 = vrot.slane %v4433, 6
      %v4436 = vshll.u32 %v4318, 16
      %v4438 = vrot.slane %v4436, 7
      %v4439 = vor.u32 %v4435, %v4438
      %v4440 = vsel %vm4352, %v4431, %v4439
      %v4441 = vrot.slane %v4439, 4
      %v4443 = vshrl.u32 %v4319, 16
      %v4445 = vrot.slane %v4443, 6
      %v4446 = vshll.u32 %v4319, 16
      %v4448 = vrot.slane %v4446, 7
      %v4449 = vor.u32 %v4445, %v4448
      %v4450 = vsel %vm4352, %v4441, %v4449
      %v4451 = vrot.slane %v4449, 4
      %v4453 = vshrl.u32 %v4320, 16
      %v4455 = vrot.slane %v4453, 6
      %v4456 = vshll.u32 %v4320, 16
      %v4458 = vrot.slane %v4456, 7
      %v4459 = vor.u32 %v4455, %v4458
      %v4460 = vsel %vm4352, %v4451, %v4459
      %v4461 = vrot.slane %v4459, 4
      %v4463 = vshrl.u32 %v4321, 16
      %v4465 = vrot.slane %v4463, 6
      %v4466 = vshll.u32 %v4321, 16
      %v4468 = vrot.slane %v4466, 7
      %v4469 = vor.u32 %v4465, %v4468
      %v4470 = vsel %vm4352, %v4461, %v4469
      %v4471 = vrot.slane %v4469, 4
      %v4473 = vshrl.u32 %v4322, 16
      %v4475 = vrot.slane %v4473, 6
      %v4476 = vshll.u32 %v4322, 16
      %v4478 = vrot.slane %v4476, 7
      %v4479 = vor.u32 %v4475, %v4478
      %v4480 = vsel %vm4352, %v4471, %v4479
      %v4481 = vrot.slane %v4479, 4
      %v4483 = vshrl.u32 %v4323, 16
      %v4485 = vrot.slane %v4483, 6
      %v4486 = vshll.u32 %v4323, 16
      %v4488 = vrot.slane %v4486, 7
      %v4489 = vor.u32 %v4485, %v4488
      %v4490 = vsel %vm4352, %v4481, %v4489
      %v4491 = vrot.slane %v4489, 4
      %v4493 = vshrl.u32 %v4324, 16
      %v4495 = vrot.slane %v4493, 6
      %v4496 = vshll.u32 %v4324, 16
      %v4498 = vrot.slane %v4496, 7
      %v4499 = vor.u32 %v4495, %v4498
      %v4500 = vsel %vm4352, %v4491, %v4499
      %v4501 = vrot.slane %v4499, 4
      %v4503 = vshrl.u32 %v4325, 16
      %v4505 = vrot.slane %v4503, 6
      %v4506 = vshll.u32 %v4325, 16
      %v4508 = vrot.slane %v4506, 7
      %v4509 = vor.u32 %v4505, %v4508
      %v4510 = vsel %vm4352, %v4501, %v4509
      %v4511 = vrot.slane %v4509, 4
      %v4513 = vshrl.u32 %v4326, 16
      %v4515 = vrot.slane %v4513, 6
      %v4516 = vshll.u32 %v4326, 16
      %v4518 = vrot.slane %v4516, 7
      %v4519 = vor.u32 %v4515, %v4518
      %v4520 = vsel %vm4352, %v4511, %v4519
      %v4521 = vrot.slane %v4519, 4
      %v4523 = vshrl.u32 %v4327, 16
      %v4525 = vrot.slane %v4523, 6
      %v4526 = vshll.u32 %v4327, 16
      %v4528 = vrot.slane %v4526, 7
      %v4529 = vor.u32 %v4525, %v4528
      %v4530 = vsel %vm4352, %v4521, %v4529
      %v4531 = vrot.slane %v4529, 4
      %v4533 = vshrl.u32 %v4328, 16
      %v4535 = vrot.slane %v4533, 6
      %v4536 = vshll.u32 %v4328, 16
      %v4538 = vrot.slane %v4536, 7
      %v4539 = vor.u32 %v4535, %v4538
      %v4540 = vsel %vm4352, %v4531, %v4539
      %v4541 = vrot.slane %v4539, 4
      %v4543 = vshrl.u32 %v4329, 16
      %v4545 = vrot.slane %v4543, 6
      %v4546 = vshll.u32 %v4329, 16
      %v4548 = vrot.slane %v4546, 7
      %v4549 = vor.u32 %v4545, %v4548
      %v4550 = vsel %vm4352, %v4541, %v4549
      %v4551 = vrot.slane %v4549, 4
      %v4553 = vshrl.u32 %v4330, 16
      %v4555 = vrot.slane %v4553, 6
      %v4556 = vshll.u32 %v4330, 16
      %v4558 = vrot.slane %v4556, 7
      %v4559 = vor.u32 %v4555, %v4558
      %v4560 = vsel %vm4352, %v4551, %v4559
      %v4561 = vrot.slane %v4559, 4
      %v4563 = vshrl.u32 %v4331, 16
      %v4565 = vrot.slane %v4563, 6
      %v4566 = vshll.u32 %v4331, 16
      %v4568 = vrot.slane %v4566, 7
      %v4569 = vor.u32 %v4565, %v4568
      %v4570 = vsel %vm4352, %v4561, %v4569
      %v4571 = vrot.slane %v4569, 4
      %v4573 = vshrl.u32 %v4332, 16
      %v4575 = vrot.slane %v4573, 6
      %v4576 = vshll.u32 %v4332, 16
      %v4578 = vrot.slane %v4576, 7
      %v4579 = vor.u32 %v4575, %v4578
      %v4580 = vsel %vm4352, %v4571, %v4579
      %v4581 = vrot.slane %v4579, 4
      %v4583 = vshrl.u32 %v4333, 16
      %v4585 = vrot.slane %v4583, 6
      %v4586 = vshll.u32 %v4333, 16
      %v4588 = vrot.slane %v4586, 7
      %v4589 = vor.u32 %v4585, %v4588
      %v4590 = vsel %vm4352, %v4581, %v4589
      %v4591 = vrot.slane %v4589, 4
      %v4593 = vshrl.u32 %v4334, 16
      %v4595 = vrot.slane %v4593, 6
      %v4596 = vshll.u32 %v4334, 16
      %v4598 = vrot.slane %v4596, 7
      %v4599 = vor.u32 %v4595, %v4598
      %v4600 = vsel %vm4352, %v4591, %v4599
      %v4601 = vrot.slane %v4599, 4
      %v4603 = vshrl.u32 %v4335, 16
      %v4605 = vrot.slane %v4603, 6
      %v4606 = vshll.u32 %v4335, 16
      %v4608 = vrot.slane %v4606, 7
      %v4609 = vor.u32 %v4605, %v4608
      %v4610 = vsel %vm4352, %v4601, %v4609
      %v4611 = vrot.slane %v4609, 4
      %v4613 = vshrl.u32 %v4336, 16
      %v4615 = vrot.slane %v4613, 6
      %v4616 = vshll.u32 %v4336, 16
      %v4618 = vrot.slane %v4616, 7
      %v4619 = vor.u32 %v4615, %v4618
      %v4620 = vsel %vm4352, %v4611, %v4619
      %v4621 = vrot.slane %v4619, 4
      %v4623 = vshrl.u32 %v4337, 16
      %v4625 = vrot.slane %v4623, 6
      %v4626 = vshll.u32 %v4337, 16
      %v4628 = vrot.slane %v4626, 7
      %v4629 = vor.u32 %v4625, %v4628
      %v4630 = vsel %vm4352, %v4621, %v4629
      %v4631 = vrot.slane %v4629, 4
      %v4633 = vshrl.u32 %v4338, 16
      %v4635 = vrot.slane %v4633, 6
      %v4636 = vshll.u32 %v4338, 16
      %v4638 = vrot.slane %v4636, 7
      %v4639 = vor.u32 %v4635, %v4638
      %v4640 = vsel %vm4352, %v4631, %v4639
      %v4641 = vrot.slane %v4639, 4
      %v4643 = vshrl.u32 %v4339, 16
      %v4645 = vrot.slane %v4643, 6
      %v4646 = vshll.u32 %v4339, 16
      %v4648 = vrot.slane %v4646, 7
      %v4649 = vor.u32 %v4645, %v4648
      %v4650 = vsel %vm4352, %v4641, %v4649
      %v4651 = vrot.slane %v4649, 4
      %v4653 = vshrl.u32 %v4340, 16
      %v4655 = vrot.slane %v4653, 6
      %v4656 = vshll.u32 %v4340, 16
      %v4658 = vrot.slane %v4656, 7
      %v4659 = vor.u32 %v4655, %v4658
      %v4660 = vsel %vm4352, %v4651, %v4659
      %v4661 = vrot.slane %v4659, 4
      %v4663 = vshrl.u32 %v4341, 16
      %v4665 = vrot.slane %v4663, 6
      %v4666 = vshll.u32 %v4341, 16
      %v4668 = vrot.slane %v4666, 7
      %v4669 = vor.u32 %v4665, %v4668
      %v4670 = vsel %vm4352, %v4661, %v4669
      %v4671 = vrot.slane %v4669, 4
      %v4673 = vshrl.u32 %v4342, 16
      %v4675 = vrot.slane %v4673, 6
      %v4676 = vshll.u32 %v4342, 16
      %v4678 = vrot.slane %v4676, 7
      %v4679 = vor.u32 %v4675, %v4678
      %v4680 = vsel %vm4352, %v4671, %v4679
      %v4681 = vrot.slane %v4679, 4
      %v4683 = vshrl.u32 %v4343, 16
      %v4685 = vrot.slane %v4683, 6
      %v4686 = vshll.u32 %v4343, 16
      %v4688 = vrot.slane %v4686, 7
      %v4689 = vor.u32 %v4685, %v4688
      %v4690 = vsel %vm4352, %v4681, %v4689
      %v4691 = vrot.slane %v4689, 4
      %v4693 = vshrl.u32 %v4344, 16
      %v4695 = vrot.slane %v4693, 6
      %v4696 = vshll.u32 %v4344, 16
      %v4698 = vrot.slane %v4696, 7
      %v4699 = vor.u32 %v4695, %v4698
      %v4700 = vsel %vm4352, %v4691, %v4699
      %v4701 = vrot.slane %v4699, 4
      %v4703 = vshrl.u32 %v4345, 16
      %v4705 = vrot.slane %v4703, 6
      %v4706 = vshll.u32 %v4345, 16
      %v4708 = vrot.slane %v4706, 7
      %v4709 = vor.u32 %v4705, %v4708
      %v4710 = vsel %vm4352, %v4701, %v4709
      %v4711 = vrot.slane %v4709, 4
      %v4713 = vshrl.u32 %v4346, 16
      %v4715 = vrot.slane %v4713, 6
      %v4716 = vshll.u32 %v4346, 16
      %v4718 = vrot.slane %v4716, 7
      %v4719 = vor.u32 %v4715, %v4718
      %v4720 = vsel %vm4352, %v4711, %v4719
      %v4721 = vrot.slane %v4719, 4
      %v4723 = vshrl.u32 %v4347, 16
      %v4725 = vrot.slane %v4723, 6
      %v4726 = vshll.u32 %v4347, 16
      %v4728 = vrot.slane %v4726, 7
      %v4729 = vor.u32 %v4725, %v4728
      %v4730 = vsel %vm4352, %v4721, %v4729
      %v4731 = vrot.slane %v4729, 4
      %v4733 = vshrl.u32 %v4348, 16
      %v4735 = vrot.slane %v4733, 6
      %v4736 = vshll.u32 %v4348, 16
      %v4738 = vrot.slane %v4736, 7
      %v4739 = vor.u32 %v4735, %v4738
      %v4740 = vsel %vm4352, %v4731, %v4739
      %v4741 = vrot.slane %v4739, 4
      %v4743 = vshrl.u32 %v4349, 16
      %v4745 = vrot.slane %v4743, 6
      %v4746 = vshll.u32 %v4349, 16
      %v4748 = vrot.slane %v4746, 7
      %v4749 = vor.u32 %v4745, %v4748
      %v4750 = vsel %vm4352, %v4741, %v4749
      %v4751 = vrot.slane %v4749, 4
      %v4753 = vshrl.u32 %v4350, 16
      %v4755 = vrot.slane %v4753, 6
      %v4756 = vshll.u32 %v4350, 16
      %v4758 = vrot.slane %v4756, 7
      %v4759 = vor.u32 %v4755, %v4758
      %v4760 = vsel %vm4352, %v4751, %v4759
      %vm4802 = vcmask 60417
      %vm4803 = vsmask.f32 7942
      %vm4804 = vmand %vm4802, %vm4803
      %v4805 = vld [vmem:[#allocation2 + $0x8] sm:$0xe]
      %v4806 = vsel %vm4804, %v4360, %v4805
      %4807 = vst [vmem:[#allocation2 + $0x8] sm:$0xe] %v4806
      %4808 = vst.msk [vmem:[#allocation2 + $0xc] sm:$0xf] %vm4291, %v4370
      %4809 = vst.msk [vmem:[#allocation2 + $0x10] sm:$0xf] %vm4291, %v4380
      %4810 = vst.msk [vmem:[#allocation2 + $0x14] sm:$0xf] %vm4291, %v4390
      %4811 = vst.msk [vmem:[#allocation2 + $0x18] sm:$0xf] %vm4291, %v4400
      %4812 = vst.msk [vmem:[#allocation2 + $0x1c] sm:$0xf] %vm4291, %v4410
      %4813 = vst.msk [vmem:[#allocation2 + $0x20] sm:$0xf] %vm4291, %v4420
      %4814 = vst.msk [vmem:[#allocation2 + $0x24] sm:$0xf] %vm4291, %v4430
      %4815 = vst.msk [vmem:[#allocation2 + $0x28] sm:$0xf] %vm4291, %v4440
      %4816 = vst.msk [vmem:[#allocation2 + $0x2c] sm:$0xf] %vm4291, %v4450
      %4817 = vst.msk [vmem:[#allocation2 + $0x30] sm:$0xf] %vm4291, %v4460
      %4818 = vst.msk [vmem:[#allocation2 + $0x34] sm:$0xf] %vm4291, %v4470
      %4819 = vst.msk [vmem:[#allocation2 + $0x38] sm:$0xf] %vm4291, %v4480
      %4820 = vst.msk [vmem:[#allocation2 + $0x3c] sm:$0xf] %vm4291, %v4490
      %4821 = vst.msk [vmem:[#allocation2 + $0x40] sm:$0xf] %vm4291, %v4500
      %4822 = vst.msk [vmem:[#allocation2 + $0x44] sm:$0xf] %vm4291, %v4510
      %4823 = vst.msk [vmem:[#allocation2 + $0x48] sm:$0xf] %vm4291, %v4520
      %4824 = vst.msk [vmem:[#allocation2 + $0x4c] sm:$0xf] %vm4291, %v4530
      %4825 = vst.msk [vmem:[#allocation2 + $0x50] sm:$0xf] %vm4291, %v4540
      %4826 = vst.msk [vmem:[#allocation2 + $0x54] sm:$0xf] %vm4291, %v4550
      %4827 = vst.msk [vmem:[#allocation2 + $0x58] sm:$0xf] %vm4291, %v4560
      %4828 = vst.msk [vmem:[#allocation2 + $0x5c] sm:$0xf] %vm4291, %v4570
      %4829 = vst.msk [vmem:[#allocation2 + $0x60] sm:$0xf] %vm4291, %v4580
      %4830 = vst.msk [vmem:[#allocation2 + $0x64] sm:$0xf] %vm4291, %v4590
      %4831 = vst.msk [vmem:[#allocation2 + $0x68] sm:$0xf] %vm4291, %v4600
      %4832 = vst.msk [vmem:[#allocation2 + $0x6c] sm:$0xf] %vm4291, %v4610
      %4833 = vst.msk [vmem:[#allocation2 + $0x70] sm:$0xf] %vm4291, %v4620
      %4834 = vst.msk [vmem:[#allocation2 + $0x74] sm:$0xf] %vm4291, %v4630
      %4835 = vst.msk [vmem:[#allocation2 + $0x78] sm:$0xf] %vm4291, %v4640
      %4836 = vst.msk [vmem:[#allocation2 + $0x7c] sm:$0xf] %vm4291, %v4650
      %4837 = vst.msk [vmem:[#allocation2 + $0x80] sm:$0xf] %vm4291, %v4660
      %4838 = vst.msk [vmem:[#allocation2 + $0x84] sm:$0xf] %vm4291, %v4670
      %4839 = vst.msk [vmem:[#allocation2 + $0x88] sm:$0xf] %vm4291, %v4680
      %4840 = vst.msk [vmem:[#allocation2 + $0x8c] sm:$0xf] %vm4291, %v4690
      %4841 = vst.msk [vmem:[#allocation2 + $0x90] sm:$0xf] %vm4291, %v4700
      %4842 = vst.msk [vmem:[#allocation2 + $0x94] sm:$0xf] %vm4291, %v4710
      %4843 = vst.msk [vmem:[#allocation2 + $0x98] sm:$0xf] %vm4291, %v4720
      %4844 = vst.msk [vmem:[#allocation2 + $0x9c] sm:$0xf] %vm4291, %v4730
      %4845 = vst.msk [vmem:[#allocation2 + $0xa0] sm:$0xf] %vm4291, %v4740
      %4846 = vst.msk [vmem:[#allocation2 + $0xa4] sm:$0xf] %vm4291, %v4750
      %vm4847 = vcmask 60416
      %vm4848 = vsmask.f32 3328
      %vm4849 = vmand %vm4847, %vm4848
      %v4850 = vld [vmem:[#allocation2 + $0xa8] sm:$0xf]
      %v4851 = vsel %vm4849, %v4760, %v4850
      %4852 = vst [vmem:[#allocation2 + $0xa8] sm:$0xf] %v4851
      %v4853 = vld [vmem:[#allocation2] sm:$0xf]
      %v4854 = vld [vmem:[#allocation2 + $0x4] sm:$0xf]
      %v4855 = vld [vmem:[#allocation2 + $0x8] sm:$0xf]
      %v4856 = vld [vmem:[#allocation2 + $0xc] sm:$0xf]
      %v4857 = vld [vmem:[#allocation2 + $0x10] sm:$0xf]
      %v4858 = vld [vmem:[#allocation2 + $0x14] sm:$0xf]
      %v4859 = vld [vmem:[#allocation2 + $0x18] sm:$0xf]
      %v4860 = vld [vmem:[#allocation2 + $0x1c] sm:$0xf]
      %v4861 = vld [vmem:[#allocation2 + $0x20] sm:$0xf]
      %v4862 = vld [vmem:[#allocation2 + $0x24] sm:$0xf]
      %v4863 = vld [vmem:[#allocation2 + $0x28] sm:$0xf]
      %v4864 = vld [vmem:[#allocation2 + $0x2c] sm:$0xf]
      %v4865 = vld [vmem:[#allocation2 + $0x30] sm:$0xf]
      %v4866 = vld [vmem:[#allocation2 + $0x34] sm:$0xf]
      %v4867 = vld [vmem:[#allocation2 + $0x38] sm:$0xf]
      %v4868 = vld [vmem:[#allocation2 + $0x3c] sm:$0xf]
      %v4869 = vld [vmem:[#allocation2 + $0x40] sm:$0xf]
      %v4870 = vld [vmem:[#allocation2 + $0x44] sm:$0xf]
      %v4871 = vld [vmem:[#allocation2 + $0x48] sm:$0xf]
      %v4872 = vld [vmem:[#allocation2 + $0x4c] sm:$0xf]
      %v4873 = vld [vmem:[#allocation2 + $0x50] sm:$0xf]
      %v4874 = vld [vmem:[#allocation2 + $0x54] sm:$0xf]
      %v4875 = vld [vmem:[#allocation2 + $0x58] sm:$0xf]
      %v4876 = vld [vmem:[#allocation2 + $0x5c] sm:$0xf]
      %v4877 = vld [vmem:[#allocation2 + $0x60] sm:$0xf]
      %v4878 = vld [vmem:[#allocation2 + $0x64] sm:$0xf]
      %v4879 = vld [vmem:[#allocation2 + $0x68] sm:$0xf]
      %v4880 = vld [vmem:[#allocation2 + $0x6c] sm:$0xf]
      %v4881 = vld [vmem:[#allocation2 + $0x70] sm:$0xf]
      %v4882 = vld [vmem:[#allocation2 + $0x74] sm:$0xf]
      %v4883 = vld [vmem:[#allocation2 + $0x78] sm:$0xf]
      %v4884 = vld [vmem:[#allocation2 + $0x7c] sm:$0xf]
      %v4885 = vld [vmem:[#allocation2 + $0x80] sm:$0xf]
      %v4886 = vld [vmem:[#allocation2 + $0x84] sm:$0xf]
      %v4887 = vld [vmem:[#allocation2 + $0x88] sm:$0xf]
      %v4888 = vld [vmem:[#allocation2 + $0x8c] sm:$0xf]
      %v4889 = vld [vmem:[#allocation2 + $0x90] sm:$0xf]
      %v4890 = vld [vmem:[#allocation2 + $0x94] sm:$0xf]
      %v4891 = vld [vmem:[#allocation2 + $0x98] sm:$0xf]
      %v4892 = vld [vmem:[#allocation2 + $0x9c] sm:$0xf]
      %v4893 = vld [vmem:[#allocation2 + $0xa0] sm:$0x3]
      %v4894 = vld [vmem:[%s5] sm:$0xf]
      %v4895 = vld [vmem:[#allocation2 + $0xa0] sm:$0x7]
      %s4896 = scalar_lea.vmem %s5, 4
      %v4897 = vld [vmem:[%s4896] sm:$0xf]
      %v4939 = vunpack.c.l.b16 %v4853
      %v4940 = vunpack.c.l.b16 %v4854
      %v4941 = vunpack.c.l.b16 %v4855
      %v4942 = vunpack.c.l.b16 %v4856
      %v4943 = vunpack.c.l.b16 %v4857
      %v4944 = vunpack.c.l.b16 %v4858
      %v4945 = vunpack.c.l.b16 %v4859
      %v4946 = vunpack.c.l.b16 %v4860
      %v4947 = vunpack.c.l.b16 %v4861
      %v4948 = vunpack.c.l.b16 %v4862
      %v4949 = vunpack.c.l.b16 %v4863
      %v4950 = vunpack.c.l.b16 %v4864
      %v4951 = vunpack.c.l.b16 %v4865
      %v4952 = vunpack.c.l.b16 %v4866
      %v4953 = vunpack.c.l.b16 %v4867
      %v4954 = vunpack.c.l.b16 %v4868
      %v4955 = vunpack.c.l.b16 %v4869
      %v4956 = vunpack.c.l.b16 %v4870
      %v4957 = vunpack.c.l.b16 %v4871
      %v4958 = vunpack.c.l.b16 %v4872
      %v4959 = vunpack.c.l.b16 %v4873
      %v4960 = vunpack.c.l.b16 %v4874
      %v4961 = vunpack.c.l.b16 %v4875
      %v4962 = vunpack.c.l.b16 %v4876
      %v4963 = vunpack.c.l.b16 %v4877
      %v4964 = vunpack.c.l.b16 %v4878
      %v4965 = vunpack.c.l.b16 %v4879
      %v4966 = vunpack.c.l.b16 %v4880
      %v4967 = vunpack.c.l.b16 %v4881
      %v4968 = vunpack.c.l.b16 %v4882
      %v4969 = vunpack.c.l.b16 %v4883
      %v4970 = vunpack.c.l.b16 %v4884
      %v4971 = vunpack.c.l.b16 %v4885
      %v4972 = vunpack.c.l.b16 %v4886
      %v4973 = vunpack.c.l.b16 %v4887
      %v4974 = vunpack.c.l.b16 %v4888
      %v4975 = vunpack.c.l.b16 %v4889
      %v4976 = vunpack.c.l.b16 %v4890
      %v4977 = vunpack.c.l.b16 %v4891
      %v4978 = vunpack.c.l.b16 %v4892
      %v4979 = vunpack.c.l.b16 %v4895
      %v4980 = vpack.c.b16 %v4940, %v4939
      %v4981 = vpack.c.b16 %v4942, %v4941
      %v4982 = vpack.c.b16 %v4944, %v4943
      %v4983 = vpack.c.b16 %v4946, %v4945
      %v4984 = vpack.c.b16 %v4948, %v4947
      %v4985 = vpack.c.b16 %v4950, %v4949
      %v4986 = vpack.c.b16 %v4952, %v4951
      %v4987 = vpack.c.b16 %v4954, %v4953
      %v4988 = vpack.c.b16 %v4956, %v4955
      %v4989 = vpack.c.b16 %v4958, %v4957
      %v4990 = vpack.c.b16 %v4960, %v4959
      %v4991 = vpack.c.b16 %v4962, %v4961
      %v4992 = vpack.c.b16 %v4964, %v4963
      %v4993 = vpack.c.b16 %v4966, %v4965
      %v4994 = vpack.c.b16 %v4968, %v4967
      %v4995 = vpack.c.b16 %v4970, %v4969
      %v4996 = vpack.c.b16 %v4972, %v4971
      %v4997 = vpack.c.b16 %v4974, %v4973
      %v4998 = vpack.c.b16 %v4976, %v4975
      %v4999 = vpack.c.b16 %v4978, %v4977
      %v5000 = vpack.c.b16 %v4979, %v4979
      %v5002 = vshrl.u32 %v4980, 16
      %v5004 = vshll.u32 %v4980, 16
      %v5006 = vrot.slane %v5004, 1
      %v5007 = vor.u32 %v5002, %v5006
      %v5009 = vshll.u32 %v4981, 16
      %v5011 = vrot.slane %v5009, 1
      %v5012 = vsel %vm681, %v5007, %v5011
      %v5013 = vshrl.u32 %v4981, 16
      %v5015 = vor.u32 %v5013, %v5011
      %v5017 = vshll.u32 %v4982, 16
      %v5019 = vrot.slane %v5017, 1
      %v5020 = vsel %vm681, %v5015, %v5019
      %v5021 = vshrl.u32 %v4982, 16
      %v5023 = vor.u32 %v5021, %v5019
      %v5025 = vshll.u32 %v4983, 16
      %v5027 = vrot.slane %v5025, 1
      %v5028 = vsel %vm681, %v5023, %v5027
      %v5029 = vshrl.u32 %v4983, 16
      %v5031 = vor.u32 %v5029, %v5027
      %v5033 = vshll.u32 %v4984, 16
      %v5035 = vrot.slane %v5033, 1
      %v5036 = vsel %vm681, %v5031, %v5035
      %v5037 = vshrl.u32 %v4984, 16
      %v5039 = vor.u32 %v5037, %v5035
      %v5041 = vshll.u32 %v4985, 16
      %v5043 = vrot.slane %v5041, 1
      %v5044 = vsel %vm681, %v5039, %v5043
      %v5045 = vshrl.u32 %v4985, 16
      %v5047 = vor.u32 %v5045, %v5043
      %v5049 = vshll.u32 %v4986, 16
      %v5051 = vrot.slane %v5049, 1
      %v5052 = vsel %vm681, %v5047, %v5051
      %v5053 = vshrl.u32 %v4986, 16
      %v5055 = vor.u32 %v5053, %v5051
      %v5057 = vshll.u32 %v4987, 16
      %v5059 = vrot.slane %v5057, 1
      %v5060 = vsel %vm681, %v5055, %v5059
      %v5061 = vshrl.u32 %v4987, 16
      %v5063 = vor.u32 %v5061, %v5059
      %v5065 = vshll.u32 %v4988, 16
      %v5067 = vrot.slane %v5065, 1
      %v5068 = vsel %vm681, %v5063, %v5067
      %v5069 = vshrl.u32 %v4988, 16
      %v5071 = vor.u32 %v5069, %v5067
      %v5073 = vshll.u32 %v4989, 16
      %v5075 = vrot.slane %v5073, 1
      %v5076 = vsel %vm681, %v5071, %v5075
      %v5077 = vshrl.u32 %v4989, 16
      %v5079 = vor.u32 %v5077, %v5075
      %v5081 = vshll.u32 %v4990, 16
      %v5083 = vrot.slane %v5081, 1
      %v5084 = vsel %vm681, %v5079, %v5083
      %v5085 = vshrl.u32 %v4990, 16
      %v5087 = vor.u32 %v5085, %v5083
      %v5089 = vshll.u32 %v4991, 16
      %v5091 = vrot.slane %v5089, 1
      %v5092 = vsel %vm681, %v5087, %v5091
      %v5093 = vshrl.u32 %v4991, 16
      %v5095 = vor.u32 %v5093, %v5091
      %v5097 = vshll.u32 %v4992, 16
      %v5099 = vrot.slane %v5097, 1
      %v5100 = vsel %vm681, %v5095, %v5099
      %v5101 = vshrl.u32 %v4992, 16
      %v5103 = vor.u32 %v5101, %v5099
      %v5105 = vshll.u32 %v4993, 16
      %v5107 = vrot.slane %v5105, 1
      %v5108 = vsel %vm681, %v5103, %v5107
      %v5109 = vshrl.u32 %v4993, 16
      %v5111 = vor.u32 %v5109, %v5107
      %v5113 = vshll.u32 %v4994, 16
      %v5115 = vrot.slane %v5113, 1
      %v5116 = vsel %vm681, %v5111, %v5115
      %v5117 = vshrl.u32 %v4994, 16
      %v5119 = vor.u32 %v5117, %v5115
      %v5121 = vshll.u32 %v4995, 16
      %v5123 = vrot.slane %v5121, 1
      %v5124 = vsel %vm681, %v5119, %v5123
      %v5125 = vshrl.u32 %v4995, 16
      %v5127 = vor.u32 %v5125, %v5123
      %v5129 = vshll.u32 %v4996, 16
      %v5131 = vrot.slane %v5129, 1
      %v5132 = vsel %vm681, %v5127, %v5131
      %v5133 = vshrl.u32 %v4996, 16
      %v5135 = vor.u32 %v5133, %v5131
      %v5137 = vshll.u32 %v4997, 16
      %v5139 = vrot.slane %v5137, 1
      %v5140 = vsel %vm681, %v5135, %v5139
      %v5141 = vshrl.u32 %v4997, 16
      %v5143 = vor.u32 %v5141, %v5139
      %v5145 = vshll.u32 %v4998, 16
      %v5147 = vrot.slane %v5145, 1
      %v5148 = vsel %vm681, %v5143, %v5147
      %v5149 = vshrl.u32 %v4998, 16
      %v5151 = vor.u32 %v5149, %v5147
      %v5153 = vshll.u32 %v4999, 16
      %v5155 = vrot.slane %v5153, 1
      %v5156 = vsel %vm681, %v5151, %v5155
      %v5157 = vshrl.u32 %v4999, 16
      %v5159 = vor.u32 %v5157, %v5155
      %v5161 = vshll.u32 %v5000, 16
      %v5163 = vrot.slane %v5161, 1
      %v5164 = vsel %vm681, %v5159, %v5163
      %v5165 = vshrl.u32 %v5000, 16
      %v5167 = vor.u32 %v5165, %v5163
      %v5169 = vsel %vm497, %v5012, 0
      %v5172 = vsel %vm497, %v5020, 0
      %v5175 = vsel %vm497, %v5028, 0
      %v5178 = vsel %vm497, %v5036, 0
      %v5181 = vsel %vm497, %v5044, 0
      %v5184 = vsel %vm497, %v5052, 0
      %v5187 = vsel %vm497, %v5060, 0
      %v5190 = vsel %vm497, %v5068, 0
      %v5193 = vsel %vm497, %v5076, 0
      %v5196 = vsel %vm497, %v5084, 0
      %v5199 = vsel %vm497, %v5092, 0
      %v5202 = vsel %vm497, %v5100, 0
      %v5205 = vsel %vm497, %v5108, 0
      %v5208 = vsel %vm497, %v5116, 0
      %v5211 = vsel %vm497, %v5124, 0
      %v5214 = vsel %vm497, %v5132, 0
      %v5217 = vsel %vm497, %v5140, 0
      %v5220 = vsel %vm497, %v5148, 0
      %v5223 = vsel %vm497, %v5156, 0
      %v5226 = vsel %vm497, %v5164, 0
      %v5229 = vsel %vm497, %v5167, 0
      %v5232 = vsel %vm561, %v4897, 0
      %5234 = vmatpush.bf16.msra.mxu0 0
      %5235 = vmatpush.bf16.msra.mxu0 0
      %5236 = vmatpush.bf16.msra.mxu0 0
      %5237 = vmatpush.bf16.msra.mxu0 0
      %5238 = vmatpush.bf16.msra.mxu0 0
      %5239 = vmatpush.bf16.msra.mxu0 0
      %5240 = vmatpush.bf16.msra.mxu0 0
      %5241 = vmatpush.bf16.msra.mxu0 %v5232
      %5242 = vmatmul.bf16.gmra.mxu0 %v5169
      %v5243 = vpop.f32.mrf.mxu0
      %v5244 = vadd.f32 0.0, %v5243
      %v5245 = vpop.f32.mrf.mxu0
      %v5246 = vadd.f32 0.0, %v5245
      %5247 = vmatmul.bf16.gmra.mxu0 %v5172
      %v5248 = vpop.f32.mrf.mxu0
      %v5249 = vadd.f32 0.0, %v5248
      %v5250 = vpop.f32.mrf.mxu0
      %v5251 = vadd.f32 0.0, %v5250
      %5252 = vmatmul.bf16.gmra.mxu0 %v5175
      %v5253 = vpop.f32.mrf.mxu0
      %v5254 = vadd.f32 0.0, %v5253
      %v5255 = vpop.f32.mrf.mxu0
      %v5256 = vadd.f32 0.0, %v5255
      %5257 = vmatmul.bf16.gmra.mxu0 %v5178
      %v5258 = vpop.f32.mrf.mxu0
      %v5259 = vadd.f32 0.0, %v5258
      %v5260 = vpop.f32.mrf.mxu0
      %v5261 = vadd.f32 0.0, %v5260
      %5262 = vmatmul.bf16.gmra.mxu0 %v5181
      %v5263 = vpop.f32.mrf.mxu0
      %v5264 = vadd.f32 0.0, %v5263
      %v5265 = vpop.f32.mrf.mxu0
      %v5266 = vadd.f32 0.0, %v5265
      %5267 = vmatmul.bf16.gmra.mxu0 %v5184
      %v5268 = vpop.f32.mrf.mxu0
      %v5269 = vadd.f32 0.0, %v5268
      %v5270 = vpop.f32.mrf.mxu0
      %v5271 = vadd.f32 0.0, %v5270
      %5272 = vmatmul.bf16.gmra.mxu0 %v5187
      %v5273 = vpop.f32.mrf.mxu0
      %v5274 = vadd.f32 0.0, %v5273
      %v5275 = vpop.f32.mrf.mxu0
      %v5276 = vadd.f32 0.0, %v5275
      %5277 = vmatmul.bf16.gmra.mxu0 %v5190
      %v5278 = vpop.f32.mrf.mxu0
      %v5279 = vadd.f32 0.0, %v5278
      %v5280 = vpop.f32.mrf.mxu0
      %v5281 = vadd.f32 0.0, %v5280
      %5282 = vmatmul.bf16.gmra.mxu0 %v5193
      %v5283 = vpop.f32.mrf.mxu0
      %v5284 = vadd.f32 0.0, %v5283
      %v5285 = vpop.f32.mrf.mxu0
      %v5286 = vadd.f32 0.0, %v5285
      %5287 = vmatmul.bf16.gmra.mxu0 %v5196
      %v5288 = vpop.f32.mrf.mxu0
      %v5289 = vadd.f32 0.0, %v5288
      %v5290 = vpop.f32.mrf.mxu0
      %v5291 = vadd.f32 0.0, %v5290
      %5292 = vmatmul.bf16.gmra.mxu0 %v5199
      %v5293 = vpop.f32.mrf.mxu0
      %v5294 = vadd.f32 0.0, %v5293
      %v5295 = vpop.f32.mrf.mxu0
      %v5296 = vadd.f32 0.0, %v5295
      %5297 = vmatmul.bf16.gmra.mxu0 %v5202
      %v5298 = vpop.f32.mrf.mxu0
      %v5299 = vadd.f32 0.0, %v5298
      %v5300 = vpop.f32.mrf.mxu0
      %v5301 = vadd.f32 0.0, %v5300
      %5302 = vmatmul.bf16.gmra.mxu0 %v5205
      %v5303 = vpop.f32.mrf.mxu0
      %v5304 = vadd.f32 0.0, %v5303
      %v5305 = vpop.f32.mrf.mxu0
      %v5306 = vadd.f32 0.0, %v5305
      %5307 = vmatmul.bf16.gmra.mxu0 %v5208
      %v5308 = vpop.f32.mrf.mxu0
      %v5309 = vadd.f32 0.0, %v5308
      %v5310 = vpop.f32.mrf.mxu0
      %v5311 = vadd.f32 0.0, %v5310
      %5312 = vmatmul.bf16.gmra.mxu0 %v5211
      %v5313 = vpop.f32.mrf.mxu0
      %v5314 = vadd.f32 0.0, %v5313
      %v5315 = vpop.f32.mrf.mxu0
      %v5316 = vadd.f32 0.0, %v5315
      %5317 = vmatmul.bf16.gmra.mxu0 %v5214
      %v5318 = vpop.f32.mrf.mxu0
      %v5319 = vadd.f32 0.0, %v5318
      %v5320 = vpop.f32.mrf.mxu0
      %v5321 = vadd.f32 0.0, %v5320
      %5322 = vmatmul.bf16.gmra.mxu0 %v5217
      %v5323 = vpop.f32.mrf.mxu0
      %v5324 = vadd.f32 0.0, %v5323
      %v5325 = vpop.f32.mrf.mxu0
      %v5326 = vadd.f32 0.0, %v5325
      %5327 = vmatmul.bf16.gmra.mxu0 %v5220
      %v5328 = vpop.f32.mrf.mxu0
      %v5329 = vadd.f32 0.0, %v5328
      %v5330 = vpop.f32.mrf.mxu0
      %v5331 = vadd.f32 0.0, %v5330
      %5332 = vmatmul.bf16.gmra.mxu0 %v5223
      %v5333 = vpop.f32.mrf.mxu0
      %v5334 = vadd.f32 0.0, %v5333
      %v5335 = vpop.f32.mrf.mxu0
      %v5336 = vadd.f32 0.0, %v5335
      %5337 = vmatmul.bf16.gmra.mxu0 %v5226
      %v5338 = vpop.f32.mrf.mxu0
      %v5339 = vadd.f32 0.0, %v5338
      %v5340 = vpop.f32.mrf.mxu0
      %v5341 = vadd.f32 0.0, %v5340
      %5342 = vmatmul.bf16.gmra.mxu0 %v5229
      %v5343 = vpop.f32.mrf.mxu0
      %v5344 = vadd.f32 0.0, %v5343
      %v5345 = vpop.f32.mrf.mxu0
      %5346 = vdwg.mxu0
      %v5348 = vunpack.c.l.b16 %v4893
      %v5349 = vpack.c.b16 %v5348, %v5348
      %v5350 = vsel %vm497, %v4980, 0
      %v5352 = vsel %vm497, %v4981, 0
      %v5354 = vsel %vm497, %v4982, 0
      %v5356 = vsel %vm497, %v4983, 0
      %v5358 = vsel %vm497, %v4984, 0
      %v5360 = vsel %vm497, %v4985, 0
      %v5362 = vsel %vm497, %v4986, 0
      %v5364 = vsel %vm497, %v4987, 0
      %v5366 = vsel %vm497, %v4988, 0
      %v5368 = vsel %vm497, %v4989, 0
      %v5370 = vsel %vm497, %v4990, 0
      %v5372 = vsel %vm497, %v4991, 0
      %v5374 = vsel %vm497, %v4992, 0
      %v5376 = vsel %vm497, %v4993, 0
      %v5378 = vsel %vm497, %v4994, 0
      %v5380 = vsel %vm497, %v4995, 0
      %v5382 = vsel %vm497, %v4996, 0
      %v5384 = vsel %vm497, %v4997, 0
      %v5386 = vsel %vm497, %v4998, 0
      %v5388 = vsel %vm497, %v4999, 0
      %v5391 = vsel %vm497, %v5349, 0
      %v5394 = vsel %vm561, %v4894, 0
      %5396 = vmatpush.bf16.msra.mxu0 0
      %5397 = vmatpush.bf16.msra.mxu0 0
      %5398 = vmatpush.bf16.msra.mxu0 0
      %5399 = vmatpush.bf16.msra.mxu0 0
      %5400 = vmatpush.bf16.msra.mxu0 0
      %5401 = vmatpush.bf16.msra.mxu0 0
      %5402 = vmatpush.bf16.msra.mxu0 0
      %5403 = vmatpush.bf16.msra.mxu0 %v5394
      %5404 = vmatmul.bf16.gmra.mxu0 %v5350
      %v5405 = vpop.f32.mrf.mxu0
      %v5406 = vadd.f32 %v5244, %v5405
      %v5407 = vpop.f32.mrf.mxu0
      %v5408 = vadd.f32 %v5246, %v5407
      %5409 = vmatmul.bf16.gmra.mxu0 %v5352
      %v5410 = vpop.f32.mrf.mxu0
      %v5411 = vadd.f32 %v5249, %v5410
      %v5412 = vpop.f32.mrf.mxu0
      %v5413 = vadd.f32 %v5251, %v5412
      %5414 = vmatmul.bf16.gmra.mxu0 %v5354
      %v5415 = vpop.f32.mrf.mxu0
      %v5416 = vadd.f32 %v5254, %v5415
      %v5417 = vpop.f32.mrf.mxu0
      %v5418 = vadd.f32 %v5256, %v5417
      %5419 = vmatmul.bf16.gmra.mxu0 %v5356
      %v5420 = vpop.f32.mrf.mxu0
      %v5421 = vadd.f32 %v5259, %v5420
      %v5422 = vpop.f32.mrf.mxu0
      %v5423 = vadd.f32 %v5261, %v5422
      %5424 = vmatmul.bf16.gmra.mxu0 %v5358
      %v5425 = vpop.f32.mrf.mxu0
      %v5426 = vadd.f32 %v5264, %v5425
      %v5427 = vpop.f32.mrf.mxu0
      %v5428 = vadd.f32 %v5266, %v5427
      %5429 = vmatmul.bf16.gmra.mxu0 %v5360
      %v5430 = vpop.f32.mrf.mxu0
      %v5431 = vadd.f32 %v5269, %v5430
      %v5432 = vpop.f32.mrf.mxu0
      %v5433 = vadd.f32 %v5271, %v5432
      %5434 = vmatmul.bf16.gmra.mxu0 %v5362
      %v5435 = vpop.f32.mrf.mxu0
      %v5436 = vadd.f32 %v5274, %v5435
      %v5437 = vpop.f32.mrf.mxu0
      %v5438 = vadd.f32 %v5276, %v5437
      %5439 = vmatmul.bf16.gmra.mxu0 %v5364
      %v5440 = vpop.f32.mrf.mxu0
      %v5441 = vadd.f32 %v5279, %v5440
      %v5442 = vpop.f32.mrf.mxu0
      %v5443 = vadd.f32 %v5281, %v5442
      %5444 = vmatmul.bf16.gmra.mxu0 %v5366
      %v5445 = vpop.f32.mrf.mxu0
      %v5446 = vadd.f32 %v5284, %v5445
      %v5447 = vpop.f32.mrf.mxu0
      %v5448 = vadd.f32 %v5286, %v5447
      %5449 = vmatmul.bf16.gmra.mxu0 %v5368
      %v5450 = vpop.f32.mrf.mxu0
      %v5451 = vadd.f32 %v5289, %v5450
      %v5452 = vpop.f32.mrf.mxu0
      %v5453 = vadd.f32 %v5291, %v5452
      %5454 = vmatmul.bf16.gmra.mxu0 %v5370
      %v5455 = vpop.f32.mrf.mxu0
      %v5456 = vadd.f32 %v5294, %v5455
      %v5457 = vpop.f32.mrf.mxu0
      %v5458 = vadd.f32 %v5296, %v5457
      %5459 = vmatmul.bf16.gmra.mxu0 %v5372
      %v5460 = vpop.f32.mrf.mxu0
      %v5461 = vadd.f32 %v5299, %v5460
      %v5462 = vpop.f32.mrf.mxu0
      %v5463 = vadd.f32 %v5301, %v5462
      %5464 = vmatmul.bf16.gmra.mxu0 %v5374
      %v5465 = vpop.f32.mrf.mxu0
      %v5466 = vadd.f32 %v5304, %v5465
      %v5467 = vpop.f32.mrf.mxu0
      %v5468 = vadd.f32 %v5306, %v5467
      %5469 = vmatmul.bf16.gmra.mxu0 %v5376
      %v5470 = vpop.f32.mrf.mxu0
      %v5471 = vadd.f32 %v5309, %v5470
      %v5472 = vpop.f32.mrf.mxu0
      %v5473 = vadd.f32 %v5311, %v5472
      %5474 = vmatmul.bf16.gmra.mxu0 %v5378
      %v5475 = vpop.f32.mrf.mxu0
      %v5476 = vadd.f32 %v5314, %v5475
      %v5477 = vpop.f32.mrf.mxu0
      %v5478 = vadd.f32 %v5316, %v5477
      %5479 = vmatmul.bf16.gmra.mxu0 %v5380
      %v5480 = vpop.f32.mrf.mxu0
      %v5481 = vadd.f32 %v5319, %v5480
      %v5482 = vpop.f32.mrf.mxu0
      %v5483 = vadd.f32 %v5321, %v5482
      %5484 = vmatmul.bf16.gmra.mxu0 %v5382
      %v5485 = vpop.f32.mrf.mxu0
      %v5486 = vadd.f32 %v5324, %v5485
      %v5487 = vpop.f32.mrf.mxu0
      %v5488 = vadd.f32 %v5326, %v5487
      %5489 = vmatmul.bf16.gmra.mxu0 %v5384
      %v5490 = vpop.f32.mrf.mxu0
      %v5491 = vadd.f32 %v5329, %v5490
      %v5492 = vpop.f32.mrf.mxu0
      %v5493 = vadd.f32 %v5331, %v5492
      %5494 = vmatmul.bf16.gmra.mxu0 %v5386
      %v5495 = vpop.f32.mrf.mxu0
      %v5496 = vadd.f32 %v5334, %v5495
      %v5497 = vpop.f32.mrf.mxu0
      %v5498 = vadd.f32 %v5336, %v5497
      %5499 = vmatmul.bf16.gmra.mxu0 %v5388
      %v5500 = vpop.f32.mrf.mxu0
      %v5501 = vadd.f32 %v5339, %v5500
      %v5502 = vpop.f32.mrf.mxu0
      %v5503 = vadd.f32 %v5341, %v5502
      %5504 = vmatmul.bf16.gmra.mxu0 %v5391
      %v5505 = vpop.f32.mrf.mxu0
      %v5506 = vadd.f32 %v5344, %v5505
      %v5507 = vpop.f32.mrf.mxu0
      %5508 = vdwg.mxu0
      %v5509 = vld [vmem:[#allocation2] sm:$0xe]
      %s5510 = scalar_lea.vmem %s5, 8
      %v5511 = vld [vmem:[%s5510] sm:$0xf]
      %v5513 = vunpack.c.l.b16 %v5509
      %v5514 = vpack.c.b16 %v4940, %v5513
      %v5515 = vrot.slane %v5514, 1
      %v5516 = vrot.slane %v4981, 1
      %v5517 = vsel %vm455, %v5515, %v5516
      %v5518 = vrot.slane %v4982, 1
      %v5519 = vsel %vm455, %v5516, %v5518
      %v5520 = vrot.slane %v4983, 1
      %v5521 = vsel %vm455, %v5518, %v5520
      %v5522 = vrot.slane %v4984, 1
      %v5523 = vsel %vm455, %v5520, %v5522
      %v5524 = vrot.slane %v4985, 1
      %v5525 = vsel %vm455, %v5522, %v5524
      %v5526 = vrot.slane %v4986, 1
      %v5527 = vsel %vm455, %v5524, %v5526
      %v5528 = vrot.slane %v4987, 1
      %v5529 = vsel %vm455, %v5526, %v5528
      %v5530 = vrot.slane %v4988, 1
      %v5531 = vsel %vm455, %v5528, %v5530
      %v5532 = vrot.slane %v4989, 1
      %v5533 = vsel %vm455, %v5530, %v5532
      %v5534 = vrot.slane %v4990, 1
      %v5535 = vsel %vm455, %v5532, %v5534
      %v5536 = vrot.slane %v4991, 1
      %v5537 = vsel %vm455, %v5534, %v5536
      %v5538 = vrot.slane %v4992, 1
      %v5539 = vsel %vm455, %v5536, %v5538
      %v5540 = vrot.slane %v4993, 1
      %v5541 = vsel %vm455, %v5538, %v5540
      %v5542 = vrot.slane %v4994, 1
      %v5543 = vsel %vm455, %v5540, %v5542
      %v5544 = vrot.slane %v4995, 1
      %v5545 = vsel %vm455, %v5542, %v5544
      %v5546 = vrot.slane %v4996, 1
      %v5547 = vsel %vm455, %v5544, %v5546
      %v5548 = vrot.slane %v4997, 1
      %v5549 = vsel %vm455, %v5546, %v5548
      %v5550 = vrot.slane %v4998, 1
      %v5551 = vsel %vm455, %v5548, %v5550
      %v5552 = vrot.slane %v4999, 1
      %v5553 = vsel %vm455, %v5550, %v5552
      %v5554 = vrot.slane %v5000, 1
      %v5555 = vsel %vm455, %v5552, %v5554
      %v5557 = vsel %vm497, %v5517, 0
      %v5560 = vsel %vm497, %v5519, 0
      %v5563 = vsel %vm497, %v5521, 0
      %v5566 = vsel %vm497, %v5523, 0
      %v5569 = vsel %vm497, %v5525, 0
      %v5572 = vsel %vm497, %v5527, 0
      %v5575 = vsel %vm497, %v5529, 0
      %v5578 = vsel %vm497, %v5531, 0
      %v5581 = vsel %vm497, %v5533, 0
      %v5584 = vsel %vm497, %v5535, 0
      %v5587 = vsel %vm497, %v5537, 0
      %v5590 = vsel %vm497, %v5539, 0
      %v5593 = vsel %vm497, %v5541, 0
      %v5596 = vsel %vm497, %v5543, 0
      %v5599 = vsel %vm497, %v5545, 0
      %v5602 = vsel %vm497, %v5547, 0
      %v5605 = vsel %vm497, %v5549, 0
      %v5608 = vsel %vm497, %v5551, 0
      %v5611 = vsel %vm497, %v5553, 0
      %v5614 = vsel %vm497, %v5555, 0
      %v5617 = vsel %vm497, %v5554, 0
      %v5620 = vsel %vm561, %v5511, 0
      %5622 = vmatpush.bf16.msra.mxu0 0
      %5623 = vmatpush.bf16.msra.mxu0 0
      %5624 = vmatpush.bf16.msra.mxu0 0
      %5625 = vmatpush.bf16.msra.mxu0 0
      %5626 = vmatpush.bf16.msra.mxu0 0
      %5627 = vmatpush.bf16.msra.mxu0 0
      %5628 = vmatpush.bf16.msra.mxu0 0
      %5629 = vmatpush.bf16.msra.mxu0 %v5620
      %5630 = vmatmul.bf16.gmra.mxu0 %v5557
      %v5631 = vpop.f32.mrf.mxu0
      %v5632 = vadd.f32 0.0, %v5631
      %v5633 = vpop.f32.mrf.mxu0
      %v5634 = vadd.f32 0.0, %v5633
      %5635 = vmatmul.bf16.gmra.mxu0 %v5560
      %v5636 = vpop.f32.mrf.mxu0
      %v5637 = vadd.f32 0.0, %v5636
      %v5638 = vpop.f32.mrf.mxu0
      %v5639 = vadd.f32 0.0, %v5638
      %5640 = vmatmul.bf16.gmra.mxu0 %v5563
      %v5641 = vpop.f32.mrf.mxu0
      %v5642 = vadd.f32 0.0, %v5641
      %v5643 = vpop.f32.mrf.mxu0
      %v5644 = vadd.f32 0.0, %v5643
      %5645 = vmatmul.bf16.gmra.mxu0 %v5566
      %v5646 = vpop.f32.mrf.mxu0
      %v5647 = vadd.f32 0.0, %v5646
      %v5648 = vpop.f32.mrf.mxu0
      %v5649 = vadd.f32 0.0, %v5648
      %5650 = vmatmul.bf16.gmra.mxu0 %v5569
      %v5651 = vpop.f32.mrf.mxu0
      %v5652 = vadd.f32 0.0, %v5651
      %v5653 = vpop.f32.mrf.mxu0
      %v5654 = vadd.f32 0.0, %v5653
      %5655 = vmatmul.bf16.gmra.mxu0 %v5572
      %v5656 = vpop.f32.mrf.mxu0
      %v5657 = vadd.f32 0.0, %v5656
      %v5658 = vpop.f32.mrf.mxu0
      %v5659 = vadd.f32 0.0, %v5658
      %5660 = vmatmul.bf16.gmra.mxu0 %v5575
      %v5661 = vpop.f32.mrf.mxu0
      %v5662 = vadd.f32 0.0, %v5661
      %v5663 = vpop.f32.mrf.mxu0
      %v5664 = vadd.f32 0.0, %v5663
      %5665 = vmatmul.bf16.gmra.mxu0 %v5578
      %v5666 = vpop.f32.mrf.mxu0
      %v5667 = vadd.f32 0.0, %v5666
      %v5668 = vpop.f32.mrf.mxu0
      %v5669 = vadd.f32 0.0, %v5668
      %5670 = vmatmul.bf16.gmra.mxu0 %v5581
      %v5671 = vpop.f32.mrf.mxu0
      %v5672 = vadd.f32 0.0, %v5671
      %v5673 = vpop.f32.mrf.mxu0
      %v5674 = vadd.f32 0.0, %v5673
      %5675 = vmatmul.bf16.gmra.mxu0 %v5584
      %v5676 = vpop.f32.mrf.mxu0
      %v5677 = vadd.f32 0.0, %v5676
      %v5678 = vpop.f32.mrf.mxu0
      %v5679 = vadd.f32 0.0, %v5678
      %5680 = vmatmul.bf16.gmra.mxu0 %v5587
      %v5681 = vpop.f32.mrf.mxu0
      %v5682 = vadd.f32 0.0, %v5681
      %v5683 = vpop.f32.mrf.mxu0
      %v5684 = vadd.f32 0.0, %v5683
      %5685 = vmatmul.bf16.gmra.mxu0 %v5590
      %v5686 = vpop.f32.mrf.mxu0
      %v5687 = vadd.f32 0.0, %v5686
      %v5688 = vpop.f32.mrf.mxu0
      %v5689 = vadd.f32 0.0, %v5688
      %5690 = vmatmul.bf16.gmra.mxu0 %v5593
      %v5691 = vpop.f32.mrf.mxu0
      %v5692 = vadd.f32 0.0, %v5691
      %v5693 = vpop.f32.mrf.mxu0
      %v5694 = vadd.f32 0.0, %v5693
      %5695 = vmatmul.bf16.gmra.mxu0 %v5596
      %v5696 = vpop.f32.mrf.mxu0
      %v5697 = vadd.f32 0.0, %v5696
      %v5698 = vpop.f32.mrf.mxu0
      %v5699 = vadd.f32 0.0, %v5698
      %5700 = vmatmul.bf16.gmra.mxu0 %v5599
      %v5701 = vpop.f32.mrf.mxu0
      %v5702 = vadd.f32 0.0, %v5701
      %v5703 = vpop.f32.mrf.mxu0
      %v5704 = vadd.f32 0.0, %v5703
      %5705 = vmatmul.bf16.gmra.mxu0 %v5602
      %v5706 = vpop.f32.mrf.mxu0
      %v5707 = vadd.f32 0.0, %v5706
      %v5708 = vpop.f32.mrf.mxu0
      %v5709 = vadd.f32 0.0, %v5708
      %5710 = vmatmul.bf16.gmra.mxu0 %v5605
      %v5711 = vpop.f32.mrf.mxu0
      %v5712 = vadd.f32 0.0, %v5711
      %v5713 = vpop.f32.mrf.mxu0
      %v5714 = vadd.f32 0.0, %v5713
      %5715 = vmatmul.bf16.gmra.mxu0 %v5608
      %v5716 = vpop.f32.mrf.mxu0
      %v5717 = vadd.f32 0.0, %v5716
      %v5718 = vpop.f32.mrf.mxu0
      %v5719 = vadd.f32 0.0, %v5718
      %5720 = vmatmul.bf16.gmra.mxu0 %v5611
      %v5721 = vpop.f32.mrf.mxu0
      %v5722 = vadd.f32 0.0, %v5721
      %v5723 = vpop.f32.mrf.mxu0
      %v5724 = vadd.f32 0.0, %v5723
      %5725 = vmatmul.bf16.gmra.mxu0 %v5614
      %v5726 = vpop.f32.mrf.mxu0
      %v5727 = vadd.f32 0.0, %v5726
      %v5728 = vpop.f32.mrf.mxu0
      %v5729 = vadd.f32 0.0, %v5728
      %5730 = vmatmul.bf16.gmra.mxu0 %v5617
      %v5731 = vpop.f32.mrf.mxu0
      %v5732 = vadd.f32 0.0, %v5731
      %v5733 = vpop.f32.mrf.mxu0
      %5734 = vdwg.mxu0
      %v5735 = vadd.f32 %v5406, %v5632
      %v5736 = vadd.f32 %v5408, %v5634
      %v5737 = vadd.f32 %v5411, %v5637
      %v5738 = vadd.f32 %v5413, %v5639
      %v5739 = vadd.f32 %v5416, %v5642
      %v5740 = vadd.f32 %v5418, %v5644
      %v5741 = vadd.f32 %v5421, %v5647
      %v5742 = vadd.f32 %v5423, %v5649
      %v5743 = vadd.f32 %v5426, %v5652
      %v5744 = vadd.f32 %v5428, %v5654
      %v5745 = vadd.f32 %v5431, %v5657
      %v5746 = vadd.f32 %v5433, %v5659
      %v5747 = vadd.f32 %v5436, %v5662
      %v5748 = vadd.f32 %v5438, %v5664
      %v5749 = vadd.f32 %v5441, %v5667
      %v5750 = vadd.f32 %v5443, %v5669
      %v5751 = vadd.f32 %v5446, %v5672
      %v5752 = vadd.f32 %v5448, %v5674
      %v5753 = vadd.f32 %v5451, %v5677
      %v5754 = vadd.f32 %v5453, %v5679
      %v5755 = vadd.f32 %v5456, %v5682
      %v5756 = vadd.f32 %v5458, %v5684
      %v5757 = vadd.f32 %v5461, %v5687
      %v5758 = vadd.f32 %v5463, %v5689
      %v5759 = vadd.f32 %v5466, %v5692
      %v5760 = vadd.f32 %v5468, %v5694
      %v5761 = vadd.f32 %v5471, %v5697
      %v5762 = vadd.f32 %v5473, %v5699
      %v5763 = vadd.f32 %v5476, %v5702
      %v5764 = vadd.f32 %v5478, %v5704
      %v5765 = vadd.f32 %v5481, %v5707
      %v5766 = vadd.f32 %v5483, %v5709
      %v5767 = vadd.f32 %v5486, %v5712
      %v5768 = vadd.f32 %v5488, %v5714
      %v5769 = vadd.f32 %v5491, %v5717
      %v5770 = vadd.f32 %v5493, %v5719
      %v5771 = vadd.f32 %v5496, %v5722
      %v5772 = vadd.f32 %v5498, %v5724
      %v5773 = vadd.f32 %v5501, %v5727
      %v5774 = vadd.f32 %v5503, %v5729
      %v5775 = vadd.f32 %v5506, %v5732
      %v5776 = vld [vmem:[#allocation2 + $0x8] sm:$0xe]
      %v5777 = vld [vmem:[#allocation2 + $0xc] sm:$0xf]
      %v5778 = vld [vmem:[#allocation2 + $0x10] sm:$0xf]
      %v5779 = vld [vmem:[#allocation2 + $0x14] sm:$0xf]
      %v5780 = vld [vmem:[#allocation2 + $0x18] sm:$0xf]
      %v5781 = vld [vmem:[#allocation2 + $0x1c] sm:$0xf]
      %v5782 = vld [vmem:[#allocation2 + $0x20] sm:$0xf]
      %v5783 = vld [vmem:[#allocation2 + $0x24] sm:$0xf]
      %v5784 = vld [vmem:[#allocation2 + $0x28] sm:$0xf]
      %v5785 = vld [vmem:[#allocation2 + $0x2c] sm:$0xf]
      %v5786 = vld [vmem:[#allocation2 + $0x30] sm:$0xf]
      %v5787 = vld [vmem:[#allocation2 + $0x34] sm:$0xf]
      %v5788 = vld [vmem:[#allocation2 + $0x38] sm:$0xf]
      %v5789 = vld [vmem:[#allocation2 + $0x3c] sm:$0xf]
      %v5790 = vld [vmem:[#allocation2 + $0x40] sm:$0xf]
      %v5791 = vld [vmem:[#allocation2 + $0x44] sm:$0xf]
      %v5792 = vld [vmem:[#allocation2 + $0x48] sm:$0xf]
      %v5793 = vld [vmem:[#allocation2 + $0x4c] sm:$0xf]
      %v5794 = vld [vmem:[#allocation2 + $0x50] sm:$0xf]
      %v5795 = vld [vmem:[#allocation2 + $0x54] sm:$0xf]
      %v5796 = vld [vmem:[#allocation2 + $0x58] sm:$0xf]
      %v5797 = vld [vmem:[#allocation2 + $0x5c] sm:$0xf]
      %v5798 = vld [vmem:[#allocation2 + $0x60] sm:$0xf]
      %v5799 = vld [vmem:[#allocation2 + $0x64] sm:$0xf]
      %v5800 = vld [vmem:[#allocation2 + $0x68] sm:$0xf]
      %v5801 = vld [vmem:[#allocation2 + $0x6c] sm:$0xf]
      %v5802 = vld [vmem:[#allocation2 + $0x70] sm:$0xf]
      %v5803 = vld [vmem:[#allocation2 + $0x74] sm:$0xf]
      %v5804 = vld [vmem:[#allocation2 + $0x78] sm:$0xf]
      %v5805 = vld [vmem:[#allocation2 + $0x7c] sm:$0xf]
      %v5806 = vld [vmem:[#allocation2 + $0x80] sm:$0xf]
      %v5807 = vld [vmem:[#allocation2 + $0x84] sm:$0xf]
      %v5808 = vld [vmem:[#allocation2 + $0x88] sm:$0xf]
      %v5809 = vld [vmem:[#allocation2 + $0x8c] sm:$0xf]
      %v5810 = vld [vmem:[#allocation2 + $0x90] sm:$0xf]
      %v5811 = vld [vmem:[#allocation2 + $0x94] sm:$0xf]
      %v5812 = vld [vmem:[#allocation2 + $0x98] sm:$0xf]
      %v5813 = vld [vmem:[#allocation2 + $0x9c] sm:$0xf]
      %v5814 = vld [vmem:[#allocation2 + $0xa0] sm:$0xf]
      %v5815 = vld [vmem:[#allocation2 + $0xa4] sm:$0xf]
      %v5816 = vld [vmem:[#allocation2 + $0xa8] sm:$0x7]
      %s5817 = scalar_lea.vmem %s5, 12
      %v5818 = vld [vmem:[%s5817] sm:$0xf]
      %v5860 = vunpack.c.l.b16 %v5776
      %v5861 = vunpack.c.l.b16 %v5777
      %v5862 = vunpack.c.l.b16 %v5778
      %v5863 = vunpack.c.l.b16 %v5779
      %v5864 = vunpack.c.l.b16 %v5780
      %v5865 = vunpack.c.l.b16 %v5781
      %v5866 = vunpack.c.l.b16 %v5782
      %v5867 = vunpack.c.l.b16 %v5783
      %v5868 = vunpack.c.l.b16 %v5784
      %v5869 = vunpack.c.l.b16 %v5785
      %v5870 = vunpack.c.l.b16 %v5786
      %v5871 = vunpack.c.l.b16 %v5787
      %v5872 = vunpack.c.l.b16 %v5788
      %v5873 = vunpack.c.l.b16 %v5789
      %v5874 = vunpack.c.l.b16 %v5790
      %v5875 = vunpack.c.l.b16 %v5791
      %v5876 = vunpack.c.l.b16 %v5792
      %v5877 = vunpack.c.l.b16 %v5793
      %v5878 = vunpack.c.l.b16 %v5794
      %v5879 = vunpack.c.l.b16 %v5795
      %v5880 = vunpack.c.l.b16 %v5796
      %v5881 = vunpack.c.l.b16 %v5797
      %v5882 = vunpack.c.l.b16 %v5798
      %v5883 = vunpack.c.l.b16 %v5799
      %v5884 = vunpack.c.l.b16 %v5800
      %v5885 = vunpack.c.l.b16 %v5801
      %v5886 = vunpack.c.l.b16 %v5802
      %v5887 = vunpack.c.l.b16 %v5803
      %v5888 = vunpack.c.l.b16 %v5804
      %v5889 = vunpack.c.l.b16 %v5805
      %v5890 = vunpack.c.l.b16 %v5806
      %v5891 = vunpack.c.l.b16 %v5807
      %v5892 = vunpack.c.l.b16 %v5808
      %v5893 = vunpack.c.l.b16 %v5809
      %v5894 = vunpack.c.l.b16 %v5810
      %v5895 = vunpack.c.l.b16 %v5811
      %v5896 = vunpack.c.l.b16 %v5812
      %v5897 = vunpack.c.l.b16 %v5813
      %v5898 = vunpack.c.l.b16 %v5814
      %v5899 = vunpack.c.l.b16 %v5815
      %v5900 = vunpack.c.l.b16 %v5816
      %v5901 = vpack.c.b16 %v5861, %v5860
      %v5902 = vpack.c.b16 %v5863, %v5862
      %v5903 = vpack.c.b16 %v5865, %v5864
      %v5904 = vpack.c.b16 %v5867, %v5866
      %v5905 = vpack.c.b16 %v5869, %v5868
      %v5906 = vpack.c.b16 %v5871, %v5870
      %v5907 = vpack.c.b16 %v5873, %v5872
      %v5908 = vpack.c.b16 %v5875, %v5874
      %v5909 = vpack.c.b16 %v5877, %v5876
      %v5910 = vpack.c.b16 %v5879, %v5878
      %v5911 = vpack.c.b16 %v5881, %v5880
      %v5912 = vpack.c.b16 %v5883, %v5882
      %v5913 = vpack.c.b16 %v5885, %v5884
      %v5914 = vpack.c.b16 %v5887, %v5886
      %v5915 = vpack.c.b16 %v5889, %v5888
      %v5916 = vpack.c.b16 %v5891, %v5890
      %v5917 = vpack.c.b16 %v5893, %v5892
      %v5918 = vpack.c.b16 %v5895, %v5894
      %v5919 = vpack.c.b16 %v5897, %v5896
      %v5920 = vpack.c.b16 %v5899, %v5898
      %v5921 = vpack.c.b16 %v5900, %v5900
      %v5922 = vrot.slane %v5901, 1
      %v5923 = vrot.slane %v5902, 1
      %v5924 = vsel %vm455, %v5922, %v5923
      %v5925 = vrot.slane %v5903, 1
      %v5926 = vsel %vm455, %v5923, %v5925
      %v5927 = vrot.slane %v5904, 1
      %v5928 = vsel %vm455, %v5925, %v5927
      %v5929 = vrot.slane %v5905, 1
      %v5930 = vsel %vm455, %v5927, %v5929
      %v5931 = vrot.slane %v5906, 1
      %v5932 = vsel %vm455, %v5929, %v5931
      %v5933 = vrot.slane %v5907, 1
      %v5934 = vsel %vm455, %v5931, %v5933
      %v5935 = vrot.slane %v5908, 1
      %v5936 = vsel %vm455, %v5933, %v5935
      %v5937 = vrot.slane %v5909, 1
      %v5938 = vsel %vm455, %v5935, %v5937
      %v5939 = vrot.slane %v5910, 1
      %v5940 = vsel %vm455, %v5937, %v5939
      %v5941 = vrot.slane %v5911, 1
      %v5942 = vsel %vm455, %v5939, %v5941
      %v5943 = vrot.slane %v5912, 1
      %v5944 = vsel %vm455, %v5941, %v5943
      %v5945 = vrot.slane %v5913, 1
      %v5946 = vsel %vm455, %v5943, %v5945
      %v5947 = vrot.slane %v5914, 1
      %v5948 = vsel %vm455, %v5945, %v5947
      %v5949 = vrot.slane %v5915, 1
      %v5950 = vsel %vm455, %v5947, %v5949
      %v5951 = vrot.slane %v5916, 1
      %v5952 = vsel %vm455, %v5949, %v5951
      %v5953 = vrot.slane %v5917, 1
      %v5954 = vsel %vm455, %v5951, %v5953
      %v5955 = vrot.slane %v5918, 1
      %v5956 = vsel %vm455, %v5953, %v5955
      %v5957 = vrot.slane %v5919, 1
      %v5958 = vsel %vm455, %v5955, %v5957
      %v5959 = vrot.slane %v5920, 1
      %v5960 = vsel %vm455, %v5957, %v5959
      %v5961 = vrot.slane %v5921, 1
      %v5962 = vsel %vm455, %v5959, %v5961
      %v5964 = vsel %vm497, %v5924, 0
      %v5967 = vsel %vm497, %v5926, 0
      %v5970 = vsel %vm497, %v5928, 0
      %v5973 = vsel %vm497, %v5930, 0
      %v5976 = vsel %vm497, %v5932, 0
      %v5979 = vsel %vm497, %v5934, 0
      %v5982 = vsel %vm497, %v5936, 0
      %v5985 = vsel %vm497, %v5938, 0
      %v5988 = vsel %vm497, %v5940, 0
      %v5991 = vsel %vm497, %v5942, 0
      %v5994 = vsel %vm497, %v5944, 0
      %v5997 = vsel %vm497, %v5946, 0
      %v6000 = vsel %vm497, %v5948, 0
      %v6003 = vsel %vm497, %v5950, 0
      %v6006 = vsel %vm497, %v5952, 0
      %v6009 = vsel %vm497, %v5954, 0
      %v6012 = vsel %vm497, %v5956, 0
      %v6015 = vsel %vm497, %v5958, 0
      %v6018 = vsel %vm497, %v5960, 0
      %v6021 = vsel %vm497, %v5962, 0
      %v6024 = vsel %vm497, %v5961, 0
      %v6027 = vsel %vm561, %v5818, 0
      %6029 = vmatpush.bf16.msra.mxu0 0
      %6030 = vmatpush.bf16.msra.mxu0 0
      %6031 = vmatpush.bf16.msra.mxu0 0
      %6032 = vmatpush.bf16.msra.mxu0 0
      %6033 = vmatpush.bf16.msra.mxu0 0
      %6034 = vmatpush.bf16.msra.mxu0 0
      %6035 = vmatpush.bf16.msra.mxu0 0
      %6036 = vmatpush.bf16.msra.mxu0 %v6027
      %6037 = vmatmul.bf16.gmra.mxu0 %v5964
      %v6038 = vpop.f32.mrf.mxu0
      %v6039 = vadd.f32 0.0, %v6038
      %v6040 = vpop.f32.mrf.mxu0
      %v6041 = vadd.f32 0.0, %v6040
      %6042 = vmatmul.bf16.gmra.mxu0 %v5967
      %v6043 = vpop.f32.mrf.mxu0
      %v6044 = vadd.f32 0.0, %v6043
      %v6045 = vpop.f32.mrf.mxu0
      %v6046 = vadd.f32 0.0, %v6045
      %6047 = vmatmul.bf16.gmra.mxu0 %v5970
      %v6048 = vpop.f32.mrf.mxu0
      %v6049 = vadd.f32 0.0, %v6048
      %v6050 = vpop.f32.mrf.mxu0
      %v6051 = vadd.f32 0.0, %v6050
      %6052 = vmatmul.bf16.gmra.mxu0 %v5973
      %v6053 = vpop.f32.mrf.mxu0
      %v6054 = vadd.f32 0.0, %v6053
      %v6055 = vpop.f32.mrf.mxu0
      %v6056 = vadd.f32 0.0, %v6055
      %6057 = vmatmul.bf16.gmra.mxu0 %v5976
      %v6058 = vpop.f32.mrf.mxu0
      %v6059 = vadd.f32 0.0, %v6058
      %v6060 = vpop.f32.mrf.mxu0
      %v6061 = vadd.f32 0.0, %v6060
      %6062 = vmatmul.bf16.gmra.mxu0 %v5979
      %v6063 = vpop.f32.mrf.mxu0
      %v6064 = vadd.f32 0.0, %v6063
      %v6065 = vpop.f32.mrf.mxu0
      %v6066 = vadd.f32 0.0, %v6065
      %6067 = vmatmul.bf16.gmra.mxu0 %v5982
      %v6068 = vpop.f32.mrf.mxu0
      %v6069 = vadd.f32 0.0, %v6068
      %v6070 = vpop.f32.mrf.mxu0
      %v6071 = vadd.f32 0.0, %v6070
      %6072 = vmatmul.bf16.gmra.mxu0 %v5985
      %v6073 = vpop.f32.mrf.mxu0
      %v6074 = vadd.f32 0.0, %v6073
      %v6075 = vpop.f32.mrf.mxu0
      %v6076 = vadd.f32 0.0, %v6075
      %6077 = vmatmul.bf16.gmra.mxu0 %v5988
      %v6078 = vpop.f32.mrf.mxu0
      %v6079 = vadd.f32 0.0, %v6078
      %v6080 = vpop.f32.mrf.mxu0
      %v6081 = vadd.f32 0.0, %v6080
      %6082 = vmatmul.bf16.gmra.mxu0 %v5991
      %v6083 = vpop.f32.mrf.mxu0
      %v6084 = vadd.f32 0.0, %v6083
      %v6085 = vpop.f32.mrf.mxu0
      %v6086 = vadd.f32 0.0, %v6085
      %6087 = vmatmul.bf16.gmra.mxu0 %v5994
      %v6088 = vpop.f32.mrf.mxu0
      %v6089 = vadd.f32 0.0, %v6088
      %v6090 = vpop.f32.mrf.mxu0
      %v6091 = vadd.f32 0.0, %v6090
      %6092 = vmatmul.bf16.gmra.mxu0 %v5997
      %v6093 = vpop.f32.mrf.mxu0
      %v6094 = vadd.f32 0.0, %v6093
      %v6095 = vpop.f32.mrf.mxu0
      %v6096 = vadd.f32 0.0, %v6095
      %6097 = vmatmul.bf16.gmra.mxu0 %v6000
      %v6098 = vpop.f32.mrf.mxu0
      %v6099 = vadd.f32 0.0, %v6098
      %v6100 = vpop.f32.mrf.mxu0
      %v6101 = vadd.f32 0.0, %v6100
      %6102 = vmatmul.bf16.gmra.mxu0 %v6003
      %v6103 = vpop.f32.mrf.mxu0
      %v6104 = vadd.f32 0.0, %v6103
      %v6105 = vpop.f32.mrf.mxu0
      %v6106 = vadd.f32 0.0, %v6105
      %6107 = vmatmul.bf16.gmra.mxu0 %v6006
      %v6108 = vpop.f32.mrf.mxu0
      %v6109 = vadd.f32 0.0, %v6108
      %v6110 = vpop.f32.mrf.mxu0
      %v6111 = vadd.f32 0.0, %v6110
      %6112 = vmatmul.bf16.gmra.mxu0 %v6009
      %v6113 = vpop.f32.mrf.mxu0
      %v6114 = vadd.f32 0.0, %v6113
      %v6115 = vpop.f32.mrf.mxu0
      %v6116 = vadd.f32 0.0, %v6115
      %6117 = vmatmul.bf16.gmra.mxu0 %v6012
      %v6118 = vpop.f32.mrf.mxu0
      %v6119 = vadd.f32 0.0, %v6118
      %v6120 = vpop.f32.mrf.mxu0
      %v6121 = vadd.f32 0.0, %v6120
      %6122 = vmatmul.bf16.gmra.mxu0 %v6015
      %v6123 = vpop.f32.mrf.mxu0
      %v6124 = vadd.f32 0.0, %v6123
      %v6125 = vpop.f32.mrf.mxu0
      %v6126 = vadd.f32 0.0, %v6125
      %6127 = vmatmul.bf16.gmra.mxu0 %v6018
      %v6128 = vpop.f32.mrf.mxu0
      %v6129 = vadd.f32 0.0, %v6128
      %v6130 = vpop.f32.mrf.mxu0
      %v6131 = vadd.f32 0.0, %v6130
      %6132 = vmatmul.bf16.gmra.mxu0 %v6021
      %v6133 = vpop.f32.mrf.mxu0
      %v6134 = vadd.f32 0.0, %v6133
      %v6135 = vpop.f32.mrf.mxu0
      %v6136 = vadd.f32 0.0, %v6135
      %6137 = vmatmul.bf16.gmra.mxu0 %v6024
      %v6138 = vpop.f32.mrf.mxu0
      %v6139 = vadd.f32 0.0, %v6138
      %v6140 = vpop.f32.mrf.mxu0
      %6141 = vdwg.mxu0
      %v6142 = vadd.f32 %v5735, %v6039
      %v6143 = vadd.f32 %v5736, %v6041
      %v6144 = vadd.f32 %v5737, %v6044
      %v6145 = vadd.f32 %v5738, %v6046
      %v6146 = vadd.f32 %v5739, %v6049
      %v6147 = vadd.f32 %v5740, %v6051
      %v6148 = vadd.f32 %v5741, %v6054
      %v6149 = vadd.f32 %v5742, %v6056
      %v6150 = vadd.f32 %v5743, %v6059
      %v6151 = vadd.f32 %v5744, %v6061
      %v6152 = vadd.f32 %v5745, %v6064
      %v6153 = vadd.f32 %v5746, %v6066
      %v6154 = vadd.f32 %v5747, %v6069
      %v6155 = vadd.f32 %v5748, %v6071
      %v6156 = vadd.f32 %v5749, %v6074
      %v6157 = vadd.f32 %v5750, %v6076
      %v6158 = vadd.f32 %v5751, %v6079
      %v6159 = vadd.f32 %v5752, %v6081
      %v6160 = vadd.f32 %v5753, %v6084
      %v6161 = vadd.f32 %v5754, %v6086
      %v6162 = vadd.f32 %v5755, %v6089
      %v6163 = vadd.f32 %v5756, %v6091
      %v6164 = vadd.f32 %v5757, %v6094
      %v6165 = vadd.f32 %v5758, %v6096
      %v6166 = vadd.f32 %v5759, %v6099
      %v6167 = vadd.f32 %v5760, %v6101
      %v6168 = vadd.f32 %v5761, %v6104
      %v6169 = vadd.f32 %v5762, %v6106
      %v6170 = vadd.f32 %v5763, %v6109
      %v6171 = vadd.f32 %v5764, %v6111
      %v6172 = vadd.f32 %v5765, %v6114
      %v6173 = vadd.f32 %v5766, %v6116
      %v6174 = vadd.f32 %v5767, %v6119
      %v6175 = vadd.f32 %v5768, %v6121
      %v6176 = vadd.f32 %v5769, %v6124
      %v6177 = vadd.f32 %v5770, %v6126
      %v6178 = vadd.f32 %v5771, %v6129
      %v6179 = vadd.f32 %v5772, %v6131
      %v6180 = vadd.f32 %v5773, %v6134
      %v6181 = vadd.f32 %v5774, %v6136
      %v6182 = vadd.f32 %v5775, %v6139
      %v6183 = vld [vmem:[#allocation2 + $0xa8] sm:$0xf]
      %s6184 = scalar_lea.vmem %s5, 16
      %v6185 = vld [vmem:[%s6184] sm:$0xf]
      %v6187 = vunpack.c.l.b16 %v6183
      %v6188 = vpack.c.b16 %v6187, %v6187
      %v6190 = vshrl.u32 %v5901, 16
      %v6192 = vrot.slane %v6190, 1
      %v6193 = vshll.u32 %v5901, 16
      %v6195 = vrot.slane %v6193, 2
      %v6196 = vor.u32 %v6192, %v6195
      %v6198 = vshrl.u32 %v5902, 16
      %v6200 = vrot.slane %v6198, 1
      %v6201 = vshll.u32 %v5902, 16
      %v6203 = vrot.slane %v6201, 2
      %v6204 = vor.u32 %v6200, %v6203
      %v6205 = vsel %vm1034, %v6196, %v6204
      %v6207 = vshrl.u32 %v5903, 16
      %v6209 = vrot.slane %v6207, 1
      %v6210 = vshll.u32 %v5903, 16
      %v6212 = vrot.slane %v6210, 2
      %v6213 = vor.u32 %v6209, %v6212
      %v6214 = vsel %vm1034, %v6204, %v6213
      %v6216 = vshrl.u32 %v5904, 16
      %v6218 = vrot.slane %v6216, 1
      %v6219 = vshll.u32 %v5904, 16
      %v6221 = vrot.slane %v6219, 2
      %v6222 = vor.u32 %v6218, %v6221
      %v6223 = vsel %vm1034, %v6213, %v6222
      %v6225 = vshrl.u32 %v5905, 16
      %v6227 = vrot.slane %v6225, 1
      %v6228 = vshll.u32 %v5905, 16
      %v6230 = vrot.slane %v6228, 2
      %v6231 = vor.u32 %v6227, %v6230
      %v6232 = vsel %vm1034, %v6222, %v6231
      %v6234 = vshrl.u32 %v5906, 16
      %v6236 = vrot.slane %v6234, 1
      %v6237 = vshll.u32 %v5906, 16
      %v6239 = vrot.slane %v6237, 2
      %v6240 = vor.u32 %v6236, %v6239
      %v6241 = vsel %vm1034, %v6231, %v6240
      %v6243 = vshrl.u32 %v5907, 16
      %v6245 = vrot.slane %v6243, 1
      %v6246 = vshll.u32 %v5907, 16
      %v6248 = vrot.slane %v6246, 2
      %v6249 = vor.u32 %v6245, %v6248
      %v6250 = vsel %vm1034, %v6240, %v6249
      %v6252 = vshrl.u32 %v5908, 16
      %v6254 = vrot.slane %v6252, 1
      %v6255 = vshll.u32 %v5908, 16
      %v6257 = vrot.slane %v6255, 2
      %v6258 = vor.u32 %v6254, %v6257
      %v6259 = vsel %vm1034, %v6249, %v6258
      %v6261 = vshrl.u32 %v5909, 16
      %v6263 = vrot.slane %v6261, 1
      %v6264 = vshll.u32 %v5909, 16
      %v6266 = vrot.slane %v6264, 2
      %v6267 = vor.u32 %v6263, %v6266
      %v6268 = vsel %vm1034, %v6258, %v6267
      %v6270 = vshrl.u32 %v5910, 16
      %v6272 = vrot.slane %v6270, 1
      %v6273 = vshll.u32 %v5910, 16
      %v6275 = vrot.slane %v6273, 2
      %v6276 = vor.u32 %v6272, %v6275
      %v6277 = vsel %vm1034, %v6267, %v6276
      %v6279 = vshrl.u32 %v5911, 16
      %v6281 = vrot.slane %v6279, 1
      %v6282 = vshll.u32 %v5911, 16
      %v6284 = vrot.slane %v6282, 2
      %v6285 = vor.u32 %v6281, %v6284
      %v6286 = vsel %vm1034, %v6276, %v6285
      %v6288 = vshrl.u32 %v5912, 16
      %v6290 = vrot.slane %v6288, 1
      %v6291 = vshll.u32 %v5912, 16
      %v6293 = vrot.slane %v6291, 2
      %v6294 = vor.u32 %v6290, %v6293
      %v6295 = vsel %vm1034, %v6285, %v6294
      %v6297 = vshrl.u32 %v5913, 16
      %v6299 = vrot.slane %v6297, 1
      %v6300 = vshll.u32 %v5913, 16
      %v6302 = vrot.slane %v6300, 2
      %v6303 = vor.u32 %v6299, %v6302
      %v6304 = vsel %vm1034, %v6294, %v6303
      %v6306 = vshrl.u32 %v5914, 16
      %v6308 = vrot.slane %v6306, 1
      %v6309 = vshll.u32 %v5914, 16
      %v6311 = vrot.slane %v6309, 2
      %v6312 = vor.u32 %v6308, %v6311
      %v6313 = vsel %vm1034, %v6303, %v6312
      %v6315 = vshrl.u32 %v5915, 16
      %v6317 = vrot.slane %v6315, 1
      %v6318 = vshll.u32 %v5915, 16
      %v6320 = vrot.slane %v6318, 2
      %v6321 = vor.u32 %v6317, %v6320
      %v6322 = vsel %vm1034, %v6312, %v6321
      %v6324 = vshrl.u32 %v5916, 16
      %v6326 = vrot.slane %v6324, 1
      %v6327 = vshll.u32 %v5916, 16
      %v6329 = vrot.slane %v6327, 2
      %v6330 = vor.u32 %v6326, %v6329
      %v6331 = vsel %vm1034, %v6321, %v6330
      %v6333 = vshrl.u32 %v5917, 16
      %v6335 = vrot.slane %v6333, 1
      %v6336 = vshll.u32 %v5917, 16
      %v6338 = vrot.slane %v6336, 2
      %v6339 = vor.u32 %v6335, %v6338
      %v6340 = vsel %vm1034, %v6330, %v6339
      %v6342 = vshrl.u32 %v5918, 16
      %v6344 = vrot.slane %v6342, 1
      %v6345 = vshll.u32 %v5918, 16
      %v6347 = vrot.slane %v6345, 2
      %v6348 = vor.u32 %v6344, %v6347
      %v6349 = vsel %vm1034, %v6339, %v6348
      %v6351 = vshrl.u32 %v5919, 16
      %v6353 = vrot.slane %v6351, 1
      %v6354 = vshll.u32 %v5919, 16
      %v6356 = vrot.slane %v6354, 2
      %v6357 = vor.u32 %v6353, %v6356
      %v6358 = vsel %vm1034, %v6348, %v6357
      %v6360 = vshrl.u32 %v5920, 16
      %v6362 = vrot.slane %v6360, 1
      %v6363 = vshll.u32 %v5920, 16
      %v6365 = vrot.slane %v6363, 2
      %v6366 = vor.u32 %v6362, %v6365
      %v6367 = vsel %vm1034, %v6357, %v6366
      %v6369 = vshrl.u32 %v6188, 16
      %v6371 = vrot.slane %v6369, 1
      %v6372 = vshll.u32 %v6188, 16
      %v6374 = vrot.slane %v6372, 2
      %v6375 = vor.u32 %v6371, %v6374
      %v6376 = vsel %vm1034, %v6366, %v6375
      %v6378 = vsel %vm497, %v6205, 0
      %v6381 = vsel %vm497, %v6214, 0
      %v6384 = vsel %vm497, %v6223, 0
      %v6387 = vsel %vm497, %v6232, 0
      %v6390 = vsel %vm497, %v6241, 0
      %v6393 = vsel %vm497, %v6250, 0
      %v6396 = vsel %vm497, %v6259, 0
      %v6399 = vsel %vm497, %v6268, 0
      %v6402 = vsel %vm497, %v6277, 0
      %v6405 = vsel %vm497, %v6286, 0
      %v6408 = vsel %vm497, %v6295, 0
      %v6411 = vsel %vm497, %v6304, 0
      %v6414 = vsel %vm497, %v6313, 0
      %v6417 = vsel %vm497, %v6322, 0
      %v6420 = vsel %vm497, %v6331, 0
      %v6423 = vsel %vm497, %v6340, 0
      %v6426 = vsel %vm497, %v6349, 0
      %v6429 = vsel %vm497, %v6358, 0
      %v6432 = vsel %vm497, %v6367, 0
      %v6435 = vsel %vm497, %v6376, 0
      %v6438 = vsel %vm497, %v6375, 0
      %v6441 = vsel %vm561, %v6185, 0
      %6443 = vmatpush.bf16.msra.mxu0 0
      %6444 = vmatpush.bf16.msra.mxu0 0
      %6445 = vmatpush.bf16.msra.mxu0 0
      %6446 = vmatpush.bf16.msra.mxu0 0
      %6447 = vmatpush.bf16.msra.mxu0 0
      %6448 = vmatpush.bf16.msra.mxu0 0
      %6449 = vmatpush.bf16.msra.mxu0 0
      %6450 = vmatpush.bf16.msra.mxu0 %v6441
      %6451 = vmatmul.bf16.gmra.mxu0 %v6378
      %v6452 = vpop.f32.mrf.mxu0
      %v6453 = vadd.f32 0.0, %v6452
      %v6454 = vpop.f32.mrf.mxu0
      %v6455 = vadd.f32 0.0, %v6454
      %6456 = vmatmul.bf16.gmra.mxu0 %v6381
      %v6457 = vpop.f32.mrf.mxu0
      %v6458 = vadd.f32 0.0, %v6457
      %v6459 = vpop.f32.mrf.mxu0
      %v6460 = vadd.f32 0.0, %v6459
      %6461 = vmatmul.bf16.gmra.mxu0 %v6384
      %v6462 = vpop.f32.mrf.mxu0
      %v6463 = vadd.f32 0.0, %v6462
      %v6464 = vpop.f32.mrf.mxu0
      %v6465 = vadd.f32 0.0, %v6464
      %6466 = vmatmul.bf16.gmra.mxu0 %v6387
      %v6467 = vpop.f32.mrf.mxu0
      %v6468 = vadd.f32 0.0, %v6467
      %v6469 = vpop.f32.mrf.mxu0
      %v6470 = vadd.f32 0.0, %v6469
      %6471 = vmatmul.bf16.gmra.mxu0 %v6390
      %v6472 = vpop.f32.mrf.mxu0
      %v6473 = vadd.f32 0.0, %v6472
      %v6474 = vpop.f32.mrf.mxu0
      %v6475 = vadd.f32 0.0, %v6474
      %6476 = vmatmul.bf16.gmra.mxu0 %v6393
      %v6477 = vpop.f32.mrf.mxu0
      %v6478 = vadd.f32 0.0, %v6477
      %v6479 = vpop.f32.mrf.mxu0
      %v6480 = vadd.f32 0.0, %v6479
      %6481 = vmatmul.bf16.gmra.mxu0 %v6396
      %v6482 = vpop.f32.mrf.mxu0
      %v6483 = vadd.f32 0.0, %v6482
      %v6484 = vpop.f32.mrf.mxu0
      %v6485 = vadd.f32 0.0, %v6484
      %6486 = vmatmul.bf16.gmra.mxu0 %v6399
      %v6487 = vpop.f32.mrf.mxu0
      %v6488 = vadd.f32 0.0, %v6487
      %v6489 = vpop.f32.mrf.mxu0
      %v6490 = vadd.f32 0.0, %v6489
      %6491 = vmatmul.bf16.gmra.mxu0 %v6402
      %v6492 = vpop.f32.mrf.mxu0
      %v6493 = vadd.f32 0.0, %v6492
      %v6494 = vpop.f32.mrf.mxu0
      %v6495 = vadd.f32 0.0, %v6494
      %6496 = vmatmul.bf16.gmra.mxu0 %v6405
      %v6497 = vpop.f32.mrf.mxu0
      %v6498 = vadd.f32 0.0, %v6497
      %v6499 = vpop.f32.mrf.mxu0
      %v6500 = vadd.f32 0.0, %v6499
      %6501 = vmatmul.bf16.gmra.mxu0 %v6408
      %v6502 = vpop.f32.mrf.mxu0
      %v6503 = vadd.f32 0.0, %v6502
      %v6504 = vpop.f32.mrf.mxu0
      %v6505 = vadd.f32 0.0, %v6504
      %6506 = vmatmul.bf16.gmra.mxu0 %v6411
      %v6507 = vpop.f32.mrf.mxu0
      %v6508 = vadd.f32 0.0, %v6507
      %v6509 = vpop.f32.mrf.mxu0
      %v6510 = vadd.f32 0.0, %v6509
      %6511 = vmatmul.bf16.gmra.mxu0 %v6414
      %v6512 = vpop.f32.mrf.mxu0
      %v6513 = vadd.f32 0.0, %v6512
      %v6514 = vpop.f32.mrf.mxu0
      %v6515 = vadd.f32 0.0, %v6514
      %6516 = vmatmul.bf16.gmra.mxu0 %v6417
      %v6517 = vpop.f32.mrf.mxu0
      %v6518 = vadd.f32 0.0, %v6517
      %v6519 = vpop.f32.mrf.mxu0
      %v6520 = vadd.f32 0.0, %v6519
      %6521 = vmatmul.bf16.gmra.mxu0 %v6420
      %v6522 = vpop.f32.mrf.mxu0
      %v6523 = vadd.f32 0.0, %v6522
      %v6524 = vpop.f32.mrf.mxu0
      %v6525 = vadd.f32 0.0, %v6524
      %6526 = vmatmul.bf16.gmra.mxu0 %v6423
      %v6527 = vpop.f32.mrf.mxu0
      %v6528 = vadd.f32 0.0, %v6527
      %v6529 = vpop.f32.mrf.mxu0
      %v6530 = vadd.f32 0.0, %v6529
      %6531 = vmatmul.bf16.gmra.mxu0 %v6426
      %v6532 = vpop.f32.mrf.mxu0
      %v6533 = vadd.f32 0.0, %v6532
      %v6534 = vpop.f32.mrf.mxu0
      %v6535 = vadd.f32 0.0, %v6534
      %6536 = vmatmul.bf16.gmra.mxu0 %v6429
      %v6537 = vpop.f32.mrf.mxu0
      %v6538 = vadd.f32 0.0, %v6537
      %v6539 = vpop.f32.mrf.mxu0
      %v6540 = vadd.f32 0.0, %v6539
      %6541 = vmatmul.bf16.gmra.mxu0 %v6432
      %v6542 = vpop.f32.mrf.mxu0
      %v6543 = vadd.f32 0.0, %v6542
      %v6544 = vpop.f32.mrf.mxu0
      %v6545 = vadd.f32 0.0, %v6544
      %6546 = vmatmul.bf16.gmra.mxu0 %v6435
      %v6547 = vpop.f32.mrf.mxu0
      %v6548 = vadd.f32 0.0, %v6547
      %v6549 = vpop.f32.mrf.mxu0
      %v6550 = vadd.f32 0.0, %v6549
      %6551 = vmatmul.bf16.gmra.mxu0 %v6438
      %v6552 = vpop.f32.mrf.mxu0
      %v6553 = vadd.f32 0.0, %v6552
      %v6554 = vpop.f32.mrf.mxu0
      %6555 = vdwg.mxu0
      %v6556 = vadd.f32 %v6142, %v6453
      %v6557 = vadd.f32 %v6143, %v6455
      %v6558 = vadd.f32 %v6144, %v6458
      %v6559 = vadd.f32 %v6145, %v6460
      %v6560 = vadd.f32 %v6146, %v6463
      %v6561 = vadd.f32 %v6147, %v6465
      %v6562 = vadd.f32 %v6148, %v6468
      %v6563 = vadd.f32 %v6149, %v6470
      %v6564 = vadd.f32 %v6150, %v6473
      %v6565 = vadd.f32 %v6151, %v6475
      %v6566 = vadd.f32 %v6152, %v6478
      %v6567 = vadd.f32 %v6153, %v6480
      %v6568 = vadd.f32 %v6154, %v6483
      %v6569 = vadd.f32 %v6155, %v6485
      %v6570 = vadd.f32 %v6156, %v6488
      %v6571 = vadd.f32 %v6157, %v6490
      %v6572 = vadd.f32 %v6158, %v6493
      %v6573 = vadd.f32 %v6159, %v6495
      %v6574 = vadd.f32 %v6160, %v6498
      %v6575 = vadd.f32 %v6161, %v6500
      %v6576 = vadd.f32 %v6162, %v6503
      %v6577 = vadd.f32 %v6163, %v6505
      %v6578 = vadd.f32 %v6164, %v6508
      %v6579 = vadd.f32 %v6165, %v6510
      %v6580 = vadd.f32 %v6166, %v6513
      %v6581 = vadd.f32 %v6167, %v6515
      %v6582 = vadd.f32 %v6168, %v6518
      %v6583 = vadd.f32 %v6169, %v6520
      %v6584 = vadd.f32 %v6170, %v6523
      %v6585 = vadd.f32 %v6171, %v6525
      %v6586 = vadd.f32 %v6172, %v6528
      %v6587 = vadd.f32 %v6173, %v6530
      %v6588 = vadd.f32 %v6174, %v6533
      %v6589 = vadd.f32 %v6175, %v6535
      %v6590 = vadd.f32 %v6176, %v6538
      %v6591 = vadd.f32 %v6177, %v6540
      %v6592 = vadd.f32 %v6178, %v6543
      %v6593 = vadd.f32 %v6179, %v6545
      %v6594 = vadd.f32 %v6180, %v6548
      %v6595 = vadd.f32 %v6181, %v6550
      %v6596 = vadd.f32 %v6182, %v6553
      %v6597 = vld [vmem:[#allocation2 + $0x8] sm:$0xc]
      %s6598 = scalar_lea.vmem %s5, 20
      %v6599 = vld [vmem:[%s6598] sm:$0xf]
      %v6601 = vunpack.c.l.b16 %v6597
      %v6602 = vpack.c.b16 %v5861, %v6601
      %v6603 = vrot.slane %v6602, 2
      %v6604 = vrot.slane %v5902, 2
      %v6605 = vsel %vm1908, %v6603, %v6604
      %v6606 = vrot.slane %v5903, 2
      %v6607 = vsel %vm1908, %v6604, %v6606
      %v6608 = vrot.slane %v5904, 2
      %v6609 = vsel %vm1908, %v6606, %v6608
      %v6610 = vrot.slane %v5905, 2
      %v6611 = vsel %vm1908, %v6608, %v6610
      %v6612 = vrot.slane %v5906, 2
      %v6613 = vsel %vm1908, %v6610, %v6612
      %v6614 = vrot.slane %v5907, 2
      %v6615 = vsel %vm1908, %v6612, %v6614
      %v6616 = vrot.slane %v5908, 2
      %v6617 = vsel %vm1908, %v6614, %v6616
      %v6618 = vrot.slane %v5909, 2
      %v6619 = vsel %vm1908, %v6616, %v6618
      %v6620 = vrot.slane %v5910, 2
      %v6621 = vsel %vm1908, %v6618, %v6620
      %v6622 = vrot.slane %v5911, 2
      %v6623 = vsel %vm1908, %v6620, %v6622
      %v6624 = vrot.slane %v5912, 2
      %v6625 = vsel %vm1908, %v6622, %v6624
      %v6626 = vrot.slane %v5913, 2
      %v6627 = vsel %vm1908, %v6624, %v6626
      %v6628 = vrot.slane %v5914, 2
      %v6629 = vsel %vm1908, %v6626, %v6628
      %v6630 = vrot.slane %v5915, 2
      %v6631 = vsel %vm1908, %v6628, %v6630
      %v6632 = vrot.slane %v5916, 2
      %v6633 = vsel %vm1908, %v6630, %v6632
      %v6634 = vrot.slane %v5917, 2
      %v6635 = vsel %vm1908, %v6632, %v6634
      %v6636 = vrot.slane %v5918, 2
      %v6637 = vsel %vm1908, %v6634, %v6636
      %v6638 = vrot.slane %v5919, 2
      %v6639 = vsel %vm1908, %v6636, %v6638
      %v6640 = vrot.slane %v5920, 2
      %v6641 = vsel %vm1908, %v6638, %v6640
      %v6642 = vrot.slane %v6188, 2
      %v6643 = vsel %vm1908, %v6640, %v6642
      %v6645 = vsel %vm497, %v6605, 0
      %v6648 = vsel %vm497, %v6607, 0
      %v6651 = vsel %vm497, %v6609, 0
      %v6654 = vsel %vm497, %v6611, 0
      %v6657 = vsel %vm497, %v6613, 0
      %v6660 = vsel %vm497, %v6615, 0
      %v6663 = vsel %vm497, %v6617, 0
      %v6666 = vsel %vm497, %v6619, 0
      %v6669 = vsel %vm497, %v6621, 0
      %v6672 = vsel %vm497, %v6623, 0
      %v6675 = vsel %vm497, %v6625, 0
      %v6678 = vsel %vm497, %v6627, 0
      %v6681 = vsel %vm497, %v6629, 0
      %v6684 = vsel %vm497, %v6631, 0
      %v6687 = vsel %vm497, %v6633, 0
      %v6690 = vsel %vm497, %v6635, 0
      %v6693 = vsel %vm497, %v6637, 0
      %v6696 = vsel %vm497, %v6639, 0
      %v6699 = vsel %vm497, %v6641, 0
      %v6702 = vsel %vm497, %v6643, 0
      %v6705 = vsel %vm497, %v6642, 0
      %v6708 = vsel %vm561, %v6599, 0
      %6710 = vmatpush.bf16.msra.mxu0 0
      %6711 = vmatpush.bf16.msra.mxu0 0
      %6712 = vmatpush.bf16.msra.mxu0 0
      %6713 = vmatpush.bf16.msra.mxu0 0
      %6714 = vmatpush.bf16.msra.mxu0 0
      %6715 = vmatpush.bf16.msra.mxu0 0
      %6716 = vmatpush.bf16.msra.mxu0 0
      %6717 = vmatpush.bf16.msra.mxu0 %v6708
      %6718 = vmatmul.bf16.gmra.mxu0 %v6645
      %v6719 = vpop.f32.mrf.mxu0
      %v6720 = vadd.f32 0.0, %v6719
      %v6721 = vpop.f32.mrf.mxu0
      %v6722 = vadd.f32 0.0, %v6721
      %6723 = vmatmul.bf16.gmra.mxu0 %v6648
      %v6724 = vpop.f32.mrf.mxu0
      %v6725 = vadd.f32 0.0, %v6724
      %v6726 = vpop.f32.mrf.mxu0
      %v6727 = vadd.f32 0.0, %v6726
      %6728 = vmatmul.bf16.gmra.mxu0 %v6651
      %v6729 = vpop.f32.mrf.mxu0
      %v6730 = vadd.f32 0.0, %v6729
      %v6731 = vpop.f32.mrf.mxu0
      %v6732 = vadd.f32 0.0, %v6731
      %6733 = vmatmul.bf16.gmra.mxu0 %v6654
      %v6734 = vpop.f32.mrf.mxu0
      %v6735 = vadd.f32 0.0, %v6734
      %v6736 = vpop.f32.mrf.mxu0
      %v6737 = vadd.f32 0.0, %v6736
      %6738 = vmatmul.bf16.gmra.mxu0 %v6657
      %v6739 = vpop.f32.mrf.mxu0
      %v6740 = vadd.f32 0.0, %v6739
      %v6741 = vpop.f32.mrf.mxu0
      %v6742 = vadd.f32 0.0, %v6741
      %6743 = vmatmul.bf16.gmra.mxu0 %v6660
      %v6744 = vpop.f32.mrf.mxu0
      %v6745 = vadd.f32 0.0, %v6744
      %v6746 = vpop.f32.mrf.mxu0
      %v6747 = vadd.f32 0.0, %v6746
      %6748 = vmatmul.bf16.gmra.mxu0 %v6663
      %v6749 = vpop.f32.mrf.mxu0
      %v6750 = vadd.f32 0.0, %v6749
      %v6751 = vpop.f32.mrf.mxu0
      %v6752 = vadd.f32 0.0, %v6751
      %6753 = vmatmul.bf16.gmra.mxu0 %v6666
      %v6754 = vpop.f32.mrf.mxu0
      %v6755 = vadd.f32 0.0, %v6754
      %v6756 = vpop.f32.mrf.mxu0
      %v6757 = vadd.f32 0.0, %v6756
      %6758 = vmatmul.bf16.gmra.mxu0 %v6669
      %v6759 = vpop.f32.mrf.mxu0
      %v6760 = vadd.f32 0.0, %v6759
      %v6761 = vpop.f32.mrf.mxu0
      %v6762 = vadd.f32 0.0, %v6761
      %6763 = vmatmul.bf16.gmra.mxu0 %v6672
      %v6764 = vpop.f32.mrf.mxu0
      %v6765 = vadd.f32 0.0, %v6764
      %v6766 = vpop.f32.mrf.mxu0
      %v6767 = vadd.f32 0.0, %v6766
      %6768 = vmatmul.bf16.gmra.mxu0 %v6675
      %v6769 = vpop.f32.mrf.mxu0
      %v6770 = vadd.f32 0.0, %v6769
      %v6771 = vpop.f32.mrf.mxu0
      %v6772 = vadd.f32 0.0, %v6771
      %6773 = vmatmul.bf16.gmra.mxu0 %v6678
      %v6774 = vpop.f32.mrf.mxu0
      %v6775 = vadd.f32 0.0, %v6774
      %v6776 = vpop.f32.mrf.mxu0
      %v6777 = vadd.f32 0.0, %v6776
      %6778 = vmatmul.bf16.gmra.mxu0 %v6681
      %v6779 = vpop.f32.mrf.mxu0
      %v6780 = vadd.f32 0.0, %v6779
      %v6781 = vpop.f32.mrf.mxu0
      %v6782 = vadd.f32 0.0, %v6781
      %6783 = vmatmul.bf16.gmra.mxu0 %v6684
      %v6784 = vpop.f32.mrf.mxu0
      %v6785 = vadd.f32 0.0, %v6784
      %v6786 = vpop.f32.mrf.mxu0
      %v6787 = vadd.f32 0.0, %v6786
      %6788 = vmatmul.bf16.gmra.mxu0 %v6687
      %v6789 = vpop.f32.mrf.mxu0
      %v6790 = vadd.f32 0.0, %v6789
      %v6791 = vpop.f32.mrf.mxu0
      %v6792 = vadd.f32 0.0, %v6791
      %6793 = vmatmul.bf16.gmra.mxu0 %v6690
      %v6794 = vpop.f32.mrf.mxu0
      %v6795 = vadd.f32 0.0, %v6794
      %v6796 = vpop.f32.mrf.mxu0
      %v6797 = vadd.f32 0.0, %v6796
      %6798 = vmatmul.bf16.gmra.mxu0 %v6693
      %v6799 = vpop.f32.mrf.mxu0
      %v6800 = vadd.f32 0.0, %v6799
      %v6801 = vpop.f32.mrf.mxu0
      %v6802 = vadd.f32 0.0, %v6801
      %6803 = vmatmul.bf16.gmra.mxu0 %v6696
      %v6804 = vpop.f32.mrf.mxu0
      %v6805 = vadd.f32 0.0, %v6804
      %v6806 = vpop.f32.mrf.mxu0
      %v6807 = vadd.f32 0.0, %v6806
      %6808 = vmatmul.bf16.gmra.mxu0 %v6699
      %v6809 = vpop.f32.mrf.mxu0
      %v6810 = vadd.f32 0.0, %v6809
      %v6811 = vpop.f32.mrf.mxu0
      %v6812 = vadd.f32 0.0, %v6811
      %6813 = vmatmul.bf16.gmra.mxu0 %v6702
      %v6814 = vpop.f32.mrf.mxu0
      %v6815 = vadd.f32 0.0, %v6814
      %v6816 = vpop.f32.mrf.mxu0
      %v6817 = vadd.f32 0.0, %v6816
      %6818 = vmatmul.bf16.gmra.mxu0 %v6705
      %v6819 = vpop.f32.mrf.mxu0
      %v6820 = vadd.f32 0.0, %v6819
      %v6821 = vpop.f32.mrf.mxu0
      %6822 = vdwg.mxu0
      %v6823 = vadd.f32 %v6556, %v6720
      %v6824 = vadd.f32 %v6557, %v6722
      %v6825 = vadd.f32 %v6558, %v6725
      %v6826 = vadd.f32 %v6559, %v6727
      %v6827 = vadd.f32 %v6560, %v6730
      %v6828 = vadd.f32 %v6561, %v6732
      %v6829 = vadd.f32 %v6562, %v6735
      %v6830 = vadd.f32 %v6563, %v6737
      %v6831 = vadd.f32 %v6564, %v6740
      %v6832 = vadd.f32 %v6565, %v6742
      %v6833 = vadd.f32 %v6566, %v6745
      %v6834 = vadd.f32 %v6567, %v6747
      %v6835 = vadd.f32 %v6568, %v6750
      %v6836 = vadd.f32 %v6569, %v6752
      %v6837 = vadd.f32 %v6570, %v6755
      %v6838 = vadd.f32 %v6571, %v6757
      %v6839 = vadd.f32 %v6572, %v6760
      %v6840 = vadd.f32 %v6573, %v6762
      %v6841 = vadd.f32 %v6574, %v6765
      %v6842 = vadd.f32 %v6575, %v6767
      %v6843 = vadd.f32 %v6576, %v6770
      %v6844 = vadd.f32 %v6577, %v6772
      %v6845 = vadd.f32 %v6578, %v6775
      %v6846 = vadd.f32 %v6579, %v6777
      %v6847 = vadd.f32 %v6580, %v6780
      %v6848 = vadd.f32 %v6581, %v6782
      %v6849 = vadd.f32 %v6582, %v6785
      %v6850 = vadd.f32 %v6583, %v6787
      %v6851 = vadd.f32 %v6584, %v6790
      %v6852 = vadd.f32 %v6585, %v6792
      %v6853 = vadd.f32 %v6586, %v6795
      %v6854 = vadd.f32 %v6587, %v6797
      %v6855 = vadd.f32 %v6588, %v6800
      %v6856 = vadd.f32 %v6589, %v6802
      %v6857 = vadd.f32 %v6590, %v6805
      %v6858 = vadd.f32 %v6591, %v6807
      %v6859 = vadd.f32 %v6592, %v6810
      %v6860 = vadd.f32 %v6593, %v6812
      %v6861 = vadd.f32 %v6594, %v6815
      %v6862 = vadd.f32 %v6595, %v6817
      %v6863 = vadd.f32 %v6596, %v6820
      %v6864 = vld [vmem:[#allocation2 + $0x10] sm:$0xc]
      %v6865 = vld [vmem:[#allocation2 + $0x14] sm:$0xf]
      %v6866 = vld [vmem:[#allocation2 + $0x18] sm:$0xf]
      %v6867 = vld [vmem:[#allocation2 + $0x1c] sm:$0xf]
      %v6868 = vld [vmem:[#allocation2 + $0x20] sm:$0xf]
      %v6869 = vld [vmem:[#allocation2 + $0x24] sm:$0xf]
      %v6870 = vld [vmem:[#allocation2 + $0x28] sm:$0xf]
      %v6871 = vld [vmem:[#allocation2 + $0x2c] sm:$0xf]
      %v6872 = vld [vmem:[#allocation2 + $0x30] sm:$0xf]
      %v6873 = vld [vmem:[#allocation2 + $0x34] sm:$0xf]
      %v6874 = vld [vmem:[#allocation2 + $0x38] sm:$0xf]
      %v6875 = vld [vmem:[#allocation2 + $0x3c] sm:$0xf]
      %v6876 = vld [vmem:[#allocation2 + $0x40] sm:$0xf]
      %v6877 = vld [vmem:[#allocation2 + $0x44] sm:$0xf]
      %v6878 = vld [vmem:[#allocation2 + $0x48] sm:$0xf]
      %v6879 = vld [vmem:[#allocation2 + $0x4c] sm:$0xf]
      %v6880 = vld [vmem:[#allocation2 + $0x50] sm:$0xf]
      %v6881 = vld [vmem:[#allocation2 + $0x54] sm:$0xf]
      %v6882 = vld [vmem:[#allocation2 + $0x58] sm:$0xf]
      %v6883 = vld [vmem:[#allocation2 + $0x5c] sm:$0xf]
      %v6884 = vld [vmem:[#allocation2 + $0x60] sm:$0xf]
      %v6885 = vld [vmem:[#allocation2 + $0x64] sm:$0xf]
      %v6886 = vld [vmem:[#allocation2 + $0x68] sm:$0xf]
      %v6887 = vld [vmem:[#allocation2 + $0x6c] sm:$0xf]
      %v6888 = vld [vmem:[#allocation2 + $0x70] sm:$0xf]
      %v6889 = vld [vmem:[#allocation2 + $0x74] sm:$0xf]
      %v6890 = vld [vmem:[#allocation2 + $0x78] sm:$0xf]
      %v6891 = vld [vmem:[#allocation2 + $0x7c] sm:$0xf]
      %v6892 = vld [vmem:[#allocation2 + $0x80] sm:$0xf]
      %v6893 = vld [vmem:[#allocation2 + $0x84] sm:$0xf]
      %v6894 = vld [vmem:[#allocation2 + $0x88] sm:$0xf]
      %v6895 = vld [vmem:[#allocation2 + $0x8c] sm:$0xf]
      %v6896 = vld [vmem:[#allocation2 + $0x90] sm:$0xf]
      %v6897 = vld [vmem:[#allocation2 + $0x94] sm:$0xf]
      %v6898 = vld [vmem:[#allocation2 + $0x98] sm:$0xf]
      %v6899 = vld [vmem:[#allocation2 + $0x9c] sm:$0xf]
      %v6900 = vld [vmem:[#allocation2 + $0xa0] sm:$0xf]
      %v6901 = vld [vmem:[#allocation2 + $0xa4] sm:$0xf]
      %v6902 = vld [vmem:[#allocation2 + $0xa8] sm:$0xf]
      %v6903 = vld [vmem:[#allocation2 + $0xac] sm:$0xf]
      %v6904 = vld [vmem:[#allocation2 + $0xb0] sm:$0xf]
      %s6905 = scalar_lea.vmem %s5, 24
      %v6906 = vld [vmem:[%s6905] sm:$0xf]
      %v6948 = vunpack.c.l.b16 %v6864
      %v6949 = vunpack.c.l.b16 %v6865
      %v6950 = vunpack.c.l.b16 %v6866
      %v6951 = vunpack.c.l.b16 %v6867
      %v6952 = vunpack.c.l.b16 %v6868
      %v6953 = vunpack.c.l.b16 %v6869
      %v6954 = vunpack.c.l.b16 %v6870
      %v6955 = vunpack.c.l.b16 %v6871
      %v6956 = vunpack.c.l.b16 %v6872
      %v6957 = vunpack.c.l.b16 %v6873
      %v6958 = vunpack.c.l.b16 %v6874
      %v6959 = vunpack.c.l.b16 %v6875
      %v6960 = vunpack.c.l.b16 %v6876
      %v6961 = vunpack.c.l.b16 %v6877
      %v6962 = vunpack.c.l.b16 %v6878
      %v6963 = vunpack.c.l.b16 %v6879
      %v6964 = vunpack.c.l.b16 %v6880
      %v6965 = vunpack.c.l.b16 %v6881
      %v6966 = vunpack.c.l.b16 %v6882
      %v6967 = vunpack.c.l.b16 %v6883
      %v6968 = vunpack.c.l.b16 %v6884
      %v6969 = vunpack.c.l.b16 %v6885
      %v6970 = vunpack.c.l.b16 %v6886
      %v6971 = vunpack.c.l.b16 %v6887
      %v6972 = vunpack.c.l.b16 %v6888
      %v6973 = vunpack.c.l.b16 %v6889
      %v6974 = vunpack.c.l.b16 %v6890
      %v6975 = vunpack.c.l.b16 %v6891
      %v6976 = vunpack.c.l.b16 %v6892
      %v6977 = vunpack.c.l.b16 %v6893
      %v6978 = vunpack.c.l.b16 %v6894
      %v6979 = vunpack.c.l.b16 %v6895
      %v6980 = vunpack.c.l.b16 %v6896
      %v6981 = vunpack.c.l.b16 %v6897
      %v6982 = vunpack.c.l.b16 %v6898
      %v6983 = vunpack.c.l.b16 %v6899
      %v6984 = vunpack.c.l.b16 %v6900
      %v6985 = vunpack.c.l.b16 %v6901
      %v6986 = vunpack.c.l.b16 %v6902
      %v6987 = vunpack.c.l.b16 %v6903
      %v6988 = vunpack.c.l.b16 %v6904
      %v6989 = vpack.c.b16 %v6949, %v6948
      %v6990 = vpack.c.b16 %v6951, %v6950
      %v6991 = vpack.c.b16 %v6953, %v6952
      %v6992 = vpack.c.b16 %v6955, %v6954
      %v6993 = vpack.c.b16 %v6957, %v6956
      %v6994 = vpack.c.b16 %v6959, %v6958
      %v6995 = vpack.c.b16 %v6961, %v6960
      %v6996 = vpack.c.b16 %v6963, %v6962
      %v6997 = vpack.c.b16 %v6965, %v6964
      %v6998 = vpack.c.b16 %v6967, %v6966
      %v6999 = vpack.c.b16 %v6969, %v6968
      %v7000 = vpack.c.b16 %v6971, %v6970
      %v7001 = vpack.c.b16 %v6973, %v6972
      %v7002 = vpack.c.b16 %v6975, %v6974
      %v7003 = vpack.c.b16 %v6977, %v6976
      %v7004 = vpack.c.b16 %v6979, %v6978
      %v7005 = vpack.c.b16 %v6981, %v6980
      %v7006 = vpack.c.b16 %v6983, %v6982
      %v7007 = vpack.c.b16 %v6985, %v6984
      %v7008 = vpack.c.b16 %v6987, %v6986
      %v7009 = vpack.c.b16 %v6988, %v6988
      %v7010 = vrot.slane %v6989, 2
      %v7011 = vrot.slane %v6990, 2
      %v7012 = vsel %vm1908, %v7010, %v7011
      %v7013 = vrot.slane %v6991, 2
      %v7014 = vsel %vm1908, %v7011, %v7013
      %v7015 = vrot.slane %v6992, 2
      %v7016 = vsel %vm1908, %v7013, %v7015
      %v7017 = vrot.slane %v6993, 2
      %v7018 = vsel %vm1908, %v7015, %v7017
      %v7019 = vrot.slane %v6994, 2
      %v7020 = vsel %vm1908, %v7017, %v7019
      %v7021 = vrot.slane %v6995, 2
      %v7022 = vsel %vm1908, %v7019, %v7021
      %v7023 = vrot.slane %v6996, 2
      %v7024 = vsel %vm1908, %v7021, %v7023
      %v7025 = vrot.slane %v6997, 2
      %v7026 = vsel %vm1908, %v7023, %v7025
      %v7027 = vrot.slane %v6998, 2
      %v7028 = vsel %vm1908, %v7025, %v7027
      %v7029 = vrot.slane %v6999, 2
      %v7030 = vsel %vm1908, %v7027, %v7029
      %v7031 = vrot.slane %v7000, 2
      %v7032 = vsel %vm1908, %v7029, %v7031
      %v7033 = vrot.slane %v7001, 2
      %v7034 = vsel %vm1908, %v7031, %v7033
      %v7035 = vrot.slane %v7002, 2
      %v7036 = vsel %vm1908, %v7033, %v7035
      %v7037 = vrot.slane %v7003, 2
      %v7038 = vsel %vm1908, %v7035, %v7037
      %v7039 = vrot.slane %v7004, 2
      %v7040 = vsel %vm1908, %v7037, %v7039
      %v7041 = vrot.slane %v7005, 2
      %v7042 = vsel %vm1908, %v7039, %v7041
      %v7043 = vrot.slane %v7006, 2
      %v7044 = vsel %vm1908, %v7041, %v7043
      %v7045 = vrot.slane %v7007, 2
      %v7046 = vsel %vm1908, %v7043, %v7045
      %v7047 = vrot.slane %v7008, 2
      %v7048 = vsel %vm1908, %v7045, %v7047
      %v7049 = vrot.slane %v7009, 2
      %v7050 = vsel %vm1908, %v7047, %v7049
      %v7052 = vsel %vm497, %v7012, 0
      %v7055 = vsel %vm497, %v7014, 0
      %v7058 = vsel %vm497, %v7016, 0
      %v7061 = vsel %vm497, %v7018, 0
      %v7064 = vsel %vm497, %v7020, 0
      %v7067 = vsel %vm497, %v7022, 0
      %v7070 = vsel %vm497, %v7024, 0
      %v7073 = vsel %vm497, %v7026, 0
      %v7076 = vsel %vm497, %v7028, 0
      %v7079 = vsel %vm497, %v7030, 0
      %v7082 = vsel %vm497, %v7032, 0
      %v7085 = vsel %vm497, %v7034, 0
      %v7088 = vsel %vm497, %v7036, 0
      %v7091 = vsel %vm497, %v7038, 0
      %v7094 = vsel %vm497, %v7040, 0
      %v7097 = vsel %vm497, %v7042, 0
      %v7100 = vsel %vm497, %v7044, 0
      %v7103 = vsel %vm497, %v7046, 0
      %v7106 = vsel %vm497, %v7048, 0
      %v7109 = vsel %vm497, %v7050, 0
      %v7112 = vsel %vm497, %v7049, 0
      %v7115 = vsel %vm561, %v6906, 0
      %7117 = vmatpush.bf16.msra.mxu0 0
      %7118 = vmatpush.bf16.msra.mxu0 0
      %7119 = vmatpush.bf16.msra.mxu0 0
      %7120 = vmatpush.bf16.msra.mxu0 0
      %7121 = vmatpush.bf16.msra.mxu0 0
      %7122 = vmatpush.bf16.msra.mxu0 0
      %7123 = vmatpush.bf16.msra.mxu0 0
      %7124 = vmatpush.bf16.msra.mxu0 %v7115
      %7125 = vmatmul.bf16.gmra.mxu0 %v7052
      %v7126 = vpop.f32.mrf.mxu0
      %v7127 = vadd.f32 0.0, %v7126
      %v7128 = vpop.f32.mrf.mxu0
      %v7129 = vadd.f32 0.0, %v7128
      %7130 = vmatmul.bf16.gmra.mxu0 %v7055
      %v7131 = vpop.f32.mrf.mxu0
      %v7132 = vadd.f32 0.0, %v7131
      %v7133 = vpop.f32.mrf.mxu0
      %v7134 = vadd.f32 0.0, %v7133
      %7135 = vmatmul.bf16.gmra.mxu0 %v7058
      %v7136 = vpop.f32.mrf.mxu0
      %v7137 = vadd.f32 0.0, %v7136
      %v7138 = vpop.f32.mrf.mxu0
      %v7139 = vadd.f32 0.0, %v7138
      %7140 = vmatmul.bf16.gmra.mxu0 %v7061
      %v7141 = vpop.f32.mrf.mxu0
      %v7142 = vadd.f32 0.0, %v7141
      %v7143 = vpop.f32.mrf.mxu0
      %v7144 = vadd.f32 0.0, %v7143
      %7145 = vmatmul.bf16.gmra.mxu0 %v7064
      %v7146 = vpop.f32.mrf.mxu0
      %v7147 = vadd.f32 0.0, %v7146
      %v7148 = vpop.f32.mrf.mxu0
      %v7149 = vadd.f32 0.0, %v7148
      %7150 = vmatmul.bf16.gmra.mxu0 %v7067
      %v7151 = vpop.f32.mrf.mxu0
      %v7152 = vadd.f32 0.0, %v7151
      %v7153 = vpop.f32.mrf.mxu0
      %v7154 = vadd.f32 0.0, %v7153
      %7155 = vmatmul.bf16.gmra.mxu0 %v7070
      %v7156 = vpop.f32.mrf.mxu0
      %v7157 = vadd.f32 0.0, %v7156
      %v7158 = vpop.f32.mrf.mxu0
      %v7159 = vadd.f32 0.0, %v7158
      %7160 = vmatmul.bf16.gmra.mxu0 %v7073
      %v7161 = vpop.f32.mrf.mxu0
      %v7162 = vadd.f32 0.0, %v7161
      %v7163 = vpop.f32.mrf.mxu0
      %v7164 = vadd.f32 0.0, %v7163
      %7165 = vmatmul.bf16.gmra.mxu0 %v7076
      %v7166 = vpop.f32.mrf.mxu0
      %v7167 = vadd.f32 0.0, %v7166
      %v7168 = vpop.f32.mrf.mxu0
      %v7169 = vadd.f32 0.0, %v7168
      %7170 = vmatmul.bf16.gmra.mxu0 %v7079
      %v7171 = vpop.f32.mrf.mxu0
      %v7172 = vadd.f32 0.0, %v7171
      %v7173 = vpop.f32.mrf.mxu0
      %v7174 = vadd.f32 0.0, %v7173
      %7175 = vmatmul.bf16.gmra.mxu0 %v7082
      %v7176 = vpop.f32.mrf.mxu0
      %v7177 = vadd.f32 0.0, %v7176
      %v7178 = vpop.f32.mrf.mxu0
      %v7179 = vadd.f32 0.0, %v7178
      %7180 = vmatmul.bf16.gmra.mxu0 %v7085
      %v7181 = vpop.f32.mrf.mxu0
      %v7182 = vadd.f32 0.0, %v7181
      %v7183 = vpop.f32.mrf.mxu0
      %v7184 = vadd.f32 0.0, %v7183
      %7185 = vmatmul.bf16.gmra.mxu0 %v7088
      %v7186 = vpop.f32.mrf.mxu0
      %v7187 = vadd.f32 0.0, %v7186
      %v7188 = vpop.f32.mrf.mxu0
      %v7189 = vadd.f32 0.0, %v7188
      %7190 = vmatmul.bf16.gmra.mxu0 %v7091
      %v7191 = vpop.f32.mrf.mxu0
      %v7192 = vadd.f32 0.0, %v7191
      %v7193 = vpop.f32.mrf.mxu0
      %v7194 = vadd.f32 0.0, %v7193
      %7195 = vmatmul.bf16.gmra.mxu0 %v7094
      %v7196 = vpop.f32.mrf.mxu0
      %v7197 = vadd.f32 0.0, %v7196
      %v7198 = vpop.f32.mrf.mxu0
      %v7199 = vadd.f32 0.0, %v7198
      %7200 = vmatmul.bf16.gmra.mxu0 %v7097
      %v7201 = vpop.f32.mrf.mxu0
      %v7202 = vadd.f32 0.0, %v7201
      %v7203 = vpop.f32.mrf.mxu0
      %v7204 = vadd.f32 0.0, %v7203
      %7205 = vmatmul.bf16.gmra.mxu0 %v7100
      %v7206 = vpop.f32.mrf.mxu0
      %v7207 = vadd.f32 0.0, %v7206
      %v7208 = vpop.f32.mrf.mxu0
      %v7209 = vadd.f32 0.0, %v7208
      %7210 = vmatmul.bf16.gmra.mxu0 %v7103
      %v7211 = vpop.f32.mrf.mxu0
      %v7212 = vadd.f32 0.0, %v7211
      %v7213 = vpop.f32.mrf.mxu0
      %v7214 = vadd.f32 0.0, %v7213
      %7215 = vmatmul.bf16.gmra.mxu0 %v7106
      %v7216 = vpop.f32.mrf.mxu0
      %v7217 = vadd.f32 0.0, %v7216
      %v7218 = vpop.f32.mrf.mxu0
      %v7219 = vadd.f32 0.0, %v7218
      %7220 = vmatmul.bf16.gmra.mxu0 %v7109
      %v7221 = vpop.f32.mrf.mxu0
      %v7222 = vadd.f32 0.0, %v7221
      %v7223 = vpop.f32.mrf.mxu0
      %v7224 = vadd.f32 0.0, %v7223
      %7225 = vmatmul.bf16.gmra.mxu0 %v7112
      %v7226 = vpop.f32.mrf.mxu0
      %v7227 = vadd.f32 0.0, %v7226
      %v7228 = vpop.f32.mrf.mxu0
      %7229 = vdwg.mxu0
      %v7230 = vadd.f32 %v6823, %v7127
      %v7231 = vadd.f32 %v6824, %v7129
      %v7232 = vadd.f32 %v6825, %v7132
      %v7233 = vadd.f32 %v6826, %v7134
      %v7234 = vadd.f32 %v6827, %v7137
      %v7235 = vadd.f32 %v6828, %v7139
      %v7236 = vadd.f32 %v6829, %v7142
      %v7237 = vadd.f32 %v6830, %v7144
      %v7238 = vadd.f32 %v6831, %v7147
      %v7239 = vadd.f32 %v6832, %v7149
      %v7240 = vadd.f32 %v6833, %v7152
      %v7241 = vadd.f32 %v6834, %v7154
      %v7242 = vadd.f32 %v6835, %v7157
      %v7243 = vadd.f32 %v6836, %v7159
      %v7244 = vadd.f32 %v6837, %v7162
      %v7245 = vadd.f32 %v6838, %v7164
      %v7246 = vadd.f32 %v6839, %v7167
      %v7247 = vadd.f32 %v6840, %v7169
      %v7248 = vadd.f32 %v6841, %v7172
      %v7249 = vadd.f32 %v6842, %v7174
      %v7250 = vadd.f32 %v6843, %v7177
      %v7251 = vadd.f32 %v6844, %v7179
      %v7252 = vadd.f32 %v6845, %v7182
      %v7253 = vadd.f32 %v6846, %v7184
      %v7254 = vadd.f32 %v6847, %v7187
      %v7255 = vadd.f32 %v6848, %v7189
      %v7256 = vadd.f32 %v6849, %v7192
      %v7257 = vadd.f32 %v6850, %v7194
      %v7258 = vadd.f32 %v6851, %v7197
      %v7259 = vadd.f32 %v6852, %v7199
      %v7260 = vadd.f32 %v6853, %v7202
      %v7261 = vadd.f32 %v6854, %v7204
      %v7262 = vadd.f32 %v6855, %v7207
      %v7263 = vadd.f32 %v6856, %v7209
      %v7264 = vadd.f32 %v6857, %v7212
      %v7265 = vadd.f32 %v6858, %v7214
      %v7266 = vadd.f32 %v6859, %v7217
      %v7267 = vadd.f32 %v6860, %v7219
      %v7268 = vadd.f32 %v6861, %v7222
      %v7269 = vadd.f32 %v6862, %v7224
      %v7270 = vadd.f32 %v6863, %v7227
      %v7271 = vld [vmem:[#allocation2 + $0x10] sm:$0xc]
      %v7272 = vld [vmem:[#allocation2 + $0x14] sm:$0xf]
      %v7273 = vld [vmem:[#allocation2 + $0x18] sm:$0xf]
      %v7274 = vld [vmem:[#allocation2 + $0x1c] sm:$0xf]
      %v7275 = vld [vmem:[#allocation2 + $0x20] sm:$0xf]
      %v7276 = vld [vmem:[#allocation2 + $0x24] sm:$0xf]
      %v7277 = vld [vmem:[#allocation2 + $0x28] sm:$0xf]
      %v7278 = vld [vmem:[#allocation2 + $0x2c] sm:$0xf]
      %v7279 = vld [vmem:[#allocation2 + $0x30] sm:$0xf]
      %v7280 = vld [vmem:[#allocation2 + $0x34] sm:$0xf]
      %v7281 = vld [vmem:[#allocation2 + $0x38] sm:$0xf]
      %v7282 = vld [vmem:[#allocation2 + $0x3c] sm:$0xf]
      %v7283 = vld [vmem:[#allocation2 + $0x40] sm:$0xf]
      %v7284 = vld [vmem:[#allocation2 + $0x44] sm:$0xf]
      %v7285 = vld [vmem:[#allocation2 + $0x48] sm:$0xf]
      %v7286 = vld [vmem:[#allocation2 + $0x4c] sm:$0xf]
      %v7287 = vld [vmem:[#allocation2 + $0x50] sm:$0xf]
      %v7288 = vld [vmem:[#allocation2 + $0x54] sm:$0xf]
      %v7289 = vld [vmem:[#allocation2 + $0x58] sm:$0xf]
      %v7290 = vld [vmem:[#allocation2 + $0x5c] sm:$0xf]
      %v7291 = vld [vmem:[#allocation2 + $0x60] sm:$0xf]
      %v7292 = vld [vmem:[#allocation2 + $0x64] sm:$0xf]
      %v7293 = vld [vmem:[#allocation2 + $0x68] sm:$0xf]
      %v7294 = vld [vmem:[#allocation2 + $0x6c] sm:$0xf]
      %v7295 = vld [vmem:[#allocation2 + $0x70] sm:$0xf]
      %v7296 = vld [vmem:[#allocation2 + $0x74] sm:$0xf]
      %v7297 = vld [vmem:[#allocation2 + $0x78] sm:$0xf]
      %v7298 = vld [vmem:[#allocation2 + $0x7c] sm:$0xf]
      %v7299 = vld [vmem:[#allocation2 + $0x80] sm:$0xf]
      %v7300 = vld [vmem:[#allocation2 + $0x84] sm:$0xf]
      %v7301 = vld [vmem:[#allocation2 + $0x88] sm:$0xf]
      %v7302 = vld [vmem:[#allocation2 + $0x8c] sm:$0xf]
      %v7303 = vld [vmem:[#allocation2 + $0x90] sm:$0xf]
      %v7304 = vld [vmem:[#allocation2 + $0x94] sm:$0xf]
      %v7305 = vld [vmem:[#allocation2 + $0x98] sm:$0xf]
      %v7306 = vld [vmem:[#allocation2 + $0x9c] sm:$0xf]
      %v7307 = vld [vmem:[#allocation2 + $0xa0] sm:$0xf]
      %v7308 = vld [vmem:[#allocation2 + $0xa4] sm:$0xf]
      %v7309 = vld [vmem:[#allocation2 + $0xa8] sm:$0xf]
      %v7310 = vld [vmem:[#allocation2 + $0xac] sm:$0xf]
      %v7311 = vld [vmem:[#allocation2 + $0xb0] sm:$0xf]
      %v7312 = vld [vmem:[#allocation2 + $0xb4] sm:$0x1]
      %s7313 = scalar_lea.vmem %s5, 28
      %v7314 = vld [vmem:[%s7313] sm:$0xf]
      %v7357 = vunpack.c.l.b16 %v7271
      %v7358 = vunpack.c.l.b16 %v7272
      %v7359 = vunpack.c.l.b16 %v7273
      %v7360 = vunpack.c.l.b16 %v7274
      %v7361 = vunpack.c.l.b16 %v7275
      %v7362 = vunpack.c.l.b16 %v7276
      %v7363 = vunpack.c.l.b16 %v7277
      %v7364 = vunpack.c.l.b16 %v7278
      %v7365 = vunpack.c.l.b16 %v7279
      %v7366 = vunpack.c.l.b16 %v7280
      %v7367 = vunpack.c.l.b16 %v7281
      %v7368 = vunpack.c.l.b16 %v7282
      %v7369 = vunpack.c.l.b16 %v7283
      %v7370 = vunpack.c.l.b16 %v7284
      %v7371 = vunpack.c.l.b16 %v7285
      %v7372 = vunpack.c.l.b16 %v7286
      %v7373 = vunpack.c.l.b16 %v7287
      %v7374 = vunpack.c.l.b16 %v7288
      %v7375 = vunpack.c.l.b16 %v7289
      %v7376 = vunpack.c.l.b16 %v7290
      %v7377 = vunpack.c.l.b16 %v7291
      %v7378 = vunpack.c.l.b16 %v7292
      %v7379 = vunpack.c.l.b16 %v7293
      %v7380 = vunpack.c.l.b16 %v7294
      %v7381 = vunpack.c.l.b16 %v7295
      %v7382 = vunpack.c.l.b16 %v7296
      %v7383 = vunpack.c.l.b16 %v7297
      %v7384 = vunpack.c.l.b16 %v7298
      %v7385 = vunpack.c.l.b16 %v7299
      %v7386 = vunpack.c.l.b16 %v7300
      %v7387 = vunpack.c.l.b16 %v7301
      %v7388 = vunpack.c.l.b16 %v7302
      %v7389 = vunpack.c.l.b16 %v7303
      %v7390 = vunpack.c.l.b16 %v7304
      %v7391 = vunpack.c.l.b16 %v7305
      %v7392 = vunpack.c.l.b16 %v7306
      %v7393 = vunpack.c.l.b16 %v7307
      %v7394 = vunpack.c.l.b16 %v7308
      %v7395 = vunpack.c.l.b16 %v7309
      %v7396 = vunpack.c.l.b16 %v7310
      %v7397 = vunpack.c.l.b16 %v7311
      %v7398 = vunpack.c.l.b16 %v7312
      %v7399 = vpack.c.b16 %v7358, %v7357
      %v7400 = vpack.c.b16 %v7360, %v7359
      %v7401 = vpack.c.b16 %v7362, %v7361
      %v7402 = vpack.c.b16 %v7364, %v7363
      %v7403 = vpack.c.b16 %v7366, %v7365
      %v7404 = vpack.c.b16 %v7368, %v7367
      %v7405 = vpack.c.b16 %v7370, %v7369
      %v7406 = vpack.c.b16 %v7372, %v7371
      %v7407 = vpack.c.b16 %v7374, %v7373
      %v7408 = vpack.c.b16 %v7376, %v7375
      %v7409 = vpack.c.b16 %v7378, %v7377
      %v7410 = vpack.c.b16 %v7380, %v7379
      %v7411 = vpack.c.b16 %v7382, %v7381
      %v7412 = vpack.c.b16 %v7384, %v7383
      %v7413 = vpack.c.b16 %v7386, %v7385
      %v7414 = vpack.c.b16 %v7388, %v7387
      %v7415 = vpack.c.b16 %v7390, %v7389
      %v7416 = vpack.c.b16 %v7392, %v7391
      %v7417 = vpack.c.b16 %v7394, %v7393
      %v7418 = vpack.c.b16 %v7396, %v7395
      %v7419 = vpack.c.b16 %v7398, %v7397
      %v7421 = vshrl.u32 %v7399, 16
      %v7423 = vrot.slane %v7421, 2
      %v7424 = vshll.u32 %v7399, 16
      %v7426 = vrot.slane %v7424, 3
      %v7427 = vor.u32 %v7423, %v7426
      %v7429 = vshrl.u32 %v7400, 16
      %v7431 = vrot.slane %v7429, 2
      %v7432 = vshll.u32 %v7400, 16
      %v7434 = vrot.slane %v7432, 3
      %v7435 = vor.u32 %v7431, %v7434
      %v7436 = vsel %vm2319, %v7427, %v7435
      %v7438 = vshrl.u32 %v7401, 16
      %v7440 = vrot.slane %v7438, 2
      %v7441 = vshll.u32 %v7401, 16
      %v7443 = vrot.slane %v7441, 3
      %v7444 = vor.u32 %v7440, %v7443
      %v7445 = vsel %vm2319, %v7435, %v7444
      %v7447 = vshrl.u32 %v7402, 16
      %v7449 = vrot.slane %v7447, 2
      %v7450 = vshll.u32 %v7402, 16
      %v7452 = vrot.slane %v7450, 3
      %v7453 = vor.u32 %v7449, %v7452
      %v7454 = vsel %vm2319, %v7444, %v7453
      %v7456 = vshrl.u32 %v7403, 16
      %v7458 = vrot.slane %v7456, 2
      %v7459 = vshll.u32 %v7403, 16
      %v7461 = vrot.slane %v7459, 3
      %v7462 = vor.u32 %v7458, %v7461
      %v7463 = vsel %vm2319, %v7453, %v7462
      %v7465 = vshrl.u32 %v7404, 16
      %v7467 = vrot.slane %v7465, 2
      %v7468 = vshll.u32 %v7404, 16
      %v7470 = vrot.slane %v7468, 3
      %v7471 = vor.u32 %v7467, %v7470
      %v7472 = vsel %vm2319, %v7462, %v7471
      %v7474 = vshrl.u32 %v7405, 16
      %v7476 = vrot.slane %v7474, 2
      %v7477 = vshll.u32 %v7405, 16
      %v7479 = vrot.slane %v7477, 3
      %v7480 = vor.u32 %v7476, %v7479
      %v7481 = vsel %vm2319, %v7471, %v7480
      %v7483 = vshrl.u32 %v7406, 16
      %v7485 = vrot.slane %v7483, 2
      %v7486 = vshll.u32 %v7406, 16
      %v7488 = vrot.slane %v7486, 3
      %v7489 = vor.u32 %v7485, %v7488
      %v7490 = vsel %vm2319, %v7480, %v7489
      %v7492 = vshrl.u32 %v7407, 16
      %v7494 = vrot.slane %v7492, 2
      %v7495 = vshll.u32 %v7407, 16
      %v7497 = vrot.slane %v7495, 3
      %v7498 = vor.u32 %v7494, %v7497
      %v7499 = vsel %vm2319, %v7489, %v7498
      %v7501 = vshrl.u32 %v7408, 16
      %v7503 = vrot.slane %v7501, 2
      %v7504 = vshll.u32 %v7408, 16
      %v7506 = vrot.slane %v7504, 3
      %v7507 = vor.u32 %v7503, %v7506
      %v7508 = vsel %vm2319, %v7498, %v7507
      %v7510 = vshrl.u32 %v7409, 16
      %v7512 = vrot.slane %v7510, 2
      %v7513 = vshll.u32 %v7409, 16
      %v7515 = vrot.slane %v7513, 3
      %v7516 = vor.u32 %v7512, %v7515
      %v7517 = vsel %vm2319, %v7507, %v7516
      %v7519 = vshrl.u32 %v7410, 16
      %v7521 = vrot.slane %v7519, 2
      %v7522 = vshll.u32 %v7410, 16
      %v7524 = vrot.slane %v7522, 3
      %v7525 = vor.u32 %v7521, %v7524
      %v7526 = vsel %vm2319, %v7516, %v7525
      %v7528 = vshrl.u32 %v7411, 16
      %v7530 = vrot.slane %v7528, 2
      %v7531 = vshll.u32 %v7411, 16
      %v7533 = vrot.slane %v7531, 3
      %v7534 = vor.u32 %v7530, %v7533
      %v7535 = vsel %vm2319, %v7525, %v7534
      %v7537 = vshrl.u32 %v7412, 16
      %v7539 = vrot.slane %v7537, 2
      %v7540 = vshll.u32 %v7412, 16
      %v7542 = vrot.slane %v7540, 3
      %v7543 = vor.u32 %v7539, %v7542
      %v7544 = vsel %vm2319, %v7534, %v7543
      %v7546 = vshrl.u32 %v7413, 16
      %v7548 = vrot.slane %v7546, 2
      %v7549 = vshll.u32 %v7413, 16
      %v7551 = vrot.slane %v7549, 3
      %v7552 = vor.u32 %v7548, %v7551
      %v7553 = vsel %vm2319, %v7543, %v7552
      %v7555 = vshrl.u32 %v7414, 16
      %v7557 = vrot.slane %v7555, 2
      %v7558 = vshll.u32 %v7414, 16
      %v7560 = vrot.slane %v7558, 3
      %v7561 = vor.u32 %v7557, %v7560
      %v7562 = vsel %vm2319, %v7552, %v7561
      %v7564 = vshrl.u32 %v7415, 16
      %v7566 = vrot.slane %v7564, 2
      %v7567 = vshll.u32 %v7415, 16
      %v7569 = vrot.slane %v7567, 3
      %v7570 = vor.u32 %v7566, %v7569
      %v7571 = vsel %vm2319, %v7561, %v7570
      %v7573 = vshrl.u32 %v7416, 16
      %v7575 = vrot.slane %v7573, 2
      %v7576 = vshll.u32 %v7416, 16
      %v7578 = vrot.slane %v7576, 3
      %v7579 = vor.u32 %v7575, %v7578
      %v7580 = vsel %vm2319, %v7570, %v7579
      %v7582 = vshrl.u32 %v7417, 16
      %v7584 = vrot.slane %v7582, 2
      %v7585 = vshll.u32 %v7417, 16
      %v7587 = vrot.slane %v7585, 3
      %v7588 = vor.u32 %v7584, %v7587
      %v7589 = vsel %vm2319, %v7579, %v7588
      %v7591 = vshrl.u32 %v7418, 16
      %v7593 = vrot.slane %v7591, 2
      %v7594 = vshll.u32 %v7418, 16
      %v7596 = vrot.slane %v7594, 3
      %v7597 = vor.u32 %v7593, %v7596
      %v7598 = vsel %vm2319, %v7588, %v7597
      %v7600 = vshrl.u32 %v7419, 16
      %v7602 = vrot.slane %v7600, 2
      %v7603 = vshll.u32 %v7419, 16
      %v7605 = vrot.slane %v7603, 3
      %v7606 = vor.u32 %v7602, %v7605
      %v7607 = vsel %vm2319, %v7597, %v7606
      %v7609 = vsel %vm497, %v7436, 0
      %v7612 = vsel %vm497, %v7445, 0
      %v7615 = vsel %vm497, %v7454, 0
      %v7618 = vsel %vm497, %v7463, 0
      %v7621 = vsel %vm497, %v7472, 0
      %v7624 = vsel %vm497, %v7481, 0
      %v7627 = vsel %vm497, %v7490, 0
      %v7630 = vsel %vm497, %v7499, 0
      %v7633 = vsel %vm497, %v7508, 0
      %v7636 = vsel %vm497, %v7517, 0
      %v7639 = vsel %vm497, %v7526, 0
      %v7642 = vsel %vm497, %v7535, 0
      %v7645 = vsel %vm497, %v7544, 0
      %v7648 = vsel %vm497, %v7553, 0
      %v7651 = vsel %vm497, %v7562, 0
      %v7654 = vsel %vm497, %v7571, 0
      %v7657 = vsel %vm497, %v7580, 0
      %v7660 = vsel %vm497, %v7589, 0
      %v7663 = vsel %vm497, %v7598, 0
      %v7666 = vsel %vm497, %v7607, 0
      %v7669 = vsel %vm497, %v7606, 0
      %v7672 = vsel %vm561, %v7314, 0
      %7674 = vmatpush.bf16.msra.mxu0 0
      %7675 = vmatpush.bf16.msra.mxu0 0
      %7676 = vmatpush.bf16.msra.mxu0 0
      %7677 = vmatpush.bf16.msra.mxu0 0
      %7678 = vmatpush.bf16.msra.mxu0 0
      %7679 = vmatpush.bf16.msra.mxu0 0
      %7680 = vmatpush.bf16.msra.mxu0 0
      %7681 = vmatpush.bf16.msra.mxu0 %v7672
      %7682 = vmatmul.bf16.gmra.mxu0 %v7609
      %v7683 = vpop.f32.mrf.mxu0
      %v7684 = vadd.f32 0.0, %v7683
      %v7685 = vpop.f32.mrf.mxu0
      %v7686 = vadd.f32 0.0, %v7685
      %7687 = vmatmul.bf16.gmra.mxu0 %v7612
      %v7688 = vpop.f32.mrf.mxu0
      %v7689 = vadd.f32 0.0, %v7688
      %v7690 = vpop.f32.mrf.mxu0
      %v7691 = vadd.f32 0.0, %v7690
      %7692 = vmatmul.bf16.gmra.mxu0 %v7615
      %v7693 = vpop.f32.mrf.mxu0
      %v7694 = vadd.f32 0.0, %v7693
      %v7695 = vpop.f32.mrf.mxu0
      %v7696 = vadd.f32 0.0, %v7695
      %7697 = vmatmul.bf16.gmra.mxu0 %v7618
      %v7698 = vpop.f32.mrf.mxu0
      %v7699 = vadd.f32 0.0, %v7698
      %v7700 = vpop.f32.mrf.mxu0
      %v7701 = vadd.f32 0.0, %v7700
      %7702 = vmatmul.bf16.gmra.mxu0 %v7621
      %v7703 = vpop.f32.mrf.mxu0
      %v7704 = vadd.f32 0.0, %v7703
      %v7705 = vpop.f32.mrf.mxu0
      %v7706 = vadd.f32 0.0, %v7705
      %7707 = vmatmul.bf16.gmra.mxu0 %v7624
      %v7708 = vpop.f32.mrf.mxu0
      %v7709 = vadd.f32 0.0, %v7708
      %v7710 = vpop.f32.mrf.mxu0
      %v7711 = vadd.f32 0.0, %v7710
      %7712 = vmatmul.bf16.gmra.mxu0 %v7627
      %v7713 = vpop.f32.mrf.mxu0
      %v7714 = vadd.f32 0.0, %v7713
      %v7715 = vpop.f32.mrf.mxu0
      %v7716 = vadd.f32 0.0, %v7715
      %7717 = vmatmul.bf16.gmra.mxu0 %v7630
      %v7718 = vpop.f32.mrf.mxu0
      %v7719 = vadd.f32 0.0, %v7718
      %v7720 = vpop.f32.mrf.mxu0
      %v7721 = vadd.f32 0.0, %v7720
      %7722 = vmatmul.bf16.gmra.mxu0 %v7633
      %v7723 = vpop.f32.mrf.mxu0
      %v7724 = vadd.f32 0.0, %v7723
      %v7725 = vpop.f32.mrf.mxu0
      %v7726 = vadd.f32 0.0, %v7725
      %7727 = vmatmul.bf16.gmra.mxu0 %v7636
      %v7728 = vpop.f32.mrf.mxu0
      %v7729 = vadd.f32 0.0, %v7728
      %v7730 = vpop.f32.mrf.mxu0
      %v7731 = vadd.f32 0.0, %v7730
      %7732 = vmatmul.bf16.gmra.mxu0 %v7639
      %v7733 = vpop.f32.mrf.mxu0
      %v7734 = vadd.f32 0.0, %v7733
      %v7735 = vpop.f32.mrf.mxu0
      %v7736 = vadd.f32 0.0, %v7735
      %7737 = vmatmul.bf16.gmra.mxu0 %v7642
      %v7738 = vpop.f32.mrf.mxu0
      %v7739 = vadd.f32 0.0, %v7738
      %v7740 = vpop.f32.mrf.mxu0
      %v7741 = vadd.f32 0.0, %v7740
      %7742 = vmatmul.bf16.gmra.mxu0 %v7645
      %v7743 = vpop.f32.mrf.mxu0
      %v7744 = vadd.f32 0.0, %v7743
      %v7745 = vpop.f32.mrf.mxu0
      %v7746 = vadd.f32 0.0, %v7745
      %7747 = vmatmul.bf16.gmra.mxu0 %v7648
      %v7748 = vpop.f32.mrf.mxu0
      %v7749 = vadd.f32 0.0, %v7748
      %v7750 = vpop.f32.mrf.mxu0
      %v7751 = vadd.f32 0.0, %v7750
      %7752 = vmatmul.bf16.gmra.mxu0 %v7651
      %v7753 = vpop.f32.mrf.mxu0
      %v7754 = vadd.f32 0.0, %v7753
      %v7755 = vpop.f32.mrf.mxu0
      %v7756 = vadd.f32 0.0, %v7755
      %7757 = vmatmul.bf16.gmra.mxu0 %v7654
      %v7758 = vpop.f32.mrf.mxu0
      %v7759 = vadd.f32 0.0, %v7758
      %v7760 = vpop.f32.mrf.mxu0
      %v7761 = vadd.f32 0.0, %v7760
      %7762 = vmatmul.bf16.gmra.mxu0 %v7657
      %v7763 = vpop.f32.mrf.mxu0
      %v7764 = vadd.f32 0.0, %v7763
      %v7765 = vpop.f32.mrf.mxu0
      %v7766 = vadd.f32 0.0, %v7765
      %7767 = vmatmul.bf16.gmra.mxu0 %v7660
      %v7768 = vpop.f32.mrf.mxu0
      %v7769 = vadd.f32 0.0, %v7768
      %v7770 = vpop.f32.mrf.mxu0
      %v7771 = vadd.f32 0.0, %v7770
      %7772 = vmatmul.bf16.gmra.mxu0 %v7663
      %v7773 = vpop.f32.mrf.mxu0
      %v7774 = vadd.f32 0.0, %v7773
      %v7775 = vpop.f32.mrf.mxu0
      %v7776 = vadd.f32 0.0, %v7775
      %7777 = vmatmul.bf16.gmra.mxu0 %v7666
      %v7778 = vpop.f32.mrf.mxu0
      %v7779 = vadd.f32 0.0, %v7778
      %v7780 = vpop.f32.mrf.mxu0
      %v7781 = vadd.f32 0.0, %v7780
      %7782 = vmatmul.bf16.gmra.mxu0 %v7669
      %v7783 = vpop.f32.mrf.mxu0
      %v7784 = vadd.f32 0.0, %v7783
      %v7785 = vpop.f32.mrf.mxu0
      %7786 = vdwg.mxu0
      %v7787 = vadd.f32 %v7230, %v7684
      %v7788 = vadd.f32 %v7231, %v7686
      %v7789 = vadd.f32 %v7232, %v7689
      %v7790 = vadd.f32 %v7233, %v7691
      %v7791 = vadd.f32 %v7234, %v7694
      %v7792 = vadd.f32 %v7235, %v7696
      %v7793 = vadd.f32 %v7236, %v7699
      %v7794 = vadd.f32 %v7237, %v7701
      %v7795 = vadd.f32 %v7238, %v7704
      %v7796 = vadd.f32 %v7239, %v7706
      %v7797 = vadd.f32 %v7240, %v7709
      %v7798 = vadd.f32 %v7241, %v7711
      %v7799 = vadd.f32 %v7242, %v7714
      %v7800 = vadd.f32 %v7243, %v7716
      %v7801 = vadd.f32 %v7244, %v7719
      %v7802 = vadd.f32 %v7245, %v7721
      %v7803 = vadd.f32 %v7246, %v7724
      %v7804 = vadd.f32 %v7247, %v7726
      %v7805 = vadd.f32 %v7248, %v7729
      %v7806 = vadd.f32 %v7249, %v7731
      %v7807 = vadd.f32 %v7250, %v7734
      %v7808 = vadd.f32 %v7251, %v7736
      %v7809 = vadd.f32 %v7252, %v7739
      %v7810 = vadd.f32 %v7253, %v7741
      %v7811 = vadd.f32 %v7254, %v7744
      %v7812 = vadd.f32 %v7255, %v7746
      %v7813 = vadd.f32 %v7256, %v7749
      %v7814 = vadd.f32 %v7257, %v7751
      %v7815 = vadd.f32 %v7258, %v7754
      %v7816 = vadd.f32 %v7259, %v7756
      %v7817 = vadd.f32 %v7260, %v7759
      %v7818 = vadd.f32 %v7261, %v7761
      %v7819 = vadd.f32 %v7262, %v7764
      %v7820 = vadd.f32 %v7263, %v7766
      %v7821 = vadd.f32 %v7264, %v7769
      %v7822 = vadd.f32 %v7265, %v7771
      %v7823 = vadd.f32 %v7266, %v7774
      %v7824 = vadd.f32 %v7267, %v7776
      %v7825 = vadd.f32 %v7268, %v7779
      %v7826 = vadd.f32 %v7269, %v7781
      %v7827 = vadd.f32 %v7270, %v7784
      %v7828 = vld [vmem:[#allocation2 + $0x10] sm:$0x8]
      %s7829 = scalar_lea.vmem %s5, 32
      %v7830 = vld [vmem:[%s7829] sm:$0xf]
      %v7832 = vunpack.c.l.b16 %v7828
      %v7833 = vpack.c.b16 %v7358, %v7832
      %v7834 = vrot.slane %v7833, 3
      %v7835 = vrot.slane %v7400, 3
      %v7836 = vsel %vm3291, %v7834, %v7835
      %v7837 = vrot.slane %v7401, 3
      %v7838 = vsel %vm3291, %v7835, %v7837
      %v7839 = vrot.slane %v7402, 3
      %v7840 = vsel %vm3291, %v7837, %v7839
      %v7841 = vrot.slane %v7403, 3
      %v7842 = vsel %vm3291, %v7839, %v7841
      %v7843 = vrot.slane %v7404, 3
      %v7844 = vsel %vm3291, %v7841, %v7843
      %v7845 = vrot.slane %v7405, 3
      %v7846 = vsel %vm3291, %v7843, %v7845
      %v7847 = vrot.slane %v7406, 3
      %v7848 = vsel %vm3291, %v7845, %v7847
      %v7849 = vrot.slane %v7407, 3
      %v7850 = vsel %vm3291, %v7847, %v7849
      %v7851 = vrot.slane %v7408, 3
      %v7852 = vsel %vm3291, %v7849, %v7851
      %v7853 = vrot.slane %v7409, 3
      %v7854 = vsel %vm3291, %v7851, %v7853
      %v7855 = vrot.slane %v7410, 3
      %v7856 = vsel %vm3291, %v7853, %v7855
      %v7857 = vrot.slane %v7411, 3
      %v7858 = vsel %vm3291, %v7855, %v7857
      %v7859 = vrot.slane %v7412, 3
      %v7860 = vsel %vm3291, %v7857, %v7859
      %v7861 = vrot.slane %v7413, 3
      %v7862 = vsel %vm3291, %v7859, %v7861
      %v7863 = vrot.slane %v7414, 3
      %v7864 = vsel %vm3291, %v7861, %v7863
      %v7865 = vrot.slane %v7415, 3
      %v7866 = vsel %vm3291, %v7863, %v7865
      %v7867 = vrot.slane %v7416, 3
      %v7868 = vsel %vm3291, %v7865, %v7867
      %v7869 = vrot.slane %v7417, 3
      %v7870 = vsel %vm3291, %v7867, %v7869
      %v7871 = vrot.slane %v7418, 3
      %v7872 = vsel %vm3291, %v7869, %v7871
      %v7873 = vrot.slane %v7419, 3
      %v7874 = vsel %vm3291, %v7871, %v7873
      %v7876 = vsel %vm497, %v7836, 0
      %v7879 = vsel %vm497, %v7838, 0
      %v7882 = vsel %vm497, %v7840, 0
      %v7885 = vsel %vm497, %v7842, 0
      %v7888 = vsel %vm497, %v7844, 0
      %v7891 = vsel %vm497, %v7846, 0
      %v7894 = vsel %vm497, %v7848, 0
      %v7897 = vsel %vm497, %v7850, 0
      %v7900 = vsel %vm497, %v7852, 0
      %v7903 = vsel %vm497, %v7854, 0
      %v7906 = vsel %vm497, %v7856, 0
      %v7909 = vsel %vm497, %v7858, 0
      %v7912 = vsel %vm497, %v7860, 0
      %v7915 = vsel %vm497, %v7862, 0
      %v7918 = vsel %vm497, %v7864, 0
      %v7921 = vsel %vm497, %v7866, 0
      %v7924 = vsel %vm497, %v7868, 0
      %v7927 = vsel %vm497, %v7870, 0
      %v7930 = vsel %vm497, %v7872, 0
      %v7933 = vsel %vm497, %v7874, 0
      %v7936 = vsel %vm497, %v7873, 0
      %v7939 = vsel %vm561, %v7830, 0
      %7941 = vmatpush.bf16.msra.mxu0 0
      %7942 = vmatpush.bf16.msra.mxu0 0
      %7943 = vmatpush.bf16.msra.mxu0 0
      %7944 = vmatpush.bf16.msra.mxu0 0
      %7945 = vmatpush.bf16.msra.mxu0 0
      %7946 = vmatpush.bf16.msra.mxu0 0
      %7947 = vmatpush.bf16.msra.mxu0 0
      %7948 = vmatpush.bf16.msra.mxu0 %v7939
      %7949 = vmatmul.bf16.gmra.mxu0 %v7876
      %v7950 = vpop.f32.mrf.mxu0
      %v7951 = vadd.f32 0.0, %v7950
      %v7952 = vpop.f32.mrf.mxu0
      %v7953 = vadd.f32 0.0, %v7952
      %7954 = vmatmul.bf16.gmra.mxu0 %v7879
      %v7955 = vpop.f32.mrf.mxu0
      %v7956 = vadd.f32 0.0, %v7955
      %v7957 = vpop.f32.mrf.mxu0
      %v7958 = vadd.f32 0.0, %v7957
      %7959 = vmatmul.bf16.gmra.mxu0 %v7882
      %v7960 = vpop.f32.mrf.mxu0
      %v7961 = vadd.f32 0.0, %v7960
      %v7962 = vpop.f32.mrf.mxu0
      %v7963 = vadd.f32 0.0, %v7962
      %7964 = vmatmul.bf16.gmra.mxu0 %v7885
      %v7965 = vpop.f32.mrf.mxu0
      %v7966 = vadd.f32 0.0, %v7965
      %v7967 = vpop.f32.mrf.mxu0
      %v7968 = vadd.f32 0.0, %v7967
      %7969 = vmatmul.bf16.gmra.mxu0 %v7888
      %v7970 = vpop.f32.mrf.mxu0
      %v7971 = vadd.f32 0.0, %v7970
      %v7972 = vpop.f32.mrf.mxu0
      %v7973 = vadd.f32 0.0, %v7972
      %7974 = vmatmul.bf16.gmra.mxu0 %v7891
      %v7975 = vpop.f32.mrf.mxu0
      %v7976 = vadd.f32 0.0, %v7975
      %v7977 = vpop.f32.mrf.mxu0
      %v7978 = vadd.f32 0.0, %v7977
      %7979 = vmatmul.bf16.gmra.mxu0 %v7894
      %v7980 = vpop.f32.mrf.mxu0
      %v7981 = vadd.f32 0.0, %v7980
      %v7982 = vpop.f32.mrf.mxu0
      %v7983 = vadd.f32 0.0, %v7982
      %7984 = vmatmul.bf16.gmra.mxu0 %v7897
      %v7985 = vpop.f32.mrf.mxu0
      %v7986 = vadd.f32 0.0, %v7985
      %v7987 = vpop.f32.mrf.mxu0
      %v7988 = vadd.f32 0.0, %v7987
      %7989 = vmatmul.bf16.gmra.mxu0 %v7900
      %v7990 = vpop.f32.mrf.mxu0
      %v7991 = vadd.f32 0.0, %v7990
      %v7992 = vpop.f32.mrf.mxu0
      %v7993 = vadd.f32 0.0, %v7992
      %7994 = vmatmul.bf16.gmra.mxu0 %v7903
      %v7995 = vpop.f32.mrf.mxu0
      %v7996 = vadd.f32 0.0, %v7995
      %v7997 = vpop.f32.mrf.mxu0
      %v7998 = vadd.f32 0.0, %v7997
      %7999 = vmatmul.bf16.gmra.mxu0 %v7906
      %v8000 = vpop.f32.mrf.mxu0
      %v8001 = vadd.f32 0.0, %v8000
      %v8002 = vpop.f32.mrf.mxu0
      %v8003 = vadd.f32 0.0, %v8002
      %8004 = vmatmul.bf16.gmra.mxu0 %v7909
      %v8005 = vpop.f32.mrf.mxu0
      %v8006 = vadd.f32 0.0, %v8005
      %v8007 = vpop.f32.mrf.mxu0
      %v8008 = vadd.f32 0.0, %v8007
      %8009 = vmatmul.bf16.gmra.mxu0 %v7912
      %v8010 = vpop.f32.mrf.mxu0
      %v8011 = vadd.f32 0.0, %v8010
      %v8012 = vpop.f32.mrf.mxu0
      %v8013 = vadd.f32 0.0, %v8012
      %8014 = vmatmul.bf16.gmra.mxu0 %v7915
      %v8015 = vpop.f32.mrf.mxu0
      %v8016 = vadd.f32 0.0, %v8015
      %v8017 = vpop.f32.mrf.mxu0
      %v8018 = vadd.f32 0.0, %v8017
      %8019 = vmatmul.bf16.gmra.mxu0 %v7918
      %v8020 = vpop.f32.mrf.mxu0
      %v8021 = vadd.f32 0.0, %v8020
      %v8022 = vpop.f32.mrf.mxu0
      %v8023 = vadd.f32 0.0, %v8022
      %8024 = vmatmul.bf16.gmra.mxu0 %v7921
      %v8025 = vpop.f32.mrf.mxu0
      %v8026 = vadd.f32 0.0, %v8025
      %v8027 = vpop.f32.mrf.mxu0
      %v8028 = vadd.f32 0.0, %v8027
      %8029 = vmatmul.bf16.gmra.mxu0 %v7924
      %v8030 = vpop.f32.mrf.mxu0
      %v8031 = vadd.f32 0.0, %v8030
      %v8032 = vpop.f32.mrf.mxu0
      %v8033 = vadd.f32 0.0, %v8032
      %8034 = vmatmul.bf16.gmra.mxu0 %v7927
      %v8035 = vpop.f32.mrf.mxu0
      %v8036 = vadd.f32 0.0, %v8035
      %v8037 = vpop.f32.mrf.mxu0
      %v8038 = vadd.f32 0.0, %v8037
      %8039 = vmatmul.bf16.gmra.mxu0 %v7930
      %v8040 = vpop.f32.mrf.mxu0
      %v8041 = vadd.f32 0.0, %v8040
      %v8042 = vpop.f32.mrf.mxu0
      %v8043 = vadd.f32 0.0, %v8042
      %8044 = vmatmul.bf16.gmra.mxu0 %v7933
      %v8045 = vpop.f32.mrf.mxu0
      %v8046 = vadd.f32 0.0, %v8045
      %v8047 = vpop.f32.mrf.mxu0
      %v8048 = vadd.f32 0.0, %v8047
      %8049 = vmatmul.bf16.gmra.mxu0 %v7936
      %v8050 = vpop.f32.mrf.mxu0
      %v8051 = vadd.f32 0.0, %v8050
      %v8052 = vpop.f32.mrf.mxu0
      %8053 = vdwg.mxu0
      %v8054 = vadd.f32 %v7787, %v7951
      %v8055 = vadd.f32 %v7788, %v7953
      %v8056 = vadd.f32 %v7789, %v7956
      %v8057 = vadd.f32 %v7790, %v7958
      %v8058 = vadd.f32 %v7791, %v7961
      %v8059 = vadd.f32 %v7792, %v7963
      %v8060 = vadd.f32 %v7793, %v7966
      %v8061 = vadd.f32 %v7794, %v7968
      %v8062 = vadd.f32 %v7795, %v7971
      %v8063 = vadd.f32 %v7796, %v7973
      %v8064 = vadd.f32 %v7797, %v7976
      %v8065 = vadd.f32 %v7798, %v7978
      %v8066 = vadd.f32 %v7799, %v7981
      %v8067 = vadd.f32 %v7800, %v7983
      %v8068 = vadd.f32 %v7801, %v7986
      %v8069 = vadd.f32 %v7802, %v7988
      %v8070 = vadd.f32 %v7803, %v7991
      %v8071 = vadd.f32 %v7804, %v7993
      %v8072 = vadd.f32 %v7805, %v7996
      %v8073 = vadd.f32 %v7806, %v7998
      %v8074 = vadd.f32 %v7807, %v8001
      %v8075 = vadd.f32 %v7808, %v8003
      %v8076 = vadd.f32 %v7809, %v8006
      %v8077 = vadd.f32 %v7810, %v8008
      %v8078 = vadd.f32 %v7811, %v8011
      %v8079 = vadd.f32 %v7812, %v8013
      %v8080 = vadd.f32 %v7813, %v8016
      %v8081 = vadd.f32 %v7814, %v8018
      %v8082 = vadd.f32 %v7815, %v8021
      %v8083 = vadd.f32 %v7816, %v8023
      %v8084 = vadd.f32 %v7817, %v8026
      %v8085 = vadd.f32 %v7818, %v8028
      %v8086 = vadd.f32 %v7819, %v8031
      %v8087 = vadd.f32 %v7820, %v8033
      %v8088 = vadd.f32 %v7821, %v8036
      %v8089 = vadd.f32 %v7822, %v8038
      %v8090 = vadd.f32 %v7823, %v8041
      %v8091 = vadd.f32 %v7824, %v8043
      %v8092 = vadd.f32 %v7825, %v8046
      %v8093 = vadd.f32 %v7826, %v8048
      %v8094 = vadd.f32 %v7827, %v8051
      %v8095 = vld [vmem:[%s6] sm:$0x1]
      %v8097 = vperm.slane %v8095, 0
      %v8099 = vmul.f32 %v8054, %v8097
      %v8100 = vmul.f32 %v8055, %v8097
      %v8101 = vmul.f32 %v8056, %v8097
      %v8102 = vmul.f32 %v8057, %v8097
      %v8103 = vmul.f32 %v8058, %v8097
      %v8104 = vmul.f32 %v8059, %v8097
      %v8105 = vmul.f32 %v8060, %v8097
      %v8106 = vmul.f32 %v8061, %v8097
      %v8107 = vmul.f32 %v8062, %v8097
      %v8108 = vmul.f32 %v8063, %v8097
      %v8109 = vmul.f32 %v8064, %v8097
      %v8110 = vmul.f32 %v8065, %v8097
      %v8111 = vmul.f32 %v8066, %v8097
      %v8112 = vmul.f32 %v8067, %v8097
      %v8113 = vmul.f32 %v8068, %v8097
      %v8114 = vmul.f32 %v8069, %v8097
      %v8115 = vmul.f32 %v8070, %v8097
      %v8116 = vmul.f32 %v8071, %v8097
      %v8117 = vmul.f32 %v8072, %v8097
      %v8118 = vmul.f32 %v8073, %v8097
      %v8119 = vmul.f32 %v8074, %v8097
      %v8120 = vmul.f32 %v8075, %v8097
      %v8121 = vmul.f32 %v8076, %v8097
      %v8122 = vmul.f32 %v8077, %v8097
      %v8123 = vmul.f32 %v8078, %v8097
      %v8124 = vmul.f32 %v8079, %v8097
      %v8125 = vmul.f32 %v8080, %v8097
      %v8126 = vmul.f32 %v8081, %v8097
      %v8127 = vmul.f32 %v8082, %v8097
      %v8128 = vmul.f32 %v8083, %v8097
      %v8129 = vmul.f32 %v8084, %v8097
      %v8130 = vmul.f32 %v8085, %v8097
      %v8131 = vmul.f32 %v8086, %v8097
      %v8132 = vmul.f32 %v8087, %v8097
      %v8133 = vmul.f32 %v8088, %v8097
      %v8134 = vmul.f32 %v8089, %v8097
      %v8135 = vmul.f32 %v8090, %v8097
      %v8136 = vmul.f32 %v8091, %v8097
      %v8137 = vmul.f32 %v8092, %v8097
      %v8138 = vmul.f32 %v8093, %v8097
      %v8139 = vmul.f32 %v8094, %v8097
      %v8140 = vld [vmem:[%s7] sm:$0x1]
      %v8142 = vperm.slane %v8140, 0
      %v8144 = vadd.f32 %v8099, %v8142
      %v8145 = vadd.f32 %v8100, %v8142
      %v8146 = vadd.f32 %v8101, %v8142
      %v8147 = vadd.f32 %v8102, %v8142
      %v8148 = vadd.f32 %v8103, %v8142
      %v8149 = vadd.f32 %v8104, %v8142
      %v8150 = vadd.f32 %v8105, %v8142
      %v8151 = vadd.f32 %v8106, %v8142
      %v8152 = vadd.f32 %v8107, %v8142
      %v8153 = vadd.f32 %v8108, %v8142
      %v8154 = vadd.f32 %v8109, %v8142
      %v8155 = vadd.f32 %v8110, %v8142
      %v8156 = vadd.f32 %v8111, %v8142
      %v8157 = vadd.f32 %v8112, %v8142
      %v8158 = vadd.f32 %v8113, %v8142
      %v8159 = vadd.f32 %v8114, %v8142
      %v8160 = vadd.f32 %v8115, %v8142
      %v8161 = vadd.f32 %v8116, %v8142
      %v8162 = vadd.f32 %v8117, %v8142
      %v8163 = vadd.f32 %v8118, %v8142
      %v8164 = vadd.f32 %v8119, %v8142
      %v8165 = vadd.f32 %v8120, %v8142
      %v8166 = vadd.f32 %v8121, %v8142
      %v8167 = vadd.f32 %v8122, %v8142
      %v8168 = vadd.f32 %v8123, %v8142
      %v8169 = vadd.f32 %v8124, %v8142
      %v8170 = vadd.f32 %v8125, %v8142
      %v8171 = vadd.f32 %v8126, %v8142
      %v8172 = vadd.f32 %v8127, %v8142
      %v8173 = vadd.f32 %v8128, %v8142
      %v8174 = vadd.f32 %v8129, %v8142
      %v8175 = vadd.f32 %v8130, %v8142
      %v8176 = vadd.f32 %v8131, %v8142
      %v8177 = vadd.f32 %v8132, %v8142
      %v8178 = vadd.f32 %v8133, %v8142
      %v8179 = vadd.f32 %v8134, %v8142
      %v8180 = vadd.f32 %v8135, %v8142
      %v8181 = vadd.f32 %v8136, %v8142
      %v8182 = vadd.f32 %v8137, %v8142
      %v8183 = vadd.f32 %v8138, %v8142
      %v8184 = vadd.f32 %v8139, %v8142
      %8185 = vst.msk [vmem:[#allocation3] sm:$0xff] %vm497, %v8144
      %8186 = vst.msk [vmem:[#allocation3 + $0x8] sm:$0xff] %vm497, %v8145
      %8187 = vst.msk [vmem:[#allocation3 + $0x10] sm:$0xff] %vm497, %v8146
      %8188 = vst.msk [vmem:[#allocation3 + $0x18] sm:$0xff] %vm497, %v8147
      %8189 = vst.msk [vmem:[#allocation3 + $0x20] sm:$0xff] %vm497, %v8148
      %8190 = vst.msk [vmem:[#allocation3 + $0x28] sm:$0xff] %vm497, %v8149
      %8191 = vst.msk [vmem:[#allocation3 + $0x30] sm:$0xff] %vm497, %v8150
      %8192 = vst.msk [vmem:[#allocation3 + $0x38] sm:$0xff] %vm497, %v8151
      %8193 = vst.msk [vmem:[#allocation3 + $0x40] sm:$0xff] %vm497, %v8152
      %8194 = vst.msk [vmem:[#allocation3 + $0x48] sm:$0xff] %vm497, %v8153
      %8195 = vst.msk [vmem:[#allocation3 + $0x50] sm:$0xff] %vm497, %v8154
      %8196 = vst.msk [vmem:[#allocation3 + $0x58] sm:$0xff] %vm497, %v8155
      %8197 = vst.msk [vmem:[#allocation3 + $0x60] sm:$0xff] %vm497, %v8156
      %8198 = vst.msk [vmem:[#allocation3 + $0x68] sm:$0xff] %vm497, %v8157
      %8199 = vst.msk [vmem:[#allocation3 + $0x70] sm:$0xff] %vm497, %v8158
      %8200 = vst.msk [vmem:[#allocation3 + $0x78] sm:$0xff] %vm497, %v8159
      %8201 = vst.msk [vmem:[#allocation3 + $0x80] sm:$0xff] %vm497, %v8160
      %8202 = vst.msk [vmem:[#allocation3 + $0x88] sm:$0xff] %vm497, %v8161
      %8203 = vst.msk [vmem:[#allocation3 + $0x90] sm:$0xff] %vm497, %v8162
      %8204 = vst.msk [vmem:[#allocation3 + $0x98] sm:$0xff] %vm497, %v8163
      %8205 = vst.msk [vmem:[#allocation3 + $0xa0] sm:$0xff] %vm497, %v8164
      %8206 = vst.msk [vmem:[#allocation3 + $0xa8] sm:$0xff] %vm497, %v8165
      %8207 = vst.msk [vmem:[#allocation3 + $0xb0] sm:$0xff] %vm497, %v8166
      %8208 = vst.msk [vmem:[#allocation3 + $0xb8] sm:$0xff] %vm497, %v8167
      %8209 = vst.msk [vmem:[#allocation3 + $0xc0] sm:$0xff] %vm497, %v8168
      %8210 = vst.msk [vmem:[#allocation3 + $0xc8] sm:$0xff] %vm497, %v8169
      %8211 = vst.msk [vmem:[#allocation3 + $0xd0] sm:$0xff] %vm497, %v8170
      %8212 = vst.msk [vmem:[#allocation3 + $0xd8] sm:$0xff] %vm497, %v8171
      %8213 = vst.msk [vmem:[#allocation3 + $0xe0] sm:$0xff] %vm497, %v8172
      %8214 = vst.msk [vmem:[#allocation3 + $0xe8] sm:$0xff] %vm497, %v8173
      %8215 = vst.msk [vmem:[#allocation3 + $0xf0] sm:$0xff] %vm497, %v8174
      %8216 = vst.msk [vmem:[#allocation3 + $0xf8] sm:$0xff] %vm497, %v8175
      %8217 = vst.msk [vmem:[#allocation3 + $0x100] sm:$0xff] %vm497, %v8176
      %8218 = vst.msk [vmem:[#allocation3 + $0x108] sm:$0xff] %vm497, %v8177
      %8219 = vst.msk [vmem:[#allocation3 + $0x110] sm:$0xff] %vm497, %v8178
      %8220 = vst.msk [vmem:[#allocation3 + $0x118] sm:$0xff] %vm497, %v8179
      %8221 = vst.msk [vmem:[#allocation3 + $0x120] sm:$0xff] %vm497, %v8180
      %8222 = vst.msk [vmem:[#allocation3 + $0x128] sm:$0xff] %vm497, %v8181
      %8223 = vst.msk [vmem:[#allocation3 + $0x130] sm:$0xff] %vm497, %v8182
      %8224 = vst.msk [vmem:[#allocation3 + $0x138] sm:$0xff] %vm497, %v8183
      %8225 = vst.msk [vmem:[#allocation3 + $0x140] sm:$0xf] %vm4291, %v8184
      %v8226 = vld [vmem:[%s300 + $0x18] sm:$0x8]
      %v8227 = vld [vmem:[%s300 + $0x1c] sm:$0xf]
      %v8228 = vld [vmem:[%s300 + $0x20] sm:$0xf]
      %v8229 = vunpack.c.l.bf16 %v8226
      %v8230 = vunpack.c.l.bf16 %v8227
      %v8231 = vunpack.c.l.bf16 %v8228
      %v8232 = vld [vmem:[#allocation3 + $0x13] sm:$0xff]
      %v8233 = vld [vmem:[#allocation3 + $0x1b] sm:$0xff]
      %vm8236 = vcmask 1046528
      %v8237 = vrot.slane %v8232, 1
      %v8238 = vrot.slane %v8233, 1
      %v8239 = vsel %vm8236, %v8237, %v8238
      %v8243 = vadd.f32 %v8229, %v8237
      %v8244 = vadd.f32 %v8230, %v8239
      %v8245 = vadd.f32 %v8231, %v8238
      %v8246 = vmax.f32 %v8243, 0.0
      %v8247 = vmax.f32 %v8244, 0.0
      %v8248 = vmax.f32 %v8245, 0.0
      %vm8249 = vcmask 64519
      %8250 = vst.msk [vmem:[%s305 - $0x7] sm:$0x80] %vm8249, %v8246
      %8251 = vst.msk [vmem:[%s305 + $0x1] sm:$0xff] %vm497, %v8247
      %vm8252 = vcmask 63488
      %8253 = vst.msk [vmem:[%s305 + $0x9] sm:$0x7f] %vm8252, %v8248
      %v8254 = vld [vmem:[%s300 + $0x24] sm:$0xf]
      %v8255 = vld [vmem:[%s300 + $0x28] sm:$0xf]
      %v8256 = vld [vmem:[%s300 + $0x2c] sm:$0x1]
      %v8257 = vunpack.c.l.bf16 %v8254
      %v8258 = vunpack.c.l.bf16 %v8255
      %v8259 = vunpack.c.l.bf16 %v8256
      %v8260 = vld [vmem:[#allocation3 + $0x25] sm:$0xff]
      %v8261 = vld [vmem:[#allocation3 + $0x2d] sm:$0xff]
      %vm8264 = vcmask 1040384
      %v8265 = vrot.slane %v8260, 7
      %v8266 = vrot.slane %v8261, 7
      %v8267 = vsel %vm8264, %v8265, %v8266
      %v8271 = vadd.f32 %v8257, %v8265
      %v8272 = vadd.f32 %v8258, %v8267
      %v8273 = vadd.f32 %v8259, %v8266
      %v8274 = vmax.f32 %v8271, 0.0
      %v8275 = vmax.f32 %v8272, 0.0
      %v8276 = vmax.f32 %v8273, 0.0
      %s8277 = scalar_lea.vmem %s305, 16
      %vm8278 = vcmask 64513
      %8279 = vst.msk [vmem:[%s8277 - $0x1] sm:$0xfe] %vm8278, %v8274
      %8280 = vst.msk [vmem:[%s8277 + $0x7] sm:$0xff] %vm497, %v8275
      %8281 = vst.msk [vmem:[%s8277 + $0xf] sm:$0x1] %vm4308, %v8276
      %v8282 = vld [vmem:[%s300 + $0x2c] sm:$0xe]
      %v8283 = vld [vmem:[%s300 + $0x30] sm:$0xf]
      %v8284 = vld [vmem:[%s300 + $0x34] sm:$0x3]
      %v8285 = vunpack.c.l.bf16 %v8282
      %v8286 = vunpack.c.l.bf16 %v8283
      %v8287 = vunpack.c.l.bf16 %v8284
      %v8288 = vld [vmem:[#allocation3 + $0x37] sm:$0xff]
      %v8289 = vld [vmem:[#allocation3 + $0x3f] sm:$0xff]
      %vm8292 = vcmask 1042432
      %v8293 = vrot.slane %v8288, 5
      %v8294 = vrot.slane %v8289, 5
      %v8295 = vsel %vm8292, %v8293, %v8294
      %v8299 = vadd.f32 %v8285, %v8293
      %v8300 = vadd.f32 %v8286, %v8295
      %v8301 = vadd.f32 %v8287, %v8294
      %v8302 = vmax.f32 %v8299, 0.0
      %v8303 = vmax.f32 %v8300, 0.0
      %v8304 = vmax.f32 %v8301, 0.0
      %s8305 = scalar_lea.vmem %s305, 32
      %vm8306 = vcmask 64515
      %8307 = vst.msk [vmem:[%s8305 - $0x3] sm:$0xf8] %vm8306, %v8302
      %8308 = vst.msk [vmem:[%s8305 + $0x5] sm:$0xff] %vm497, %v8303
      %vm8309 = vcmask 59392
      %8310 = vst.msk [vmem:[%s8305 + $0xd] sm:$0x7] %vm8309, %v8304
      %v8311 = vld [vmem:[%s300 + $0x34] sm:$0xc]
      %v8312 = vld [vmem:[%s300 + $0x38] sm:$0xf]
      %v8313 = vld [vmem:[%s300 + $0x3c] sm:$0x7]
      %v8314 = vunpack.c.l.bf16 %v8311
      %v8315 = vunpack.c.l.bf16 %v8312
      %v8316 = vunpack.c.l.bf16 %v8313
      %v8317 = vld [vmem:[#allocation3 + $0x49] sm:$0xff]
      %v8318 = vld [vmem:[#allocation3 + $0x51] sm:$0xff]
      %vm8321 = vcmask 1044480
      %v8322 = vrot.slane %v8317, 3
      %v8323 = vrot.slane %v8318, 3
      %v8324 = vsel %vm8321, %v8322, %v8323
      %v8328 = vadd.f32 %v8314, %v8322
      %v8329 = vadd.f32 %v8315, %v8324
      %v8330 = vadd.f32 %v8316, %v8323
      %v8331 = vmax.f32 %v8328, 0.0
      %v8332 = vmax.f32 %v8329, 0.0
      %v8333 = vmax.f32 %v8330, 0.0
      %s8334 = scalar_lea.vmem %s305, 48
      %vm8335 = vcmask 64517
      %8336 = vst.msk [vmem:[%s8334 - $0x5] sm:$0xe0] %vm8335, %v8331
      %8337 = vst.msk [vmem:[%s8334 + $0x3] sm:$0xff] %vm497, %v8332
      %vm8338 = vcmask 61440
      %8339 = vst.msk [vmem:[%s8334 + $0xb] sm:$0x1f] %vm8338, %v8333
      %v8340 = vld [vmem:[%s300 + $0x3c] sm:$0x8]
      %v8341 = vld [vmem:[%s300 + $0x40] sm:$0xf]
      %v8342 = vld [vmem:[%s300 + $0x44] sm:$0xf]
      %v8343 = vunpack.c.l.bf16 %v8340
      %v8344 = vunpack.c.l.bf16 %v8341
      %v8345 = vunpack.c.l.bf16 %v8342
      %v8346 = vld [vmem:[#allocation3 + $0x5b] sm:$0xff]
      %v8347 = vld [vmem:[#allocation3 + $0x63] sm:$0xff]
      %v8350 = vrot.slane %v8346, 1
      %v8351 = vrot.slane %v8347, 1
      %v8352 = vsel %vm8236, %v8350, %v8351
      %v8356 = vadd.f32 %v8343, %v8350
      %v8357 = vadd.f32 %v8344, %v8352
      %v8358 = vadd.f32 %v8345, %v8351
      %v8359 = vmax.f32 %v8356, 0.0
      %v8360 = vmax.f32 %v8357, 0.0
      %v8361 = vmax.f32 %v8358, 0.0
      %s8362 = scalar_lea.vmem %s305, 64
      %8363 = vst.msk [vmem:[%s8362 - $0x7] sm:$0x80] %vm8249, %v8359
      %8364 = vst.msk [vmem:[%s8362 + $0x1] sm:$0xff] %vm497, %v8360
      %8365 = vst.msk [vmem:[%s8362 + $0x9] sm:$0x7f] %vm8252, %v8361
      %v8366 = vld [vmem:[%s300 + $0x48] sm:$0xf]
      %v8367 = vld [vmem:[%s300 + $0x4c] sm:$0xf]
      %v8368 = vld [vmem:[%s300 + $0x50] sm:$0x1]
      %v8369 = vunpack.c.l.bf16 %v8366
      %v8370 = vunpack.c.l.bf16 %v8367
      %v8371 = vunpack.c.l.bf16 %v8368
      %v8372 = vld [vmem:[#allocation3 + $0x6d] sm:$0xff]
      %v8373 = vld [vmem:[#allocation3 + $0x75] sm:$0xff]
      %v8376 = vrot.slane %v8372, 7
      %v8377 = vrot.slane %v8373, 7
      %v8378 = vsel %vm8264, %v8376, %v8377
      %v8382 = vadd.f32 %v8369, %v8376
      %v8383 = vadd.f32 %v8370, %v8378
      %v8384 = vadd.f32 %v8371, %v8377
      %v8385 = vmax.f32 %v8382, 0.0
      %v8386 = vmax.f32 %v8383, 0.0
      %v8387 = vmax.f32 %v8384, 0.0
      %s8388 = scalar_lea.vmem %s305, 80
      %8389 = vst.msk [vmem:[%s8388 - $0x1] sm:$0xfe] %vm8278, %v8385
      %8390 = vst.msk [vmem:[%s8388 + $0x7] sm:$0xff] %vm497, %v8386
      %8391 = vst.msk [vmem:[%s8388 + $0xf] sm:$0x1] %vm4308, %v8387
      %v8392 = vld [vmem:[%s300 + $0x50] sm:$0xe]
      %v8393 = vld [vmem:[%s300 + $0x54] sm:$0xf]
      %v8394 = vld [vmem:[%s300 + $0x58] sm:$0x3]
      %v8395 = vunpack.c.l.bf16 %v8392
      %v8396 = vunpack.c.l.bf16 %v8393
      %v8397 = vunpack.c.l.bf16 %v8394
      %v8398 = vld [vmem:[#allocation3 + $0x7f] sm:$0xff]
      %v8399 = vld [vmem:[#allocation3 + $0x87] sm:$0xff]
      %v8402 = vrot.slane %v8398, 5
      %v8403 = vrot.slane %v8399, 5
      %v8404 = vsel %vm8292, %v8402, %v8403
      %v8408 = vadd.f32 %v8395, %v8402
      %v8409 = vadd.f32 %v8396, %v8404
      %v8410 = vadd.f32 %v8397, %v8403
      %v8411 = vmax.f32 %v8408, 0.0
      %v8412 = vmax.f32 %v8409, 0.0
      %v8413 = vmax.f32 %v8410, 0.0
      %s8414 = scalar_lea.vmem %s305, 96
      %8415 = vst.msk [vmem:[%s8414 - $0x3] sm:$0xf8] %vm8306, %v8411
      %8416 = vst.msk [vmem:[%s8414 + $0x5] sm:$0xff] %vm497, %v8412
      %8417 = vst.msk [vmem:[%s8414 + $0xd] sm:$0x7] %vm8309, %v8413
      %v8418 = vld [vmem:[%s300 + $0x58] sm:$0xc]
      %v8419 = vld [vmem:[%s300 + $0x5c] sm:$0xf]
      %v8420 = vld [vmem:[%s300 + $0x60] sm:$0x7]
      %v8421 = vunpack.c.l.bf16 %v8418
      %v8422 = vunpack.c.l.bf16 %v8419
      %v8423 = vunpack.c.l.bf16 %v8420
      %v8424 = vld [vmem:[#allocation3 + $0x91] sm:$0xff]
      %v8425 = vld [vmem:[#allocation3 + $0x99] sm:$0xff]
      %v8428 = vrot.slane %v8424, 3
      %v8429 = vrot.slane %v8425, 3
      %v8430 = vsel %vm8321, %v8428, %v8429
      %v8434 = vadd.f32 %v8421, %v8428
      %v8435 = vadd.f32 %v8422, %v8430
      %v8436 = vadd.f32 %v8423, %v8429
      %v8437 = vmax.f32 %v8434, 0.0
      %v8438 = vmax.f32 %v8435, 0.0
      %v8439 = vmax.f32 %v8436, 0.0
      %s8440 = scalar_lea.vmem %s305, 112
      %8441 = vst.msk [vmem:[%s8440 - $0x5] sm:$0xe0] %vm8335, %v8437
      %8442 = vst.msk [vmem:[%s8440 + $0x3] sm:$0xff] %vm497, %v8438
      %8443 = vst.msk [vmem:[%s8440 + $0xb] sm:$0x1f] %vm8338, %v8439
      %v8444 = vld [vmem:[%s300 + $0x60] sm:$0x8]
      %v8445 = vld [vmem:[%s300 + $0x64] sm:$0xf]
      %v8446 = vld [vmem:[%s300 + $0x68] sm:$0xf]
      %v8447 = vunpack.c.l.bf16 %v8444
      %v8448 = vunpack.c.l.bf16 %v8445
      %v8449 = vunpack.c.l.bf16 %v8446
      %v8450 = vld [vmem:[#allocation3 + $0xa3] sm:$0xff]
      %v8451 = vld [vmem:[#allocation3 + $0xab] sm:$0xff]
      %v8454 = vrot.slane %v8450, 1
      %v8455 = vrot.slane %v8451, 1
      %v8456 = vsel %vm8236, %v8454, %v8455
      %v8460 = vadd.f32 %v8447, %v8454
      %v8461 = vadd.f32 %v8448, %v8456
      %v8462 = vadd.f32 %v8449, %v8455
      %v8463 = vmax.f32 %v8460, 0.0
      %v8464 = vmax.f32 %v8461, 0.0
      %v8465 = vmax.f32 %v8462, 0.0
      %s8466 = scalar_lea.vmem %s305, 128
      %8467 = vst.msk [vmem:[%s8466 - $0x7] sm:$0x80] %vm8249, %v8463
      %8468 = vst.msk [vmem:[%s8466 + $0x1] sm:$0xff] %vm497, %v8464
      %8469 = vst.msk [vmem:[%s8466 + $0x9] sm:$0x7f] %vm8252, %v8465
      %v8470 = vld [vmem:[%s300 + $0x6c] sm:$0xf]
      %v8471 = vld [vmem:[%s300 + $0x70] sm:$0xf]
      %v8472 = vld [vmem:[%s300 + $0x74] sm:$0x1]
      %v8473 = vunpack.c.l.bf16 %v8470
      %v8474 = vunpack.c.l.bf16 %v8471
      %v8475 = vunpack.c.l.bf16 %v8472
      %v8476 = vld [vmem:[#allocation3 + $0xb5] sm:$0xff]
      %v8477 = vld [vmem:[#allocation3 + $0xbd] sm:$0xff]
      %v8480 = vrot.slane %v8476, 7
      %v8481 = vrot.slane %v8477, 7
      %v8482 = vsel %vm8264, %v8480, %v8481
      %v8486 = vadd.f32 %v8473, %v8480
      %v8487 = vadd.f32 %v8474, %v8482
      %v8488 = vadd.f32 %v8475, %v8481
      %v8489 = vmax.f32 %v8486, 0.0
      %v8490 = vmax.f32 %v8487, 0.0
      %v8491 = vmax.f32 %v8488, 0.0
      %s8492 = scalar_lea.vmem %s305, 144
      %8493 = vst.msk [vmem:[%s8492 - $0x1] sm:$0xfe] %vm8278, %v8489
      %8494 = vst.msk [vmem:[%s8492 + $0x7] sm:$0xff] %vm497, %v8490
      %8495 = vst.msk [vmem:[%s8492 + $0xf] sm:$0x1] %vm4308, %v8491
      %v8496 = vld [vmem:[%s300 + $0x74] sm:$0xe]
      %v8497 = vld [vmem:[%s300 + $0x78] sm:$0xf]
      %v8498 = vld [vmem:[%s300 + $0x7c] sm:$0x3]
      %v8499 = vunpack.c.l.bf16 %v8496
      %v8500 = vunpack.c.l.bf16 %v8497
      %v8501 = vunpack.c.l.bf16 %v8498
      %v8502 = vld [vmem:[#allocation3 + $0xc7] sm:$0xff]
      %v8503 = vld [vmem:[#allocation3 + $0xcf] sm:$0xff]
      %v8506 = vrot.slane %v8502, 5
      %v8507 = vrot.slane %v8503, 5
      %v8508 = vsel %vm8292, %v8506, %v8507
      %v8512 = vadd.f32 %v8499, %v8506
      %v8513 = vadd.f32 %v8500, %v8508
      %v8514 = vadd.f32 %v8501, %v8507
      %v8515 = vmax.f32 %v8512, 0.0
      %v8516 = vmax.f32 %v8513, 0.0
      %v8517 = vmax.f32 %v8514, 0.0
      %s8518 = scalar_lea.vmem %s305, 160
      %8519 = vst.msk [vmem:[%s8518 - $0x3] sm:$0xf8] %vm8306, %v8515
      %8520 = vst.msk [vmem:[%s8518 + $0x5] sm:$0xff] %vm497, %v8516
      %8521 = vst.msk [vmem:[%s8518 + $0xd] sm:$0x7] %vm8309, %v8517
      %v8522 = vld [vmem:[%s300 + $0x7c] sm:$0xc]
      %v8523 = vld [vmem:[%s300 + $0x80] sm:$0xf]
      %v8524 = vld [vmem:[%s300 + $0x84] sm:$0x7]
      %v8525 = vunpack.c.l.bf16 %v8522
      %v8526 = vunpack.c.l.bf16 %v8523
      %v8527 = vunpack.c.l.bf16 %v8524
      %v8528 = vld [vmem:[#allocation3 + $0xd9] sm:$0xff]
      %v8529 = vld [vmem:[#allocation3 + $0xe1] sm:$0xff]
      %v8532 = vrot.slane %v8528, 3
      %v8533 = vrot.slane %v8529, 3
      %v8534 = vsel %vm8321, %v8532, %v8533
      %v8538 = vadd.f32 %v8525, %v8532
      %v8539 = vadd.f32 %v8526, %v8534
      %v8540 = vadd.f32 %v8527, %v8533
      %v8541 = vmax.f32 %v8538, 0.0
      %v8542 = vmax.f32 %v8539, 0.0
      %v8543 = vmax.f32 %v8540, 0.0
      %s8544 = scalar_lea.vmem %s305, 176
      %8545 = vst.msk [vmem:[%s8544 - $0x5] sm:$0xe0] %vm8335, %v8541
      %8546 = vst.msk [vmem:[%s8544 + $0x3] sm:$0xff] %vm497, %v8542
      %8547 = vst.msk [vmem:[%s8544 + $0xb] sm:$0x1f] %vm8338, %v8543
      %v8548 = vld [vmem:[%s300 + $0x84] sm:$0x8]
      %v8549 = vld [vmem:[%s300 + $0x88] sm:$0xf]
      %v8550 = vld [vmem:[%s300 + $0x8c] sm:$0xf]
      %v8551 = vunpack.c.l.bf16 %v8548
      %v8552 = vunpack.c.l.bf16 %v8549
      %v8553 = vunpack.c.l.bf16 %v8550
      %v8554 = vld [vmem:[#allocation3 + $0xeb] sm:$0xff]
      %v8555 = vld [vmem:[#allocation3 + $0xf3] sm:$0xff]
      %v8558 = vrot.slane %v8554, 1
      %v8559 = vrot.slane %v8555, 1
      %v8560 = vsel %vm8236, %v8558, %v8559
      %v8564 = vadd.f32 %v8551, %v8558
      %v8565 = vadd.f32 %v8552, %v8560
      %v8566 = vadd.f32 %v8553, %v8559
      %v8567 = vmax.f32 %v8564, 0.0
      %v8568 = vmax.f32 %v8565, 0.0
      %v8569 = vmax.f32 %v8566, 0.0
      %s8570 = scalar_lea.vmem %s305, 192
      %8571 = vst.msk [vmem:[%s8570 - $0x7] sm:$0x80] %vm8249, %v8567
      %8572 = vst.msk [vmem:[%s8570 + $0x1] sm:$0xff] %vm497, %v8568
      %8573 = vst.msk [vmem:[%s8570 + $0x9] sm:$0x7f] %vm8252, %v8569
      %v8574 = vld [vmem:[%s300 + $0x90] sm:$0xf]
      %v8575 = vld [vmem:[%s300 + $0x94] sm:$0xf]
      %v8576 = vld [vmem:[%s300 + $0x98] sm:$0x1]
      %v8577 = vunpack.c.l.bf16 %v8574
      %v8578 = vunpack.c.l.bf16 %v8575
      %v8579 = vunpack.c.l.bf16 %v8576
      %v8580 = vld [vmem:[#allocation3 + $0xfd] sm:$0xff]
      %v8581 = vld [vmem:[#allocation3 + $0x105] sm:$0xff]
      %v8584 = vrot.slane %v8580, 7
      %v8585 = vrot.slane %v8581, 7
      %v8586 = vsel %vm8264, %v8584, %v8585
      %v8590 = vadd.f32 %v8577, %v8584
      %v8591 = vadd.f32 %v8578, %v8586
      %v8592 = vadd.f32 %v8579, %v8585
      %v8593 = vmax.f32 %v8590, 0.0
      %v8594 = vmax.f32 %v8591, 0.0
      %v8595 = vmax.f32 %v8592, 0.0
      %s8596 = scalar_lea.vmem %s305, 208
      %8597 = vst.msk [vmem:[%s8596 - $0x1] sm:$0xfe] %vm8278, %v8593
      %8598 = vst.msk [vmem:[%s8596 + $0x7] sm:$0xff] %vm497, %v8594
      %8599 = vst.msk [vmem:[%s8596 + $0xf] sm:$0x1] %vm4308, %v8595
      %v8600 = vld [vmem:[%s300 + $0x98] sm:$0xe]
      %v8601 = vld [vmem:[%s300 + $0x9c] sm:$0xf]
      %v8602 = vld [vmem:[%s300 + $0xa0] sm:$0x3]
      %v8603 = vunpack.c.l.bf16 %v8600
      %v8604 = vunpack.c.l.bf16 %v8601
      %v8605 = vunpack.c.l.bf16 %v8602
      %v8606 = vld [vmem:[#allocation3 + $0x10f] sm:$0xff]
      %v8607 = vld [vmem:[#allocation3 + $0x117] sm:$0xff]
      %v8610 = vrot.slane %v8606, 5
      %v8611 = vrot.slane %v8607, 5
      %v8612 = vsel %vm8292, %v8610, %v8611
      %v8616 = vadd.f32 %v8603, %v8610
      %v8617 = vadd.f32 %v8604, %v8612
      %v8618 = vadd.f32 %v8605, %v8611
      %v8619 = vmax.f32 %v8616, 0.0
      %v8620 = vmax.f32 %v8617, 0.0
      %v8621 = vmax.f32 %v8618, 0.0
      %s8622 = scalar_lea.vmem %s305, 224
      %8623 = vst.msk [vmem:[%s8622 - $0x3] sm:$0xf8] %vm8306, %v8619
      %8624 = vst.msk [vmem:[%s8622 + $0x5] sm:$0xff] %vm497, %v8620
      %8625 = vst.msk [vmem:[%s8622 + $0xd] sm:$0x7] %vm8309, %v8621
      %v8626 = vld [vmem:[%s300 + $0xa0] sm:$0xc]
      %v8627 = vld [vmem:[%s300 + $0xa4] sm:$0xf]
      %v8628 = vld [vmem:[%s300 + $0xa8] sm:$0x7]
      %v8629 = vunpack.c.l.bf16 %v8626
      %v8630 = vunpack.c.l.bf16 %v8627
      %v8631 = vunpack.c.l.bf16 %v8628
      %v8632 = vld [vmem:[#allocation3 + $0x121] sm:$0xff]
      %v8633 = vld [vmem:[#allocation3 + $0x129] sm:$0xff]
      %v8636 = vrot.slane %v8632, 3
      %v8637 = vrot.slane %v8633, 3
      %v8638 = vsel %vm8321, %v8636, %v8637
      %v8642 = vadd.f32 %v8629, %v8636
      %v8643 = vadd.f32 %v8630, %v8638
      %v8644 = vadd.f32 %v8631, %v8637
      %v8645 = vmax.f32 %v8642, 0.0
      %v8646 = vmax.f32 %v8643, 0.0
      %v8647 = vmax.f32 %v8644, 0.0
      %s8648 = scalar_lea.vmem %s305, 240
      %8649 = vst.msk [vmem:[%s8648 - $0x5] sm:$0xe0] %vm8335, %v8645
      %8650 = vst.msk [vmem:[%s8648 + $0x3] sm:$0xff] %vm497, %v8646
      %8651 = vst.msk [vmem:[%s8648 + $0xb] sm:$0x1f] %vm8338, %v8647
      %p8652 = scmp.lt.s32.totalorder %s19, 1
      %s8653 = scalar_select %p8652, %s19, 1
      %s8654 = smul.addr %s8653, 32
      %s8655 = smul.addr %s8654, 8
      %s8656 = scalar_lea.vmem %s8, %s8655
      // Predicated region
      $region53: #{tpu_custom_call.1} parent=51 // pred_check
        %p8657 = pneg %p210
      $region54: #{tpu_custom_call.1} parent=51 // pred_check_branch
        %8659 = sbr.rel (%p8657) target = $region56
      $region55: #{tpu_custom_call.1} parent=51 // pred_region
        _
      $region56: #{tpu_custom_call.1} parent=51 // pred_fallthru
        _
    $region52: #{tpu_custom_call.1} parent=5 // pred_fallthru
      _
    %p8660 = scmp.le.s32.totalorder 2, %s14
    // Predicated region
    $region57: #{tpu_custom_call.1} parent=5 // pred_check
      %p8661 = pneg %p8660
    $region58: #{tpu_custom_call.1} parent=5 // pred_check_branch
      %8663 = sbr.rel (%p8661) target = $region60
    $region59: #{tpu_custom_call.1} parent=5 // pred_region
      %s8664 = ssub.s32 %s14, 2
      // Predicated region
      $region61: #{tpu_custom_call.1} parent=59 // pred_check
        %p8665 = pneg %p216
      $region62: #{tpu_custom_call.1} parent=59 // pred_check_branch
        %8667 = sbr.rel (%p8665) target = $region64
      $region63: #{tpu_custom_call.1} parent=59 // pred_region
        %p8668 = scmp.lt.s32.totalorder %s20, 1
        %s8669 = scalar_select %p8668, %s20, 1
        %s8670 = smul.addr %s8669, 32
        %s8671 = smul.addr %s8670, 8
        %s8672 = scalar_lea.vmem %s8, %s8671
      $region64: #{tpu_custom_call.1} parent=59 // pred_fallthru
        _
    $region60: #{tpu_custom_call.1} parent=5 // pred_fallthru
      _
  $region6: #{tpu_custom_call.1} parent=0 // loop_footer
    %s18 = sadd.s32 1, %s14
  $region7: #{tpu_custom_call.1} parent=0 // loop_footer_branch
    %13 = sbr.rel target = $region3
  $region8: #{tpu_custom_call.1} parent=0 // loop_exit
    _

</llo_original>
